<compile_context>
chip_gen: v6e
topology: v6e:2x2x1
jax: 0.10.0
libtpu: 0.0.40
codegen_flags: <defaults>
</compile_context>

<pallas_src>
import functools

import jax
import jax.numpy as jnp
from jax.experimental import pallas as pl
from jax.experimental.pallas import tpu as pltpu

nc = 1
ngf = 64
nz = 128
BN_EPS = 1e-5

_MAX_TM = 512     # row tile (pixel-dimension rows)
_MAX_TN = 1024    # column tile (only layer 1 is wider than this)


# ----------------------------------------------------------------------------
# Pallas kernel: one (tm, tn) tile of  out = act((X @ W) * scale + shift)
# X/W are bf16, accumulation and the BN/activation epilogue are f32.
# ----------------------------------------------------------------------------
def _fused_matmul_kernel(*refs, act, affine):
    if affine:
        x_ref, w_ref, ss_ref, o_ref = refs
    else:
        x_ref, w_ref, o_ref = refs
    y = jnp.dot(x_ref[0], w_ref[0], preferred_element_type=jnp.float32)
    if affine:
        y = y * ss_ref[0:1, :] + ss_ref[1:2, :]
    if act == "relu":
        y = jnp.maximum(y, 0.0)
    elif act == "tanh":
        y = jnp.tanh(y)
    o_ref[0] = y.astype(o_ref.dtype)


def fused_matmul(x, w, ss=None, *, act="none", out_dtype=jnp.bfloat16):
    """x: (G, M, K) bf16, w: (G, K, Nout) bf16, ss: (2, Nout) f32 or None.

    Returns (G, M, Nout).  Grid = (G, M//tm, Nout//tn), all axes parallel
    (K is never gridded, so no reduction axis).  M must already be padded
    (see _padded_rows)."""
    G, M, K = x.shape
    _, _, Nout = w.shape
    affine = ss is not None

    tm = min(_MAX_TM, M)
    tn = min(_MAX_TN, Nout)
    assert M % tm == 0 and Nout % tn == 0 and tm % 8 == 0

    in_specs = [
        pl.BlockSpec((1, tm, K), lambda g, i, j: (g, i, 0)),   # X row tile
        pl.BlockSpec((1, K, tn), lambda g, i, j: (g, 0, j)),   # W column tile
    ]
    args = [x, w]
    if affine:
        in_specs.append(pl.BlockSpec((2, tn), lambda g, i, j: (0, j)))
        args.append(ss.astype(jnp.float32))

    return pl.pallas_call(
        functools.partial(_fused_matmul_kernel, act=act, affine=affine),
        out_shape=jax.ShapeDtypeStruct((G, M, Nout), out_dtype),
        grid_spec=pltpu.PrefetchScalarGridSpec(
            num_scalar_prefetch=0,
            grid=(G, M // tm, Nout // tn),
            in_specs=in_specs,
            out_specs=pl.BlockSpec((1, tm, tn), lambda g, i, j: (g, i, j)),
        ),
        compiler_params=pltpu.CompilerParams(
            dimension_semantics=("parallel", "parallel", "parallel"),
            vmem_limit_bytes=32 * 1024 * 1024,
        ),
    )(*args)


# ----------------------------------------------------------------------------
# Small helpers (row padding, BN folding, weight / patch reshaping)
# ----------------------------------------------------------------------------
def _round_up(x, m):
    return ((x + m - 1) // m) * m


def _padded_rows(m):
    mp = _round_up(m, 128)
    if mp > _MAX_TM:
        mp = _round_up(m, _MAX_TM)
    return mp


def bn_fold(gamma, beta, mean, var, eps=BN_EPS):
    scale = gamma / jnp.sqrt(var + eps)
    shift = beta - mean * scale
    return jnp.stack([scale, shift], axis=0)            # (2, C) f32


def convt1_weight(wt):
    """ConvT(nz,Cout,4,1,0) weight (nz, Cout, 4, 4) -> (1, nz, 16*Cout) with
    columns ordered (y, x, co) so the matmul output is NHWC directly."""
    cin, cout = wt.shape[0], wt.shape[1]
    w = wt.transpose(0, 2, 3, 1).reshape(cin, 16 * cout)
    return w[None].astype(jnp.bfloat16)


def convt_s2_parity_weights(wt, cout_pad=None):
    """ConvT(Cin,Cout,4,2,1) weight (Cin, Cout, 4, 4) -> (4, 4*Cin, Cout_pad).

    Parity g = py*2 + px; rows ordered (dy, dx, ci); the 2x2 sub-kernel is
    W[ci, co, (3-py)-2*dy, (3-px)-2*dx]."""
    cin, cout = wt.shape[0], wt.shape[1]
    cp = cout if cout_pad is None else cout_pad
    mats = []
    for py in range(2):
        for px in range(2):
            sub = wt[:, :, (3 - py)::-2, (3 - px)::-2]   # (Cin, Cout, dy, dx)
            sub = sub.transpose(2, 3, 0, 1).reshape(4 * cin, cout)
            if cp != cout:
                sub = jnp.pad(sub, ((0, 0), (0, cp - cout)))
            mats.append(sub)
    return jnp.stack(mats, axis=0).astype(jnp.bfloat16)


def convt_s2_parity_patches(x):
    """NHWC x (N,H,W,C) -> parity patch matrices (4, N*H*W, 4*C), bf16.

    P[py*2+px, (n,a,b), (dy,dx,ci)] = xpad[n, a+py+dy, b+px+dx, ci]."""
    N, H, W, C = x.shape
    xp = jnp.pad(x, ((0, 0), (1, 1), (1, 1), (0, 0)))
    mats = []
    for py in range(2):
        for px in range(2):
            taps = [xp[:, py + dy:py + dy + H, px + dx:px + dx + W, :]
                    for dy in range(2) for dx in range(2)]
            mats.append(jnp.concatenate(taps, axis=-1).reshape(N * H * W, 4 * C))
    return jnp.stack(mats, axis=0)


def parity_interleave(y, N, H, W):
    """(4, M_pad, C) parity-planar rows (n,a,b) -> interleaved NHWC (N,2H,2W,C)."""
    C = y.shape[-1]
    y = y[:, :N * H * W, :].reshape(2, 2, N, H, W, C)     # (py, px, n, a, b, c)
    y = y.transpose(2, 3, 0, 4, 1, 5)                     # (n, a, py, b, px, c)
    return y.reshape(N, 2 * H, 2 * W, C)


# ----------------------------------------------------------------------------
# Layers
# ----------------------------------------------------------------------------
def layer1_convt_bn_relu(z, w1, ss1):
    """ConvT(nz, 256, 4, 1, 0) on a 1x1 input is a matmul; output is NHWC."""
    N = z.shape[0]
    x = z.reshape(N, nz).astype(jnp.bfloat16)
    Mp = _padded_rows(N)
    if Mp != N:
        x = jnp.pad(x, ((0, Mp - N), (0, 0)))
    w = convt1_weight(w1)                                  # (1, nz, 4096)
    ss = jnp.tile(ss1, (1, 16))                            # per-(y,x,co) column
    y = fused_matmul(x[None], w, ss, act="relu")           # (1, Mp, 4096) bf16
    return y[0, :N].reshape(N, 4, 4, ngf * 4)              # NHWC


def convt_s2_bn_relu(x, wt, ss, *, cout_pad=None):
    """ConvT(Cin, Cout, 4, 2, 1) + BN + ReLU, sub-pixel (parity) form."""
    N, H, W, _ = x.shape
    P = convt_s2_parity_patches(x)                         # (4, N*H*W, 4Cin)
    M = N * H * W
    Mp = _padded_rows(M)
    if Mp != M:
        P = jnp.pad(P, ((0, 0), (0, Mp - M), (0, 0)))
    Wp = convt_s2_parity_weights(wt, cout_pad)             # (4, 4Cin, Cp)
    Cp = Wp.shape[-1]
    if Cp != ss.shape[-1]:
        pad = Cp - ss.shape[-1]
        ss = jnp.concatenate(
            [ss, jnp.stack([jnp.ones((pad,), jnp.float32),
                            jnp.zeros((pad,), jnp.float32)])], axis=-1)
    y = fused_matmul(P, Wp, ss, act="relu")                # (4, Mp, Cp) bf16
    return parity_interleave(y, N, H, W)                   # (N, 2H, 2W, Cp)


def convt_s2_tanh_final(x, wt):
    """Last layer ConvT(64, 1, 4, 2, 1) + Tanh in the col2im direction:
    rows = input pixels, cols = the 16 kernel taps (no patch matrix, no
    identity affine).  The tiny overlap-add + tanh runs in plain JAX."""
    N, H, W, Cp = x.shape
    cin = wt.shape[0]
    w = wt[:, 0].reshape(cin, 16)                          # tap k = ky*4 + kx
    if Cp != cin:                                          # padded channels are 0
        w = jnp.pad(w, ((0, Cp - cin), (0, 0)))
    w = w[None].astype(jnp.bfloat16)                       # (1, Cp, 16)

    M = N * H * W
    Mp = _padded_rows(M)
    xf = x.reshape(1, M, Cp)
    if Mp != M:
        xf = jnp.pad(xf, ((0, 0), (0, Mp - M), (0, 0)))
    y = fused_matmul(xf, w, None, act="none", out_dtype=jnp.float32)
    y = y[0, :M].reshape(N, H, W, 16)

    # col2im overlap-add: out[n, 2a+py, 2b+px] gets taps ((3-py)-2dy, (3-px)-2dx)
    yp = jnp.pad(y, ((0, 0), (1, 1), (1, 1), (0, 0)))
    planes = []
    for py in range(2):
        for px in range(2):
            acc = jnp.zeros((N, H, W), jnp.float32)
            for dy in range(2):
                for dx in range(2):
                    k = ((3 - py) - 2 * dy) * 4 + ((3 - px) - 2 * dx)
                    acc = acc + yp[:, py + dy:py + dy + H, px + dx:px + dx + W, k]
            planes.append(acc)
    img = jnp.stack(planes, axis=0).reshape(2, 2, N, H, W)  # (py, px, n, a, b)
    img = img.transpose(2, 3, 0, 4, 1).reshape(N, 2 * H, 2 * W)
    return jnp.tanh(img)                                    # (N, 32, 32) f32


# ----------------------------------------------------------------------------
# Parameters (deterministic, DCGAN-style init; PyTorch ConvT weight layout)
# ----------------------------------------------------------------------------
def init_params(key):
    ks = jax.random.split(key, 8)
    p = {}
    p["w1"] = 0.02 * jax.random.normal(ks[0], (nz, ngf * 4, 4, 4), jnp.float32)
    p["w2"] = 0.02 * jax.random.normal(ks[1], (ngf * 4, ngf * 2, 4, 4), jnp.float32)
    p["w3"] = 0.02 * jax.random.normal(ks[2], (ngf * 2, ngf, 4, 4), jnp.float32)
    p["w4"] = 0.02 * jax.random.normal(ks[3], (ngf, nc, 4, 4), jnp.float32)
    for idx, ch, k in ((1, ngf * 4, ks[4]), (2, ngf * 2, ks[5]), (3, ngf, ks[6])):
        p[f"g{idx}"] = 1.0 + 0.02 * jax.random.normal(k, (ch,), jnp.float32)
        p[f"b{idx}"] = jnp.zeros((ch,), jnp.float32)
        p[f"m{idx}"] = jnp.zeros((ch,), jnp.float32)
        p[f"v{idx}"] = jnp.ones((ch,), jnp.float32)
    return p


# ----------------------------------------------------------------------------
# Generator forward (Pallas path)
# ----------------------------------------------------------------------------
def generator_forward(z, params):
    N = z.shape[0]
    assert N % 3 == 0, "batch must be a multiple of 3 (final reshape(-1,3,32,32))"

    ss1 = bn_fold(params["g1"], params["b1"], params["m1"], params["v1"])
    ss2 = bn_fold(params["g2"], params["b2"], params["m2"], params["v2"])
    ss3 = bn_fold(params["g3"], params["b3"], params["m3"], params["v3"])

    # layer 1: ConvT(nz, 256, 4, 1, 0) + BN + ReLU    -> (N, 4, 4, 256) NHWC
    x = layer1_convt_bn_relu(z, params["w1"], ss1)

    # layer 2: ConvT(256, 128, 4, 2, 1) + BN + ReLU   -> (N, 8, 8, 128)
    x = convt_s2_bn_relu(x, params["w2"], ss2)

    # layer 3: ConvT(128, 64, 4, 2, 1) + BN + ReLU; Cout padded 64->128 for
    # lane-dense stores (padded channels stay exactly zero) -> (N, 16, 16, 128)
    x = convt_s2_bn_relu(x, params["w3"], ss3, cout_pad=128)

    # layer 4: ConvT(64, 1, 4, 2, 1) + Tanh           -> (N, 32, 32)
    img = convt_s2_tanh_final(x, params["w4"])

    return img.reshape(-1, 3, 32, 32)


# ----------------------------------------------------------------------------
# Pure-JAX (f32, XLA conv) reference — used only for the in-script check.
# ----------------------------------------------------------------------------
def _convt_ref(x_nhwc, w_pt, stride, pad):
    k = w_pt.shape[2]
    # PyTorch ConvTranspose2d == lhs-dilated conv with spatially flipped
    # kernel and (k-1-p) padding; kernel to HWIO with I=Cin, O=Cout.
    wf = jnp.flip(w_pt, axis=(2, 3)).transpose(2, 3, 0, 1)
    return jax.lax.conv_general_dilated(
        x_nhwc, wf, window_strides=(1, 1),
        padding=[(k - 1 - pad, k - 1 - pad)] * 2,
        lhs_dilation=(stride, stride),
        dimension_numbers=("NHWC", "HWIO", "NHWC"))


def generator_reference(z, params):
    def bn_relu(y, i):
        s = params[f"g{i}"] / jnp.sqrt(params[f"v{i}"] + BN_EPS)
        return jnp.maximum(y * s + (params[f"b{i}"] - params[f"m{i}"] * s), 0.0)

    x = jnp.transpose(z, (0, 2, 3, 1)).astype(jnp.float32)   # (N, 1, 1, nz)
    x = bn_relu(_convt_ref(x, params["w1"], 1, 0), 1)
    x = bn_relu(_convt_ref(x, params["w2"], 2, 1), 2)
    x = bn_relu(_convt_ref(x, params["w3"], 2, 1), 3)
    x = jnp.tanh(_convt_ref(x, params["w4"], 2, 1))          # (N, 32, 32, 1)
    return x[..., 0].reshape(-1, 3, 32, 32)


if __name__ == "__main__":
    key = jax.random.PRNGKey(0)
    pkey, zkey = jax.random.split(key)
    params = init_params(pkey)

    # batch must be a multiple of 3 because of the final reshape(-1, 3, 32, 32)
    batch = 6
    z = jax.random.normal(zkey, (batch, nz, 1, 1), jnp.float32)

    out = jax.jit(generator_forward)(z, params)
    out = jax.block_until_ready(out)

    assert out.shape == (batch // 3, 3, 32, 32), out.shape
    assert bool(jnp.all(jnp.isfinite(out)))
    assert bool(jnp.all(jnp.abs(out) <= 1.0 + 1e-6))          # tanh range

    # Correctness vs. a pure-JAX f32 reference (bf16 MXU path -> loose tol).
    ref = jax.block_until_ready(jax.jit(generator_reference)(z, params))
    max_err = float(jnp.max(jnp.abs(out - ref)))
    assert max_err < 2e-2, f"max abs err vs reference = {max_err}"

    print("KERNEL_OK")
</pallas_src>

<mosaic_0001>
module attributes {stable_mosaic.version = 11 : i64} {
  func.func @_fused_matmul_kernel(%arg0: i32, %arg1: i32, %arg2: i32, %arg3: memref<1x128x128xbf16, #tpu.memory_space<vmem>>, %arg4: memref<1x128x1024xbf16, #tpu.memory_space<vmem>>, %arg5: memref<2x1024xf32, #tpu.memory_space<vmem>>, %arg6: memref<1x128x1024xbf16, #tpu.memory_space<vmem>>) attributes {dimension_semantics = [#tpu.dimension_semantics<parallel>, #tpu.dimension_semantics<parallel>, #tpu.dimension_semantics<parallel>], iteration_bounds = array<i64: 1, 1, 4>, scalar_prefetch = 0 : i64, scratch_operands = 0 : i64, tpu.core_type = #tpu.core_type<tc>, window_params = [{transform_indices = @transform_0, window_bounds = array<i64: 1, 128, 128>}, {transform_indices = @transform_1, window_bounds = array<i64: 1, 128, 1024>}, {transform_indices = @transform_2, window_bounds = array<i64: 2, 1024>}, {transform_indices = @transform_3, window_bounds = array<i64: 1, 128, 1024>}]} {
    %c0 = arith.constant 0 : index
    %c0_0 = arith.constant 0 : index
    %c0_1 = arith.constant 0 : index
    %0 = vector.load %arg3[%c0, %c0_0, %c0_1] : memref<1x128x128xbf16, #tpu.memory_space<vmem>>, vector<1x128x128xbf16>
    %1 = vector.shape_cast %0 : vector<1x128x128xbf16> to vector<128x128xbf16>
    %c0_2 = arith.constant 0 : index
    %c0_3 = arith.constant 0 : index
    %c0_4 = arith.constant 0 : index
    %2 = vector.load %arg4[%c0_2, %c0_3, %c0_4] : memref<1x128x1024xbf16, #tpu.memory_space<vmem>>, vector<1x128x1024xbf16>
    %3 = vector.shape_cast %2 : vector<1x128x1024xbf16> to vector<128x1024xbf16>
    %cst = arith.constant dense<0.000000e+00> : vector<128x1024xf32>
    %4 = tpu.matmul %1, %3, %cst {dimension_numbers = #tpu.dot_dimension_numbers<[1], [0], [0], [1], [0, 0, 1, 1], [], []>} : vector<128x128xbf16>, vector<128x1024xbf16>, vector<128x1024xf32> -> vector<128x1024xf32>
    %c0_5 = arith.constant 0 : index
    %c0_6 = arith.constant 0 : index
    %5 = vector.load %arg5[%c0_5, %c0_6] : memref<2x1024xf32, #tpu.memory_space<vmem>>, vector<1x1024xf32>
    %6 = vector.broadcast %5 : vector<1x1024xf32> to vector<128x1024xf32>
    %7 = arith.mulf %4, %6 : vector<128x1024xf32>
    %c1 = arith.constant 1 : index
    %c0_7 = arith.constant 0 : index
    %8 = vector.load %arg5[%c1, %c0_7] : memref<2x1024xf32, #tpu.memory_space<vmem>>, vector<1x1024xf32>
    %9 = vector.broadcast %8 : vector<1x1024xf32> to vector<128x1024xf32>
    %10 = arith.addf %7, %9 : vector<128x1024xf32>
    %cst_8 = arith.constant 0.000000e+00 : f32
    %11 = vector.broadcast %cst_8 : f32 to vector<128x1024xf32>
    %12 = arith.maximumf %10, %11 : vector<128x1024xf32>
    %13 = arith.truncf %12 : vector<128x1024xf32> to vector<128x1024xbf16>
    %c0_9 = arith.constant 0 : index
    %c0_10 = arith.constant 0 : index
    %c0_11 = arith.constant 0 : index
    %14 = vector.load %arg6[%c0_9, %c0_10, %c0_11] : memref<1x128x1024xbf16, #tpu.memory_space<vmem>>, vector<1x128x1024xbf16>
    %15 = vector.shape_cast %14 : vector<1x128x1024xbf16> to vector<128x1024xbf16>
    %16 = vector.shape_cast %13 : vector<128x1024xbf16> to vector<1x128x1024xbf16>
    tpu.vector_store %arg6[%c0_9, %c0_10, %c0_11], %16 {strides = array<i32>} : memref<1x128x1024xbf16, #tpu.memory_space<vmem>>, vector<1x128x1024xbf16>,
    return
  }
  func.func @transform_0(%arg0: i32, %arg1: i32, %arg2: i32) -> (i32, i32, i32) {
    %c0_i32 = arith.constant 0 : i32
    %c0_i32_0 = arith.constant 0 : i32
    return %arg0, %arg1, %c0_i32 : i32, i32, i32
  }
  func.func @transform_1(%arg0: i32, %arg1: i32, %arg2: i32) -> (i32, i32, i32) {
    %c0_i32 = arith.constant 0 : i32
    %c0_i32_0 = arith.constant 0 : i32
    return %arg0, %c0_i32, %arg2 : i32, i32, i32
  }
  func.func @transform_2(%arg0: i32, %arg1: i32, %arg2: i32) -> (i32, i32) {
    %c0_i32 = arith.constant 0 : i32
    %c0_i32_0 = arith.constant 0 : i32
    return %c0_i32, %arg2 : i32, i32
  }
  func.func @transform_3(%arg0: i32, %arg1: i32, %arg2: i32) -> (i32, i32, i32) {
    %c0_i32 = arith.constant 0 : i32
    return %arg0, %arg1, %arg2 : i32, i32, i32
  }
}

module attributes {stable_mosaic.version = 11 : i64} {
  func.func @_fused_matmul_kernel(%arg0: i32, %arg1: i32, %arg2: i32, %arg3: memref<1x128x1024xbf16, #tpu.memory_space<vmem>>, %arg4: memref<1x1024x128xbf16, #tpu.memory_space<vmem>>, %arg5: memref<2x128xf32, #tpu.memory_space<vmem>>, %arg6: memref<1x128x128xbf16, #tpu.memory_space<vmem>>) attributes {dimension_semantics = [#tpu.dimension_semantics<parallel>, #tpu.dimension_semantics<parallel>, #tpu.dimension_semantics<parallel>], iteration_bounds = array<i64: 4, 1, 1>, scalar_prefetch = 0 : i64, scratch_operands = 0 : i64, tpu.core_type = #tpu.core_type<tc>, window_params = [{transform_indices = @transform_0, window_bounds = array<i64: 1, 128, 1024>}, {transform_indices = @transform_1, window_bounds = array<i64: 1, 1024, 128>}, {transform_indices = @transform_2, window_bounds = array<i64: 2, 128>}, {transform_indices = @transform_3, window_bounds = array<i64: 1, 128, 128>}]} {
    %c0 = arith.constant 0 : index
    %c0_0 = arith.constant 0 : index
    %c0_1 = arith.constant 0 : index
    %0 = vector.load %arg3[%c0, %c0_0, %c0_1] : memref<1x128x1024xbf16, #tpu.memory_space<vmem>>, vector<1x128x1024xbf16>
    %1 = vector.shape_cast %0 : vector<1x128x1024xbf16> to vector<128x1024xbf16>
    %c0_2 = arith.constant 0 : index
    %c0_3 = arith.constant 0 : index
    %c0_4 = arith.constant 0 : index
    %2 = vector.load %arg4[%c0_2, %c0_3, %c0_4] : memref<1x1024x128xbf16, #tpu.memory_space<vmem>>, vector<1x1024x128xbf16>
    %3 = vector.shape_cast %2 : vector<1x1024x128xbf16> to vector<1024x128xbf16>
    %cst = arith.constant dense<0.000000e+00> : vector<128x128xf32>
    %4 = tpu.matmul %1, %3, %cst {dimension_numbers = #tpu.dot_dimension_numbers<[1], [0], [0], [1], [0, 0, 1, 1], [], []>} : vector<128x1024xbf16>, vector<1024x128xbf16>, vector<128x128xf32> -> vector<128x128xf32>
    %c0_5 = arith.constant 0 : index
    %c0_6 = arith.constant 0 : index
    %5 = vector.load %arg5[%c0_5, %c0_6] : memref<2x128xf32, #tpu.memory_space<vmem>>, vector<1x128xf32>
    %6 = vector.broadcast %5 : vector<1x128xf32> to vector<128x128xf32>
    %7 = arith.mulf %4, %6 : vector<128x128xf32>
    %c1 = arith.constant 1 : index
    %c0_7 = arith.constant 0 : index
    %8 = vector.load %arg5[%c1, %c0_7] : memref<2x128xf32, #tpu.memory_space<vmem>>, vector<1x128xf32>
    %9 = vector.broadcast %8 : vector<1x128xf32> to vector<128x128xf32>
    %10 = arith.addf %7, %9 : vector<128x128xf32>
    %cst_8 = arith.constant 0.000000e+00 : f32
    %11 = vector.broadcast %cst_8 : f32 to vector<128x128xf32>
    %12 = arith.maximumf %10, %11 : vector<128x128xf32>
    %13 = arith.truncf %12 : vector<128x128xf32> to vector<128x128xbf16>
    %c0_9 = arith.constant 0 : index
    %c0_10 = arith.constant 0 : index
    %c0_11 = arith.constant 0 : index
    %14 = vector.load %arg6[%c0_9, %c0_10, %c0_11] : memref<1x128x128xbf16, #tpu.memory_space<vmem>>, vector<1x128x128xbf16>
    %15 = vector.shape_cast %14 : vector<1x128x128xbf16> to vector<128x128xbf16>
    %16 = vector.shape_cast %13 : vector<128x128xbf16> to vector<1x128x128xbf16>
    tpu.vector_store %arg6[%c0_9, %c0_10, %c0_11], %16 {strides = array<i32>} : memref<1x128x128xbf16, #tpu.memory_space<vmem>>, vector<1x128x128xbf16>,
    return
  }
  func.func @transform_0(%arg0: i32, %arg1: i32, %arg2: i32) -> (i32, i32, i32) {
    %c0_i32 = arith.constant 0 : i32
    %c0_i32_0 = arith.constant 0 : i32
    return %arg0, %arg1, %c0_i32 : i32, i32, i32
  }
  func.func @transform_1(%arg0: i32, %arg1: i32, %arg2: i32) -> (i32, i32, i32) {
    %c0_i32 = arith.constant 0 : i32
    %c0_i32_0 = arith.constant 0 : i32
    return %arg0, %c0_i32, %arg2 : i32, i32, i32
  }
  func.func @transform_2(%arg0: i32, %arg1: i32, %arg2: i32) -> (i32, i32) {
    %c0_i32 = arith.constant 0 : i32
    %c0_i32_0 = arith.constant 0 : i32
    return %c0_i32, %arg2 : i32, i32
  }
  func.func @transform_3(%arg0: i32, %arg1: i32, %arg2: i32) -> (i32, i32, i32) {
    %c0_i32 = arith.constant 0 : i32
    return %arg0, %arg1, %arg2 : i32, i32, i32
  }
}

module attributes {stable_mosaic.version = 11 : i64} {
  func.func @_fused_matmul_kernel(%arg0: i32, %arg1: i32, %arg2: i32, %arg3: memref<1x384x512xbf16, #tpu.memory_space<vmem>>, %arg4: memref<1x512x128xbf16, #tpu.memory_space<vmem>>, %arg5: memref<2x128xf32, #tpu.memory_space<vmem>>, %arg6: memref<1x384x128xbf16, #tpu.memory_space<vmem>>) attributes {dimension_semantics = [#tpu.dimension_semantics<parallel>, #tpu.dimension_semantics<parallel>, #tpu.dimension_semantics<parallel>], iteration_bounds = array<i64: 4, 1, 1>, scalar_prefetch = 0 : i64, scratch_operands = 0 : i64, tpu.core_type = #tpu.core_type<tc>, window_params = [{transform_indices = @transform_0, window_bounds = array<i64: 1, 384, 512>}, {transform_indices = @transform_1, window_bounds = array<i64: 1, 512, 128>}, {transform_indices = @transform_2, window_bounds = array<i64: 2, 128>}, {transform_indices = @transform_3, window_bounds = array<i64: 1, 384, 128>}]} {
    %c0 = arith.constant 0 : index
    %c0_0 = arith.constant 0 : index
    %c0_1 = arith.constant 0 : index
    %0 = vector.load %arg3[%c0, %c0_0, %c0_1] : memref<1x384x512xbf16, #tpu.memory_space<vmem>>, vector<1x384x512xbf16>
    %1 = vector.shape_cast %0 : vector<1x384x512xbf16> to vector<384x512xbf16>
    %c0_2 = arith.constant 0 : index
    %c0_3 = arith.constant 0 : index
    %c0_4 = arith.constant 0 : index
    %2 = vector.load %arg4[%c0_2, %c0_3, %c0_4] : memref<1x512x128xbf16, #tpu.memory_space<vmem>>, vector<1x512x128xbf16>
    %3 = vector.shape_cast %2 : vector<1x512x128xbf16> to vector<512x128xbf16>
    %cst = arith.constant dense<0.000000e+00> : vector<384x128xf32>
    %4 = tpu.matmul %1, %3, %cst {dimension_numbers = #tpu.dot_dimension_numbers<[1], [0], [0], [1], [0, 0, 1, 1], [], []>} : vector<384x512xbf16>, vector<512x128xbf16>, vector<384x128xf32> -> vector<384x128xf32>
    %c0_5 = arith.constant 0 : index
    %c0_6 = arith.constant 0 : index
    %5 = vector.load %arg5[%c0_5, %c0_6] : memref<2x128xf32, #tpu.memory_space<vmem>>, vector<1x128xf32>
    %6 = vector.broadcast %5 : vector<1x128xf32> to vector<384x128xf32>
    %7 = arith.mulf %4, %6 : vector<384x128xf32>
    %c1 = arith.constant 1 : index
    %c0_7 = arith.constant 0 : index
    %8 = vector.load %arg5[%c1, %c0_7] : memref<2x128xf32, #tpu.memory_space<vmem>>, vector<1x128xf32>
    %9 = vector.broadcast %8 : vector<1x128xf32> to vector<384x128xf32>
    %10 = arith.addf %7, %9 : vector<384x128xf32>
    %cst_8 = arith.constant 0.000000e+00 : f32
    %11 = vector.broadcast %cst_8 : f32 to vector<384x128xf32>
    %12 = arith.maximumf %10, %11 : vector<384x128xf32>
    %13 = arith.truncf %12 : vector<384x128xf32> to vector<384x128xbf16>
    %c0_9 = arith.constant 0 : index
    %c0_10 = arith.constant 0 : index
    %c0_11 = arith.constant 0 : index
    %14 = vector.load %arg6[%c0_9, %c0_10, %c0_11] : memref<1x384x128xbf16, #tpu.memory_space<vmem>>, vector<1x384x128xbf16>
    %15 = vector.shape_cast %14 : vector<1x384x128xbf16> to vector<384x128xbf16>
    %16 = vector.shape_cast %13 : vector<384x128xbf16> to vector<1x384x128xbf16>
    tpu.vector_store %arg6[%c0_9, %c0_10, %c0_11], %16 {strides = array<i32>} : memref<1x384x128xbf16, #tpu.memory_space<vmem>>, vector<1x384x128xbf16>,
    return
  }
  func.func @transform_0(%arg0: i32, %arg1: i32, %arg2: i32) -> (i32, i32, i32) {
    %c0_i32 = arith.constant 0 : i32
    %c0_i32_0 = arith.constant 0 : i32
    return %arg0, %arg1, %c0_i32 : i32, i32, i32
  }
  func.func @transform_1(%arg0: i32, %arg1: i32, %arg2: i32) -> (i32, i32, i32) {
    %c0_i32 = arith.constant 0 : i32
    %c0_i32_0 = arith.constant 0 : i32
    return %arg0, %c0_i32, %arg2 : i32, i32, i32
  }
  func.func @transform_2(%arg0: i32, %arg1: i32, %arg2: i32) -> (i32, i32) {
    %c0_i32 = arith.constant 0 : i32
    %c0_i32_0 = arith.constant 0 : i32
    return %c0_i32, %arg2 : i32, i32
  }
  func.func @transform_3(%arg0: i32, %arg1: i32, %arg2: i32) -> (i32, i32, i32) {
    %c0_i32 = arith.constant 0 : i32
    return %arg0, %arg1, %arg2 : i32, i32, i32
  }
}

module attributes {stable_mosaic.version = 11 : i64} {
  func.func @_fused_matmul_kernel(%arg0: i32, %arg1: i32, %arg2: i32, %arg3: memref<1x512x128xbf16, #tpu.memory_space<vmem>>, %arg4: memref<1x128x16xbf16, #tpu.memory_space<vmem>>, %arg5: memref<1x512x16xf32, #tpu.memory_space<vmem>>) attributes {dimension_semantics = [#tpu.dimension_semantics<parallel>, #tpu.dimension_semantics<parallel>, #tpu.dimension_semantics<parallel>], iteration_bounds = array<i64: 1, 3, 1>, scalar_prefetch = 0 : i64, scratch_operands = 0 : i64, tpu.core_type = #tpu.core_type<tc>, window_params = [{transform_indices = @transform_0, window_bounds = array<i64: 1, 512, 128>}, {transform_indices = @transform_1, window_bounds = array<i64: 1, 128, 16>}, {transform_indices = @transform_2, window_bounds = array<i64: 1, 512, 16>}]} {
    %c0 = arith.constant 0 : index
    %c0_0 = arith.constant 0 : index
    %c0_1 = arith.constant 0 : index
    %0 = vector.load %arg3[%c0, %c0_0, %c0_1] : memref<1x512x128xbf16, #tpu.memory_space<vmem>>, vector<1x512x128xbf16>
    %1 = vector.shape_cast %0 : vector<1x512x128xbf16> to vector<512x128xbf16>
    %c0_2 = arith.constant 0 : index
    %c0_3 = arith.constant 0 : index
    %c0_4 = arith.constant 0 : index
    %2 = vector.load %arg4[%c0_2, %c0_3, %c0_4] : memref<1x128x16xbf16, #tpu.memory_space<vmem>>, vector<1x128x16xbf16>
    %3 = vector.shape_cast %2 : vector<1x128x16xbf16> to vector<128x16xbf16>
    %cst = arith.constant dense<0.000000e+00> : vector<512x16xf32>
    %4 = tpu.matmul %1, %3, %cst {dimension_numbers = #tpu.dot_dimension_numbers<[1], [0], [0], [1], [0, 0, 1, 1], [], []>} : vector<512x128xbf16>, vector<128x16xbf16>, vector<512x16xf32> -> vector<512x16xf32>
    %c0_5 = arith.constant 0 : index
    %c0_6 = arith.constant 0 : index
    %c0_7 = arith.constant 0 : index
    %5 = vector.load %arg5[%c0_5, %c0_6, %c0_7] : memref<1x512x16xf32, #tpu.memory_space<vmem>>, vector<1x512x16xf32>
    %6 = vector.shape_cast %5 : vector<1x512x16xf32> to vector<512x16xf32>
    %7 = vector.shape_cast %4 : vector<512x16xf32> to vector<1x512x16xf32>
    tpu.vector_store %arg5[%c0_5, %c0_6, %c0_7], %7 {strides = array<i32>} : memref<1x512x16xf32, #tpu.memory_space<vmem>>, vector<1x512x16xf32>,
    return
  }
  func.func @transform_0(%arg0: i32, %arg1: i32, %arg2: i32) -> (i32, i32, i32) {
    %c0_i32 = arith.constant 0 : i32
    %c0_i32_0 = arith.constant 0 : i32
    return %arg0, %arg1, %c0_i32 : i32, i32, i32
  }
  func.func @transform_1(%arg0: i32, %arg1: i32, %arg2: i32) -> (i32, i32, i32) {
    %c0_i32 = arith.constant 0 : i32
    %c0_i32_0 = arith.constant 0 : i32
    return %arg0, %c0_i32, %arg2 : i32, i32, i32
  }
  func.func @transform_2(%arg0: i32, %arg1: i32, %arg2: i32) -> (i32, i32, i32) {
    %c0_i32 = arith.constant 0 : i32
    return %arg0, %arg1, %arg2 : i32, i32, i32
  }
}

</mosaic_0001>

<llo_original>
// kernel: squeeze.19
$region0: #{squeeze.19}
  %s0 = inlined_call_operand.vmem [shape: bf16[1,6,4096], index: 0, kind: input, shape index: {}]
  %s1 = inlined_call_operand.vmem [shape: bf16[6,4,4,256], index: 1, kind: output, shape index: {}]
  $region1: #{squeeze.19} parent=0
    #allocation0 [shape = 'u8[196608]{0}', space=vmem, size = 0x30000, scoped, tag = 'scoped mem for output reshape']
    #allocation1 [shape = 'u8[131072]{0}', space=vmem, size = 0x20000, scoped, tag = 'scoped mem for input reshape']
    %s3 = smul.u32 4, 2
    %s4 = sshll.u32 1, %s3
    %s5 = ssub.s32 %s4, 1
    %s6 = smul.addr 4, 31
    %s7 = scalar_lea.vmem %s0, %s6
    %s8 = sshrl.u32 %s5, 1
    %s9 = sor.u32 %s5, %s8
    %s10 = sand.u32 %s9, 85
    %s11 = sshrl.u32 %s10, 1
    %s12 = sor.u32 %s10, %s11
    %s13 = sand.u32 51, %s12
    %s14 = sshrl.u32 %s13, 2
    %s15 = sor.u32 %s13, %s14
    %s16 = sand.u32 15, %s15
    %v17 = vld [vmem:[%s7] sm:%s16]
    %v18 = vunpack.c.l.bf16 %v17
    %v19 = vunpack.c.h.bf16 %v17
    %s20 = scalar_lea.vmem [#allocation1], 248
    %21 = vst [vmem:[%s20] sm:%s5] %v18
    %s22 = smul.addr 4, 30
    %s23 = scalar_lea.vmem %s0, %s22
    %s24 = sshrl.u32 %s5, 1
    %s25 = sor.u32 %s5, %s24
    %s26 = sand.u32 %s25, 85
    %s27 = sshrl.u32 %s26, 1
    %s28 = sor.u32 %s26, %s27
    %s29 = sand.u32 51, %s28
    %s30 = sshrl.u32 %s29, 2
    %s31 = sor.u32 %s29, %s30
    %s32 = sand.u32 15, %s31
    %v33 = vld [vmem:[%s23] sm:%s32]
    %v34 = vunpack.c.l.bf16 %v33
    %v35 = vunpack.c.h.bf16 %v33
    %s36 = scalar_lea.vmem [#allocation1], 240
    %37 = vst [vmem:[%s36] sm:%s5] %v34
    %s38 = smul.addr 4, 29
    %s39 = scalar_lea.vmem %s0, %s38
    %s40 = sshrl.u32 %s5, 1
    %s41 = sor.u32 %s5, %s40
    %s42 = sand.u32 %s41, 85
    %s43 = sshrl.u32 %s42, 1
    %s44 = sor.u32 %s42, %s43
    %s45 = sand.u32 51, %s44
    %s46 = sshrl.u32 %s45, 2
    %s47 = sor.u32 %s45, %s46
    %s48 = sand.u32 15, %s47
    %v49 = vld [vmem:[%s39] sm:%s48]
    %v50 = vunpack.c.l.bf16 %v49
    %v51 = vunpack.c.h.bf16 %v49
    %s52 = scalar_lea.vmem [#allocation1], 232
    %53 = vst [vmem:[%s52] sm:%s5] %v50
    %s54 = smul.addr 4, 28
    %s55 = scalar_lea.vmem %s0, %s54
    %s56 = sshrl.u32 %s5, 1
    %s57 = sor.u32 %s5, %s56
    %s58 = sand.u32 %s57, 85
    %s59 = sshrl.u32 %s58, 1
    %s60 = sor.u32 %s58, %s59
    %s61 = sand.u32 51, %s60
    %s62 = sshrl.u32 %s61, 2
    %s63 = sor.u32 %s61, %s62
    %s64 = sand.u32 15, %s63
    %v65 = vld [vmem:[%s55] sm:%s64]
    %v66 = vunpack.c.l.bf16 %v65
    %v67 = vunpack.c.h.bf16 %v65
    %s68 = scalar_lea.vmem [#allocation1], 224
    %69 = vst [vmem:[%s68] sm:%s5] %v66
    %s70 = smul.addr 4, 27
    %s71 = scalar_lea.vmem %s0, %s70
    %s72 = sshrl.u32 %s5, 1
    %s73 = sor.u32 %s5, %s72
    %s74 = sand.u32 %s73, 85
    %s75 = sshrl.u32 %s74, 1
    %s76 = sor.u32 %s74, %s75
    %s77 = sand.u32 51, %s76
    %s78 = sshrl.u32 %s77, 2
    %s79 = sor.u32 %s77, %s78
    %s80 = sand.u32 15, %s79
    %v81 = vld [vmem:[%s71] sm:%s80]
    %v82 = vunpack.c.l.bf16 %v81
    %v83 = vunpack.c.h.bf16 %v81
    %s84 = scalar_lea.vmem [#allocation1], 216
    %85 = vst [vmem:[%s84] sm:%s5] %v82
    %s86 = smul.addr 4, 26
    %s87 = scalar_lea.vmem %s0, %s86
    %s88 = sshrl.u32 %s5, 1
    %s89 = sor.u32 %s5, %s88
    %s90 = sand.u32 %s89, 85
    %s91 = sshrl.u32 %s90, 1
    %s92 = sor.u32 %s90, %s91
    %s93 = sand.u32 51, %s92
    %s94 = sshrl.u32 %s93, 2
    %s95 = sor.u32 %s93, %s94
    %s96 = sand.u32 15, %s95
    %v97 = vld [vmem:[%s87] sm:%s96]
    %v98 = vunpack.c.l.bf16 %v97
    %v99 = vunpack.c.h.bf16 %v97
    %s100 = scalar_lea.vmem [#allocation1], 208
    %101 = vst [vmem:[%s100] sm:%s5] %v98
    %s102 = smul.addr 4, 25
    %s103 = scalar_lea.vmem %s0, %s102
    %s104 = sshrl.u32 %s5, 1
    %s105 = sor.u32 %s5, %s104
    %s106 = sand.u32 %s105, 85
    %s107 = sshrl.u32 %s106, 1
    %s108 = sor.u32 %s106, %s107
    %s109 = sand.u32 51, %s108
    %s110 = sshrl.u32 %s109, 2
    %s111 = sor.u32 %s109, %s110
    %s112 = sand.u32 15, %s111
    %v113 = vld [vmem:[%s103] sm:%s112]
    %v114 = vunpack.c.l.bf16 %v113
    %v115 = vunpack.c.h.bf16 %v113
    %s116 = scalar_lea.vmem [#allocation1], 200
    %117 = vst [vmem:[%s116] sm:%s5] %v114
    %s118 = smul.addr 4, 24
    %s119 = scalar_lea.vmem %s0, %s118
    %s120 = sshrl.u32 %s5, 1
    %s121 = sor.u32 %s5, %s120
    %s122 = sand.u32 %s121, 85
    %s123 = sshrl.u32 %s122, 1
    %s124 = sor.u32 %s122, %s123
    %s125 = sand.u32 51, %s124
    %s126 = sshrl.u32 %s125, 2
    %s127 = sor.u32 %s125, %s126
    %s128 = sand.u32 15, %s127
    %v129 = vld [vmem:[%s119] sm:%s128]
    %v130 = vunpack.c.l.bf16 %v129
    %v131 = vunpack.c.h.bf16 %v129
    %s132 = scalar_lea.vmem [#allocation1], 192
    %133 = vst [vmem:[%s132] sm:%s5] %v130
    %s134 = smul.addr 4, 23
    %s135 = scalar_lea.vmem %s0, %s134
    %s136 = sshrl.u32 %s5, 1
    %s137 = sor.u32 %s5, %s136
    %s138 = sand.u32 %s137, 85
    %s139 = sshrl.u32 %s138, 1
    %s140 = sor.u32 %s138, %s139
    %s141 = sand.u32 51, %s140
    %s142 = sshrl.u32 %s141, 2
    %s143 = sor.u32 %s141, %s142
    %s144 = sand.u32 15, %s143
    %v145 = vld [vmem:[%s135] sm:%s144]
    %v146 = vunpack.c.l.bf16 %v145
    %v147 = vunpack.c.h.bf16 %v145
    %s148 = scalar_lea.vmem [#allocation1], 184
    %149 = vst [vmem:[%s148] sm:%s5] %v146
    %s150 = smul.addr 4, 22
    %s151 = scalar_lea.vmem %s0, %s150
    %s152 = sshrl.u32 %s5, 1
    %s153 = sor.u32 %s5, %s152
    %s154 = sand.u32 %s153, 85
    %s155 = sshrl.u32 %s154, 1
    %s156 = sor.u32 %s154, %s155
    %s157 = sand.u32 51, %s156
    %s158 = sshrl.u32 %s157, 2
    %s159 = sor.u32 %s157, %s158
    %s160 = sand.u32 15, %s159
    %v161 = vld [vmem:[%s151] sm:%s160]
    %v162 = vunpack.c.l.bf16 %v161
    %v163 = vunpack.c.h.bf16 %v161
    %s164 = scalar_lea.vmem [#allocation1], 176
    %165 = vst [vmem:[%s164] sm:%s5] %v162
    %s166 = smul.addr 4, 21
    %s167 = scalar_lea.vmem %s0, %s166
    %s168 = sshrl.u32 %s5, 1
    %s169 = sor.u32 %s5, %s168
    %s170 = sand.u32 %s169, 85
    %s171 = sshrl.u32 %s170, 1
    %s172 = sor.u32 %s170, %s171
    %s173 = sand.u32 51, %s172
    %s174 = sshrl.u32 %s173, 2
    %s175 = sor.u32 %s173, %s174
    %s176 = sand.u32 15, %s175
    %v177 = vld [vmem:[%s167] sm:%s176]
    %v178 = vunpack.c.l.bf16 %v177
    %v179 = vunpack.c.h.bf16 %v177
    %s180 = scalar_lea.vmem [#allocation1], 168
    %181 = vst [vmem:[%s180] sm:%s5] %v178
    %s182 = smul.addr 4, 20
    %s183 = scalar_lea.vmem %s0, %s182
    %s184 = sshrl.u32 %s5, 1
    %s185 = sor.u32 %s5, %s184
    %s186 = sand.u32 %s185, 85
    %s187 = sshrl.u32 %s186, 1
    %s188 = sor.u32 %s186, %s187
    %s189 = sand.u32 51, %s188
    %s190 = sshrl.u32 %s189, 2
    %s191 = sor.u32 %s189, %s190
    %s192 = sand.u32 15, %s191
    %v193 = vld [vmem:[%s183] sm:%s192]
    %v194 = vunpack.c.l.bf16 %v193
    %v195 = vunpack.c.h.bf16 %v193
    %s196 = scalar_lea.vmem [#allocation1], 160
    %197 = vst [vmem:[%s196] sm:%s5] %v194
    %s198 = smul.addr 4, 19
    %s199 = scalar_lea.vmem %s0, %s198
    %s200 = sshrl.u32 %s5, 1
    %s201 = sor.u32 %s5, %s200
    %s202 = sand.u32 %s201, 85
    %s203 = sshrl.u32 %s202, 1
    %s204 = sor.u32 %s202, %s203
    %s205 = sand.u32 51, %s204
    %s206 = sshrl.u32 %s205, 2
    %s207 = sor.u32 %s205, %s206
    %s208 = sand.u32 15, %s207
    %v209 = vld [vmem:[%s199] sm:%s208]
    %v210 = vunpack.c.l.bf16 %v209
    %v211 = vunpack.c.h.bf16 %v209
    %s212 = scalar_lea.vmem [#allocation1], 152
    %213 = vst [vmem:[%s212] sm:%s5] %v210
    %s214 = smul.addr 4, 18
    %s215 = scalar_lea.vmem %s0, %s214
    %s216 = sshrl.u32 %s5, 1
    %s217 = sor.u32 %s5, %s216
    %s218 = sand.u32 %s217, 85
    %s219 = sshrl.u32 %s218, 1
    %s220 = sor.u32 %s218, %s219
    %s221 = sand.u32 51, %s220
    %s222 = sshrl.u32 %s221, 2
    %s223 = sor.u32 %s221, %s222
    %s224 = sand.u32 15, %s223
    %v225 = vld [vmem:[%s215] sm:%s224]
    %v226 = vunpack.c.l.bf16 %v225
    %v227 = vunpack.c.h.bf16 %v225
    %s228 = scalar_lea.vmem [#allocation1], 144
    %229 = vst [vmem:[%s228] sm:%s5] %v226
    %s230 = smul.addr 4, 17
    %s231 = scalar_lea.vmem %s0, %s230
    %s232 = sshrl.u32 %s5, 1
    %s233 = sor.u32 %s5, %s232
    %s234 = sand.u32 %s233, 85
    %s235 = sshrl.u32 %s234, 1
    %s236 = sor.u32 %s234, %s235
    %s237 = sand.u32 51, %s236
    %s238 = sshrl.u32 %s237, 2
    %s239 = sor.u32 %s237, %s238
    %s240 = sand.u32 15, %s239
    %v241 = vld [vmem:[%s231] sm:%s240]
    %v242 = vunpack.c.l.bf16 %v241
    %v243 = vunpack.c.h.bf16 %v241
    %s244 = scalar_lea.vmem [#allocation1], 136
    %245 = vst [vmem:[%s244] sm:%s5] %v242
    %s246 = smul.addr 4, 16
    %s247 = scalar_lea.vmem %s0, %s246
    %s248 = sshrl.u32 %s5, 1
    %s249 = sor.u32 %s5, %s248
    %s250 = sand.u32 %s249, 85
    %s251 = sshrl.u32 %s250, 1
    %s252 = sor.u32 %s250, %s251
    %s253 = sand.u32 51, %s252
    %s254 = sshrl.u32 %s253, 2
    %s255 = sor.u32 %s253, %s254
    %s256 = sand.u32 15, %s255
    %v257 = vld [vmem:[%s247] sm:%s256]
    %v258 = vunpack.c.l.bf16 %v257
    %v259 = vunpack.c.h.bf16 %v257
    %s260 = scalar_lea.vmem [#allocation1], 128
    %261 = vst [vmem:[%s260] sm:%s5] %v258
    %s262 = smul.addr 4, 15
    %s263 = scalar_lea.vmem %s0, %s262
    %s264 = sshrl.u32 %s5, 1
    %s265 = sor.u32 %s5, %s264
    %s266 = sand.u32 %s265, 85
    %s267 = sshrl.u32 %s266, 1
    %s268 = sor.u32 %s266, %s267
    %s269 = sand.u32 51, %s268
    %s270 = sshrl.u32 %s269, 2
    %s271 = sor.u32 %s269, %s270
    %s272 = sand.u32 15, %s271
    %v273 = vld [vmem:[%s263] sm:%s272]
    %v274 = vunpack.c.l.bf16 %v273
    %v275 = vunpack.c.h.bf16 %v273
    %s276 = scalar_lea.vmem [#allocation1], 120
    %277 = vst [vmem:[%s276] sm:%s5] %v274
    %s278 = smul.addr 4, 14
    %s279 = scalar_lea.vmem %s0, %s278
    %s280 = sshrl.u32 %s5, 1
    %s281 = sor.u32 %s5, %s280
    %s282 = sand.u32 %s281, 85
    %s283 = sshrl.u32 %s282, 1
    %s284 = sor.u32 %s282, %s283
    %s285 = sand.u32 51, %s284
    %s286 = sshrl.u32 %s285, 2
    %s287 = sor.u32 %s285, %s286
    %s288 = sand.u32 15, %s287
    %v289 = vld [vmem:[%s279] sm:%s288]
    %v290 = vunpack.c.l.bf16 %v289
    %v291 = vunpack.c.h.bf16 %v289
    %s292 = scalar_lea.vmem [#allocation1], 112
    %293 = vst [vmem:[%s292] sm:%s5] %v290
    %s294 = smul.addr 4, 13
    %s295 = scalar_lea.vmem %s0, %s294
    %s296 = sshrl.u32 %s5, 1
    %s297 = sor.u32 %s5, %s296
    %s298 = sand.u32 %s297, 85
    %s299 = sshrl.u32 %s298, 1
    %s300 = sor.u32 %s298, %s299
    %s301 = sand.u32 51, %s300
    %s302 = sshrl.u32 %s301, 2
    %s303 = sor.u32 %s301, %s302
    %s304 = sand.u32 15, %s303
    %v305 = vld [vmem:[%s295] sm:%s304]
    %v306 = vunpack.c.l.bf16 %v305
    %v307 = vunpack.c.h.bf16 %v305
    %s308 = scalar_lea.vmem [#allocation1], 104
    %309 = vst [vmem:[%s308] sm:%s5] %v306
    %s310 = smul.addr 4, 12
    %s311 = scalar_lea.vmem %s0, %s310
    %s312 = sshrl.u32 %s5, 1
    %s313 = sor.u32 %s5, %s312
    %s314 = sand.u32 %s313, 85
    %s315 = sshrl.u32 %s314, 1
    %s316 = sor.u32 %s314, %s315
    %s317 = sand.u32 51, %s316
    %s318 = sshrl.u32 %s317, 2
    %s319 = sor.u32 %s317, %s318
    %s320 = sand.u32 15, %s319
    %v321 = vld [vmem:[%s311] sm:%s320]
    %v322 = vunpack.c.l.bf16 %v321
    %v323 = vunpack.c.h.bf16 %v321
    %s324 = scalar_lea.vmem [#allocation1], 96
    %325 = vst [vmem:[%s324] sm:%s5] %v322
    %s326 = smul.addr 4, 11
    %s327 = scalar_lea.vmem %s0, %s326
    %s328 = sshrl.u32 %s5, 1
    %s329 = sor.u32 %s5, %s328
    %s330 = sand.u32 %s329, 85
    %s331 = sshrl.u32 %s330, 1
    %s332 = sor.u32 %s330, %s331
    %s333 = sand.u32 51, %s332
    %s334 = sshrl.u32 %s333, 2
    %s335 = sor.u32 %s333, %s334
    %s336 = sand.u32 15, %s335
    %v337 = vld [vmem:[%s327] sm:%s336]
    %v338 = vunpack.c.l.bf16 %v337
    %v339 = vunpack.c.h.bf16 %v337
    %s340 = scalar_lea.vmem [#allocation1], 88
    %341 = vst [vmem:[%s340] sm:%s5] %v338
    %s342 = smul.addr 4, 10
    %s343 = scalar_lea.vmem %s0, %s342
    %s344 = sshrl.u32 %s5, 1
    %s345 = sor.u32 %s5, %s344
    %s346 = sand.u32 %s345, 85
    %s347 = sshrl.u32 %s346, 1
    %s348 = sor.u32 %s346, %s347
    %s349 = sand.u32 51, %s348
    %s350 = sshrl.u32 %s349, 2
    %s351 = sor.u32 %s349, %s350
    %s352 = sand.u32 15, %s351
    %v353 = vld [vmem:[%s343] sm:%s352]
    %v354 = vunpack.c.l.bf16 %v353
    %v355 = vunpack.c.h.bf16 %v353
    %s356 = scalar_lea.vmem [#allocation1], 80
    %357 = vst [vmem:[%s356] sm:%s5] %v354
    %s358 = smul.addr 4, 9
    %s359 = scalar_lea.vmem %s0, %s358
    %s360 = sshrl.u32 %s5, 1
    %s361 = sor.u32 %s5, %s360
    %s362 = sand.u32 %s361, 85
    %s363 = sshrl.u32 %s362, 1
    %s364 = sor.u32 %s362, %s363
    %s365 = sand.u32 51, %s364
    %s366 = sshrl.u32 %s365, 2
    %s367 = sor.u32 %s365, %s366
    %s368 = sand.u32 15, %s367
    %v369 = vld [vmem:[%s359] sm:%s368]
    %v370 = vunpack.c.l.bf16 %v369
    %v371 = vunpack.c.h.bf16 %v369
    %s372 = scalar_lea.vmem [#allocation1], 72
    %373 = vst [vmem:[%s372] sm:%s5] %v370
    %s374 = smul.addr 4, 8
    %s375 = scalar_lea.vmem %s0, %s374
    %s376 = sshrl.u32 %s5, 1
    %s377 = sor.u32 %s5, %s376
    %s378 = sand.u32 %s377, 85
    %s379 = sshrl.u32 %s378, 1
    %s380 = sor.u32 %s378, %s379
    %s381 = sand.u32 51, %s380
    %s382 = sshrl.u32 %s381, 2
    %s383 = sor.u32 %s381, %s382
    %s384 = sand.u32 15, %s383
    %v385 = vld [vmem:[%s375] sm:%s384]
    %v386 = vunpack.c.l.bf16 %v385
    %v387 = vunpack.c.h.bf16 %v385
    %s388 = scalar_lea.vmem [#allocation1], 64
    %389 = vst [vmem:[%s388] sm:%s5] %v386
    %s390 = smul.addr 4, 7
    %s391 = scalar_lea.vmem %s0, %s390
    %s392 = sshrl.u32 %s5, 1
    %s393 = sor.u32 %s5, %s392
    %s394 = sand.u32 %s393, 85
    %s395 = sshrl.u32 %s394, 1
    %s396 = sor.u32 %s394, %s395
    %s397 = sand.u32 51, %s396
    %s398 = sshrl.u32 %s397, 2
    %s399 = sor.u32 %s397, %s398
    %s400 = sand.u32 15, %s399
    %v401 = vld [vmem:[%s391] sm:%s400]
    %v402 = vunpack.c.l.bf16 %v401
    %v403 = vunpack.c.h.bf16 %v401
    %s404 = scalar_lea.vmem [#allocation1], 56
    %405 = vst [vmem:[%s404] sm:%s5] %v402
    %s406 = smul.addr 4, 6
    %s407 = scalar_lea.vmem %s0, %s406
    %s408 = sshrl.u32 %s5, 1
    %s409 = sor.u32 %s5, %s408
    %s410 = sand.u32 %s409, 85
    %s411 = sshrl.u32 %s410, 1
    %s412 = sor.u32 %s410, %s411
    %s413 = sand.u32 51, %s412
    %s414 = sshrl.u32 %s413, 2
    %s415 = sor.u32 %s413, %s414
    %s416 = sand.u32 15, %s415
    %v417 = vld [vmem:[%s407] sm:%s416]
    %v418 = vunpack.c.l.bf16 %v417
    %v419 = vunpack.c.h.bf16 %v417
    %s420 = scalar_lea.vmem [#allocation1], 48
    %421 = vst [vmem:[%s420] sm:%s5] %v418
    %s422 = smul.addr 4, 5
    %s423 = scalar_lea.vmem %s0, %s422
    %s424 = sshrl.u32 %s5, 1
    %s425 = sor.u32 %s5, %s424
    %s426 = sand.u32 %s425, 85
    %s427 = sshrl.u32 %s426, 1
    %s428 = sor.u32 %s426, %s427
    %s429 = sand.u32 51, %s428
    %s430 = sshrl.u32 %s429, 2
    %s431 = sor.u32 %s429, %s430
    %s432 = sand.u32 15, %s431
    %v433 = vld [vmem:[%s423] sm:%s432]
    %v434 = vunpack.c.l.bf16 %v433
    %v435 = vunpack.c.h.bf16 %v433
    %s436 = scalar_lea.vmem [#allocation1], 40
    %437 = vst [vmem:[%s436] sm:%s5] %v434
    %s438 = smul.addr 4, 4
    %s439 = scalar_lea.vmem %s0, %s438
    %s440 = sshrl.u32 %s5, 1
    %s441 = sor.u32 %s5, %s440
    %s442 = sand.u32 %s441, 85
    %s443 = sshrl.u32 %s442, 1
    %s444 = sor.u32 %s442, %s443
    %s445 = sand.u32 51, %s444
    %s446 = sshrl.u32 %s445, 2
    %s447 = sor.u32 %s445, %s446
    %s448 = sand.u32 15, %s447
    %v449 = vld [vmem:[%s439] sm:%s448]
    %v450 = vunpack.c.l.bf16 %v449
    %v451 = vunpack.c.h.bf16 %v449
    %s452 = scalar_lea.vmem [#allocation1], 32
    %453 = vst [vmem:[%s452] sm:%s5] %v450
    %s454 = smul.addr 4, 3
    %s455 = scalar_lea.vmem %s0, %s454
    %s456 = sshrl.u32 %s5, 1
    %s457 = sor.u32 %s5, %s456
    %s458 = sand.u32 %s457, 85
    %s459 = sshrl.u32 %s458, 1
    %s460 = sor.u32 %s458, %s459
    %s461 = sand.u32 51, %s460
    %s462 = sshrl.u32 %s461, 2
    %s463 = sor.u32 %s461, %s462
    %s464 = sand.u32 15, %s463
    %v465 = vld [vmem:[%s455] sm:%s464]
    %v466 = vunpack.c.l.bf16 %v465
    %v467 = vunpack.c.h.bf16 %v465
    %s468 = scalar_lea.vmem [#allocation1], 24
    %469 = vst [vmem:[%s468] sm:%s5] %v466
    %s470 = smul.addr 4, 2
    %s471 = scalar_lea.vmem %s0, %s470
    %s472 = sshrl.u32 %s5, 1
    %s473 = sor.u32 %s5, %s472
    %s474 = sand.u32 %s473, 85
    %s475 = sshrl.u32 %s474, 1
    %s476 = sor.u32 %s474, %s475
    %s477 = sand.u32 51, %s476
    %s478 = sshrl.u32 %s477, 2
    %s479 = sor.u32 %s477, %s478
    %s480 = sand.u32 15, %s479
    %v481 = vld [vmem:[%s471] sm:%s480]
    %v482 = vunpack.c.l.bf16 %v481
    %v483 = vunpack.c.h.bf16 %v481
    %s484 = scalar_lea.vmem [#allocation1], 16
    %485 = vst [vmem:[%s484] sm:%s5] %v482
    %s486 = scalar_lea.vmem %s0, 4
    %s487 = sshrl.u32 %s5, 1
    %s488 = sor.u32 %s5, %s487
    %s489 = sand.u32 %s488, 85
    %s490 = sshrl.u32 %s489, 1
    %s491 = sor.u32 %s489, %s490
    %s492 = sand.u32 51, %s491
    %s493 = sshrl.u32 %s492, 2
    %s494 = sor.u32 %s492, %s493
    %s495 = sand.u32 15, %s494
    %v496 = vld [vmem:[%s486] sm:%s495]
    %v497 = vunpack.c.l.bf16 %v496
    %v498 = vunpack.c.h.bf16 %v496
    %s499 = scalar_lea.vmem [#allocation1], 8
    %500 = vst [vmem:[%s499] sm:%s5] %v497
    %s501 = sshrl.u32 %s5, 1
    %s502 = sor.u32 %s5, %s501
    %s503 = sand.u32 %s502, 85
    %s504 = sshrl.u32 %s503, 1
    %s505 = sor.u32 %s503, %s504
    %s506 = sand.u32 51, %s505
    %s507 = sshrl.u32 %s506, 2
    %s508 = sor.u32 %s506, %s507
    %s509 = sand.u32 15, %s508
    %v510 = vld [vmem:[%s0] sm:%s509]
    %v511 = vunpack.c.l.bf16 %v510
    %v512 = vunpack.c.h.bf16 %v510
    %513 = vst [vmem:[#allocation1] sm:%s5] %v511
    %v514 = vld [vmem:[#allocation1] sm:$0x3f]
    %515 = vst [vmem:[#allocation0] sm:$0x1] %v514
    %s516 = scalar_lea.vmem [#allocation0], 63
    %517 = vst [vmem:[%s516] sm:$0x2] %v514
    %s518 = scalar_lea.vmem [#allocation0], 126
    %519 = vst [vmem:[%s518] sm:$0x4] %v514
    %s520 = scalar_lea.vmem [#allocation0], 189
    %521 = vst [vmem:[%s520] sm:$0x8] %v514
    %s522 = scalar_lea.vmem [#allocation0], 252
    %523 = vst [vmem:[%s522] sm:$0x10] %v514
    %s524 = scalar_lea.vmem [#allocation0], 315
    %525 = vst [vmem:[%s524] sm:$0x20] %v514
    %s526 = scalar_lea.vmem [#allocation1], 8
    %v527 = vld [vmem:[%s526] sm:$0x3f]
    %s528 = scalar_lea.vmem [#allocation0], 8
    %529 = vst [vmem:[%s528] sm:$0x1] %v527
    %s530 = scalar_lea.vmem [#allocation0], 71
    %531 = vst [vmem:[%s530] sm:$0x2] %v527
    %s532 = scalar_lea.vmem [#allocation0], 134
    %533 = vst [vmem:[%s532] sm:$0x4] %v527
    %s534 = scalar_lea.vmem [#allocation0], 197
    %535 = vst [vmem:[%s534] sm:$0x8] %v527
    %s536 = scalar_lea.vmem [#allocation0], 260
    %537 = vst [vmem:[%s536] sm:$0x10] %v527
    %s538 = scalar_lea.vmem [#allocation0], 323
    %539 = vst [vmem:[%s538] sm:$0x20] %v527
    %s540 = scalar_lea.vmem [#allocation1], 16
    %v541 = vld [vmem:[%s540] sm:$0x3f]
    %s542 = scalar_lea.vmem [#allocation0], 1
    %543 = vst [vmem:[%s542] sm:$0x1] %v541
    %s544 = scalar_lea.vmem [#allocation0], 64
    %545 = vst [vmem:[%s544] sm:$0x2] %v541
    %s546 = scalar_lea.vmem [#allocation0], 127
    %547 = vst [vmem:[%s546] sm:$0x4] %v541
    %s548 = scalar_lea.vmem [#allocation0], 190
    %549 = vst [vmem:[%s548] sm:$0x8] %v541
    %s550 = scalar_lea.vmem [#allocation0], 253
    %551 = vst [vmem:[%s550] sm:$0x10] %v541
    %s552 = scalar_lea.vmem [#allocation0], 316
    %553 = vst [vmem:[%s552] sm:$0x20] %v541
    %s554 = scalar_lea.vmem [#allocation1], 24
    %v555 = vld [vmem:[%s554] sm:$0x3f]
    %s556 = scalar_lea.vmem [#allocation0], 9
    %557 = vst [vmem:[%s556] sm:$0x1] %v555
    %s558 = scalar_lea.vmem [#allocation0], 72
    %559 = vst [vmem:[%s558] sm:$0x2] %v555
    %s560 = scalar_lea.vmem [#allocation0], 135
    %561 = vst [vmem:[%s560] sm:$0x4] %v555
    %s562 = scalar_lea.vmem [#allocation0], 198
    %563 = vst [vmem:[%s562] sm:$0x8] %v555
    %s564 = scalar_lea.vmem [#allocation0], 261
    %565 = vst [vmem:[%s564] sm:$0x10] %v555
    %s566 = scalar_lea.vmem [#allocation0], 324
    %567 = vst [vmem:[%s566] sm:$0x20] %v555
    %s568 = scalar_lea.vmem [#allocation1], 32
    %v569 = vld [vmem:[%s568] sm:$0x3f]
    %s570 = scalar_lea.vmem [#allocation0], 2
    %571 = vst [vmem:[%s570] sm:$0x1] %v569
    %s572 = scalar_lea.vmem [#allocation0], 65
    %573 = vst [vmem:[%s572] sm:$0x2] %v569
    %s574 = scalar_lea.vmem [#allocation0], 128
    %575 = vst [vmem:[%s574] sm:$0x4] %v569
    %s576 = scalar_lea.vmem [#allocation0], 191
    %577 = vst [vmem:[%s576] sm:$0x8] %v569
    %s578 = scalar_lea.vmem [#allocation0], 254
    %579 = vst [vmem:[%s578] sm:$0x10] %v569
    %s580 = scalar_lea.vmem [#allocation0], 317
    %581 = vst [vmem:[%s580] sm:$0x20] %v569
    %s582 = scalar_lea.vmem [#allocation1], 40
    %v583 = vld [vmem:[%s582] sm:$0x3f]
    %s584 = scalar_lea.vmem [#allocation0], 10
    %585 = vst [vmem:[%s584] sm:$0x1] %v583
    %s586 = scalar_lea.vmem [#allocation0], 73
    %587 = vst [vmem:[%s586] sm:$0x2] %v583
    %s588 = scalar_lea.vmem [#allocation0], 136
    %589 = vst [vmem:[%s588] sm:$0x4] %v583
    %s590 = scalar_lea.vmem [#allocation0], 199
    %591 = vst [vmem:[%s590] sm:$0x8] %v583
    %s592 = scalar_lea.vmem [#allocation0], 262
    %593 = vst [vmem:[%s592] sm:$0x10] %v583
    %s594 = scalar_lea.vmem [#allocation0], 325
    %595 = vst [vmem:[%s594] sm:$0x20] %v583
    %s596 = scalar_lea.vmem [#allocation1], 48
    %v597 = vld [vmem:[%s596] sm:$0x3f]
    %s598 = scalar_lea.vmem [#allocation0], 3
    %599 = vst [vmem:[%s598] sm:$0x1] %v597
    %s600 = scalar_lea.vmem [#allocation0], 66
    %601 = vst [vmem:[%s600] sm:$0x2] %v597
    %s602 = scalar_lea.vmem [#allocation0], 129
    %603 = vst [vmem:[%s602] sm:$0x4] %v597
    %s604 = scalar_lea.vmem [#allocation0], 192
    %605 = vst [vmem:[%s604] sm:$0x8] %v597
    %s606 = scalar_lea.vmem [#allocation0], 255
    %607 = vst [vmem:[%s606] sm:$0x10] %v597
    %s608 = scalar_lea.vmem [#allocation0], 318
    %609 = vst [vmem:[%s608] sm:$0x20] %v597
    %s610 = scalar_lea.vmem [#allocation1], 56
    %v611 = vld [vmem:[%s610] sm:$0x3f]
    %s612 = scalar_lea.vmem [#allocation0], 11
    %613 = vst [vmem:[%s612] sm:$0x1] %v611
    %s614 = scalar_lea.vmem [#allocation0], 74
    %615 = vst [vmem:[%s614] sm:$0x2] %v611
    %s616 = scalar_lea.vmem [#allocation0], 137
    %617 = vst [vmem:[%s616] sm:$0x4] %v611
    %s618 = scalar_lea.vmem [#allocation0], 200
    %619 = vst [vmem:[%s618] sm:$0x8] %v611
    %s620 = scalar_lea.vmem [#allocation0], 263
    %621 = vst [vmem:[%s620] sm:$0x10] %v611
    %s622 = scalar_lea.vmem [#allocation0], 326
    %623 = vst [vmem:[%s622] sm:$0x20] %v611
    %s624 = scalar_lea.vmem [#allocation1], 64
    %v625 = vld [vmem:[%s624] sm:$0x3f]
    %s626 = scalar_lea.vmem [#allocation0], 16
    %627 = vst [vmem:[%s626] sm:$0x1] %v625
    %s628 = scalar_lea.vmem [#allocation0], 79
    %629 = vst [vmem:[%s628] sm:$0x2] %v625
    %s630 = scalar_lea.vmem [#allocation0], 142
    %631 = vst [vmem:[%s630] sm:$0x4] %v625
    %s632 = scalar_lea.vmem [#allocation0], 205
    %633 = vst [vmem:[%s632] sm:$0x8] %v625
    %s634 = scalar_lea.vmem [#allocation0], 268
    %635 = vst [vmem:[%s634] sm:$0x10] %v625
    %s636 = scalar_lea.vmem [#allocation0], 331
    %637 = vst [vmem:[%s636] sm:$0x20] %v625
    %s638 = scalar_lea.vmem [#allocation1], 72
    %v639 = vld [vmem:[%s638] sm:$0x3f]
    %s640 = scalar_lea.vmem [#allocation0], 24
    %641 = vst [vmem:[%s640] sm:$0x1] %v639
    %s642 = scalar_lea.vmem [#allocation0], 87
    %643 = vst [vmem:[%s642] sm:$0x2] %v639
    %s644 = scalar_lea.vmem [#allocation0], 150
    %645 = vst [vmem:[%s644] sm:$0x4] %v639
    %s646 = scalar_lea.vmem [#allocation0], 213
    %647 = vst [vmem:[%s646] sm:$0x8] %v639
    %s648 = scalar_lea.vmem [#allocation0], 276
    %649 = vst [vmem:[%s648] sm:$0x10] %v639
    %s650 = scalar_lea.vmem [#allocation0], 339
    %651 = vst [vmem:[%s650] sm:$0x20] %v639
    %s652 = scalar_lea.vmem [#allocation1], 80
    %v653 = vld [vmem:[%s652] sm:$0x3f]
    %s654 = scalar_lea.vmem [#allocation0], 17
    %655 = vst [vmem:[%s654] sm:$0x1] %v653
    %s656 = scalar_lea.vmem [#allocation0], 80
    %657 = vst [vmem:[%s656] sm:$0x2] %v653
    %s658 = scalar_lea.vmem [#allocation0], 143
    %659 = vst [vmem:[%s658] sm:$0x4] %v653
    %s660 = scalar_lea.vmem [#allocation0], 206
    %661 = vst [vmem:[%s660] sm:$0x8] %v653
    %s662 = scalar_lea.vmem [#allocation0], 269
    %663 = vst [vmem:[%s662] sm:$0x10] %v653
    %s664 = scalar_lea.vmem [#allocation0], 332
    %665 = vst [vmem:[%s664] sm:$0x20] %v653
    %s666 = scalar_lea.vmem [#allocation1], 88
    %v667 = vld [vmem:[%s666] sm:$0x3f]
    %s668 = scalar_lea.vmem [#allocation0], 25
    %669 = vst [vmem:[%s668] sm:$0x1] %v667
    %s670 = scalar_lea.vmem [#allocation0], 88
    %671 = vst [vmem:[%s670] sm:$0x2] %v667
    %s672 = scalar_lea.vmem [#allocation0], 151
    %673 = vst [vmem:[%s672] sm:$0x4] %v667
    %s674 = scalar_lea.vmem [#allocation0], 214
    %675 = vst [vmem:[%s674] sm:$0x8] %v667
    %s676 = scalar_lea.vmem [#allocation0], 277
    %677 = vst [vmem:[%s676] sm:$0x10] %v667
    %s678 = scalar_lea.vmem [#allocation0], 340
    %679 = vst [vmem:[%s678] sm:$0x20] %v667
    %s680 = scalar_lea.vmem [#allocation1], 96
    %v681 = vld [vmem:[%s680] sm:$0x3f]
    %s682 = scalar_lea.vmem [#allocation0], 18
    %683 = vst [vmem:[%s682] sm:$0x1] %v681
    %s684 = scalar_lea.vmem [#allocation0], 81
    %685 = vst [vmem:[%s684] sm:$0x2] %v681
    %s686 = scalar_lea.vmem [#allocation0], 144
    %687 = vst [vmem:[%s686] sm:$0x4] %v681
    %s688 = scalar_lea.vmem [#allocation0], 207
    %689 = vst [vmem:[%s688] sm:$0x8] %v681
    %s690 = scalar_lea.vmem [#allocation0], 270
    %691 = vst [vmem:[%s690] sm:$0x10] %v681
    %s692 = scalar_lea.vmem [#allocation0], 333
    %693 = vst [vmem:[%s692] sm:$0x20] %v681
    %s694 = scalar_lea.vmem [#allocation1], 104
    %v695 = vld [vmem:[%s694] sm:$0x3f]
    %s696 = scalar_lea.vmem [#allocation0], 26
    %697 = vst [vmem:[%s696] sm:$0x1] %v695
    %s698 = scalar_lea.vmem [#allocation0], 89
    %699 = vst [vmem:[%s698] sm:$0x2] %v695
    %s700 = scalar_lea.vmem [#allocation0], 152
    %701 = vst [vmem:[%s700] sm:$0x4] %v695
    %s702 = scalar_lea.vmem [#allocation0], 215
    %703 = vst [vmem:[%s702] sm:$0x8] %v695
    %s704 = scalar_lea.vmem [#allocation0], 278
    %705 = vst [vmem:[%s704] sm:$0x10] %v695
    %s706 = scalar_lea.vmem [#allocation0], 341
    %707 = vst [vmem:[%s706] sm:$0x20] %v695
    %s708 = scalar_lea.vmem [#allocation1], 112
    %v709 = vld [vmem:[%s708] sm:$0x3f]
    %s710 = scalar_lea.vmem [#allocation0], 19
    %711 = vst [vmem:[%s710] sm:$0x1] %v709
    %s712 = scalar_lea.vmem [#allocation0], 82
    %713 = vst [vmem:[%s712] sm:$0x2] %v709
    %s714 = scalar_lea.vmem [#allocation0], 145
    %715 = vst [vmem:[%s714] sm:$0x4] %v709
    %s716 = scalar_lea.vmem [#allocation0], 208
    %717 = vst [vmem:[%s716] sm:$0x8] %v709
    %s718 = scalar_lea.vmem [#allocation0], 271
    %719 = vst [vmem:[%s718] sm:$0x10] %v709
    %s720 = scalar_lea.vmem [#allocation0], 334
    %721 = vst [vmem:[%s720] sm:$0x20] %v709
    %s722 = scalar_lea.vmem [#allocation1], 120
    %v723 = vld [vmem:[%s722] sm:$0x3f]
    %s724 = scalar_lea.vmem [#allocation0], 27
    %725 = vst [vmem:[%s724] sm:$0x1] %v723
    %s726 = scalar_lea.vmem [#allocation0], 90
    %727 = vst [vmem:[%s726] sm:$0x2] %v723
    %s728 = scalar_lea.vmem [#allocation0], 153
    %729 = vst [vmem:[%s728] sm:$0x4] %v723
    %s730 = scalar_lea.vmem [#allocation0], 216
    %731 = vst [vmem:[%s730] sm:$0x8] %v723
    %s732 = scalar_lea.vmem [#allocation0], 279
    %733 = vst [vmem:[%s732] sm:$0x10] %v723
    %s734 = scalar_lea.vmem [#allocation0], 342
    %735 = vst [vmem:[%s734] sm:$0x20] %v723
    %s736 = scalar_lea.vmem [#allocation1], 128
    %v737 = vld [vmem:[%s736] sm:$0x3f]
    %s738 = scalar_lea.vmem [#allocation0], 32
    %739 = vst [vmem:[%s738] sm:$0x1] %v737
    %s740 = scalar_lea.vmem [#allocation0], 95
    %741 = vst [vmem:[%s740] sm:$0x2] %v737
    %s742 = scalar_lea.vmem [#allocation0], 158
    %743 = vst [vmem:[%s742] sm:$0x4] %v737
    %s744 = scalar_lea.vmem [#allocation0], 221
    %745 = vst [vmem:[%s744] sm:$0x8] %v737
    %s746 = scalar_lea.vmem [#allocation0], 284
    %747 = vst [vmem:[%s746] sm:$0x10] %v737
    %s748 = scalar_lea.vmem [#allocation0], 347
    %749 = vst [vmem:[%s748] sm:$0x20] %v737
    %s750 = scalar_lea.vmem [#allocation1], 136
    %v751 = vld [vmem:[%s750] sm:$0x3f]
    %s752 = scalar_lea.vmem [#allocation0], 40
    %753 = vst [vmem:[%s752] sm:$0x1] %v751
    %s754 = scalar_lea.vmem [#allocation0], 103
    %755 = vst [vmem:[%s754] sm:$0x2] %v751
    %s756 = scalar_lea.vmem [#allocation0], 166
    %757 = vst [vmem:[%s756] sm:$0x4] %v751
    %s758 = scalar_lea.vmem [#allocation0], 229
    %759 = vst [vmem:[%s758] sm:$0x8] %v751
    %s760 = scalar_lea.vmem [#allocation0], 292
    %761 = vst [vmem:[%s760] sm:$0x10] %v751
    %s762 = scalar_lea.vmem [#allocation0], 355
    %763 = vst [vmem:[%s762] sm:$0x20] %v751
    %s764 = scalar_lea.vmem [#allocation1], 144
    %v765 = vld [vmem:[%s764] sm:$0x3f]
    %s766 = scalar_lea.vmem [#allocation0], 33
    %767 = vst [vmem:[%s766] sm:$0x1] %v765
    %s768 = scalar_lea.vmem [#allocation0], 96
    %769 = vst [vmem:[%s768] sm:$0x2] %v765
    %s770 = scalar_lea.vmem [#allocation0], 159
    %771 = vst [vmem:[%s770] sm:$0x4] %v765
    %s772 = scalar_lea.vmem [#allocation0], 222
    %773 = vst [vmem:[%s772] sm:$0x8] %v765
    %s774 = scalar_lea.vmem [#allocation0], 285
    %775 = vst [vmem:[%s774] sm:$0x10] %v765
    %s776 = scalar_lea.vmem [#allocation0], 348
    %777 = vst [vmem:[%s776] sm:$0x20] %v765
    %s778 = scalar_lea.vmem [#allocation1], 152
    %v779 = vld [vmem:[%s778] sm:$0x3f]
    %s780 = scalar_lea.vmem [#allocation0], 41
    %781 = vst [vmem:[%s780] sm:$0x1] %v779
    %s782 = scalar_lea.vmem [#allocation0], 104
    %783 = vst [vmem:[%s782] sm:$0x2] %v779
    %s784 = scalar_lea.vmem [#allocation0], 167
    %785 = vst [vmem:[%s784] sm:$0x4] %v779
    %s786 = scalar_lea.vmem [#allocation0], 230
    %787 = vst [vmem:[%s786] sm:$0x8] %v779
    %s788 = scalar_lea.vmem [#allocation0], 293
    %789 = vst [vmem:[%s788] sm:$0x10] %v779
    %s790 = scalar_lea.vmem [#allocation0], 356
    %791 = vst [vmem:[%s790] sm:$0x20] %v779
    %s792 = scalar_lea.vmem [#allocation1], 160
    %v793 = vld [vmem:[%s792] sm:$0x3f]
    %s794 = scalar_lea.vmem [#allocation0], 34
    %795 = vst [vmem:[%s794] sm:$0x1] %v793
    %s796 = scalar_lea.vmem [#allocation0], 97
    %797 = vst [vmem:[%s796] sm:$0x2] %v793
    %s798 = scalar_lea.vmem [#allocation0], 160
    %799 = vst [vmem:[%s798] sm:$0x4] %v793
    %s800 = scalar_lea.vmem [#allocation0], 223
    %801 = vst [vmem:[%s800] sm:$0x8] %v793
    %s802 = scalar_lea.vmem [#allocation0], 286
    %803 = vst [vmem:[%s802] sm:$0x10] %v793
    %s804 = scalar_lea.vmem [#allocation0], 349
    %805 = vst [vmem:[%s804] sm:$0x20] %v793
    %s806 = scalar_lea.vmem [#allocation1], 168
    %v807 = vld [vmem:[%s806] sm:$0x3f]
    %s808 = scalar_lea.vmem [#allocation0], 42
    %809 = vst [vmem:[%s808] sm:$0x1] %v807
    %s810 = scalar_lea.vmem [#allocation0], 105
    %811 = vst [vmem:[%s810] sm:$0x2] %v807
    %s812 = scalar_lea.vmem [#allocation0], 168
    %813 = vst [vmem:[%s812] sm:$0x4] %v807
    %s814 = scalar_lea.vmem [#allocation0], 231
    %815 = vst [vmem:[%s814] sm:$0x8] %v807
    %s816 = scalar_lea.vmem [#allocation0], 294
    %817 = vst [vmem:[%s816] sm:$0x10] %v807
    %s818 = scalar_lea.vmem [#allocation0], 357
    %819 = vst [vmem:[%s818] sm:$0x20] %v807
    %s820 = scalar_lea.vmem [#allocation1], 176
    %v821 = vld [vmem:[%s820] sm:$0x3f]
    %s822 = scalar_lea.vmem [#allocation0], 35
    %823 = vst [vmem:[%s822] sm:$0x1] %v821
    %s824 = scalar_lea.vmem [#allocation0], 98
    %825 = vst [vmem:[%s824] sm:$0x2] %v821
    %s826 = scalar_lea.vmem [#allocation0], 161
    %827 = vst [vmem:[%s826] sm:$0x4] %v821
    %s828 = scalar_lea.vmem [#allocation0], 224
    %829 = vst [vmem:[%s828] sm:$0x8] %v821
    %s830 = scalar_lea.vmem [#allocation0], 287
    %831 = vst [vmem:[%s830] sm:$0x10] %v821
    %s832 = scalar_lea.vmem [#allocation0], 350
    %833 = vst [vmem:[%s832] sm:$0x20] %v821
    %s834 = scalar_lea.vmem [#allocation1], 184
    %v835 = vld [vmem:[%s834] sm:$0x3f]
    %s836 = scalar_lea.vmem [#allocation0], 43
    %837 = vst [vmem:[%s836] sm:$0x1] %v835
    %s838 = scalar_lea.vmem [#allocation0], 106
    %839 = vst [vmem:[%s838] sm:$0x2] %v835
    %s840 = scalar_lea.vmem [#allocation0], 169
    %841 = vst [vmem:[%s840] sm:$0x4] %v835
    %s842 = scalar_lea.vmem [#allocation0], 232
    %843 = vst [vmem:[%s842] sm:$0x8] %v835
    %s844 = scalar_lea.vmem [#allocation0], 295
    %845 = vst [vmem:[%s844] sm:$0x10] %v835
    %s846 = scalar_lea.vmem [#allocation0], 358
    %847 = vst [vmem:[%s846] sm:$0x20] %v835
    %s848 = scalar_lea.vmem [#allocation1], 192
    %v849 = vld [vmem:[%s848] sm:$0x3f]
    %s850 = scalar_lea.vmem [#allocation0], 48
    %851 = vst [vmem:[%s850] sm:$0x1] %v849
    %s852 = scalar_lea.vmem [#allocation0], 111
    %853 = vst [vmem:[%s852] sm:$0x2] %v849
    %s854 = scalar_lea.vmem [#allocation0], 174
    %855 = vst [vmem:[%s854] sm:$0x4] %v849
    %s856 = scalar_lea.vmem [#allocation0], 237
    %857 = vst [vmem:[%s856] sm:$0x8] %v849
    %s858 = scalar_lea.vmem [#allocation0], 300
    %859 = vst [vmem:[%s858] sm:$0x10] %v849
    %s860 = scalar_lea.vmem [#allocation0], 363
    %861 = vst [vmem:[%s860] sm:$0x20] %v849
    %s862 = scalar_lea.vmem [#allocation1], 200
    %v863 = vld [vmem:[%s862] sm:$0x3f]
    %s864 = scalar_lea.vmem [#allocation0], 56
    %865 = vst [vmem:[%s864] sm:$0x1] %v863
    %s866 = scalar_lea.vmem [#allocation0], 119
    %867 = vst [vmem:[%s866] sm:$0x2] %v863
    %s868 = scalar_lea.vmem [#allocation0], 182
    %869 = vst [vmem:[%s868] sm:$0x4] %v863
    %s870 = scalar_lea.vmem [#allocation0], 245
    %871 = vst [vmem:[%s870] sm:$0x8] %v863
    %s872 = scalar_lea.vmem [#allocation0], 308
    %873 = vst [vmem:[%s872] sm:$0x10] %v863
    %s874 = scalar_lea.vmem [#allocation0], 371
    %875 = vst [vmem:[%s874] sm:$0x20] %v863
    %s876 = scalar_lea.vmem [#allocation1], 208
    %v877 = vld [vmem:[%s876] sm:$0x3f]
    %s878 = scalar_lea.vmem [#allocation0], 49
    %879 = vst [vmem:[%s878] sm:$0x1] %v877
    %s880 = scalar_lea.vmem [#allocation0], 112
    %881 = vst [vmem:[%s880] sm:$0x2] %v877
    %s882 = scalar_lea.vmem [#allocation0], 175
    %883 = vst [vmem:[%s882] sm:$0x4] %v877
    %s884 = scalar_lea.vmem [#allocation0], 238
    %885 = vst [vmem:[%s884] sm:$0x8] %v877
    %s886 = scalar_lea.vmem [#allocation0], 301
    %887 = vst [vmem:[%s886] sm:$0x10] %v877
    %s888 = scalar_lea.vmem [#allocation0], 364
    %889 = vst [vmem:[%s888] sm:$0x20] %v877
    %s890 = scalar_lea.vmem [#allocation1], 216
    %v891 = vld [vmem:[%s890] sm:$0x3f]
    %s892 = scalar_lea.vmem [#allocation0], 57
    %893 = vst [vmem:[%s892] sm:$0x1] %v891
    %s894 = scalar_lea.vmem [#allocation0], 120
    %895 = vst [vmem:[%s894] sm:$0x2] %v891
    %s896 = scalar_lea.vmem [#allocation0], 183
    %897 = vst [vmem:[%s896] sm:$0x4] %v891
    %s898 = scalar_lea.vmem [#allocation0], 246
    %899 = vst [vmem:[%s898] sm:$0x8] %v891
    %s900 = scalar_lea.vmem [#allocation0], 309
    %901 = vst [vmem:[%s900] sm:$0x10] %v891
    %s902 = scalar_lea.vmem [#allocation0], 372
    %903 = vst [vmem:[%s902] sm:$0x20] %v891
    %s904 = scalar_lea.vmem [#allocation1], 224
    %v905 = vld [vmem:[%s904] sm:$0x3f]
    %s906 = scalar_lea.vmem [#allocation0], 50
    %907 = vst [vmem:[%s906] sm:$0x1] %v905
    %s908 = scalar_lea.vmem [#allocation0], 113
    %909 = vst [vmem:[%s908] sm:$0x2] %v905
    %s910 = scalar_lea.vmem [#allocation0], 176
    %911 = vst [vmem:[%s910] sm:$0x4] %v905
    %s912 = scalar_lea.vmem [#allocation0], 239
    %913 = vst [vmem:[%s912] sm:$0x8] %v905
    %s914 = scalar_lea.vmem [#allocation0], 302
    %915 = vst [vmem:[%s914] sm:$0x10] %v905
    %s916 = scalar_lea.vmem [#allocation0], 365
    %917 = vst [vmem:[%s916] sm:$0x20] %v905
    %s918 = scalar_lea.vmem [#allocation1], 232
    %v919 = vld [vmem:[%s918] sm:$0x3f]
    %s920 = scalar_lea.vmem [#allocation0], 58
    %921 = vst [vmem:[%s920] sm:$0x1] %v919
    %s922 = scalar_lea.vmem [#allocation0], 121
    %923 = vst [vmem:[%s922] sm:$0x2] %v919
    %s924 = scalar_lea.vmem [#allocation0], 184
    %925 = vst [vmem:[%s924] sm:$0x4] %v919
    %s926 = scalar_lea.vmem [#allocation0], 247
    %927 = vst [vmem:[%s926] sm:$0x8] %v919
    %s928 = scalar_lea.vmem [#allocation0], 310
    %929 = vst [vmem:[%s928] sm:$0x10] %v919
    %s930 = scalar_lea.vmem [#allocation0], 373
    %931 = vst [vmem:[%s930] sm:$0x20] %v919
    %s932 = scalar_lea.vmem [#allocation1], 240
    %v933 = vld [vmem:[%s932] sm:$0x3f]
    %s934 = scalar_lea.vmem [#allocation0], 51
    %935 = vst [vmem:[%s934] sm:$0x1] %v933
    %s936 = scalar_lea.vmem [#allocation0], 114
    %937 = vst [vmem:[%s936] sm:$0x2] %v933
    %s938 = scalar_lea.vmem [#allocation0], 177
    %939 = vst [vmem:[%s938] sm:$0x4] %v933
    %s940 = scalar_lea.vmem [#allocation0], 240
    %941 = vst [vmem:[%s940] sm:$0x8] %v933
    %s942 = scalar_lea.vmem [#allocation0], 303
    %943 = vst [vmem:[%s942] sm:$0x10] %v933
    %s944 = scalar_lea.vmem [#allocation0], 366
    %945 = vst [vmem:[%s944] sm:$0x20] %v933
    %s946 = scalar_lea.vmem [#allocation1], 248
    %v947 = vld [vmem:[%s946] sm:$0x3f]
    %s948 = scalar_lea.vmem [#allocation0], 59
    %949 = vst [vmem:[%s948] sm:$0x1] %v947
    %s950 = scalar_lea.vmem [#allocation0], 122
    %951 = vst [vmem:[%s950] sm:$0x2] %v947
    %s952 = scalar_lea.vmem [#allocation0], 185
    %953 = vst [vmem:[%s952] sm:$0x4] %v947
    %s954 = scalar_lea.vmem [#allocation0], 248
    %955 = vst [vmem:[%s954] sm:$0x8] %v947
    %s956 = scalar_lea.vmem [#allocation0], 311
    %957 = vst [vmem:[%s956] sm:$0x10] %v947
    %s958 = scalar_lea.vmem [#allocation0], 374
    %959 = vst [vmem:[%s958] sm:$0x20] %v947
    %s961 = smul.u32 2, 2
    %s962 = sshll.u32 1, %s961
    %s963 = ssub.s32 %s962, 1
    %s964 = sshrl.u32 %s961, 1
    %v965 = vld [vmem:[#allocation0] sm:%s963]
    %v966 = vpack.c.bf16 0.0, %v965
    %s967 = sshll.u32 1, %s964
    %s968 = ssub.s32 %s967, 1
    %969 = vst [vmem:[%s1] sm:%s968] %v966
    %s970 = scalar_lea.vmem [#allocation0], 8
    %v971 = vld [vmem:[%s970] sm:%s963]
    %v972 = vpack.c.bf16 0.0, %v971
    %s973 = sshll.u32 1, %s964
    %s974 = ssub.s32 %s973, 1
    %s975 = scalar_lea.vmem %s1, 2
    %976 = vst [vmem:[%s975] sm:%s974] %v972
    %s977 = scalar_lea.vmem [#allocation0], 16
    %v978 = vld [vmem:[%s977] sm:%s963]
    %v979 = vpack.c.bf16 0.0, %v978
    %s980 = sshll.u32 1, %s964
    %s981 = ssub.s32 %s980, 1
    %s982 = smul.addr 2, 2
    %s983 = scalar_lea.vmem %s1, %s982
    %984 = vst [vmem:[%s983] sm:%s981] %v979
    %s985 = scalar_lea.vmem [#allocation0], 24
    %v986 = vld [vmem:[%s985] sm:%s963]
    %v987 = vpack.c.bf16 0.0, %v986
    %s988 = sshll.u32 1, %s964
    %s989 = ssub.s32 %s988, 1
    %s990 = smul.addr 2, 3
    %s991 = scalar_lea.vmem %s1, %s990
    %992 = vst [vmem:[%s991] sm:%s989] %v987
    %s993 = scalar_lea.vmem [#allocation0], 32
    %v994 = vld [vmem:[%s993] sm:%s963]
    %v995 = vpack.c.bf16 0.0, %v994
    %s996 = sshll.u32 1, %s964
    %s997 = ssub.s32 %s996, 1
    %s998 = smul.addr 2, 4
    %s999 = scalar_lea.vmem %s1, %s998
    %1000 = vst [vmem:[%s999] sm:%s997] %v995
    %s1001 = scalar_lea.vmem [#allocation0], 40
    %v1002 = vld [vmem:[%s1001] sm:%s963]
    %v1003 = vpack.c.bf16 0.0, %v1002
    %s1004 = sshll.u32 1, %s964
    %s1005 = ssub.s32 %s1004, 1
    %s1006 = smul.addr 2, 5
    %s1007 = scalar_lea.vmem %s1, %s1006
    %1008 = vst [vmem:[%s1007] sm:%s1005] %v1003
    %s1009 = scalar_lea.vmem [#allocation0], 48
    %v1010 = vld [vmem:[%s1009] sm:%s963]
    %v1011 = vpack.c.bf16 0.0, %v1010
    %s1012 = sshll.u32 1, %s964
    %s1013 = ssub.s32 %s1012, 1
    %s1014 = smul.addr 2, 6
    %s1015 = scalar_lea.vmem %s1, %s1014
    %1016 = vst [vmem:[%s1015] sm:%s1013] %v1011
    %s1017 = scalar_lea.vmem [#allocation0], 56
    %v1018 = vld [vmem:[%s1017] sm:%s963]
    %v1019 = vpack.c.bf16 0.0, %v1018
    %s1020 = sshll.u32 1, %s964
    %s1021 = ssub.s32 %s1020, 1
    %s1022 = smul.addr 2, 7
    %s1023 = scalar_lea.vmem %s1, %s1022
    %1024 = vst [vmem:[%s1023] sm:%s1021] %v1019
    %s1025 = scalar_lea.vmem [#allocation0], 64
    %v1026 = vld [vmem:[%s1025] sm:%s963]
    %v1027 = vpack.c.bf16 0.0, %v1026
    %s1028 = sshll.u32 1, %s964
    %s1029 = ssub.s32 %s1028, 1
    %s1030 = smul.addr 2, 8
    %s1031 = scalar_lea.vmem %s1, %s1030
    %1032 = vst [vmem:[%s1031] sm:%s1029] %v1027
    %s1033 = scalar_lea.vmem [#allocation0], 72
    %v1034 = vld [vmem:[%s1033] sm:%s963]
    %v1035 = vpack.c.bf16 0.0, %v1034
    %s1036 = sshll.u32 1, %s964
    %s1037 = ssub.s32 %s1036, 1
    %s1038 = smul.addr 2, 9
    %s1039 = scalar_lea.vmem %s1, %s1038
    %1040 = vst [vmem:[%s1039] sm:%s1037] %v1035
    %s1041 = scalar_lea.vmem [#allocation0], 80
    %v1042 = vld [vmem:[%s1041] sm:%s963]
    %v1043 = vpack.c.bf16 0.0, %v1042
    %s1044 = sshll.u32 1, %s964
    %s1045 = ssub.s32 %s1044, 1
    %s1046 = smul.addr 2, 10
    %s1047 = scalar_lea.vmem %s1, %s1046
    %1048 = vst [vmem:[%s1047] sm:%s1045] %v1043
    %s1049 = scalar_lea.vmem [#allocation0], 88
    %v1050 = vld [vmem:[%s1049] sm:%s963]
    %v1051 = vpack.c.bf16 0.0, %v1050
    %s1052 = sshll.u32 1, %s964
    %s1053 = ssub.s32 %s1052, 1
    %s1054 = smul.addr 2, 11
    %s1055 = scalar_lea.vmem %s1, %s1054
    %1056 = vst [vmem:[%s1055] sm:%s1053] %v1051
    %s1057 = scalar_lea.vmem [#allocation0], 96
    %v1058 = vld [vmem:[%s1057] sm:%s963]
    %v1059 = vpack.c.bf16 0.0, %v1058
    %s1060 = sshll.u32 1, %s964
    %s1061 = ssub.s32 %s1060, 1
    %s1062 = smul.addr 2, 12
    %s1063 = scalar_lea.vmem %s1, %s1062
    %1064 = vst [vmem:[%s1063] sm:%s1061] %v1059
    %s1065 = scalar_lea.vmem [#allocation0], 104
    %v1066 = vld [vmem:[%s1065] sm:%s963]
    %v1067 = vpack.c.bf16 0.0, %v1066
    %s1068 = sshll.u32 1, %s964
    %s1069 = ssub.s32 %s1068, 1
    %s1070 = smul.addr 2, 13
    %s1071 = scalar_lea.vmem %s1, %s1070
    %1072 = vst [vmem:[%s1071] sm:%s1069] %v1067
    %s1073 = scalar_lea.vmem [#allocation0], 112
    %v1074 = vld [vmem:[%s1073] sm:%s963]
    %v1075 = vpack.c.bf16 0.0, %v1074
    %s1076 = sshll.u32 1, %s964
    %s1077 = ssub.s32 %s1076, 1
    %s1078 = smul.addr 2, 14
    %s1079 = scalar_lea.vmem %s1, %s1078
    %1080 = vst [vmem:[%s1079] sm:%s1077] %v1075
    %s1081 = scalar_lea.vmem [#allocation0], 120
    %v1082 = vld [vmem:[%s1081] sm:%s963]
    %v1083 = vpack.c.bf16 0.0, %v1082
    %s1084 = sshll.u32 1, %s964
    %s1085 = ssub.s32 %s1084, 1
    %s1086 = smul.addr 2, 15
    %s1087 = scalar_lea.vmem %s1, %s1086
    %1088 = vst [vmem:[%s1087] sm:%s1085] %v1083
    %s1089 = scalar_lea.vmem [#allocation0], 128
    %v1090 = vld [vmem:[%s1089] sm:%s963]
    %v1091 = vpack.c.bf16 0.0, %v1090
    %s1092 = sshll.u32 1, %s964
    %s1093 = ssub.s32 %s1092, 1
    %s1094 = smul.addr 2, 16
    %s1095 = scalar_lea.vmem %s1, %s1094
    %1096 = vst [vmem:[%s1095] sm:%s1093] %v1091
    %s1097 = scalar_lea.vmem [#allocation0], 136
    %v1098 = vld [vmem:[%s1097] sm:%s963]
    %v1099 = vpack.c.bf16 0.0, %v1098
    %s1100 = sshll.u32 1, %s964
    %s1101 = ssub.s32 %s1100, 1
    %s1102 = smul.addr 2, 17
    %s1103 = scalar_lea.vmem %s1, %s1102
    %1104 = vst [vmem:[%s1103] sm:%s1101] %v1099
    %s1105 = scalar_lea.vmem [#allocation0], 144
    %v1106 = vld [vmem:[%s1105] sm:%s963]
    %v1107 = vpack.c.bf16 0.0, %v1106
    %s1108 = sshll.u32 1, %s964
    %s1109 = ssub.s32 %s1108, 1
    %s1110 = smul.addr 2, 18
    %s1111 = scalar_lea.vmem %s1, %s1110
    %1112 = vst [vmem:[%s1111] sm:%s1109] %v1107
    %s1113 = scalar_lea.vmem [#allocation0], 152
    %v1114 = vld [vmem:[%s1113] sm:%s963]
    %v1115 = vpack.c.bf16 0.0, %v1114
    %s1116 = sshll.u32 1, %s964
    %s1117 = ssub.s32 %s1116, 1
    %s1118 = smul.addr 2, 19
    %s1119 = scalar_lea.vmem %s1, %s1118
    %1120 = vst [vmem:[%s1119] sm:%s1117] %v1115
    %s1121 = scalar_lea.vmem [#allocation0], 160
    %v1122 = vld [vmem:[%s1121] sm:%s963]
    %v1123 = vpack.c.bf16 0.0, %v1122
    %s1124 = sshll.u32 1, %s964
    %s1125 = ssub.s32 %s1124, 1
    %s1126 = smul.addr 2, 20
    %s1127 = scalar_lea.vmem %s1, %s1126
    %1128 = vst [vmem:[%s1127] sm:%s1125] %v1123
    %s1129 = scalar_lea.vmem [#allocation0], 168
    %v1130 = vld [vmem:[%s1129] sm:%s963]
    %v1131 = vpack.c.bf16 0.0, %v1130
    %s1132 = sshll.u32 1, %s964
    %s1133 = ssub.s32 %s1132, 1
    %s1134 = smul.addr 2, 21
    %s1135 = scalar_lea.vmem %s1, %s1134
    %1136 = vst [vmem:[%s1135] sm:%s1133] %v1131
    %s1137 = scalar_lea.vmem [#allocation0], 176
    %v1138 = vld [vmem:[%s1137] sm:%s963]
    %v1139 = vpack.c.bf16 0.0, %v1138
    %s1140 = sshll.u32 1, %s964
    %s1141 = ssub.s32 %s1140, 1
    %s1142 = smul.addr 2, 22
    %s1143 = scalar_lea.vmem %s1, %s1142
    %1144 = vst [vmem:[%s1143] sm:%s1141] %v1139
    %s1145 = scalar_lea.vmem [#allocation0], 184
    %v1146 = vld [vmem:[%s1145] sm:%s963]
    %v1147 = vpack.c.bf16 0.0, %v1146
    %s1148 = sshll.u32 1, %s964
    %s1149 = ssub.s32 %s1148, 1
    %s1150 = smul.addr 2, 23
    %s1151 = scalar_lea.vmem %s1, %s1150
    %1152 = vst [vmem:[%s1151] sm:%s1149] %v1147
    %s1153 = scalar_lea.vmem [#allocation0], 192
    %v1154 = vld [vmem:[%s1153] sm:%s963]
    %v1155 = vpack.c.bf16 0.0, %v1154
    %s1156 = sshll.u32 1, %s964
    %s1157 = ssub.s32 %s1156, 1
    %s1158 = smul.addr 2, 24
    %s1159 = scalar_lea.vmem %s1, %s1158
    %1160 = vst [vmem:[%s1159] sm:%s1157] %v1155
    %s1161 = scalar_lea.vmem [#allocation0], 200
    %v1162 = vld [vmem:[%s1161] sm:%s963]
    %v1163 = vpack.c.bf16 0.0, %v1162
    %s1164 = sshll.u32 1, %s964
    %s1165 = ssub.s32 %s1164, 1
    %s1166 = smul.addr 2, 25
    %s1167 = scalar_lea.vmem %s1, %s1166
    %1168 = vst [vmem:[%s1167] sm:%s1165] %v1163
    %s1169 = scalar_lea.vmem [#allocation0], 208
    %v1170 = vld [vmem:[%s1169] sm:%s963]
    %v1171 = vpack.c.bf16 0.0, %v1170
    %s1172 = sshll.u32 1, %s964
    %s1173 = ssub.s32 %s1172, 1
    %s1174 = smul.addr 2, 26
    %s1175 = scalar_lea.vmem %s1, %s1174
    %1176 = vst [vmem:[%s1175] sm:%s1173] %v1171
    %s1177 = scalar_lea.vmem [#allocation0], 216
    %v1178 = vld [vmem:[%s1177] sm:%s963]
    %v1179 = vpack.c.bf16 0.0, %v1178
    %s1180 = sshll.u32 1, %s964
    %s1181 = ssub.s32 %s1180, 1
    %s1182 = smul.addr 2, 27
    %s1183 = scalar_lea.vmem %s1, %s1182
    %1184 = vst [vmem:[%s1183] sm:%s1181] %v1179
    %s1185 = scalar_lea.vmem [#allocation0], 224
    %v1186 = vld [vmem:[%s1185] sm:%s963]
    %v1187 = vpack.c.bf16 0.0, %v1186
    %s1188 = sshll.u32 1, %s964
    %s1189 = ssub.s32 %s1188, 1
    %s1190 = smul.addr 2, 28
    %s1191 = scalar_lea.vmem %s1, %s1190
    %1192 = vst [vmem:[%s1191] sm:%s1189] %v1187
    %s1193 = scalar_lea.vmem [#allocation0], 232
    %v1194 = vld [vmem:[%s1193] sm:%s963]
    %v1195 = vpack.c.bf16 0.0, %v1194
    %s1196 = sshll.u32 1, %s964
    %s1197 = ssub.s32 %s1196, 1
    %s1198 = smul.addr 2, 29
    %s1199 = scalar_lea.vmem %s1, %s1198
    %1200 = vst [vmem:[%s1199] sm:%s1197] %v1195
    %s1201 = scalar_lea.vmem [#allocation0], 240
    %v1202 = vld [vmem:[%s1201] sm:%s963]
    %v1203 = vpack.c.bf16 0.0, %v1202
    %s1204 = sshll.u32 1, %s964
    %s1205 = ssub.s32 %s1204, 1
    %s1206 = smul.addr 2, 30
    %s1207 = scalar_lea.vmem %s1, %s1206
    %1208 = vst [vmem:[%s1207] sm:%s1205] %v1203
    %s1209 = scalar_lea.vmem [#allocation0], 248
    %v1210 = vld [vmem:[%s1209] sm:%s963]
    %v1211 = vpack.c.bf16 0.0, %v1210
    %s1212 = sshll.u32 1, %s964
    %s1213 = ssub.s32 %s1212, 1
    %s1214 = smul.addr 2, 31
    %s1215 = scalar_lea.vmem %s1, %s1214
    %1216 = vst [vmem:[%s1215] sm:%s1213] %v1211
    %s1217 = scalar_lea.vmem [#allocation0], 256
    %v1218 = vld [vmem:[%s1217] sm:%s963]
    %v1219 = vpack.c.bf16 0.0, %v1218
    %s1220 = sshll.u32 1, %s964
    %s1221 = ssub.s32 %s1220, 1
    %s1222 = smul.addr 2, 32
    %s1223 = scalar_lea.vmem %s1, %s1222
    %1224 = vst [vmem:[%s1223] sm:%s1221] %v1219
    %s1225 = scalar_lea.vmem [#allocation0], 264
    %v1226 = vld [vmem:[%s1225] sm:%s963]
    %v1227 = vpack.c.bf16 0.0, %v1226
    %s1228 = sshll.u32 1, %s964
    %s1229 = ssub.s32 %s1228, 1
    %s1230 = smul.addr 2, 33
    %s1231 = scalar_lea.vmem %s1, %s1230
    %1232 = vst [vmem:[%s1231] sm:%s1229] %v1227
    %s1233 = scalar_lea.vmem [#allocation0], 272
    %v1234 = vld [vmem:[%s1233] sm:%s963]
    %v1235 = vpack.c.bf16 0.0, %v1234
    %s1236 = sshll.u32 1, %s964
    %s1237 = ssub.s32 %s1236, 1
    %s1238 = smul.addr 2, 34
    %s1239 = scalar_lea.vmem %s1, %s1238
    %1240 = vst [vmem:[%s1239] sm:%s1237] %v1235
    %s1241 = scalar_lea.vmem [#allocation0], 280
    %v1242 = vld [vmem:[%s1241] sm:%s963]
    %v1243 = vpack.c.bf16 0.0, %v1242
    %s1244 = sshll.u32 1, %s964
    %s1245 = ssub.s32 %s1244, 1
    %s1246 = smul.addr 2, 35
    %s1247 = scalar_lea.vmem %s1, %s1246
    %1248 = vst [vmem:[%s1247] sm:%s1245] %v1243
    %s1249 = scalar_lea.vmem [#allocation0], 288
    %v1250 = vld [vmem:[%s1249] sm:%s963]
    %v1251 = vpack.c.bf16 0.0, %v1250
    %s1252 = sshll.u32 1, %s964
    %s1253 = ssub.s32 %s1252, 1
    %s1254 = smul.addr 2, 36
    %s1255 = scalar_lea.vmem %s1, %s1254
    %1256 = vst [vmem:[%s1255] sm:%s1253] %v1251
    %s1257 = scalar_lea.vmem [#allocation0], 296
    %v1258 = vld [vmem:[%s1257] sm:%s963]
    %v1259 = vpack.c.bf16 0.0, %v1258
    %s1260 = sshll.u32 1, %s964
    %s1261 = ssub.s32 %s1260, 1
    %s1262 = smul.addr 2, 37
    %s1263 = scalar_lea.vmem %s1, %s1262
    %1264 = vst [vmem:[%s1263] sm:%s1261] %v1259
    %s1265 = scalar_lea.vmem [#allocation0], 304
    %v1266 = vld [vmem:[%s1265] sm:%s963]
    %v1267 = vpack.c.bf16 0.0, %v1266
    %s1268 = sshll.u32 1, %s964
    %s1269 = ssub.s32 %s1268, 1
    %s1270 = smul.addr 2, 38
    %s1271 = scalar_lea.vmem %s1, %s1270
    %1272 = vst [vmem:[%s1271] sm:%s1269] %v1267
    %s1273 = scalar_lea.vmem [#allocation0], 312
    %v1274 = vld [vmem:[%s1273] sm:%s963]
    %v1275 = vpack.c.bf16 0.0, %v1274
    %s1276 = sshll.u32 1, %s964
    %s1277 = ssub.s32 %s1276, 1
    %s1278 = smul.addr 2, 39
    %s1279 = scalar_lea.vmem %s1, %s1278
    %1280 = vst [vmem:[%s1279] sm:%s1277] %v1275
    %s1281 = scalar_lea.vmem [#allocation0], 320
    %v1282 = vld [vmem:[%s1281] sm:%s963]
    %v1283 = vpack.c.bf16 0.0, %v1282
    %s1284 = sshll.u32 1, %s964
    %s1285 = ssub.s32 %s1284, 1
    %s1286 = smul.addr 2, 40
    %s1287 = scalar_lea.vmem %s1, %s1286
    %1288 = vst [vmem:[%s1287] sm:%s1285] %v1283
    %s1289 = scalar_lea.vmem [#allocation0], 328
    %v1290 = vld [vmem:[%s1289] sm:%s963]
    %v1291 = vpack.c.bf16 0.0, %v1290
    %s1292 = sshll.u32 1, %s964
    %s1293 = ssub.s32 %s1292, 1
    %s1294 = smul.addr 2, 41
    %s1295 = scalar_lea.vmem %s1, %s1294
    %1296 = vst [vmem:[%s1295] sm:%s1293] %v1291
    %s1297 = scalar_lea.vmem [#allocation0], 336
    %v1298 = vld [vmem:[%s1297] sm:%s963]
    %v1299 = vpack.c.bf16 0.0, %v1298
    %s1300 = sshll.u32 1, %s964
    %s1301 = ssub.s32 %s1300, 1
    %s1302 = smul.addr 2, 42
    %s1303 = scalar_lea.vmem %s1, %s1302
    %1304 = vst [vmem:[%s1303] sm:%s1301] %v1299
    %s1305 = scalar_lea.vmem [#allocation0], 344
    %v1306 = vld [vmem:[%s1305] sm:%s963]
    %v1307 = vpack.c.bf16 0.0, %v1306
    %s1308 = sshll.u32 1, %s964
    %s1309 = ssub.s32 %s1308, 1
    %s1310 = smul.addr 2, 43
    %s1311 = scalar_lea.vmem %s1, %s1310
    %1312 = vst [vmem:[%s1311] sm:%s1309] %v1307
    %s1313 = scalar_lea.vmem [#allocation0], 352
    %v1314 = vld [vmem:[%s1313] sm:%s963]
    %v1315 = vpack.c.bf16 0.0, %v1314
    %s1316 = sshll.u32 1, %s964
    %s1317 = ssub.s32 %s1316, 1
    %s1318 = smul.addr 2, 44
    %s1319 = scalar_lea.vmem %s1, %s1318
    %1320 = vst [vmem:[%s1319] sm:%s1317] %v1315
    %s1321 = scalar_lea.vmem [#allocation0], 360
    %v1322 = vld [vmem:[%s1321] sm:%s963]
    %v1323 = vpack.c.bf16 0.0, %v1322
    %s1324 = sshll.u32 1, %s964
    %s1325 = ssub.s32 %s1324, 1
    %s1326 = smul.addr 2, 45
    %s1327 = scalar_lea.vmem %s1, %s1326
    %1328 = vst [vmem:[%s1327] sm:%s1325] %v1323
    %s1329 = scalar_lea.vmem [#allocation0], 368
    %v1330 = vld [vmem:[%s1329] sm:%s963]
    %v1331 = vpack.c.bf16 0.0, %v1330
    %s1332 = sshll.u32 1, %s964
    %s1333 = ssub.s32 %s1332, 1
    %s1334 = smul.addr 2, 46
    %s1335 = scalar_lea.vmem %s1, %s1334
    %1336 = vst [vmem:[%s1335] sm:%s1333] %v1331
    %s1337 = scalar_lea.vmem [#allocation0], 376
    %v1338 = vld [vmem:[%s1337] sm:%s963]
    %v1339 = vpack.c.bf16 0.0, %v1338
    %s1340 = sshll.u32 1, %s964
    %s1341 = ssub.s32 %s1340, 1
    %s1342 = smul.addr 2, 47
    %s1343 = scalar_lea.vmem %s1, %s1342
    %1344 = vst [vmem:[%s1343] sm:%s1341] %v1339

// kernel: generator_forward.4
$region0: #{generator_forward.4}
  #allocation0 [shape = 'u32[]', space=smem, size = 0x4, offset = 0x4, fixed_abs, tag = 'smem constant byte address 0x4 - core index']
  #allocation1 [shape = 'u32[144,128]{1,0:T(1,128)}', space=vmem, size = 0x12000, scoped, tag = 'internal scratch']
  %s0 = inlined_call_operand.vmem [shape: bf16[1,128,128], index: 0, kind: input, shape index: {}]
  %s1 = inlined_call_operand.vmem [shape: bf16[1,128,4096], index: 1, kind: input, shape index: {}]
  %s2 = inlined_call_operand.vmem [shape: f32[2,4096], index: 2, kind: input, shape index: {}]
  %s3 = inlined_call_operand.vmem [shape: bf16[1,128,4096], index: 3, kind: output, shape index: {}]
  %s4 = sld [smem:[#allocation0]]
  $region87: #{generator_forward.4} parent=0
    _
  %s6 = ssub.s32 1, %s4
  %s7 = scalar_select 0, %s6, %s4
  $region1: #{generator_forward.4} parent=0
    #allocation2 [shape = 'u8[524288]{0}', space=vmem, size = 0x80000, scoped, tag = 'input window, operand 1']
    #allocation3 [shape = 'u8[524288]{0}', space=vmem, size = 0x80000, scoped, tag = 'output window, operand 0']
    loop: start=0, step=1, limit=6
    $region2: #{generator_forward.4} parent=1 // loop_pre_header
      _
    $region3: #{generator_forward.4} parent=1 // loop_header
      %s9 = sphi 0, %s13
      %p10 = scmp.ge.s32.totalorder %s9, 6
      %s16 = sphi 0, %s35
      %s17 = sphi 0, %s31
      %s18 = sphi 0, %s27
      %s19 = sphi 0, %s16
      %s20 = sphi 0, %s17
      %s21 = sphi 0, %s18
      %s22 = sphi 0, %s19
      %s23 = sphi 0, %s20
      %s24 = sphi 0, %s21
      %s40 = sphi 0, %s42
      %s43 = sphi 0, %s40
      %s44 = sphi 0, %s43
      %s60 = sphi 0, %s44
      %s68 = sphi 0, %s70
      %s71 = sphi 0, %s68
      %s72 = sphi 0, %s71
      %s88 = sphi 0, %s72
      %s94 = sphi 0, %s96
      %s97 = sphi 0, %s94
      %s98 = sphi 0, %s97
      %s114 = sphi 0, %s98
      %s124 = sphi 0, %s126
      %s127 = sphi 0, %s124
      %s128 = sphi 0, %s127
      %s144 = sphi 0, %s128
    $region4: #{generator_forward.4} parent=1 // loop_header_branch
      %12 = sbr.rel (%p10) target = $region8
    $region5: #{generator_forward.4} parent=1 // loop_body
      %s14 = ssub.s32 %s9, 1
      %s15 = ssub.s32 %s9, 2
      %s25 = sadd.s32 1, %s18
      %p26 = scmp.ge.s32.totalorder %s25, 4
      %s27 = scalar_select %p26, 0, %s25
      %s28 = sadd.s32 1, %s17
      %s29 = scalar_select %p26, %s28, %s17
      %p30 = scmp.ge.s32.totalorder %s29, 1
      %s31 = scalar_select %p30, 0, %s29
      %s32 = sadd.s32 1, %s16
      %s33 = scalar_select %p30, %s32, %s16
      %p34 = scmp.ge.s32.totalorder %s33, 1
      %s35 = scalar_select %p34, 0, %s33
      %s36 = ssub.s32 %s16, %s35
      %s37 = ssub.s32 %s17, %s31
      %s38 = sor.u32 %s36, %s37
      %p39 = scmp.eq.s32.totalorder %s38, 0
      %s41 = sadd.s32 %s40, 1
      %s42 = scalar_select %p39, %s40, %s41
      %p45 = pneg %p39
      %p46 = scmp.eq.s32.totalorder %s9, 3
      %p47 = por %p45, %p46
      %p48 = scmp.ne.s32.totalorder %s40, %s43
      %p49 = scmp.eq.s32.totalorder %s9, 0
      %p50 = por %p48, %p49
      %p51 = scmp.ne.s32.totalorder %s40, %s43
      %p52 = scmp.eq.s32.totalorder %s14, 3
      %p53 = por %p51, %p52
      %p54 = scmp.ne.s32.totalorder %s43, %s44
      %p55 = scmp.eq.s32.totalorder %s14, 0
      %p56 = por %p54, %p55
      %p57 = scmp.ne.s32.totalorder %s43, %s44
      %p58 = scmp.eq.s32.totalorder %s15, 3
      %p59 = por %p57, %p58
      %p61 = scmp.ne.s32.totalorder %s44, %s60
      %p62 = scmp.eq.s32.totalorder %s15, 0
      %p63 = por %p61, %p62
      %s64 = ssub.s32 %s16, %s35
      %s65 = ssub.s32 %s18, %s27
      %s66 = sor.u32 %s64, %s65
      %p67 = scmp.eq.s32.totalorder %s66, 0
      %s69 = sadd.s32 %s68, 1
      %s70 = scalar_select %p67, %s68, %s69
      %p73 = pneg %p67
      %p74 = scmp.eq.s32.totalorder %s9, 3
      %p75 = por %p73, %p74
      %p76 = scmp.ne.s32.totalorder %s68, %s71
      %p77 = scmp.eq.s32.totalorder %s9, 0
      %p78 = por %p76, %p77
      %p79 = scmp.ne.s32.totalorder %s68, %s71
      %p80 = scmp.eq.s32.totalorder %s14, 3
      %p81 = por %p79, %p80
      %p82 = scmp.ne.s32.totalorder %s71, %s72
      %p83 = scmp.eq.s32.totalorder %s14, 0
      %p84 = por %p82, %p83
      %p85 = scmp.ne.s32.totalorder %s71, %s72
      %p86 = scmp.eq.s32.totalorder %s15, 3
      %p87 = por %p85, %p86
      %p89 = scmp.ne.s32.totalorder %s72, %s88
      %p90 = scmp.eq.s32.totalorder %s15, 0
      %p91 = por %p89, %p90
      %s92 = ssub.s32 %s18, %s27
      %p93 = scmp.eq.s32.totalorder %s92, 0
      %s95 = sadd.s32 %s94, 1
      %s96 = scalar_select %p93, %s94, %s95
      %p99 = pneg %p93
      %p100 = scmp.eq.s32.totalorder %s9, 3
      %p101 = por %p99, %p100
      %p102 = scmp.ne.s32.totalorder %s94, %s97
      %p103 = scmp.eq.s32.totalorder %s9, 0
      %p104 = por %p102, %p103
      %p105 = scmp.ne.s32.totalorder %s94, %s97
      %p106 = scmp.eq.s32.totalorder %s14, 3
      %p107 = por %p105, %p106
      %p108 = scmp.ne.s32.totalorder %s97, %s98
      %p109 = scmp.eq.s32.totalorder %s14, 0
      %p110 = por %p108, %p109
      %p111 = scmp.ne.s32.totalorder %s97, %s98
      %p112 = scmp.eq.s32.totalorder %s15, 3
      %p113 = por %p111, %p112
      %p115 = scmp.ne.s32.totalorder %s98, %s114
      %p116 = scmp.eq.s32.totalorder %s15, 0
      %p117 = por %p115, %p116
      %s118 = ssub.s32 %s16, %s35
      %s119 = ssub.s32 %s17, %s31
      %s120 = sor.u32 %s118, %s119
      %s121 = ssub.s32 %s18, %s27
      %s122 = sor.u32 %s120, %s121
      %p123 = scmp.eq.s32.totalorder %s122, 0
      %s125 = sadd.s32 %s124, 1
      %s126 = scalar_select %p123, %s124, %s125
      %p129 = pneg %p123
      %p130 = scmp.eq.s32.totalorder %s9, 3
      %p131 = por %p129, %p130
      %p132 = scmp.ne.s32.totalorder %s124, %s127
      %p133 = scmp.eq.s32.totalorder %s9, 0
      %p134 = por %p132, %p133
      %p135 = scmp.ne.s32.totalorder %s124, %s127
      %p136 = scmp.eq.s32.totalorder %s14, 3
      %p137 = por %p135, %p136
      %p138 = scmp.ne.s32.totalorder %s127, %s128
      %p139 = scmp.eq.s32.totalorder %s14, 0
      %p140 = por %p138, %p139
      %p141 = scmp.ne.s32.totalorder %s127, %s128
      %p142 = scmp.eq.s32.totalorder %s15, 3
      %p143 = por %p141, %p142
      %p145 = scmp.ne.s32.totalorder %s128, %s144
      %p146 = scmp.eq.s32.totalorder %s15, 0
      %p147 = por %p145, %p146
      %p148 = scmp.le.s32.totalorder 1, %s9
      %p149 = scmp.lt.s32.totalorder %s9, 5
      %p150 = pnand %p148, %p149
      %p151 = pneg %p150
      // Predicated region
      $region9: #{generator_forward.4} parent=5 // pred_check
        _
      $region10: #{generator_forward.4} parent=5 // pred_check_branch
        %153 = sbr.rel (%p150) target = $region12
      $region11: #{generator_forward.4} parent=5 // pred_region
        %s154 = ssub.s32 %s9, 1
        // Predicated region
        $region13: #{generator_forward.4} parent=11 // pred_check
          %p155 = pneg %p56
        $region14: #{generator_forward.4} parent=11 // pred_check_branch
          %157 = sbr.rel (%p155) target = $region16
        $region15: #{generator_forward.4} parent=11 // pred_region
          %s158 = smul.u32 16, %s20
          %p159 = scmp.lt.s32.totalorder %s19, 0
          %s160 = scalar_select %p159, %s19, 0
          %p161 = scmp.lt.s32.totalorder %s158, 15
          %s162 = scalar_select %p161, %s158, 15
          %s163 = smul.addr %s160, 16
          %s164 = sadd.s32 %s162, %s163
          %s165 = smul.addr %s164, 4
          %s166 = scalar_lea.vmem %s0, %s165
          %s167 = smul.u32 16, %s20
        $region16: #{generator_forward.4} parent=11 // pred_fallthru
          _
      $region12: #{generator_forward.4} parent=5 // pred_fallthru
        _
      %p168 = scmp.lt.s32.totalorder %s9, 4
      // Predicated region
      $region17: #{generator_forward.4} parent=5 // pred_check
        %p169 = pneg %p168
      $region18: #{generator_forward.4} parent=5 // pred_check_branch
        %171 = sbr.rel (%p169) target = $region20
      $region19: #{generator_forward.4} parent=5 // pred_region
        // Predicated region
        $region21: #{generator_forward.4} parent=19 // pred_check
          %p172 = pneg %p78
        $region22: #{generator_forward.4} parent=19 // pred_check_branch
          %174 = sbr.rel (%p172) target = $region24
        $region23: #{generator_forward.4} parent=19 // pred_region
          %s175 = sand.u32 %s68, 1
          %s176 = sand.u32 %s68, 1
          %s177 = smul.addr %s176, 512
          %s178 = scalar_lea.vmem [#allocation2], %s177
          %s179 = smul.u32 8, %s18
          %s180 = smul.addr %s16, 512
          %s181 = sadd.s32 %s179, %s180
          %s182 = smul.addr %s181, 4
          %s183 = scalar_lea.vmem %s1, %s182
          // Predicated region
          $region25: #{generator_forward.4} parent=23 // pred_check
            _
          $region26: #{generator_forward.4} parent=23 // pred_check_branch
            %185 = sbr.rel (0) target = $region28
          $region27: #{generator_forward.4} parent=23 // pred_region
            // Predicated region
            $region29: #{generator_forward.4} parent=27 // pred_check
              _
            $region30: #{generator_forward.4} parent=27 // pred_check_branch
              %187 = sbr.rel (0) target = $region32
            $region31: #{generator_forward.4} parent=27 // pred_region
              loop: start=0, step=1, limit=1
              $region33: #{generator_forward.4} parent=31 // loop_pre_header
                _
              $region34: #{generator_forward.4} parent=31 // loop_header
                %s189 = sphi 0, %s193
                %p190 = scmp.ge.s32.totalorder %s189, 1
                %s194 = sphi %s183, %s183
                %s195 = sphi %s178, %s178
              $region35: #{generator_forward.4} parent=31 // loop_header_branch
                %192 = sbr.rel (%p190) target = $region39
              $region36: #{generator_forward.4} parent=31 // loop_body
                %v196 = vld [vmem:[%s194] sm:$0xff]
                %197 = vst [vmem:[%s195] sm:$0xff] %v196
                %v198 = vld [vmem:[%s194 + $0x8] sm:$0xff]
                %199 = vst [vmem:[%s195 + $0x8] sm:$0xff] %v198
                %v200 = vld [vmem:[%s194 + $0x10] sm:$0xff]
                %201 = vst [vmem:[%s195 + $0x10] sm:$0xff] %v200
                %v202 = vld [vmem:[%s194 + $0x18] sm:$0xff]
                %203 = vst [vmem:[%s195 + $0x18] sm:$0xff] %v202
                %v204 = vld [vmem:[%s194 + $0x80] sm:$0xff]
                %205 = vst [vmem:[%s195 + $0x20] sm:$0xff] %v204
                %v206 = vld [vmem:[%s194 + $0x88] sm:$0xff]
                %207 = vst [vmem:[%s195 + $0x28] sm:$0xff] %v206
                %v208 = vld [vmem:[%s194 + $0x90] sm:$0xff]
                %209 = vst [vmem:[%s195 + $0x30] sm:$0xff] %v208
                %v210 = vld [vmem:[%s194 + $0x98] sm:$0xff]
                %211 = vst [vmem:[%s195 + $0x38] sm:$0xff] %v210
                %v212 = vld [vmem:[%s194 + $0x100] sm:$0xff]
                %213 = vst [vmem:[%s195 + $0x40] sm:$0xff] %v212
                %v214 = vld [vmem:[%s194 + $0x108] sm:$0xff]
                %215 = vst [vmem:[%s195 + $0x48] sm:$0xff] %v214
                %v216 = vld [vmem:[%s194 + $0x110] sm:$0xff]
                %217 = vst [vmem:[%s195 + $0x50] sm:$0xff] %v216
                %v218 = vld [vmem:[%s194 + $0x118] sm:$0xff]
                %219 = vst [vmem:[%s195 + $0x58] sm:$0xff] %v218
                %v220 = vld [vmem:[%s194 + $0x180] sm:$0xff]
                %221 = vst [vmem:[%s195 + $0x60] sm:$0xff] %v220
                %v222 = vld [vmem:[%s194 + $0x188] sm:$0xff]
                %223 = vst [vmem:[%s195 + $0x68] sm:$0xff] %v222
                %v224 = vld [vmem:[%s194 + $0x190] sm:$0xff]
                %225 = vst [vmem:[%s195 + $0x70] sm:$0xff] %v224
                %v226 = vld [vmem:[%s194 + $0x198] sm:$0xff]
                %227 = vst [vmem:[%s195 + $0x78] sm:$0xff] %v226
                %v228 = vld [vmem:[%s194 + $0x200] sm:$0xff]
                %229 = vst [vmem:[%s195 + $0x80] sm:$0xff] %v228
                %v230 = vld [vmem:[%s194 + $0x208] sm:$0xff]
                %231 = vst [vmem:[%s195 + $0x88] sm:$0xff] %v230
                %v232 = vld [vmem:[%s194 + $0x210] sm:$0xff]
                %233 = vst [vmem:[%s195 + $0x90] sm:$0xff] %v232
                %v234 = vld [vmem:[%s194 + $0x218] sm:$0xff]
                %235 = vst [vmem:[%s195 + $0x98] sm:$0xff] %v234
                %v236 = vld [vmem:[%s194 + $0x280] sm:$0xff]
                %237 = vst [vmem:[%s195 + $0xa0] sm:$0xff] %v236
                %v238 = vld [vmem:[%s194 + $0x288] sm:$0xff]
                %239 = vst [vmem:[%s195 + $0xa8] sm:$0xff] %v238
                %v240 = vld [vmem:[%s194 + $0x290] sm:$0xff]
                %241 = vst [vmem:[%s195 + $0xb0] sm:$0xff] %v240
                %v242 = vld [vmem:[%s194 + $0x298] sm:$0xff]
                %243 = vst [vmem:[%s195 + $0xb8] sm:$0xff] %v242
                %v244 = vld [vmem:[%s194 + $0x300] sm:$0xff]
                %245 = vst [vmem:[%s195 + $0xc0] sm:$0xff] %v244
                %v246 = vld [vmem:[%s194 + $0x308] sm:$0xff]
                %247 = vst [vmem:[%s195 + $0xc8] sm:$0xff] %v246
                %v248 = vld [vmem:[%s194 + $0x310] sm:$0xff]
                %249 = vst [vmem:[%s195 + $0xd0] sm:$0xff] %v248
                %v250 = vld [vmem:[%s194 + $0x318] sm:$0xff]
                %251 = vst [vmem:[%s195 + $0xd8] sm:$0xff] %v250
                %v252 = vld [vmem:[%s194 + $0x380] sm:$0xff]
                %253 = vst [vmem:[%s195 + $0xe0] sm:$0xff] %v252
                %v254 = vld [vmem:[%s194 + $0x388] sm:$0xff]
                %255 = vst [vmem:[%s195 + $0xe8] sm:$0xff] %v254
                %v256 = vld [vmem:[%s194 + $0x390] sm:$0xff]
                %257 = vst [vmem:[%s195 + $0xf0] sm:$0xff] %v256
                %v258 = vld [vmem:[%s194 + $0x398] sm:$0xff]
                %259 = vst [vmem:[%s195 + $0xf8] sm:$0xff] %v258
                %v260 = vld [vmem:[%s194 + $0x400] sm:$0xff]
                %261 = vst [vmem:[%s195 + $0x100] sm:$0xff] %v260
                %v262 = vld [vmem:[%s194 + $0x408] sm:$0xff]
                %263 = vst [vmem:[%s195 + $0x108] sm:$0xff] %v262
                %v264 = vld [vmem:[%s194 + $0x410] sm:$0xff]
                %265 = vst [vmem:[%s195 + $0x110] sm:$0xff] %v264
                %v266 = vld [vmem:[%s194 + $0x418] sm:$0xff]
                %267 = vst [vmem:[%s195 + $0x118] sm:$0xff] %v266
                %v268 = vld [vmem:[%s194 + $0x480] sm:$0xff]
                %269 = vst [vmem:[%s195 + $0x120] sm:$0xff] %v268
                %v270 = vld [vmem:[%s194 + $0x488] sm:$0xff]
                %271 = vst [vmem:[%s195 + $0x128] sm:$0xff] %v270
                %v272 = vld [vmem:[%s194 + $0x490] sm:$0xff]
                %273 = vst [vmem:[%s195 + $0x130] sm:$0xff] %v272
                %v274 = vld [vmem:[%s194 + $0x498] sm:$0xff]
                %275 = vst [vmem:[%s195 + $0x138] sm:$0xff] %v274
                %v276 = vld [vmem:[%s194 + $0x500] sm:$0xff]
                %277 = vst [vmem:[%s195 + $0x140] sm:$0xff] %v276
                %v278 = vld [vmem:[%s194 + $0x508] sm:$0xff]
                %279 = vst [vmem:[%s195 + $0x148] sm:$0xff] %v278
                %v280 = vld [vmem:[%s194 + $0x510] sm:$0xff]
                %281 = vst [vmem:[%s195 + $0x150] sm:$0xff] %v280
                %v282 = vld [vmem:[%s194 + $0x518] sm:$0xff]
                %283 = vst [vmem:[%s195 + $0x158] sm:$0xff] %v282
                %v284 = vld [vmem:[%s194 + $0x580] sm:$0xff]
                %285 = vst [vmem:[%s195 + $0x160] sm:$0xff] %v284
                %v286 = vld [vmem:[%s194 + $0x588] sm:$0xff]
                %287 = vst [vmem:[%s195 + $0x168] sm:$0xff] %v286
                %v288 = vld [vmem:[%s194 + $0x590] sm:$0xff]
                %289 = vst [vmem:[%s195 + $0x170] sm:$0xff] %v288
                %v290 = vld [vmem:[%s194 + $0x598] sm:$0xff]
                %291 = vst [vmem:[%s195 + $0x178] sm:$0xff] %v290
                %v292 = vld [vmem:[%s194 + $0x600] sm:$0xff]
                %293 = vst [vmem:[%s195 + $0x180] sm:$0xff] %v292
                %v294 = vld [vmem:[%s194 + $0x608] sm:$0xff]
                %295 = vst [vmem:[%s195 + $0x188] sm:$0xff] %v294
                %v296 = vld [vmem:[%s194 + $0x610] sm:$0xff]
                %297 = vst [vmem:[%s195 + $0x190] sm:$0xff] %v296
                %v298 = vld [vmem:[%s194 + $0x618] sm:$0xff]
                %299 = vst [vmem:[%s195 + $0x198] sm:$0xff] %v298
                %v300 = vld [vmem:[%s194 + $0x680] sm:$0xff]
                %301 = vst [vmem:[%s195 + $0x1a0] sm:$0xff] %v300
                %v302 = vld [vmem:[%s194 + $0x688] sm:$0xff]
                %303 = vst [vmem:[%s195 + $0x1a8] sm:$0xff] %v302
                %v304 = vld [vmem:[%s194 + $0x690] sm:$0xff]
                %305 = vst [vmem:[%s195 + $0x1b0] sm:$0xff] %v304
                %v306 = vld [vmem:[%s194 + $0x698] sm:$0xff]
                %307 = vst [vmem:[%s195 + $0x1b8] sm:$0xff] %v306
                %v308 = vld [vmem:[%s194 + $0x700] sm:$0xff]
                %309 = vst [vmem:[%s195 + $0x1c0] sm:$0xff] %v308
                %v310 = vld [vmem:[%s194 + $0x708] sm:$0xff]
                %311 = vst [vmem:[%s195 + $0x1c8] sm:$0xff] %v310
                %v312 = vld [vmem:[%s194 + $0x710] sm:$0xff]
                %313 = vst [vmem:[%s195 + $0x1d0] sm:$0xff] %v312
                %v314 = vld [vmem:[%s194 + $0x718] sm:$0xff]
                %315 = vst [vmem:[%s195 + $0x1d8] sm:$0xff] %v314
                %v316 = vld [vmem:[%s194 + $0x780] sm:$0xff]
                %317 = vst [vmem:[%s195 + $0x1e0] sm:$0xff] %v316
                %v318 = vld [vmem:[%s194 + $0x788] sm:$0xff]
                %319 = vst [vmem:[%s195 + $0x1e8] sm:$0xff] %v318
                %v320 = vld [vmem:[%s194 + $0x790] sm:$0xff]
                %321 = vst [vmem:[%s195 + $0x1f0] sm:$0xff] %v320
                %v322 = vld [vmem:[%s194 + $0x798] sm:$0xff]
                %323 = vst [vmem:[%s195 + $0x1f8] sm:$0xff] %v322
              $region37: #{generator_forward.4} parent=31 // loop_footer
                %s193 = sadd.s32 1, %s189
              $region38: #{generator_forward.4} parent=31 // loop_footer_branch
                %188 = sbr.rel target = $region34
              $region39: #{generator_forward.4} parent=31 // loop_exit
                _
            $region32: #{generator_forward.4} parent=27 // pred_fallthru
              _
            // Predicated region
            $region40: #{generator_forward.4} parent=27 // pred_check
              _
            $region41: #{generator_forward.4} parent=27 // pred_check_branch
              %325 = sbr.rel target = $region43
            $region42: #{generator_forward.4} parent=27 // pred_region
              _
            $region43: #{generator_forward.4} parent=27 // pred_fallthru
              _
          $region28: #{generator_forward.4} parent=23 // pred_fallthru
            _
          %326 = vnop
        $region24: #{generator_forward.4} parent=19 // pred_fallthru
          _
        // Predicated region
        $region44: #{generator_forward.4} parent=19 // pred_check
          %p327 = pneg %p104
        $region45: #{generator_forward.4} parent=19 // pred_check_branch
          %329 = sbr.rel (%p327) target = $region47
        $region46: #{generator_forward.4} parent=19 // pred_region
          %s330 = smul.u32 8, %s18
          %p331 = scmp.lt.s32.totalorder %s330, 31
          %s332 = scalar_select %p331, %s330, 31
          %s333 = smul.addr %s332, 2
          %s334 = scalar_lea.vmem %s2, %s333
          %s335 = smul.u32 8, %s18
        $region47: #{generator_forward.4} parent=19 // pred_fallthru
          _
      $region20: #{generator_forward.4} parent=5 // pred_fallthru
        _
      %p336 = scmp.le.s32.totalorder 1, %s9
      %p337 = scmp.lt.s32.totalorder %s9, 5
      %p338 = pnand %p336, %p337
      %p339 = pneg %p338
      // Predicated region
      $region48: #{generator_forward.4} parent=5 // pred_check
        _
      $region49: #{generator_forward.4} parent=5 // pred_check_branch
        %341 = sbr.rel (%p338) target = $region51
      $region50: #{generator_forward.4} parent=5 // pred_region
        %s342 = ssub.s32 %s9, 1
        %s343 = sand.u32 %s71, 1
        %s344 = sand.u32 %s71, 1
        %s345 = smul.addr %s344, 512
        %s346 = scalar_lea.vmem [#allocation2], %s345
        // Predicated region
        $region52: #{generator_forward.4} parent=50 // pred_check
          %p347 = pneg %p84
        $region53: #{generator_forward.4} parent=50 // pred_check_branch
          %349 = sbr.rel (%p347) target = $region55
        $region54: #{generator_forward.4} parent=50 // pred_region
          _
        $region55: #{generator_forward.4} parent=50 // pred_fallthru
          _
        %s350 = smul.u32 16, %s20
        %p351 = scmp.lt.s32.totalorder %s19, 0
        %s352 = scalar_select %p351, %s19, 0
        %p353 = scmp.lt.s32.totalorder %s350, 15
        %s354 = scalar_select %p353, %s350, 15
        %s355 = smul.addr %s352, 16
        %s356 = sadd.s32 %s354, %s355
        %s357 = smul.addr %s356, 4
        %s358 = scalar_lea.vmem %s0, %s357
        %p359 = pneg %p56
        %p360 = pneg %p53
        %s361 = sand.u32 %s71, 1
        %s362 = sand.u32 %s71, 1
        %s363 = smul.addr %s362, 512
        %s364 = scalar_lea.vmem [#allocation2], %s363
        %p365 = pneg %p84
        %p366 = pneg %p81
        %s367 = smul.u32 8, %s21
        %p368 = scmp.lt.s32.totalorder %s367, 31
        %s369 = scalar_select %p368, %s367, 31
        %s370 = smul.addr %s369, 2
        %s371 = scalar_lea.vmem %s2, %s370
        %p372 = pneg %p110
        %p373 = pneg %p107
        %p374 = pneg %p140
        %p375 = pneg %p137
        %s376 = sand.u32 %s127, 1
        %s377 = sand.u32 %s127, 1
        %s378 = smul.addr %s377, 512
        %s379 = scalar_lea.vmem [#allocation3], %s378
        %s380 = smul.u32 16, %s20
        %p381 = scmp.lt.s32.totalorder %s19, 0
        %s382 = scalar_select %p381, %s19, 0
        %p383 = scmp.lt.s32.totalorder %s380, 15
        %s384 = scalar_select %p383, %s380, 15
        %s385 = smul.addr %s382, 16
        %s386 = sadd.s32 %s384, %s385
        %s387 = smul.addr %s386, 4
        %s388 = scalar_lea.vmem %s0, %s387
        %s389 = smul.u32 16, %s20
        %s390 = smul.u32 8, %s21
        %s391 = smul.u32 8, %s21
        %p392 = scmp.lt.s32.totalorder %s391, 31
        %s393 = scalar_select %p392, %s391, 31
        %s394 = smul.addr %s393, 2
        %s395 = scalar_lea.vmem %s2, %s394
        %s396 = smul.u32 8, %s21
        %s397 = smul.u32 16, %s20
        %s398 = smul.u32 8, %s21
        %v400 = vld [vmem:[%s388] sm:$0xf]
        %v401 = vld [vmem:[%s388 + $0x4] sm:$0xf]
        %v402 = vld [vmem:[%s388 + $0x8] sm:$0xf]
        %v403 = vld [vmem:[%s388 + $0xc] sm:$0xf]
        %v404 = vld [vmem:[%s388 + $0x10] sm:$0xf]
        %v405 = vld [vmem:[%s388 + $0x14] sm:$0xf]
        %v406 = vld [vmem:[%s388 + $0x18] sm:$0xf]
        %v407 = vld [vmem:[%s388 + $0x1c] sm:$0xf]
        %v408 = vld [vmem:[%s388 + $0x20] sm:$0xf]
        %v409 = vld [vmem:[%s388 + $0x24] sm:$0xf]
        %v410 = vld [vmem:[%s388 + $0x28] sm:$0xf]
        %v411 = vld [vmem:[%s388 + $0x2c] sm:$0xf]
        %v412 = vld [vmem:[%s388 + $0x30] sm:$0xf]
        %v413 = vld [vmem:[%s388 + $0x34] sm:$0xf]
        %v414 = vld [vmem:[%s388 + $0x38] sm:$0xf]
        %v415 = vld [vmem:[%s388 + $0x3c] sm:$0xf]
        %v416 = vld [vmem:[%s346] sm:$0xff]
        %v417 = vld [vmem:[%s346 + $0x8] sm:$0xff]
        %v418 = vld [vmem:[%s346 + $0x10] sm:$0xff]
        %v419 = vld [vmem:[%s346 + $0x18] sm:$0xff]
        %v420 = vld [vmem:[%s346 + $0x20] sm:$0xff]
        %v421 = vld [vmem:[%s346 + $0x28] sm:$0xff]
        %v422 = vld [vmem:[%s346 + $0x30] sm:$0xff]
        %v423 = vld [vmem:[%s346 + $0x38] sm:$0xff]
        %v424 = vld [vmem:[%s346 + $0x40] sm:$0xff]
        %v425 = vld [vmem:[%s346 + $0x48] sm:$0xff]
        %v426 = vld [vmem:[%s346 + $0x50] sm:$0xff]
        %v427 = vld [vmem:[%s346 + $0x58] sm:$0xff]
        %v428 = vld [vmem:[%s346 + $0x60] sm:$0xff]
        %v429 = vld [vmem:[%s346 + $0x68] sm:$0xff]
        %v430 = vld [vmem:[%s346 + $0x70] sm:$0xff]
        %v431 = vld [vmem:[%s346 + $0x78] sm:$0xff]
        %v432 = vld [vmem:[%s346 + $0x80] sm:$0xff]
        %v433 = vld [vmem:[%s346 + $0x88] sm:$0xff]
        %v434 = vld [vmem:[%s346 + $0x90] sm:$0xff]
        %v435 = vld [vmem:[%s346 + $0x98] sm:$0xff]
        %v436 = vld [vmem:[%s346 + $0xa0] sm:$0xff]
        %v437 = vld [vmem:[%s346 + $0xa8] sm:$0xff]
        %v438 = vld [vmem:[%s346 + $0xb0] sm:$0xff]
        %v439 = vld [vmem:[%s346 + $0xb8] sm:$0xff]
        %v440 = vld [vmem:[%s346 + $0xc0] sm:$0xff]
        %v441 = vld [vmem:[%s346 + $0xc8] sm:$0xff]
        %v442 = vld [vmem:[%s346 + $0xd0] sm:$0xff]
        %v443 = vld [vmem:[%s346 + $0xd8] sm:$0xff]
        %v444 = vld [vmem:[%s346 + $0xe0] sm:$0xff]
        %v445 = vld [vmem:[%s346 + $0xe8] sm:$0xff]
        %v446 = vld [vmem:[%s346 + $0xf0] sm:$0xff]
        %v447 = vld [vmem:[%s346 + $0xf8] sm:$0xff]
        %v448 = vld [vmem:[%s346 + $0x100] sm:$0xff]
        %v449 = vld [vmem:[%s346 + $0x108] sm:$0xff]
        %v450 = vld [vmem:[%s346 + $0x110] sm:$0xff]
        %v451 = vld [vmem:[%s346 + $0x118] sm:$0xff]
        %v452 = vld [vmem:[%s346 + $0x120] sm:$0xff]
        %v453 = vld [vmem:[%s346 + $0x128] sm:$0xff]
        %v454 = vld [vmem:[%s346 + $0x130] sm:$0xff]
        %v455 = vld [vmem:[%s346 + $0x138] sm:$0xff]
        %v456 = vld [vmem:[%s346 + $0x140] sm:$0xff]
        %v457 = vld [vmem:[%s346 + $0x148] sm:$0xff]
        %v458 = vld [vmem:[%s346 + $0x150] sm:$0xff]
        %v459 = vld [vmem:[%s346 + $0x158] sm:$0xff]
        %v460 = vld [vmem:[%s346 + $0x160] sm:$0xff]
        %v461 = vld [vmem:[%s346 + $0x168] sm:$0xff]
        %v462 = vld [vmem:[%s346 + $0x170] sm:$0xff]
        %v463 = vld [vmem:[%s346 + $0x178] sm:$0xff]
        %v464 = vld [vmem:[%s346 + $0x180] sm:$0xff]
        %v465 = vld [vmem:[%s346 + $0x188] sm:$0xff]
        %v466 = vld [vmem:[%s346 + $0x190] sm:$0xff]
        %v467 = vld [vmem:[%s346 + $0x198] sm:$0xff]
        %v468 = vld [vmem:[%s346 + $0x1a0] sm:$0xff]
        %v469 = vld [vmem:[%s346 + $0x1a8] sm:$0xff]
        %v470 = vld [vmem:[%s346 + $0x1b0] sm:$0xff]
        %v471 = vld [vmem:[%s346 + $0x1b8] sm:$0xff]
        %v472 = vld [vmem:[%s346 + $0x1c0] sm:$0xff]
        %v473 = vld [vmem:[%s346 + $0x1c8] sm:$0xff]
        %v474 = vld [vmem:[%s346 + $0x1d0] sm:$0xff]
        %v475 = vld [vmem:[%s346 + $0x1d8] sm:$0xff]
        %v476 = vld [vmem:[%s346 + $0x1e0] sm:$0xff]
        %v477 = vld [vmem:[%s346 + $0x1e8] sm:$0xff]
        %v478 = vld [vmem:[%s346 + $0x1f0] sm:$0xff]
        %v479 = vld [vmem:[%s346 + $0x1f8] sm:$0xff]
        %v496 = vunpack.c.l.b16 %v400
        %v497 = vunpack.c.l.b16 %v401
        %v498 = vunpack.c.l.b16 %v402
        %v499 = vunpack.c.l.b16 %v403
        %v500 = vunpack.c.l.b16 %v404
        %v501 = vunpack.c.l.b16 %v405
        %v502 = vunpack.c.l.b16 %v406
        %v503 = vunpack.c.l.b16 %v407
        %v504 = vunpack.c.l.b16 %v408
        %v505 = vunpack.c.l.b16 %v409
        %v506 = vunpack.c.l.b16 %v410
        %v507 = vunpack.c.l.b16 %v411
        %v508 = vunpack.c.l.b16 %v412
        %v509 = vunpack.c.l.b16 %v413
        %v510 = vunpack.c.l.b16 %v414
        %v511 = vunpack.c.l.b16 %v415
        %v512 = vpack.c.b16 %v497, %v496
        %v513 = vpack.c.b16 %v499, %v498
        %v514 = vpack.c.b16 %v501, %v500
        %v515 = vpack.c.b16 %v503, %v502
        %v516 = vpack.c.b16 %v505, %v504
        %v517 = vpack.c.b16 %v507, %v506
        %v518 = vpack.c.b16 %v509, %v508
        %v519 = vpack.c.b16 %v511, %v510
        %v592 = vunpack.c.l.b16 %v416
        %v593 = vunpack.c.h.b16 %v416
        %v594 = vunpack.c.l.b16 %v417
        %v595 = vunpack.c.h.b16 %v417
        %v596 = vunpack.c.l.b16 %v418
        %v597 = vunpack.c.h.b16 %v418
        %v598 = vunpack.c.l.b16 %v419
        %v599 = vunpack.c.h.b16 %v419
        %v600 = vunpack.c.l.b16 %v420
        %v601 = vunpack.c.h.b16 %v420
        %v602 = vunpack.c.l.b16 %v421
        %v603 = vunpack.c.h.b16 %v421
        %v604 = vunpack.c.l.b16 %v422
        %v605 = vunpack.c.h.b16 %v422
        %v606 = vunpack.c.l.b16 %v423
        %v607 = vunpack.c.h.b16 %v423
        %v608 = vunpack.c.l.b16 %v424
        %v609 = vunpack.c.h.b16 %v424
        %v610 = vunpack.c.l.b16 %v425
        %v611 = vunpack.c.h.b16 %v425
        %v612 = vunpack.c.l.b16 %v426
        %v613 = vunpack.c.h.b16 %v426
        %v614 = vunpack.c.l.b16 %v427
        %v615 = vunpack.c.h.b16 %v427
        %v616 = vunpack.c.l.b16 %v428
        %v617 = vunpack.c.h.b16 %v428
        %v618 = vunpack.c.l.b16 %v429
        %v619 = vunpack.c.h.b16 %v429
        %v620 = vunpack.c.l.b16 %v430
        %v621 = vunpack.c.h.b16 %v430
        %v622 = vunpack.c.l.b16 %v431
        %v623 = vunpack.c.h.b16 %v431
        %v624 = vunpack.c.l.b16 %v432
        %v625 = vunpack.c.h.b16 %v432
        %v626 = vunpack.c.l.b16 %v433
        %v627 = vunpack.c.h.b16 %v433
        %v628 = vunpack.c.l.b16 %v434
        %v629 = vunpack.c.h.b16 %v434
        %v630 = vunpack.c.l.b16 %v435
        %v631 = vunpack.c.h.b16 %v435
        %v632 = vunpack.c.l.b16 %v436
        %v633 = vunpack.c.h.b16 %v436
        %v634 = vunpack.c.l.b16 %v437
        %v635 = vunpack.c.h.b16 %v437
        %v636 = vunpack.c.l.b16 %v438
        %v637 = vunpack.c.h.b16 %v438
        %v638 = vunpack.c.l.b16 %v439
        %v639 = vunpack.c.h.b16 %v439
        %v640 = vunpack.c.l.b16 %v440
        %v641 = vunpack.c.h.b16 %v440
        %v642 = vunpack.c.l.b16 %v441
        %v643 = vunpack.c.h.b16 %v441
        %v644 = vunpack.c.l.b16 %v442
        %v645 = vunpack.c.h.b16 %v442
        %v646 = vunpack.c.l.b16 %v443
        %v647 = vunpack.c.h.b16 %v443
        %v648 = vunpack.c.l.b16 %v444
        %v649 = vunpack.c.h.b16 %v444
        %v650 = vunpack.c.l.b16 %v445
        %v651 = vunpack.c.h.b16 %v445
        %v652 = vunpack.c.l.b16 %v446
        %v653 = vunpack.c.h.b16 %v446
        %v654 = vunpack.c.l.b16 %v447
        %v655 = vunpack.c.h.b16 %v447
        %v656 = vunpack.c.l.b16 %v448
        %v657 = vunpack.c.h.b16 %v448
        %v658 = vunpack.c.l.b16 %v449
        %v659 = vunpack.c.h.b16 %v449
        %v660 = vunpack.c.l.b16 %v450
        %v661 = vunpack.c.h.b16 %v450
        %v662 = vunpack.c.l.b16 %v451
        %v663 = vunpack.c.h.b16 %v451
        %v664 = vunpack.c.l.b16 %v452
        %v665 = vunpack.c.h.b16 %v452
        %v666 = vunpack.c.l.b16 %v453
        %v667 = vunpack.c.h.b16 %v453
        %v668 = vunpack.c.l.b16 %v454
        %v669 = vunpack.c.h.b16 %v454
        %v670 = vunpack.c.l.b16 %v455
        %v671 = vunpack.c.h.b16 %v455
        %v672 = vunpack.c.l.b16 %v456
        %v673 = vunpack.c.h.b16 %v456
        %v674 = vunpack.c.l.b16 %v457
        %v675 = vunpack.c.h.b16 %v457
        %v676 = vunpack.c.l.b16 %v458
        %v677 = vunpack.c.h.b16 %v458
        %v678 = vunpack.c.l.b16 %v459
        %v679 = vunpack.c.h.b16 %v459
        %v680 = vunpack.c.l.b16 %v460
        %v681 = vunpack.c.h.b16 %v460
        %v682 = vunpack.c.l.b16 %v461
        %v683 = vunpack.c.h.b16 %v461
        %v684 = vunpack.c.l.b16 %v462
        %v685 = vunpack.c.h.b16 %v462
        %v686 = vunpack.c.l.b16 %v463
        %v687 = vunpack.c.h.b16 %v463
        %v688 = vunpack.c.l.b16 %v464
        %v689 = vunpack.c.h.b16 %v464
        %v690 = vunpack.c.l.b16 %v465
        %v691 = vunpack.c.h.b16 %v465
        %v692 = vunpack.c.l.b16 %v466
        %v693 = vunpack.c.h.b16 %v466
        %v694 = vunpack.c.l.b16 %v467
        %v695 = vunpack.c.h.b16 %v467
        %v696 = vunpack.c.l.b16 %v468
        %v697 = vunpack.c.h.b16 %v468
        %v698 = vunpack.c.l.b16 %v469
        %v699 = vunpack.c.h.b16 %v469
        %v700 = vunpack.c.l.b16 %v470
        %v701 = vunpack.c.h.b16 %v470
        %v702 = vunpack.c.l.b16 %v471
        %v703 = vunpack.c.h.b16 %v471
        %v704 = vunpack.c.l.b16 %v472
        %v705 = vunpack.c.h.b16 %v472
        %v706 = vunpack.c.l.b16 %v473
        %v707 = vunpack.c.h.b16 %v473
        %v708 = vunpack.c.l.b16 %v474
        %v709 = vunpack.c.h.b16 %v474
        %v710 = vunpack.c.l.b16 %v475
        %v711 = vunpack.c.h.b16 %v475
        %v712 = vunpack.c.l.b16 %v476
        %v713 = vunpack.c.h.b16 %v476
        %v714 = vunpack.c.l.b16 %v477
        %v715 = vunpack.c.h.b16 %v477
        %v716 = vunpack.c.l.b16 %v478
        %v717 = vunpack.c.h.b16 %v478
        %v718 = vunpack.c.l.b16 %v479
        %v719 = vunpack.c.h.b16 %v479
        %v720 = vpack.c.b16 %v600, %v592
        %v721 = vpack.c.b16 %v601, %v593
        %v722 = vpack.c.b16 %v602, %v594
        %v723 = vpack.c.b16 %v603, %v595
        %v724 = vpack.c.b16 %v604, %v596
        %v725 = vpack.c.b16 %v605, %v597
        %v726 = vpack.c.b16 %v606, %v598
        %v727 = vpack.c.b16 %v607, %v599
        %v728 = vpack.c.b16 %v616, %v608
        %v729 = vpack.c.b16 %v617, %v609
        %v730 = vpack.c.b16 %v618, %v610
        %v731 = vpack.c.b16 %v619, %v611
        %v732 = vpack.c.b16 %v620, %v612
        %v733 = vpack.c.b16 %v621, %v613
        %v734 = vpack.c.b16 %v622, %v614
        %v735 = vpack.c.b16 %v623, %v615
        %v736 = vpack.c.b16 %v632, %v624
        %v737 = vpack.c.b16 %v633, %v625
        %v738 = vpack.c.b16 %v634, %v626
        %v739 = vpack.c.b16 %v635, %v627
        %v740 = vpack.c.b16 %v636, %v628
        %v741 = vpack.c.b16 %v637, %v629
        %v742 = vpack.c.b16 %v638, %v630
        %v743 = vpack.c.b16 %v639, %v631
        %v744 = vpack.c.b16 %v648, %v640
        %v745 = vpack.c.b16 %v649, %v641
        %v746 = vpack.c.b16 %v650, %v642
        %v747 = vpack.c.b16 %v651, %v643
        %v748 = vpack.c.b16 %v652, %v644
        %v749 = vpack.c.b16 %v653, %v645
        %v750 = vpack.c.b16 %v654, %v646
        %v751 = vpack.c.b16 %v655, %v647
        %v752 = vpack.c.b16 %v664, %v656
        %v753 = vpack.c.b16 %v665, %v657
        %v754 = vpack.c.b16 %v666, %v658
        %v755 = vpack.c.b16 %v667, %v659
        %v756 = vpack.c.b16 %v668, %v660
        %v757 = vpack.c.b16 %v669, %v661
        %v758 = vpack.c.b16 %v670, %v662
        %v759 = vpack.c.b16 %v671, %v663
        %v760 = vpack.c.b16 %v680, %v672
        %v761 = vpack.c.b16 %v681, %v673
        %v762 = vpack.c.b16 %v682, %v674
        %v763 = vpack.c.b16 %v683, %v675
        %v764 = vpack.c.b16 %v684, %v676
        %v765 = vpack.c.b16 %v685, %v677
        %v766 = vpack.c.b16 %v686, %v678
        %v767 = vpack.c.b16 %v687, %v679
        %v768 = vpack.c.b16 %v696, %v688
        %v769 = vpack.c.b16 %v697, %v689
        %v770 = vpack.c.b16 %v698, %v690
        %v771 = vpack.c.b16 %v699, %v691
        %v772 = vpack.c.b16 %v700, %v692
        %v773 = vpack.c.b16 %v701, %v693
        %v774 = vpack.c.b16 %v702, %v694
        %v775 = vpack.c.b16 %v703, %v695
        %v776 = vpack.c.b16 %v712, %v704
        %v777 = vpack.c.b16 %v713, %v705
        %v778 = vpack.c.b16 %v714, %v706
        %v779 = vpack.c.b16 %v715, %v707
        %v780 = vpack.c.b16 %v716, %v708
        %v781 = vpack.c.b16 %v717, %v709
        %v782 = vpack.c.b16 %v718, %v710
        %v783 = vpack.c.b16 %v719, %v711
        %848 = vmatprep.subr.bf16.mxu0 %v777
        %849 = vmatpush1.bf16.msra.mxu0 %v776
        %850 = vmatprep.subr.bf16.mxu0 %v769
        %851 = vmatpush1.bf16.msra.mxu0 %v768
        %852 = vmatprep.subr.bf16.mxu0 %v761
        %853 = vmatpush1.bf16.msra.mxu0 %v760
        %854 = vmatprep.subr.bf16.mxu0 %v753
        %855 = vmatpush1.bf16.msra.mxu0 %v752
        %856 = vmatprep.subr.bf16.mxu0 %v745
        %857 = vmatpush1.bf16.msra.mxu0 %v744
        %858 = vmatprep.subr.bf16.mxu0 %v737
        %859 = vmatpush1.bf16.msra.mxu0 %v736
        %860 = vmatprep.subr.bf16.mxu0 %v729
        %861 = vmatpush1.bf16.msra.mxu0 %v728
        %862 = vmatprep.subr.bf16.mxu0 %v721
        %863 = vmatpush1.bf16.msra.mxu0 %v720
        %864 = vmatprep.subr.bf16.mxu0 0
        %865 = vmatpush2.bf16.msra.mxu0 0
        %866 = vmatprep.subr.bf16.mxu0 0
        %867 = vmatpush2.bf16.msra.mxu0 0
        %868 = vmatprep.subr.bf16.mxu0 0
        %869 = vmatpush2.bf16.msra.mxu0 0
        %870 = vmatprep.subr.bf16.mxu0 0
        %871 = vmatpush2.bf16.msra.mxu0 0
        %872 = vmatprep.subr.bf16.mxu0 0
        %873 = vmatpush2.bf16.msra.mxu0 0
        %874 = vmatprep.subr.bf16.mxu0 0
        %875 = vmatpush2.bf16.msra.mxu0 0
        %876 = vmatprep.subr.bf16.mxu0 0
        %877 = vmatpush2.bf16.msra.mxu0 0
        %878 = vmatprep.subr.bf16.mxu0 0
        %879 = vmatpush2.bf16.msra.mxu0 0
        %880 = vmatprep.mubr.bf16.mxu0 0
        %881 = vmatmul.mubr.bf16.gmra.mxu0 %v512
        %v882 = vpop.f32.mrf.mxu0
        %v883 = vadd.f32 0.0, %v882
        %v884 = vpop.f32.mrf.mxu0
        %v885 = vadd.f32 0.0, %v884
        %v886 = vpop.f32.mrf.mxu0
        %v887 = vadd.f32 0.0, %v886
        %v888 = vpop.f32.mrf.mxu0
        %v889 = vadd.f32 0.0, %v888
        %890 = vmatprep.mubr.bf16.mxu0 0
        %891 = vmatmul.mubr.bf16.gmra.mxu0 %v513
        %v892 = vpop.f32.mrf.mxu0
        %v893 = vadd.f32 0.0, %v892
        %v894 = vpop.f32.mrf.mxu0
        %v895 = vadd.f32 0.0, %v894
        %v896 = vpop.f32.mrf.mxu0
        %v897 = vadd.f32 0.0, %v896
        %v898 = vpop.f32.mrf.mxu0
        %v899 = vadd.f32 0.0, %v898
        %900 = vmatprep.mubr.bf16.mxu0 0
        %901 = vmatmul.mubr.bf16.gmra.mxu0 %v514
        %v902 = vpop.f32.mrf.mxu0
        %v903 = vadd.f32 0.0, %v902
        %v904 = vpop.f32.mrf.mxu0
        %v905 = vadd.f32 0.0, %v904
        %v906 = vpop.f32.mrf.mxu0
        %v907 = vadd.f32 0.0, %v906
        %v908 = vpop.f32.mrf.mxu0
        %v909 = vadd.f32 0.0, %v908
        %910 = vmatprep.mubr.bf16.mxu0 0
        %911 = vmatmul.mubr.bf16.gmra.mxu0 %v515
        %v912 = vpop.f32.mrf.mxu0
        %v913 = vadd.f32 0.0, %v912
        %v914 = vpop.f32.mrf.mxu0
        %v915 = vadd.f32 0.0, %v914
        %v916 = vpop.f32.mrf.mxu0
        %v917 = vadd.f32 0.0, %v916
        %v918 = vpop.f32.mrf.mxu0
        %v919 = vadd.f32 0.0, %v918
        %920 = vmatprep.mubr.bf16.mxu0 0
        %921 = vmatmul.mubr.bf16.gmra.mxu0 %v516
        %v922 = vpop.f32.mrf.mxu0
        %v923 = vadd.f32 0.0, %v922
        %v924 = vpop.f32.mrf.mxu0
        %v925 = vadd.f32 0.0, %v924
        %v926 = vpop.f32.mrf.mxu0
        %v927 = vadd.f32 0.0, %v926
        %v928 = vpop.f32.mrf.mxu0
        %v929 = vadd.f32 0.0, %v928
        %930 = vmatprep.mubr.bf16.mxu0 0
        %931 = vmatmul.mubr.bf16.gmra.mxu0 %v517
        %v932 = vpop.f32.mrf.mxu0
        %v933 = vadd.f32 0.0, %v932
        %v934 = vpop.f32.mrf.mxu0
        %v935 = vadd.f32 0.0, %v934
        %v936 = vpop.f32.mrf.mxu0
        %v937 = vadd.f32 0.0, %v936
        %v938 = vpop.f32.mrf.mxu0
        %v939 = vadd.f32 0.0, %v938
        %940 = vmatprep.mubr.bf16.mxu0 0
        %941 = vmatmul.mubr.bf16.gmra.mxu0 %v518
        %v942 = vpop.f32.mrf.mxu0
        %v943 = vadd.f32 0.0, %v942
        %v944 = vpop.f32.mrf.mxu0
        %v945 = vadd.f32 0.0, %v944
        %v946 = vpop.f32.mrf.mxu0
        %v947 = vadd.f32 0.0, %v946
        %v948 = vpop.f32.mrf.mxu0
        %v949 = vadd.f32 0.0, %v948
        %950 = vmatprep.mubr.bf16.mxu0 0
        %951 = vmatmul.mubr.bf16.gmra.mxu0 %v519
        %v952 = vpop.f32.mrf.mxu0
        %v953 = vadd.f32 0.0, %v952
        %v954 = vpop.f32.mrf.mxu0
        %v955 = vadd.f32 0.0, %v954
        %v956 = vpop.f32.mrf.mxu0
        %v957 = vadd.f32 0.0, %v956
        %v958 = vpop.f32.mrf.mxu0
        %v959 = vadd.f32 0.0, %v958
        %960 = vdwg.mxu0
        %961 = vmatprep.subr.bf16.mxu0 %v779
        %962 = vmatpush1.bf16.msra.mxu0 %v778
        %963 = vmatprep.subr.bf16.mxu0 %v771
        %964 = vmatpush1.bf16.msra.mxu0 %v770
        %965 = vmatprep.subr.bf16.mxu0 %v763
        %966 = vmatpush1.bf16.msra.mxu0 %v762
        %967 = vmatprep.subr.bf16.mxu0 %v755
        %968 = vmatpush1.bf16.msra.mxu0 %v754
        %969 = vmatprep.subr.bf16.mxu0 %v747
        %970 = vmatpush1.bf16.msra.mxu0 %v746
        %971 = vmatprep.subr.bf16.mxu0 %v739
        %972 = vmatpush1.bf16.msra.mxu0 %v738
        %973 = vmatprep.subr.bf16.mxu0 %v731
        %974 = vmatpush1.bf16.msra.mxu0 %v730
        %975 = vmatprep.subr.bf16.mxu0 %v723
        %976 = vmatpush1.bf16.msra.mxu0 %v722
        %977 = vmatprep.subr.bf16.mxu0 0
        %978 = vmatpush2.bf16.msra.mxu0 0
        %979 = vmatprep.subr.bf16.mxu0 0
        %980 = vmatpush2.bf16.msra.mxu0 0
        %981 = vmatprep.subr.bf16.mxu0 0
        %982 = vmatpush2.bf16.msra.mxu0 0
        %983 = vmatprep.subr.bf16.mxu0 0
        %984 = vmatpush2.bf16.msra.mxu0 0
        %985 = vmatprep.subr.bf16.mxu0 0
        %986 = vmatpush2.bf16.msra.mxu0 0
        %987 = vmatprep.subr.bf16.mxu0 0
        %988 = vmatpush2.bf16.msra.mxu0 0
        %989 = vmatprep.subr.bf16.mxu0 0
        %990 = vmatpush2.bf16.msra.mxu0 0
        %991 = vmatprep.subr.bf16.mxu0 0
        %992 = vmatpush2.bf16.msra.mxu0 0
        %993 = vmatprep.mubr.bf16.mxu0 0
        %994 = vmatmul.mubr.bf16.gmra.mxu0 %v512
        %v995 = vpop.f32.mrf.mxu0
        %v996 = vadd.f32 0.0, %v995
        %v997 = vpop.f32.mrf.mxu0
        %v998 = vadd.f32 0.0, %v997
        %v999 = vpop.f32.mrf.mxu0
        %v1000 = vadd.f32 0.0, %v999
        %v1001 = vpop.f32.mrf.mxu0
        %v1002 = vadd.f32 0.0, %v1001
        %1003 = vmatprep.mubr.bf16.mxu0 0
        %1004 = vmatmul.mubr.bf16.gmra.mxu0 %v513
        %v1005 = vpop.f32.mrf.mxu0
        %v1006 = vadd.f32 0.0, %v1005
        %v1007 = vpop.f32.mrf.mxu0
        %v1008 = vadd.f32 0.0, %v1007
        %v1009 = vpop.f32.mrf.mxu0
        %v1010 = vadd.f32 0.0, %v1009
        %v1011 = vpop.f32.mrf.mxu0
        %v1012 = vadd.f32 0.0, %v1011
        %1013 = vmatprep.mubr.bf16.mxu0 0
        %1014 = vmatmul.mubr.bf16.gmra.mxu0 %v514
        %v1015 = vpop.f32.mrf.mxu0
        %v1016 = vadd.f32 0.0, %v1015
        %v1017 = vpop.f32.mrf.mxu0
        %v1018 = vadd.f32 0.0, %v1017
        %v1019 = vpop.f32.mrf.mxu0
        %v1020 = vadd.f32 0.0, %v1019
        %v1021 = vpop.f32.mrf.mxu0
        %v1022 = vadd.f32 0.0, %v1021
        %1023 = vmatprep.mubr.bf16.mxu0 0
        %1024 = vmatmul.mubr.bf16.gmra.mxu0 %v515
        %v1025 = vpop.f32.mrf.mxu0
        %v1026 = vadd.f32 0.0, %v1025
        %v1027 = vpop.f32.mrf.mxu0
        %v1028 = vadd.f32 0.0, %v1027
        %v1029 = vpop.f32.mrf.mxu0
        %v1030 = vadd.f32 0.0, %v1029
        %v1031 = vpop.f32.mrf.mxu0
        %v1032 = vadd.f32 0.0, %v1031
        %1033 = vmatprep.mubr.bf16.mxu0 0
        %1034 = vmatmul.mubr.bf16.gmra.mxu0 %v516
        %v1035 = vpop.f32.mrf.mxu0
        %v1036 = vadd.f32 0.0, %v1035
        %v1037 = vpop.f32.mrf.mxu0
        %v1038 = vadd.f32 0.0, %v1037
        %v1039 = vpop.f32.mrf.mxu0
        %v1040 = vadd.f32 0.0, %v1039
        %v1041 = vpop.f32.mrf.mxu0
        %v1042 = vadd.f32 0.0, %v1041
        %1043 = vmatprep.mubr.bf16.mxu0 0
        %1044 = vmatmul.mubr.bf16.gmra.mxu0 %v517
        %v1045 = vpop.f32.mrf.mxu0
        %v1046 = vadd.f32 0.0, %v1045
        %v1047 = vpop.f32.mrf.mxu0
        %v1048 = vadd.f32 0.0, %v1047
        %v1049 = vpop.f32.mrf.mxu0
        %v1050 = vadd.f32 0.0, %v1049
        %v1051 = vpop.f32.mrf.mxu0
        %v1052 = vadd.f32 0.0, %v1051
        %1053 = vmatprep.mubr.bf16.mxu0 0
        %1054 = vmatmul.mubr.bf16.gmra.mxu0 %v518
        %v1055 = vpop.f32.mrf.mxu0
        %v1056 = vadd.f32 0.0, %v1055
        %v1057 = vpop.f32.mrf.mxu0
        %v1058 = vadd.f32 0.0, %v1057
        %v1059 = vpop.f32.mrf.mxu0
        %v1060 = vadd.f32 0.0, %v1059
        %v1061 = vpop.f32.mrf.mxu0
        %v1062 = vadd.f32 0.0, %v1061
        %1063 = vmatprep.mubr.bf16.mxu0 0
        %1064 = vmatmul.mubr.bf16.gmra.mxu0 %v519
        %v1065 = vpop.f32.mrf.mxu0
        %v1066 = vadd.f32 0.0, %v1065
        %v1067 = vpop.f32.mrf.mxu0
        %v1068 = vadd.f32 0.0, %v1067
        %v1069 = vpop.f32.mrf.mxu0
        %v1070 = vadd.f32 0.0, %v1069
        %v1071 = vpop.f32.mrf.mxu0
        %v1072 = vadd.f32 0.0, %v1071
        %1073 = vdwg.mxu0
        %1074 = vmatprep.subr.bf16.mxu0 %v781
        %1075 = vmatpush1.bf16.msra.mxu0 %v780
        %1076 = vmatprep.subr.bf16.mxu0 %v773
        %1077 = vmatpush1.bf16.msra.mxu0 %v772
        %1078 = vmatprep.subr.bf16.mxu0 %v765
        %1079 = vmatpush1.bf16.msra.mxu0 %v764
        %1080 = vmatprep.subr.bf16.mxu0 %v757
        %1081 = vmatpush1.bf16.msra.mxu0 %v756
        %1082 = vmatprep.subr.bf16.mxu0 %v749
        %1083 = vmatpush1.bf16.msra.mxu0 %v748
        %1084 = vmatprep.subr.bf16.mxu0 %v741
        %1085 = vmatpush1.bf16.msra.mxu0 %v740
        %1086 = vmatprep.subr.bf16.mxu0 %v733
        %1087 = vmatpush1.bf16.msra.mxu0 %v732
        %1088 = vmatprep.subr.bf16.mxu0 %v725
        %1089 = vmatpush1.bf16.msra.mxu0 %v724
        %1090 = vmatprep.subr.bf16.mxu0 0
        %1091 = vmatpush2.bf16.msra.mxu0 0
        %1092 = vmatprep.subr.bf16.mxu0 0
        %1093 = vmatpush2.bf16.msra.mxu0 0
        %1094 = vmatprep.subr.bf16.mxu0 0
        %1095 = vmatpush2.bf16.msra.mxu0 0
        %1096 = vmatprep.subr.bf16.mxu0 0
        %1097 = vmatpush2.bf16.msra.mxu0 0
        %1098 = vmatprep.subr.bf16.mxu0 0
        %1099 = vmatpush2.bf16.msra.mxu0 0
        %1100 = vmatprep.subr.bf16.mxu0 0
        %1101 = vmatpush2.bf16.msra.mxu0 0
        %1102 = vmatprep.subr.bf16.mxu0 0
        %1103 = vmatpush2.bf16.msra.mxu0 0
        %1104 = vmatprep.subr.bf16.mxu0 0
        %1105 = vmatpush2.bf16.msra.mxu0 0
        %1106 = vmatprep.mubr.bf16.mxu0 0
        %1107 = vmatmul.mubr.bf16.gmra.mxu0 %v512
        %v1108 = vpop.f32.mrf.mxu0
        %v1109 = vadd.f32 0.0, %v1108
        %v1110 = vpop.f32.mrf.mxu0
        %v1111 = vadd.f32 0.0, %v1110
        %v1112 = vpop.f32.mrf.mxu0
        %v1113 = vadd.f32 0.0, %v1112
        %v1114 = vpop.f32.mrf.mxu0
        %v1115 = vadd.f32 0.0, %v1114
        %1116 = vmatprep.mubr.bf16.mxu0 0
        %1117 = vmatmul.mubr.bf16.gmra.mxu0 %v513
        %v1118 = vpop.f32.mrf.mxu0
        %v1119 = vadd.f32 0.0, %v1118
        %v1120 = vpop.f32.mrf.mxu0
        %v1121 = vadd.f32 0.0, %v1120
        %v1122 = vpop.f32.mrf.mxu0
        %v1123 = vadd.f32 0.0, %v1122
        %v1124 = vpop.f32.mrf.mxu0
        %v1125 = vadd.f32 0.0, %v1124
        %1126 = vmatprep.mubr.bf16.mxu0 0
        %1127 = vmatmul.mubr.bf16.gmra.mxu0 %v514
        %v1128 = vpop.f32.mrf.mxu0
        %v1129 = vadd.f32 0.0, %v1128
        %v1130 = vpop.f32.mrf.mxu0
        %v1131 = vadd.f32 0.0, %v1130
        %v1132 = vpop.f32.mrf.mxu0
        %v1133 = vadd.f32 0.0, %v1132
        %v1134 = vpop.f32.mrf.mxu0
        %v1135 = vadd.f32 0.0, %v1134
        %1136 = vmatprep.mubr.bf16.mxu0 0
        %1137 = vmatmul.mubr.bf16.gmra.mxu0 %v515
        %v1138 = vpop.f32.mrf.mxu0
        %v1139 = vadd.f32 0.0, %v1138
        %v1140 = vpop.f32.mrf.mxu0
        %v1141 = vadd.f32 0.0, %v1140
        %v1142 = vpop.f32.mrf.mxu0
        %v1143 = vadd.f32 0.0, %v1142
        %v1144 = vpop.f32.mrf.mxu0
        %v1145 = vadd.f32 0.0, %v1144
        %1146 = vmatprep.mubr.bf16.mxu0 0
        %1147 = vmatmul.mubr.bf16.gmra.mxu0 %v516
        %v1148 = vpop.f32.mrf.mxu0
        %v1149 = vadd.f32 0.0, %v1148
        %v1150 = vpop.f32.mrf.mxu0
        %v1151 = vadd.f32 0.0, %v1150
        %v1152 = vpop.f32.mrf.mxu0
        %v1153 = vadd.f32 0.0, %v1152
        %v1154 = vpop.f32.mrf.mxu0
        %v1155 = vadd.f32 0.0, %v1154
        %1156 = vmatprep.mubr.bf16.mxu0 0
        %1157 = vmatmul.mubr.bf16.gmra.mxu0 %v517
        %v1158 = vpop.f32.mrf.mxu0
        %v1159 = vadd.f32 0.0, %v1158
        %v1160 = vpop.f32.mrf.mxu0
        %v1161 = vadd.f32 0.0, %v1160
        %v1162 = vpop.f32.mrf.mxu0
        %v1163 = vadd.f32 0.0, %v1162
        %v1164 = vpop.f32.mrf.mxu0
        %v1165 = vadd.f32 0.0, %v1164
        %1166 = vmatprep.mubr.bf16.mxu0 0
        %1167 = vmatmul.mubr.bf16.gmra.mxu0 %v518
        %v1168 = vpop.f32.mrf.mxu0
        %v1169 = vadd.f32 0.0, %v1168
        %v1170 = vpop.f32.mrf.mxu0
        %v1171 = vadd.f32 0.0, %v1170
        %v1172 = vpop.f32.mrf.mxu0
        %v1173 = vadd.f32 0.0, %v1172
        %v1174 = vpop.f32.mrf.mxu0
        %v1175 = vadd.f32 0.0, %v1174
        %1176 = vmatprep.mubr.bf16.mxu0 0
        %1177 = vmatmul.mubr.bf16.gmra.mxu0 %v519
        %v1178 = vpop.f32.mrf.mxu0
        %v1179 = vadd.f32 0.0, %v1178
        %v1180 = vpop.f32.mrf.mxu0
        %v1181 = vadd.f32 0.0, %v1180
        %v1182 = vpop.f32.mrf.mxu0
        %v1183 = vadd.f32 0.0, %v1182
        %v1184 = vpop.f32.mrf.mxu0
        %v1185 = vadd.f32 0.0, %v1184
        %1186 = vdwg.mxu0
        %1187 = vmatprep.subr.bf16.mxu0 %v783
        %1188 = vmatpush1.bf16.msra.mxu0 %v782
        %1189 = vmatprep.subr.bf16.mxu0 %v775
        %1190 = vmatpush1.bf16.msra.mxu0 %v774
        %1191 = vmatprep.subr.bf16.mxu0 %v767
        %1192 = vmatpush1.bf16.msra.mxu0 %v766
        %1193 = vmatprep.subr.bf16.mxu0 %v759
        %1194 = vmatpush1.bf16.msra.mxu0 %v758
        %1195 = vmatprep.subr.bf16.mxu0 %v751
        %1196 = vmatpush1.bf16.msra.mxu0 %v750
        %1197 = vmatprep.subr.bf16.mxu0 %v743
        %1198 = vmatpush1.bf16.msra.mxu0 %v742
        %1199 = vmatprep.subr.bf16.mxu0 %v735
        %1200 = vmatpush1.bf16.msra.mxu0 %v734
        %1201 = vmatprep.subr.bf16.mxu0 %v727
        %1202 = vmatpush1.bf16.msra.mxu0 %v726
        %1203 = vmatprep.subr.bf16.mxu0 0
        %1204 = vmatpush2.bf16.msra.mxu0 0
        %1205 = vmatprep.subr.bf16.mxu0 0
        %1206 = vmatpush2.bf16.msra.mxu0 0
        %1207 = vmatprep.subr.bf16.mxu0 0
        %1208 = vmatpush2.bf16.msra.mxu0 0
        %1209 = vmatprep.subr.bf16.mxu0 0
        %1210 = vmatpush2.bf16.msra.mxu0 0
        %1211 = vmatprep.subr.bf16.mxu0 0
        %1212 = vmatpush2.bf16.msra.mxu0 0
        %1213 = vmatprep.subr.bf16.mxu0 0
        %1214 = vmatpush2.bf16.msra.mxu0 0
        %1215 = vmatprep.subr.bf16.mxu0 0
        %1216 = vmatpush2.bf16.msra.mxu0 0
        %1217 = vmatprep.subr.bf16.mxu0 0
        %1218 = vmatpush2.bf16.msra.mxu0 0
        %1219 = vmatprep.mubr.bf16.mxu0 0
        %1220 = vmatmul.mubr.bf16.gmra.mxu0 %v512
        %v1221 = vpop.f32.mrf.mxu0
        %v1222 = vadd.f32 0.0, %v1221
        %v1223 = vpop.f32.mrf.mxu0
        %v1224 = vadd.f32 0.0, %v1223
        %v1225 = vpop.f32.mrf.mxu0
        %v1226 = vadd.f32 0.0, %v1225
        %v1227 = vpop.f32.mrf.mxu0
        %v1228 = vadd.f32 0.0, %v1227
        %1229 = vmatprep.mubr.bf16.mxu0 0
        %1230 = vmatmul.mubr.bf16.gmra.mxu0 %v513
        %v1231 = vpop.f32.mrf.mxu0
        %v1232 = vadd.f32 0.0, %v1231
        %v1233 = vpop.f32.mrf.mxu0
        %v1234 = vadd.f32 0.0, %v1233
        %v1235 = vpop.f32.mrf.mxu0
        %v1236 = vadd.f32 0.0, %v1235
        %v1237 = vpop.f32.mrf.mxu0
        %v1238 = vadd.f32 0.0, %v1237
        %1239 = vmatprep.mubr.bf16.mxu0 0
        %1240 = vmatmul.mubr.bf16.gmra.mxu0 %v514
        %v1241 = vpop.f32.mrf.mxu0
        %v1242 = vadd.f32 0.0, %v1241
        %v1243 = vpop.f32.mrf.mxu0
        %v1244 = vadd.f32 0.0, %v1243
        %v1245 = vpop.f32.mrf.mxu0
        %v1246 = vadd.f32 0.0, %v1245
        %v1247 = vpop.f32.mrf.mxu0
        %v1248 = vadd.f32 0.0, %v1247
        %1249 = vmatprep.mubr.bf16.mxu0 0
        %1250 = vmatmul.mubr.bf16.gmra.mxu0 %v515
        %v1251 = vpop.f32.mrf.mxu0
        %v1252 = vadd.f32 0.0, %v1251
        %v1253 = vpop.f32.mrf.mxu0
        %v1254 = vadd.f32 0.0, %v1253
        %v1255 = vpop.f32.mrf.mxu0
        %v1256 = vadd.f32 0.0, %v1255
        %v1257 = vpop.f32.mrf.mxu0
        %v1258 = vadd.f32 0.0, %v1257
        %1259 = vmatprep.mubr.bf16.mxu0 0
        %1260 = vmatmul.mubr.bf16.gmra.mxu0 %v516
        %v1261 = vpop.f32.mrf.mxu0
        %v1262 = vadd.f32 0.0, %v1261
        %v1263 = vpop.f32.mrf.mxu0
        %v1264 = vadd.f32 0.0, %v1263
        %v1265 = vpop.f32.mrf.mxu0
        %v1266 = vadd.f32 0.0, %v1265
        %v1267 = vpop.f32.mrf.mxu0
        %v1268 = vadd.f32 0.0, %v1267
        %1269 = vmatprep.mubr.bf16.mxu0 0
        %1270 = vmatmul.mubr.bf16.gmra.mxu0 %v517
        %v1271 = vpop.f32.mrf.mxu0
        %v1272 = vadd.f32 0.0, %v1271
        %v1273 = vpop.f32.mrf.mxu0
        %v1274 = vadd.f32 0.0, %v1273
        %v1275 = vpop.f32.mrf.mxu0
        %v1276 = vadd.f32 0.0, %v1275
        %v1277 = vpop.f32.mrf.mxu0
        %v1278 = vadd.f32 0.0, %v1277
        %1279 = vmatprep.mubr.bf16.mxu0 0
        %1280 = vmatmul.mubr.bf16.gmra.mxu0 %v518
        %v1281 = vpop.f32.mrf.mxu0
        %v1282 = vadd.f32 0.0, %v1281
        %v1283 = vpop.f32.mrf.mxu0
        %v1284 = vadd.f32 0.0, %v1283
        %v1285 = vpop.f32.mrf.mxu0
        %v1286 = vadd.f32 0.0, %v1285
        %v1287 = vpop.f32.mrf.mxu0
        %v1288 = vadd.f32 0.0, %v1287
        %1289 = vmatprep.mubr.bf16.mxu0 0
        %1290 = vmatmul.mubr.bf16.gmra.mxu0 %v519
        %v1291 = vpop.f32.mrf.mxu0
        %v1292 = vadd.f32 0.0, %v1291
        %v1293 = vpop.f32.mrf.mxu0
        %v1294 = vadd.f32 0.0, %v1293
        %v1295 = vpop.f32.mrf.mxu0
        %v1296 = vadd.f32 0.0, %v1295
        %v1297 = vpop.f32.mrf.mxu0
        %v1298 = vadd.f32 0.0, %v1297
        %1299 = vdwg.mxu0
        %v1300 = vld [vmem:[%s395] ss:$2 sm:$0xff]
        %v1302 = vlaneseq
        %v1303 = vshrl.u32 %v1302, 7
        %v1304 = vsub.s32 0, %v1303
        %v1305 = vrot.slane %v1300, %v1304
        %v1306 = vlaneseq
        %v1307 = vshrl.u32 %v1306, 7
        %v1308 = vsub.s32 1, %v1307
        %v1309 = vrot.slane %v1300, %v1308
        %v1310 = vlaneseq
        %v1311 = vshrl.u32 %v1310, 7
        %v1312 = vsub.s32 2, %v1311
        %v1313 = vrot.slane %v1300, %v1312
        %v1314 = vlaneseq
        %v1315 = vshrl.u32 %v1314, 7
        %v1316 = vsub.s32 3, %v1315
        %v1317 = vrot.slane %v1300, %v1316
        %v1318 = vlaneseq
        %v1319 = vshrl.u32 %v1318, 7
        %v1320 = vsub.s32 4, %v1319
        %v1321 = vrot.slane %v1300, %v1320
        %v1322 = vlaneseq
        %v1323 = vshrl.u32 %v1322, 7
        %v1324 = vsub.s32 5, %v1323
        %v1325 = vrot.slane %v1300, %v1324
        %v1326 = vlaneseq
        %v1327 = vshrl.u32 %v1326, 7
        %v1328 = vsub.s32 6, %v1327
        %v1329 = vrot.slane %v1300, %v1328
        %v1330 = vlaneseq
        %v1331 = vshrl.u32 %v1330, 7
        %v1332 = vsub.s32 7, %v1331
        %v1333 = vrot.slane %v1300, %v1332
        %v1342 = vmul.f32 %v883, %v1305
        %v1343 = vmul.f32 %v885, %v1309
        %v1344 = vmul.f32 %v996, %v1313
        %v1345 = vmul.f32 %v998, %v1317
        %v1346 = vmul.f32 %v1109, %v1321
        %v1347 = vmul.f32 %v1111, %v1325
        %v1348 = vmul.f32 %v1222, %v1329
        %v1349 = vmul.f32 %v1224, %v1333
        %v1350 = vmul.f32 %v887, %v1305
        %v1351 = vmul.f32 %v889, %v1309
        %v1352 = vmul.f32 %v1000, %v1313
        %v1353 = vmul.f32 %v1002, %v1317
        %v1354 = vmul.f32 %v1113, %v1321
        %v1355 = vmul.f32 %v1115, %v1325
        %v1356 = vmul.f32 %v1226, %v1329
        %v1357 = vmul.f32 %v1228, %v1333
        %v1358 = vmul.f32 %v893, %v1305
        %v1359 = vmul.f32 %v895, %v1309
        %v1360 = vmul.f32 %v1006, %v1313
        %v1361 = vmul.f32 %v1008, %v1317
        %v1362 = vmul.f32 %v1119, %v1321
        %v1363 = vmul.f32 %v1121, %v1325
        %v1364 = vmul.f32 %v1232, %v1329
        %v1365 = vmul.f32 %v1234, %v1333
        %v1366 = vmul.f32 %v897, %v1305
        %v1367 = vmul.f32 %v899, %v1309
        %v1368 = vmul.f32 %v1010, %v1313
        %v1369 = vmul.f32 %v1012, %v1317
        %v1370 = vmul.f32 %v1123, %v1321
        %v1371 = vmul.f32 %v1125, %v1325
        %v1372 = vmul.f32 %v1236, %v1329
        %v1373 = vmul.f32 %v1238, %v1333
        %v1374 = vmul.f32 %v903, %v1305
        %v1375 = vmul.f32 %v905, %v1309
        %v1376 = vmul.f32 %v1016, %v1313
        %v1377 = vmul.f32 %v1018, %v1317
        %v1378 = vmul.f32 %v1129, %v1321
        %v1379 = vmul.f32 %v1131, %v1325
        %v1380 = vmul.f32 %v1242, %v1329
        %v1381 = vmul.f32 %v1244, %v1333
        %v1382 = vmul.f32 %v907, %v1305
        %v1383 = vmul.f32 %v909, %v1309
        %v1384 = vmul.f32 %v1020, %v1313
        %v1385 = vmul.f32 %v1022, %v1317
        %v1386 = vmul.f32 %v1133, %v1321
        %v1387 = vmul.f32 %v1135, %v1325
        %v1388 = vmul.f32 %v1246, %v1329
        %v1389 = vmul.f32 %v1248, %v1333
        %v1390 = vmul.f32 %v913, %v1305
        %v1391 = vmul.f32 %v915, %v1309
        %v1392 = vmul.f32 %v1026, %v1313
        %v1393 = vmul.f32 %v1028, %v1317
        %v1394 = vmul.f32 %v1139, %v1321
        %v1395 = vmul.f32 %v1141, %v1325
        %v1396 = vmul.f32 %v1252, %v1329
        %v1397 = vmul.f32 %v1254, %v1333
        %v1398 = vmul.f32 %v917, %v1305
        %v1399 = vmul.f32 %v919, %v1309
        %v1400 = vmul.f32 %v1030, %v1313
        %v1401 = vmul.f32 %v1032, %v1317
        %v1402 = vmul.f32 %v1143, %v1321
        %v1403 = vmul.f32 %v1145, %v1325
        %v1404 = vmul.f32 %v1256, %v1329
        %v1405 = vmul.f32 %v1258, %v1333
        %v1406 = vmul.f32 %v923, %v1305
        %v1407 = vmul.f32 %v925, %v1309
        %v1408 = vmul.f32 %v1036, %v1313
        %v1409 = vmul.f32 %v1038, %v1317
        %v1410 = vmul.f32 %v1149, %v1321
        %v1411 = vmul.f32 %v1151, %v1325
        %v1412 = vmul.f32 %v1262, %v1329
        %v1413 = vmul.f32 %v1264, %v1333
        %v1414 = vmul.f32 %v927, %v1305
        %v1415 = vmul.f32 %v929, %v1309
        %v1416 = vmul.f32 %v1040, %v1313
        %v1417 = vmul.f32 %v1042, %v1317
        %v1418 = vmul.f32 %v1153, %v1321
        %v1419 = vmul.f32 %v1155, %v1325
        %v1420 = vmul.f32 %v1266, %v1329
        %v1421 = vmul.f32 %v1268, %v1333
        %v1422 = vmul.f32 %v933, %v1305
        %v1423 = vmul.f32 %v935, %v1309
        %v1424 = vmul.f32 %v1046, %v1313
        %v1425 = vmul.f32 %v1048, %v1317
        %v1426 = vmul.f32 %v1159, %v1321
        %v1427 = vmul.f32 %v1161, %v1325
        %v1428 = vmul.f32 %v1272, %v1329
        %v1429 = vmul.f32 %v1274, %v1333
        %v1430 = vmul.f32 %v937, %v1305
        %v1431 = vmul.f32 %v939, %v1309
        %v1432 = vmul.f32 %v1050, %v1313
        %v1433 = vmul.f32 %v1052, %v1317
        %v1434 = vmul.f32 %v1163, %v1321
        %v1435 = vmul.f32 %v1165, %v1325
        %v1436 = vmul.f32 %v1276, %v1329
        %v1437 = vmul.f32 %v1278, %v1333
        %v1438 = vmul.f32 %v943, %v1305
        %v1439 = vmul.f32 %v945, %v1309
        %v1440 = vmul.f32 %v1056, %v1313
        %v1441 = vmul.f32 %v1058, %v1317
        %v1442 = vmul.f32 %v1169, %v1321
        %v1443 = vmul.f32 %v1171, %v1325
        %v1444 = vmul.f32 %v1282, %v1329
        %v1445 = vmul.f32 %v1284, %v1333
        %v1446 = vmul.f32 %v947, %v1305
        %v1447 = vmul.f32 %v949, %v1309
        %v1448 = vmul.f32 %v1060, %v1313
        %v1449 = vmul.f32 %v1062, %v1317
        %v1450 = vmul.f32 %v1173, %v1321
        %v1451 = vmul.f32 %v1175, %v1325
        %v1452 = vmul.f32 %v1286, %v1329
        %v1453 = vmul.f32 %v1288, %v1333
        %v1454 = vmul.f32 %v953, %v1305
        %v1455 = vmul.f32 %v955, %v1309
        %v1456 = vmul.f32 %v1066, %v1313
        %v1457 = vmul.f32 %v1068, %v1317
        %v1458 = vmul.f32 %v1179, %v1321
        %v1459 = vmul.f32 %v1181, %v1325
        %v1460 = vmul.f32 %v1292, %v1329
        %v1461 = vmul.f32 %v1294, %v1333
        %v1462 = vmul.f32 %v957, %v1305
        %v1463 = vmul.f32 %v959, %v1309
        %v1464 = vmul.f32 %v1070, %v1313
        %v1465 = vmul.f32 %v1072, %v1317
        %v1466 = vmul.f32 %v1183, %v1321
        %v1467 = vmul.f32 %v1185, %v1325
        %v1468 = vmul.f32 %v1296, %v1329
        %v1469 = vmul.f32 %v1298, %v1333
        %s1470 = scalar_lea.vmem %s395, 1
        %v1471 = vld [vmem:[%s1470] ss:$2 sm:$0xff]
        %v1473 = vlaneseq
        %v1474 = vshrl.u32 %v1473, 7
        %v1475 = vsub.s32 0, %v1474
        %v1476 = vrot.slane %v1471, %v1475
        %v1477 = vlaneseq
        %v1478 = vshrl.u32 %v1477, 7
        %v1479 = vsub.s32 1, %v1478
        %v1480 = vrot.slane %v1471, %v1479
        %v1481 = vlaneseq
        %v1482 = vshrl.u32 %v1481, 7
        %v1483 = vsub.s32 2, %v1482
        %v1484 = vrot.slane %v1471, %v1483
        %v1485 = vlaneseq
        %v1486 = vshrl.u32 %v1485, 7
        %v1487 = vsub.s32 3, %v1486
        %v1488 = vrot.slane %v1471, %v1487
        %v1489 = vlaneseq
        %v1490 = vshrl.u32 %v1489, 7
        %v1491 = vsub.s32 4, %v1490
        %v1492 = vrot.slane %v1471, %v1491
        %v1493 = vlaneseq
        %v1494 = vshrl.u32 %v1493, 7
        %v1495 = vsub.s32 5, %v1494
        %v1496 = vrot.slane %v1471, %v1495
        %v1497 = vlaneseq
        %v1498 = vshrl.u32 %v1497, 7
        %v1499 = vsub.s32 6, %v1498
        %v1500 = vrot.slane %v1471, %v1499
        %v1501 = vlaneseq
        %v1502 = vshrl.u32 %v1501, 7
        %v1503 = vsub.s32 7, %v1502
        %v1504 = vrot.slane %v1471, %v1503
        %v1513 = vadd.f32 %v1342, %v1476
        %v1514 = vadd.f32 %v1343, %v1480
        %v1515 = vadd.f32 %v1344, %v1484
        %v1516 = vadd.f32 %v1345, %v1488
        %v1517 = vadd.f32 %v1346, %v1492
        %v1518 = vadd.f32 %v1347, %v1496
        %v1519 = vadd.f32 %v1348, %v1500
        %v1520 = vadd.f32 %v1349, %v1504
        %v1521 = vadd.f32 %v1350, %v1476
        %v1522 = vadd.f32 %v1351, %v1480
        %v1523 = vadd.f32 %v1352, %v1484
        %v1524 = vadd.f32 %v1353, %v1488
        %v1525 = vadd.f32 %v1354, %v1492
        %v1526 = vadd.f32 %v1355, %v1496
        %v1527 = vadd.f32 %v1356, %v1500
        %v1528 = vadd.f32 %v1357, %v1504
        %v1529 = vadd.f32 %v1358, %v1476
        %v1530 = vadd.f32 %v1359, %v1480
        %v1531 = vadd.f32 %v1360, %v1484
        %v1532 = vadd.f32 %v1361, %v1488
        %v1533 = vadd.f32 %v1362, %v1492
        %v1534 = vadd.f32 %v1363, %v1496
        %v1535 = vadd.f32 %v1364, %v1500
        %v1536 = vadd.f32 %v1365, %v1504
        %v1537 = vadd.f32 %v1366, %v1476
        %v1538 = vadd.f32 %v1367, %v1480
        %v1539 = vadd.f32 %v1368, %v1484
        %v1540 = vadd.f32 %v1369, %v1488
        %v1541 = vadd.f32 %v1370, %v1492
        %v1542 = vadd.f32 %v1371, %v1496
        %v1543 = vadd.f32 %v1372, %v1500
        %v1544 = vadd.f32 %v1373, %v1504
        %v1545 = vadd.f32 %v1374, %v1476
        %v1546 = vadd.f32 %v1375, %v1480
        %v1547 = vadd.f32 %v1376, %v1484
        %v1548 = vadd.f32 %v1377, %v1488
        %v1549 = vadd.f32 %v1378, %v1492
        %v1550 = vadd.f32 %v1379, %v1496
        %v1551 = vadd.f32 %v1380, %v1500
        %v1552 = vadd.f32 %v1381, %v1504
        %v1553 = vadd.f32 %v1382, %v1476
        %v1554 = vadd.f32 %v1383, %v1480
        %v1555 = vadd.f32 %v1384, %v1484
        %v1556 = vadd.f32 %v1385, %v1488
        %v1557 = vadd.f32 %v1386, %v1492
        %v1558 = vadd.f32 %v1387, %v1496
        %v1559 = vadd.f32 %v1388, %v1500
        %v1560 = vadd.f32 %v1389, %v1504
        %v1561 = vadd.f32 %v1390, %v1476
        %v1562 = vadd.f32 %v1391, %v1480
        %v1563 = vadd.f32 %v1392, %v1484
        %v1564 = vadd.f32 %v1393, %v1488
        %v1565 = vadd.f32 %v1394, %v1492
        %v1566 = vadd.f32 %v1395, %v1496
        %v1567 = vadd.f32 %v1396, %v1500
        %v1568 = vadd.f32 %v1397, %v1504
        %v1569 = vadd.f32 %v1398, %v1476
        %v1570 = vadd.f32 %v1399, %v1480
        %v1571 = vadd.f32 %v1400, %v1484
        %v1572 = vadd.f32 %v1401, %v1488
        %v1573 = vadd.f32 %v1402, %v1492
        %v1574 = vadd.f32 %v1403, %v1496
        %v1575 = vadd.f32 %v1404, %v1500
        %v1576 = vadd.f32 %v1405, %v1504
        %v1577 = vadd.f32 %v1406, %v1476
        %v1578 = vadd.f32 %v1407, %v1480
        %v1579 = vadd.f32 %v1408, %v1484
        %v1580 = vadd.f32 %v1409, %v1488
        %v1581 = vadd.f32 %v1410, %v1492
        %v1582 = vadd.f32 %v1411, %v1496
        %v1583 = vadd.f32 %v1412, %v1500
        %v1584 = vadd.f32 %v1413, %v1504
        %v1585 = vadd.f32 %v1414, %v1476
        %v1586 = vadd.f32 %v1415, %v1480
        %v1587 = vadd.f32 %v1416, %v1484
        %v1588 = vadd.f32 %v1417, %v1488
        %v1589 = vadd.f32 %v1418, %v1492
        %v1590 = vadd.f32 %v1419, %v1496
        %v1591 = vadd.f32 %v1420, %v1500
        %v1592 = vadd.f32 %v1421, %v1504
        %v1593 = vadd.f32 %v1422, %v1476
        %v1594 = vadd.f32 %v1423, %v1480
        %v1595 = vadd.f32 %v1424, %v1484
        %v1596 = vadd.f32 %v1425, %v1488
        %v1597 = vadd.f32 %v1426, %v1492
        %v1598 = vadd.f32 %v1427, %v1496
        %v1599 = vadd.f32 %v1428, %v1500
        %v1600 = vadd.f32 %v1429, %v1504
        %v1601 = vadd.f32 %v1430, %v1476
        %v1602 = vadd.f32 %v1431, %v1480
        %v1603 = vadd.f32 %v1432, %v1484
        %v1604 = vadd.f32 %v1433, %v1488
        %v1605 = vadd.f32 %v1434, %v1492
        %v1606 = vadd.f32 %v1435, %v1496
        %v1607 = vadd.f32 %v1436, %v1500
        %v1608 = vadd.f32 %v1437, %v1504
        %v1609 = vadd.f32 %v1438, %v1476
        %v1610 = vadd.f32 %v1439, %v1480
        %v1611 = vadd.f32 %v1440, %v1484
        %v1612 = vadd.f32 %v1441, %v1488
        %v1613 = vadd.f32 %v1442, %v1492
        %v1614 = vadd.f32 %v1443, %v1496
        %v1615 = vadd.f32 %v1444, %v1500
        %v1616 = vadd.f32 %v1445, %v1504
        %v1617 = vadd.f32 %v1446, %v1476
        %v1618 = vadd.f32 %v1447, %v1480
        %v1619 = vadd.f32 %v1448, %v1484
        %v1620 = vadd.f32 %v1449, %v1488
        %v1621 = vadd.f32 %v1450, %v1492
        %v1622 = vadd.f32 %v1451, %v1496
        %v1623 = vadd.f32 %v1452, %v1500
        %v1624 = vadd.f32 %v1453, %v1504
        %v1625 = vadd.f32 %v1454, %v1476
        %v1626 = vadd.f32 %v1455, %v1480
        %v1627 = vadd.f32 %v1456, %v1484
        %v1628 = vadd.f32 %v1457, %v1488
        %v1629 = vadd.f32 %v1458, %v1492
        %v1630 = vadd.f32 %v1459, %v1496
        %v1631 = vadd.f32 %v1460, %v1500
        %v1632 = vadd.f32 %v1461, %v1504
        %v1633 = vadd.f32 %v1462, %v1476
        %v1634 = vadd.f32 %v1463, %v1480
        %v1635 = vadd.f32 %v1464, %v1484
        %v1636 = vadd.f32 %v1465, %v1488
        %v1637 = vadd.f32 %v1466, %v1492
        %v1638 = vadd.f32 %v1467, %v1496
        %v1639 = vadd.f32 %v1468, %v1500
        %v1640 = vadd.f32 %v1469, %v1504
        %v1641 = vmax.f32 %v1513, 0.0
        %v1642 = vmax.f32 %v1514, 0.0
        %v1643 = vmax.f32 %v1515, 0.0
        %v1644 = vmax.f32 %v1516, 0.0
        %v1645 = vmax.f32 %v1517, 0.0
        %v1646 = vmax.f32 %v1518, 0.0
        %v1647 = vmax.f32 %v1519, 0.0
        %v1648 = vmax.f32 %v1520, 0.0
        %v1649 = vmax.f32 %v1521, 0.0
        %v1650 = vmax.f32 %v1522, 0.0
        %v1651 = vmax.f32 %v1523, 0.0
        %v1652 = vmax.f32 %v1524, 0.0
        %v1653 = vmax.f32 %v1525, 0.0
        %v1654 = vmax.f32 %v1526, 0.0
        %v1655 = vmax.f32 %v1527, 0.0
        %v1656 = vmax.f32 %v1528, 0.0
        %v1657 = vmax.f32 %v1529, 0.0
        %v1658 = vmax.f32 %v1530, 0.0
        %v1659 = vmax.f32 %v1531, 0.0
        %v1660 = vmax.f32 %v1532, 0.0
        %v1661 = vmax.f32 %v1533, 0.0
        %v1662 = vmax.f32 %v1534, 0.0
        %v1663 = vmax.f32 %v1535, 0.0
        %v1664 = vmax.f32 %v1536, 0.0
        %v1665 = vmax.f32 %v1537, 0.0
        %v1666 = vmax.f32 %v1538, 0.0
        %v1667 = vmax.f32 %v1539, 0.0
        %v1668 = vmax.f32 %v1540, 0.0
        %v1669 = vmax.f32 %v1541, 0.0
        %v1670 = vmax.f32 %v1542, 0.0
        %v1671 = vmax.f32 %v1543, 0.0
        %v1672 = vmax.f32 %v1544, 0.0
        %v1673 = vmax.f32 %v1545, 0.0
        %v1674 = vmax.f32 %v1546, 0.0
        %v1675 = vmax.f32 %v1547, 0.0
        %v1676 = vmax.f32 %v1548, 0.0
        %v1677 = vmax.f32 %v1549, 0.0
        %v1678 = vmax.f32 %v1550, 0.0
        %v1679 = vmax.f32 %v1551, 0.0
        %v1680 = vmax.f32 %v1552, 0.0
        %v1681 = vmax.f32 %v1553, 0.0
        %v1682 = vmax.f32 %v1554, 0.0
        %v1683 = vmax.f32 %v1555, 0.0
        %v1684 = vmax.f32 %v1556, 0.0
        %v1685 = vmax.f32 %v1557, 0.0
        %v1686 = vmax.f32 %v1558, 0.0
        %v1687 = vmax.f32 %v1559, 0.0
        %v1688 = vmax.f32 %v1560, 0.0
        %v1689 = vmax.f32 %v1561, 0.0
        %v1690 = vmax.f32 %v1562, 0.0
        %v1691 = vmax.f32 %v1563, 0.0
        %v1692 = vmax.f32 %v1564, 0.0
        %v1693 = vmax.f32 %v1565, 0.0
        %v1694 = vmax.f32 %v1566, 0.0
        %v1695 = vmax.f32 %v1567, 0.0
        %v1696 = vmax.f32 %v1568, 0.0
        %v1697 = vmax.f32 %v1569, 0.0
        %v1698 = vmax.f32 %v1570, 0.0
        %v1699 = vmax.f32 %v1571, 0.0
        %v1700 = vmax.f32 %v1572, 0.0
        %v1701 = vmax.f32 %v1573, 0.0
        %v1702 = vmax.f32 %v1574, 0.0
        %v1703 = vmax.f32 %v1575, 0.0
        %v1704 = vmax.f32 %v1576, 0.0
        %v1705 = vmax.f32 %v1577, 0.0
        %v1706 = vmax.f32 %v1578, 0.0
        %v1707 = vmax.f32 %v1579, 0.0
        %v1708 = vmax.f32 %v1580, 0.0
        %v1709 = vmax.f32 %v1581, 0.0
        %v1710 = vmax.f32 %v1582, 0.0
        %v1711 = vmax.f32 %v1583, 0.0
        %v1712 = vmax.f32 %v1584, 0.0
        %v1713 = vmax.f32 %v1585, 0.0
        %v1714 = vmax.f32 %v1586, 0.0
        %v1715 = vmax.f32 %v1587, 0.0
        %v1716 = vmax.f32 %v1588, 0.0
        %v1717 = vmax.f32 %v1589, 0.0
        %v1718 = vmax.f32 %v1590, 0.0
        %v1719 = vmax.f32 %v1591, 0.0
        %v1720 = vmax.f32 %v1592, 0.0
        %v1721 = vmax.f32 %v1593, 0.0
        %v1722 = vmax.f32 %v1594, 0.0
        %v1723 = vmax.f32 %v1595, 0.0
        %v1724 = vmax.f32 %v1596, 0.0
        %v1725 = vmax.f32 %v1597, 0.0
        %v1726 = vmax.f32 %v1598, 0.0
        %v1727 = vmax.f32 %v1599, 0.0
        %v1728 = vmax.f32 %v1600, 0.0
        %v1729 = vmax.f32 %v1601, 0.0
        %v1730 = vmax.f32 %v1602, 0.0
        %v1731 = vmax.f32 %v1603, 0.0
        %v1732 = vmax.f32 %v1604, 0.0
        %v1733 = vmax.f32 %v1605, 0.0
        %v1734 = vmax.f32 %v1606, 0.0
        %v1735 = vmax.f32 %v1607, 0.0
        %v1736 = vmax.f32 %v1608, 0.0
        %v1737 = vmax.f32 %v1609, 0.0
        %v1738 = vmax.f32 %v1610, 0.0
        %v1739 = vmax.f32 %v1611, 0.0
        %v1740 = vmax.f32 %v1612, 0.0
        %v1741 = vmax.f32 %v1613, 0.0
        %v1742 = vmax.f32 %v1614, 0.0
        %v1743 = vmax.f32 %v1615, 0.0
        %v1744 = vmax.f32 %v1616, 0.0
        %v1745 = vmax.f32 %v1617, 0.0
        %v1746 = vmax.f32 %v1618, 0.0
        %v1747 = vmax.f32 %v1619, 0.0
        %v1748 = vmax.f32 %v1620, 0.0
        %v1749 = vmax.f32 %v1621, 0.0
        %v1750 = vmax.f32 %v1622, 0.0
        %v1751 = vmax.f32 %v1623, 0.0
        %v1752 = vmax.f32 %v1624, 0.0
        %v1753 = vmax.f32 %v1625, 0.0
        %v1754 = vmax.f32 %v1626, 0.0
        %v1755 = vmax.f32 %v1627, 0.0
        %v1756 = vmax.f32 %v1628, 0.0
        %v1757 = vmax.f32 %v1629, 0.0
        %v1758 = vmax.f32 %v1630, 0.0
        %v1759 = vmax.f32 %v1631, 0.0
        %v1760 = vmax.f32 %v1632, 0.0
        %v1761 = vmax.f32 %v1633, 0.0
        %v1762 = vmax.f32 %v1634, 0.0
        %v1763 = vmax.f32 %v1635, 0.0
        %v1764 = vmax.f32 %v1636, 0.0
        %v1765 = vmax.f32 %v1637, 0.0
        %v1766 = vmax.f32 %v1638, 0.0
        %v1767 = vmax.f32 %v1639, 0.0
        %v1768 = vmax.f32 %v1640, 0.0
        %v1769 = vpack.c.bf16 %v1649, %v1641
        %v1770 = vpack.c.bf16 %v1650, %v1642
        %v1771 = vpack.c.bf16 %v1651, %v1643
        %v1772 = vpack.c.bf16 %v1652, %v1644
        %v1773 = vpack.c.bf16 %v1653, %v1645
        %v1774 = vpack.c.bf16 %v1654, %v1646
        %v1775 = vpack.c.bf16 %v1655, %v1647
        %v1776 = vpack.c.bf16 %v1656, %v1648
        %v1777 = vpack.c.bf16 %v1665, %v1657
        %v1778 = vpack.c.bf16 %v1666, %v1658
        %v1779 = vpack.c.bf16 %v1667, %v1659
        %v1780 = vpack.c.bf16 %v1668, %v1660
        %v1781 = vpack.c.bf16 %v1669, %v1661
        %v1782 = vpack.c.bf16 %v1670, %v1662
        %v1783 = vpack.c.bf16 %v1671, %v1663
        %v1784 = vpack.c.bf16 %v1672, %v1664
        %v1785 = vpack.c.bf16 %v1681, %v1673
        %v1786 = vpack.c.bf16 %v1682, %v1674
        %v1787 = vpack.c.bf16 %v1683, %v1675
        %v1788 = vpack.c.bf16 %v1684, %v1676
        %v1789 = vpack.c.bf16 %v1685, %v1677
        %v1790 = vpack.c.bf16 %v1686, %v1678
        %v1791 = vpack.c.bf16 %v1687, %v1679
        %v1792 = vpack.c.bf16 %v1688, %v1680
        %v1793 = vpack.c.bf16 %v1697, %v1689
        %v1794 = vpack.c.bf16 %v1698, %v1690
        %v1795 = vpack.c.bf16 %v1699, %v1691
        %v1796 = vpack.c.bf16 %v1700, %v1692
        %v1797 = vpack.c.bf16 %v1701, %v1693
        %v1798 = vpack.c.bf16 %v1702, %v1694
        %v1799 = vpack.c.bf16 %v1703, %v1695
        %v1800 = vpack.c.bf16 %v1704, %v1696
        %v1801 = vpack.c.bf16 %v1713, %v1705
        %v1802 = vpack.c.bf16 %v1714, %v1706
        %v1803 = vpack.c.bf16 %v1715, %v1707
        %v1804 = vpack.c.bf16 %v1716, %v1708
        %v1805 = vpack.c.bf16 %v1717, %v1709
        %v1806 = vpack.c.bf16 %v1718, %v1710
        %v1807 = vpack.c.bf16 %v1719, %v1711
        %v1808 = vpack.c.bf16 %v1720, %v1712
        %v1809 = vpack.c.bf16 %v1729, %v1721
        %v1810 = vpack.c.bf16 %v1730, %v1722
        %v1811 = vpack.c.bf16 %v1731, %v1723
        %v1812 = vpack.c.bf16 %v1732, %v1724
        %v1813 = vpack.c.bf16 %v1733, %v1725
        %v1814 = vpack.c.bf16 %v1734, %v1726
        %v1815 = vpack.c.bf16 %v1735, %v1727
        %v1816 = vpack.c.bf16 %v1736, %v1728
        %v1817 = vpack.c.bf16 %v1745, %v1737
        %v1818 = vpack.c.bf16 %v1746, %v1738
        %v1819 = vpack.c.bf16 %v1747, %v1739
        %v1820 = vpack.c.bf16 %v1748, %v1740
        %v1821 = vpack.c.bf16 %v1749, %v1741
        %v1822 = vpack.c.bf16 %v1750, %v1742
        %v1823 = vpack.c.bf16 %v1751, %v1743
        %v1824 = vpack.c.bf16 %v1752, %v1744
        %v1825 = vpack.c.bf16 %v1761, %v1753
        %v1826 = vpack.c.bf16 %v1762, %v1754
        %v1827 = vpack.c.bf16 %v1763, %v1755
        %v1828 = vpack.c.bf16 %v1764, %v1756
        %v1829 = vpack.c.bf16 %v1765, %v1757
        %v1830 = vpack.c.bf16 %v1766, %v1758
        %v1831 = vpack.c.bf16 %v1767, %v1759
        %v1832 = vpack.c.bf16 %v1768, %v1760
        %v1897 = vunpack.c.l.b16 %v1769
        %v1898 = vunpack.c.l.b16 %v1770
        %v1899 = vunpack.c.l.b16 %v1771
        %v1900 = vunpack.c.l.b16 %v1772
        %v1901 = vunpack.c.l.b16 %v1773
        %v1902 = vunpack.c.l.b16 %v1774
        %v1903 = vunpack.c.l.b16 %v1775
        %v1904 = vunpack.c.l.b16 %v1776
        %v1905 = vunpack.c.h.b16 %v1769
        %v1906 = vunpack.c.h.b16 %v1770
        %v1907 = vunpack.c.h.b16 %v1771
        %v1908 = vunpack.c.h.b16 %v1772
        %v1909 = vunpack.c.h.b16 %v1773
        %v1910 = vunpack.c.h.b16 %v1774
        %v1911 = vunpack.c.h.b16 %v1775
        %v1912 = vunpack.c.h.b16 %v1776
        %v1913 = vunpack.c.l.b16 %v1777
        %v1914 = vunpack.c.l.b16 %v1778
        %v1915 = vunpack.c.l.b16 %v1779
        %v1916 = vunpack.c.l.b16 %v1780
        %v1917 = vunpack.c.l.b16 %v1781
        %v1918 = vunpack.c.l.b16 %v1782
        %v1919 = vunpack.c.l.b16 %v1783
        %v1920 = vunpack.c.l.b16 %v1784
        %v1921 = vunpack.c.h.b16 %v1777
        %v1922 = vunpack.c.h.b16 %v1778
        %v1923 = vunpack.c.h.b16 %v1779
        %v1924 = vunpack.c.h.b16 %v1780
        %v1925 = vunpack.c.h.b16 %v1781
        %v1926 = vunpack.c.h.b16 %v1782
        %v1927 = vunpack.c.h.b16 %v1783
        %v1928 = vunpack.c.h.b16 %v1784
        %v1929 = vunpack.c.l.b16 %v1785
        %v1930 = vunpack.c.l.b16 %v1786
        %v1931 = vunpack.c.l.b16 %v1787
        %v1932 = vunpack.c.l.b16 %v1788
        %v1933 = vunpack.c.l.b16 %v1789
        %v1934 = vunpack.c.l.b16 %v1790
        %v1935 = vunpack.c.l.b16 %v1791
        %v1936 = vunpack.c.l.b16 %v1792
        %v1937 = vunpack.c.h.b16 %v1785
        %v1938 = vunpack.c.h.b16 %v1786
        %v1939 = vunpack.c.h.b16 %v1787
        %v1940 = vunpack.c.h.b16 %v1788
        %v1941 = vunpack.c.h.b16 %v1789
        %v1942 = vunpack.c.h.b16 %v1790
        %v1943 = vunpack.c.h.b16 %v1791
        %v1944 = vunpack.c.h.b16 %v1792
        %v1945 = vunpack.c.l.b16 %v1793
        %v1946 = vunpack.c.l.b16 %v1794
        %v1947 = vunpack.c.l.b16 %v1795
        %v1948 = vunpack.c.l.b16 %v1796
        %v1949 = vunpack.c.l.b16 %v1797
        %v1950 = vunpack.c.l.b16 %v1798
        %v1951 = vunpack.c.l.b16 %v1799
        %v1952 = vunpack.c.l.b16 %v1800
        %v1953 = vunpack.c.h.b16 %v1793
        %v1954 = vunpack.c.h.b16 %v1794
        %v1955 = vunpack.c.h.b16 %v1795
        %v1956 = vunpack.c.h.b16 %v1796
        %v1957 = vunpack.c.h.b16 %v1797
        %v1958 = vunpack.c.h.b16 %v1798
        %v1959 = vunpack.c.h.b16 %v1799
        %v1960 = vunpack.c.h.b16 %v1800
        %v1961 = vunpack.c.l.b16 %v1801
        %v1962 = vunpack.c.l.b16 %v1802
        %v1963 = vunpack.c.l.b16 %v1803
        %v1964 = vunpack.c.l.b16 %v1804
        %v1965 = vunpack.c.l.b16 %v1805
        %v1966 = vunpack.c.l.b16 %v1806
        %v1967 = vunpack.c.l.b16 %v1807
        %v1968 = vunpack.c.l.b16 %v1808
        %v1969 = vunpack.c.h.b16 %v1801
        %v1970 = vunpack.c.h.b16 %v1802
        %v1971 = vunpack.c.h.b16 %v1803
        %v1972 = vunpack.c.h.b16 %v1804
        %v1973 = vunpack.c.h.b16 %v1805
        %v1974 = vunpack.c.h.b16 %v1806
        %v1975 = vunpack.c.h.b16 %v1807
        %v1976 = vunpack.c.h.b16 %v1808
        %v1977 = vunpack.c.l.b16 %v1809
        %v1978 = vunpack.c.l.b16 %v1810
        %v1979 = vunpack.c.l.b16 %v1811
        %v1980 = vunpack.c.l.b16 %v1812
        %v1981 = vunpack.c.l.b16 %v1813
        %v1982 = vunpack.c.l.b16 %v1814
        %v1983 = vunpack.c.l.b16 %v1815
        %v1984 = vunpack.c.l.b16 %v1816
        %v1985 = vunpack.c.h.b16 %v1809
        %v1986 = vunpack.c.h.b16 %v1810
        %v1987 = vunpack.c.h.b16 %v1811
        %v1988 = vunpack.c.h.b16 %v1812
        %v1989 = vunpack.c.h.b16 %v1813
        %v1990 = vunpack.c.h.b16 %v1814
        %v1991 = vunpack.c.h.b16 %v1815
        %v1992 = vunpack.c.h.b16 %v1816
        %v1993 = vunpack.c.l.b16 %v1817
        %v1994 = vunpack.c.l.b16 %v1818
        %v1995 = vunpack.c.l.b16 %v1819
        %v1996 = vunpack.c.l.b16 %v1820
        %v1997 = vunpack.c.l.b16 %v1821
        %v1998 = vunpack.c.l.b16 %v1822
        %v1999 = vunpack.c.l.b16 %v1823
        %v2000 = vunpack.c.l.b16 %v1824
        %v2001 = vunpack.c.h.b16 %v1817
        %v2002 = vunpack.c.h.b16 %v1818
        %v2003 = vunpack.c.h.b16 %v1819
        %v2004 = vunpack.c.h.b16 %v1820
        %v2005 = vunpack.c.h.b16 %v1821
        %v2006 = vunpack.c.h.b16 %v1822
        %v2007 = vunpack.c.h.b16 %v1823
        %v2008 = vunpack.c.h.b16 %v1824
        %v2009 = vunpack.c.l.b16 %v1825
        %v2010 = vunpack.c.l.b16 %v1826
        %v2011 = vunpack.c.l.b16 %v1827
        %v2012 = vunpack.c.l.b16 %v1828
        %v2013 = vunpack.c.l.b16 %v1829
        %v2014 = vunpack.c.l.b16 %v1830
        %v2015 = vunpack.c.l.b16 %v1831
        %v2016 = vunpack.c.l.b16 %v1832
        %v2017 = vunpack.c.h.b16 %v1825
        %v2018 = vunpack.c.h.b16 %v1826
        %v2019 = vunpack.c.h.b16 %v1827
        %v2020 = vunpack.c.h.b16 %v1828
        %v2021 = vunpack.c.h.b16 %v1829
        %v2022 = vunpack.c.h.b16 %v1830
        %v2023 = vunpack.c.h.b16 %v1831
        %v2024 = vunpack.c.h.b16 %v1832
        %v2025 = vpack.c.b16 %v1898, %v1897
        %v2026 = vpack.c.b16 %v1900, %v1899
        %v2027 = vpack.c.b16 %v1902, %v1901
        %v2028 = vpack.c.b16 %v1904, %v1903
        %v2029 = vpack.c.b16 %v1906, %v1905
        %v2030 = vpack.c.b16 %v1908, %v1907
        %v2031 = vpack.c.b16 %v1910, %v1909
        %v2032 = vpack.c.b16 %v1912, %v1911
        %v2033 = vpack.c.b16 %v1914, %v1913
        %v2034 = vpack.c.b16 %v1916, %v1915
        %v2035 = vpack.c.b16 %v1918, %v1917
        %v2036 = vpack.c.b16 %v1920, %v1919
        %v2037 = vpack.c.b16 %v1922, %v1921
        %v2038 = vpack.c.b16 %v1924, %v1923
        %v2039 = vpack.c.b16 %v1926, %v1925
        %v2040 = vpack.c.b16 %v1928, %v1927
        %v2041 = vpack.c.b16 %v1930, %v1929
        %v2042 = vpack.c.b16 %v1932, %v1931
        %v2043 = vpack.c.b16 %v1934, %v1933
        %v2044 = vpack.c.b16 %v1936, %v1935
        %v2045 = vpack.c.b16 %v1938, %v1937
        %v2046 = vpack.c.b16 %v1940, %v1939
        %v2047 = vpack.c.b16 %v1942, %v1941
        %v2048 = vpack.c.b16 %v1944, %v1943
        %v2049 = vpack.c.b16 %v1946, %v1945
        %v2050 = vpack.c.b16 %v1948, %v1947
        %v2051 = vpack.c.b16 %v1950, %v1949
        %v2052 = vpack.c.b16 %v1952, %v1951
        %v2053 = vpack.c.b16 %v1954, %v1953
        %v2054 = vpack.c.b16 %v1956, %v1955
        %v2055 = vpack.c.b16 %v1958, %v1957
        %v2056 = vpack.c.b16 %v1960, %v1959
        %v2057 = vpack.c.b16 %v1962, %v1961
        %v2058 = vpack.c.b16 %v1964, %v1963
        %v2059 = vpack.c.b16 %v1966, %v1965
        %v2060 = vpack.c.b16 %v1968, %v1967
        %v2061 = vpack.c.b16 %v1970, %v1969
        %v2062 = vpack.c.b16 %v1972, %v1971
        %v2063 = vpack.c.b16 %v1974, %v1973
        %v2064 = vpack.c.b16 %v1976, %v1975
        %v2065 = vpack.c.b16 %v1978, %v1977
        %v2066 = vpack.c.b16 %v1980, %v1979
        %v2067 = vpack.c.b16 %v1982, %v1981
        %v2068 = vpack.c.b16 %v1984, %v1983
        %v2069 = vpack.c.b16 %v1986, %v1985
        %v2070 = vpack.c.b16 %v1988, %v1987
        %v2071 = vpack.c.b16 %v1990, %v1989
        %v2072 = vpack.c.b16 %v1992, %v1991
        %v2073 = vpack.c.b16 %v1994, %v1993
        %v2074 = vpack.c.b16 %v1996, %v1995
        %v2075 = vpack.c.b16 %v1998, %v1997
        %v2076 = vpack.c.b16 %v2000, %v1999
        %v2077 = vpack.c.b16 %v2002, %v2001
        %v2078 = vpack.c.b16 %v2004, %v2003
        %v2079 = vpack.c.b16 %v2006, %v2005
        %v2080 = vpack.c.b16 %v2008, %v2007
        %v2081 = vpack.c.b16 %v2010, %v2009
        %v2082 = vpack.c.b16 %v2012, %v2011
        %v2083 = vpack.c.b16 %v2014, %v2013
        %v2084 = vpack.c.b16 %v2016, %v2015
        %v2085 = vpack.c.b16 %v2018, %v2017
        %v2086 = vpack.c.b16 %v2020, %v2019
        %v2087 = vpack.c.b16 %v2022, %v2021
        %v2088 = vpack.c.b16 %v2024, %v2023
        %2153 = vst [vmem:[%s379] sm:$0xff] %v2025
        %2154 = vst [vmem:[%s379 + $0x8] sm:$0xff] %v2026
        %2155 = vst [vmem:[%s379 + $0x10] sm:$0xff] %v2027
        %2156 = vst [vmem:[%s379 + $0x18] sm:$0xff] %v2028
        %2157 = vst [vmem:[%s379 + $0x20] sm:$0xff] %v2029
        %2158 = vst [vmem:[%s379 + $0x28] sm:$0xff] %v2030
        %2159 = vst [vmem:[%s379 + $0x30] sm:$0xff] %v2031
        %2160 = vst [vmem:[%s379 + $0x38] sm:$0xff] %v2032
        %2161 = vst [vmem:[%s379 + $0x40] sm:$0xff] %v2033
        %2162 = vst [vmem:[%s379 + $0x48] sm:$0xff] %v2034
        %2163 = vst [vmem:[%s379 + $0x50] sm:$0xff] %v2035
        %2164 = vst [vmem:[%s379 + $0x58] sm:$0xff] %v2036
        %2165 = vst [vmem:[%s379 + $0x60] sm:$0xff] %v2037
        %2166 = vst [vmem:[%s379 + $0x68] sm:$0xff] %v2038
        %2167 = vst [vmem:[%s379 + $0x70] sm:$0xff] %v2039
        %2168 = vst [vmem:[%s379 + $0x78] sm:$0xff] %v2040
        %2169 = vst [vmem:[%s379 + $0x80] sm:$0xff] %v2041
        %2170 = vst [vmem:[%s379 + $0x88] sm:$0xff] %v2042
        %2171 = vst [vmem:[%s379 + $0x90] sm:$0xff] %v2043
        %2172 = vst [vmem:[%s379 + $0x98] sm:$0xff] %v2044
        %2173 = vst [vmem:[%s379 + $0xa0] sm:$0xff] %v2045
        %2174 = vst [vmem:[%s379 + $0xa8] sm:$0xff] %v2046
        %2175 = vst [vmem:[%s379 + $0xb0] sm:$0xff] %v2047
        %2176 = vst [vmem:[%s379 + $0xb8] sm:$0xff] %v2048
        %2177 = vst [vmem:[%s379 + $0xc0] sm:$0xff] %v2049
        %2178 = vst [vmem:[%s379 + $0xc8] sm:$0xff] %v2050
        %2179 = vst [vmem:[%s379 + $0xd0] sm:$0xff] %v2051
        %2180 = vst [vmem:[%s379 + $0xd8] sm:$0xff] %v2052
        %2181 = vst [vmem:[%s379 + $0xe0] sm:$0xff] %v2053
        %2182 = vst [vmem:[%s379 + $0xe8] sm:$0xff] %v2054
        %2183 = vst [vmem:[%s379 + $0xf0] sm:$0xff] %v2055
        %2184 = vst [vmem:[%s379 + $0xf8] sm:$0xff] %v2056
        %2185 = vst [vmem:[%s379 + $0x100] sm:$0xff] %v2057
        %2186 = vst [vmem:[%s379 + $0x108] sm:$0xff] %v2058
        %2187 = vst [vmem:[%s379 + $0x110] sm:$0xff] %v2059
        %2188 = vst [vmem:[%s379 + $0x118] sm:$0xff] %v2060
        %2189 = vst [vmem:[%s379 + $0x120] sm:$0xff] %v2061
        %2190 = vst [vmem:[%s379 + $0x128] sm:$0xff] %v2062
        %2191 = vst [vmem:[%s379 + $0x130] sm:$0xff] %v2063
        %2192 = vst [vmem:[%s379 + $0x138] sm:$0xff] %v2064
        %2193 = vst [vmem:[%s379 + $0x140] sm:$0xff] %v2065
        %2194 = vst [vmem:[%s379 + $0x148] sm:$0xff] %v2066
        %2195 = vst [vmem:[%s379 + $0x150] sm:$0xff] %v2067
        %2196 = vst [vmem:[%s379 + $0x158] sm:$0xff] %v2068
        %2197 = vst [vmem:[%s379 + $0x160] sm:$0xff] %v2069
        %2198 = vst [vmem:[%s379 + $0x168] sm:$0xff] %v2070
        %2199 = vst [vmem:[%s379 + $0x170] sm:$0xff] %v2071
        %2200 = vst [vmem:[%s379 + $0x178] sm:$0xff] %v2072
        %2201 = vst [vmem:[%s379 + $0x180] sm:$0xff] %v2073
        %2202 = vst [vmem:[%s379 + $0x188] sm:$0xff] %v2074
        %2203 = vst [vmem:[%s379 + $0x190] sm:$0xff] %v2075
        %2204 = vst [vmem:[%s379 + $0x198] sm:$0xff] %v2076
        %2205 = vst [vmem:[%s379 + $0x1a0] sm:$0xff] %v2077
        %2206 = vst [vmem:[%s379 + $0x1a8] sm:$0xff] %v2078
        %2207 = vst [vmem:[%s379 + $0x1b0] sm:$0xff] %v2079
        %2208 = vst [vmem:[%s379 + $0x1b8] sm:$0xff] %v2080
        %2209 = vst [vmem:[%s379 + $0x1c0] sm:$0xff] %v2081
        %2210 = vst [vmem:[%s379 + $0x1c8] sm:$0xff] %v2082
        %2211 = vst [vmem:[%s379 + $0x1d0] sm:$0xff] %v2083
        %2212 = vst [vmem:[%s379 + $0x1d8] sm:$0xff] %v2084
        %2213 = vst [vmem:[%s379 + $0x1e0] sm:$0xff] %v2085
        %2214 = vst [vmem:[%s379 + $0x1e8] sm:$0xff] %v2086
        %2215 = vst [vmem:[%s379 + $0x1f0] sm:$0xff] %v2087
        %2216 = vst [vmem:[%s379 + $0x1f8] sm:$0xff] %v2088
        %s2217 = sand.u32 %s127, 1
        %s2218 = sand.u32 %s127, 1
        %s2219 = smul.addr %s2218, 512
        %s2220 = scalar_lea.vmem [#allocation3], %s2219
        // Predicated region
        $region56: #{generator_forward.4} parent=50 // pred_check
          %p2221 = pneg %p137
        $region57: #{generator_forward.4} parent=50 // pred_check_branch
          %2223 = sbr.rel (%p2221) target = $region59
        $region58: #{generator_forward.4} parent=50 // pred_region
          %s2224 = smul.u32 16, %s20
          %s2225 = smul.u32 8, %s21
          %s2226 = smul.addr %s2224, 32
          %s2227 = sadd.s32 %s2225, %s2226
          %s2228 = smul.addr %s19, 512
          %s2229 = sadd.s32 %s2227, %s2228
          %s2230 = smul.addr %s2229, 4
          %s2231 = scalar_lea.vmem %s3, %s2230
          // Predicated region
          $region60: #{generator_forward.4} parent=58 // pred_check
            _
          $region61: #{generator_forward.4} parent=58 // pred_check_branch
            %2233 = sbr.rel (0) target = $region63
          $region62: #{generator_forward.4} parent=58 // pred_region
            // Predicated region
            $region64: #{generator_forward.4} parent=62 // pred_check
              _
            $region65: #{generator_forward.4} parent=62 // pred_check_branch
              %2235 = sbr.rel (0) target = $region67
            $region66: #{generator_forward.4} parent=62 // pred_region
              loop: start=0, step=1, limit=1
              $region68: #{generator_forward.4} parent=66 // loop_pre_header
                _
              $region69: #{generator_forward.4} parent=66 // loop_header
                %s2237 = sphi 0, %s2241
                %p2238 = scmp.ge.s32.totalorder %s2237, 1
                %s2242 = sphi %s2220, %s2220
                %s2243 = sphi %s2231, %s2231
              $region70: #{generator_forward.4} parent=66 // loop_header_branch
                %2240 = sbr.rel (%p2238) target = $region74
              $region71: #{generator_forward.4} parent=66 // loop_body
                %v2244 = vld [vmem:[%s2242] sm:$0xff]
                %2245 = vst [vmem:[%s2243] sm:$0xff] %v2244
                %v2246 = vld [vmem:[%s2242 + $0x8] sm:$0xff]
                %2247 = vst [vmem:[%s2243 + $0x8] sm:$0xff] %v2246
                %v2248 = vld [vmem:[%s2242 + $0x10] sm:$0xff]
                %2249 = vst [vmem:[%s2243 + $0x10] sm:$0xff] %v2248
                %v2250 = vld [vmem:[%s2242 + $0x18] sm:$0xff]
                %2251 = vst [vmem:[%s2243 + $0x18] sm:$0xff] %v2250
                %v2252 = vld [vmem:[%s2242 + $0x20] sm:$0xff]
                %2253 = vst [vmem:[%s2243 + $0x80] sm:$0xff] %v2252
                %v2254 = vld [vmem:[%s2242 + $0x28] sm:$0xff]
                %2255 = vst [vmem:[%s2243 + $0x88] sm:$0xff] %v2254
                %v2256 = vld [vmem:[%s2242 + $0x30] sm:$0xff]
                %2257 = vst [vmem:[%s2243 + $0x90] sm:$0xff] %v2256
                %v2258 = vld [vmem:[%s2242 + $0x38] sm:$0xff]
                %2259 = vst [vmem:[%s2243 + $0x98] sm:$0xff] %v2258
                %v2260 = vld [vmem:[%s2242 + $0x40] sm:$0xff]
                %2261 = vst [vmem:[%s2243 + $0x100] sm:$0xff] %v2260
                %v2262 = vld [vmem:[%s2242 + $0x48] sm:$0xff]
                %2263 = vst [vmem:[%s2243 + $0x108] sm:$0xff] %v2262
                %v2264 = vld [vmem:[%s2242 + $0x50] sm:$0xff]
                %2265 = vst [vmem:[%s2243 + $0x110] sm:$0xff] %v2264
                %v2266 = vld [vmem:[%s2242 + $0x58] sm:$0xff]
                %2267 = vst [vmem:[%s2243 + $0x118] sm:$0xff] %v2266
                %v2268 = vld [vmem:[%s2242 + $0x60] sm:$0xff]
                %2269 = vst [vmem:[%s2243 + $0x180] sm:$0xff] %v2268
                %v2270 = vld [vmem:[%s2242 + $0x68] sm:$0xff]
                %2271 = vst [vmem:[%s2243 + $0x188] sm:$0xff] %v2270
                %v2272 = vld [vmem:[%s2242 + $0x70] sm:$0xff]
                %2273 = vst [vmem:[%s2243 + $0x190] sm:$0xff] %v2272
                %v2274 = vld [vmem:[%s2242 + $0x78] sm:$0xff]
                %2275 = vst [vmem:[%s2243 + $0x198] sm:$0xff] %v2274
                %v2276 = vld [vmem:[%s2242 + $0x80] sm:$0xff]
                %2277 = vst [vmem:[%s2243 + $0x200] sm:$0xff] %v2276
                %v2278 = vld [vmem:[%s2242 + $0x88] sm:$0xff]
                %2279 = vst [vmem:[%s2243 + $0x208] sm:$0xff] %v2278
                %v2280 = vld [vmem:[%s2242 + $0x90] sm:$0xff]
                %2281 = vst [vmem:[%s2243 + $0x210] sm:$0xff] %v2280
                %v2282 = vld [vmem:[%s2242 + $0x98] sm:$0xff]
                %2283 = vst [vmem:[%s2243 + $0x218] sm:$0xff] %v2282
                %v2284 = vld [vmem:[%s2242 + $0xa0] sm:$0xff]
                %2285 = vst [vmem:[%s2243 + $0x280] sm:$0xff] %v2284
                %v2286 = vld [vmem:[%s2242 + $0xa8] sm:$0xff]
                %2287 = vst [vmem:[%s2243 + $0x288] sm:$0xff] %v2286
                %v2288 = vld [vmem:[%s2242 + $0xb0] sm:$0xff]
                %2289 = vst [vmem:[%s2243 + $0x290] sm:$0xff] %v2288
                %v2290 = vld [vmem:[%s2242 + $0xb8] sm:$0xff]
                %2291 = vst [vmem:[%s2243 + $0x298] sm:$0xff] %v2290
                %v2292 = vld [vmem:[%s2242 + $0xc0] sm:$0xff]
                %2293 = vst [vmem:[%s2243 + $0x300] sm:$0xff] %v2292
                %v2294 = vld [vmem:[%s2242 + $0xc8] sm:$0xff]
                %2295 = vst [vmem:[%s2243 + $0x308] sm:$0xff] %v2294
                %v2296 = vld [vmem:[%s2242 + $0xd0] sm:$0xff]
                %2297 = vst [vmem:[%s2243 + $0x310] sm:$0xff] %v2296
                %v2298 = vld [vmem:[%s2242 + $0xd8] sm:$0xff]
                %2299 = vst [vmem:[%s2243 + $0x318] sm:$0xff] %v2298
                %v2300 = vld [vmem:[%s2242 + $0xe0] sm:$0xff]
                %2301 = vst [vmem:[%s2243 + $0x380] sm:$0xff] %v2300
                %v2302 = vld [vmem:[%s2242 + $0xe8] sm:$0xff]
                %2303 = vst [vmem:[%s2243 + $0x388] sm:$0xff] %v2302
                %v2304 = vld [vmem:[%s2242 + $0xf0] sm:$0xff]
                %2305 = vst [vmem:[%s2243 + $0x390] sm:$0xff] %v2304
                %v2306 = vld [vmem:[%s2242 + $0xf8] sm:$0xff]
                %2307 = vst [vmem:[%s2243 + $0x398] sm:$0xff] %v2306
                %v2308 = vld [vmem:[%s2242 + $0x100] sm:$0xff]
                %2309 = vst [vmem:[%s2243 + $0x400] sm:$0xff] %v2308
                %v2310 = vld [vmem:[%s2242 + $0x108] sm:$0xff]
                %2311 = vst [vmem:[%s2243 + $0x408] sm:$0xff] %v2310
                %v2312 = vld [vmem:[%s2242 + $0x110] sm:$0xff]
                %2313 = vst [vmem:[%s2243 + $0x410] sm:$0xff] %v2312
                %v2314 = vld [vmem:[%s2242 + $0x118] sm:$0xff]
                %2315 = vst [vmem:[%s2243 + $0x418] sm:$0xff] %v2314
                %v2316 = vld [vmem:[%s2242 + $0x120] sm:$0xff]
                %2317 = vst [vmem:[%s2243 + $0x480] sm:$0xff] %v2316
                %v2318 = vld [vmem:[%s2242 + $0x128] sm:$0xff]
                %2319 = vst [vmem:[%s2243 + $0x488] sm:$0xff] %v2318
                %v2320 = vld [vmem:[%s2242 + $0x130] sm:$0xff]
                %2321 = vst [vmem:[%s2243 + $0x490] sm:$0xff] %v2320
                %v2322 = vld [vmem:[%s2242 + $0x138] sm:$0xff]
                %2323 = vst [vmem:[%s2243 + $0x498] sm:$0xff] %v2322
                %v2324 = vld [vmem:[%s2242 + $0x140] sm:$0xff]
                %2325 = vst [vmem:[%s2243 + $0x500] sm:$0xff] %v2324
                %v2326 = vld [vmem:[%s2242 + $0x148] sm:$0xff]
                %2327 = vst [vmem:[%s2243 + $0x508] sm:$0xff] %v2326
                %v2328 = vld [vmem:[%s2242 + $0x150] sm:$0xff]
                %2329 = vst [vmem:[%s2243 + $0x510] sm:$0xff] %v2328
                %v2330 = vld [vmem:[%s2242 + $0x158] sm:$0xff]
                %2331 = vst [vmem:[%s2243 + $0x518] sm:$0xff] %v2330
                %v2332 = vld [vmem:[%s2242 + $0x160] sm:$0xff]
                %2333 = vst [vmem:[%s2243 + $0x580] sm:$0xff] %v2332
                %v2334 = vld [vmem:[%s2242 + $0x168] sm:$0xff]
                %2335 = vst [vmem:[%s2243 + $0x588] sm:$0xff] %v2334
                %v2336 = vld [vmem:[%s2242 + $0x170] sm:$0xff]
                %2337 = vst [vmem:[%s2243 + $0x590] sm:$0xff] %v2336
                %v2338 = vld [vmem:[%s2242 + $0x178] sm:$0xff]
                %2339 = vst [vmem:[%s2243 + $0x598] sm:$0xff] %v2338
                %v2340 = vld [vmem:[%s2242 + $0x180] sm:$0xff]
                %2341 = vst [vmem:[%s2243 + $0x600] sm:$0xff] %v2340
                %v2342 = vld [vmem:[%s2242 + $0x188] sm:$0xff]
                %2343 = vst [vmem:[%s2243 + $0x608] sm:$0xff] %v2342
                %v2344 = vld [vmem:[%s2242 + $0x190] sm:$0xff]
                %2345 = vst [vmem:[%s2243 + $0x610] sm:$0xff] %v2344
                %v2346 = vld [vmem:[%s2242 + $0x198] sm:$0xff]
                %2347 = vst [vmem:[%s2243 + $0x618] sm:$0xff] %v2346
                %v2348 = vld [vmem:[%s2242 + $0x1a0] sm:$0xff]
                %2349 = vst [vmem:[%s2243 + $0x680] sm:$0xff] %v2348
                %v2350 = vld [vmem:[%s2242 + $0x1a8] sm:$0xff]
                %2351 = vst [vmem:[%s2243 + $0x688] sm:$0xff] %v2350
                %v2352 = vld [vmem:[%s2242 + $0x1b0] sm:$0xff]
                %2353 = vst [vmem:[%s2243 + $0x690] sm:$0xff] %v2352
                %v2354 = vld [vmem:[%s2242 + $0x1b8] sm:$0xff]
                %2355 = vst [vmem:[%s2243 + $0x698] sm:$0xff] %v2354
                %v2356 = vld [vmem:[%s2242 + $0x1c0] sm:$0xff]
                %2357 = vst [vmem:[%s2243 + $0x700] sm:$0xff] %v2356
                %v2358 = vld [vmem:[%s2242 + $0x1c8] sm:$0xff]
                %2359 = vst [vmem:[%s2243 + $0x708] sm:$0xff] %v2358
                %v2360 = vld [vmem:[%s2242 + $0x1d0] sm:$0xff]
                %2361 = vst [vmem:[%s2243 + $0x710] sm:$0xff] %v2360
                %v2362 = vld [vmem:[%s2242 + $0x1d8] sm:$0xff]
                %2363 = vst [vmem:[%s2243 + $0x718] sm:$0xff] %v2362
                %v2364 = vld [vmem:[%s2242 + $0x1e0] sm:$0xff]
                %2365 = vst [vmem:[%s2243 + $0x780] sm:$0xff] %v2364
                %v2366 = vld [vmem:[%s2242 + $0x1e8] sm:$0xff]
                %2367 = vst [vmem:[%s2243 + $0x788] sm:$0xff] %v2366
                %v2368 = vld [vmem:[%s2242 + $0x1f0] sm:$0xff]
                %2369 = vst [vmem:[%s2243 + $0x790] sm:$0xff] %v2368
                %v2370 = vld [vmem:[%s2242 + $0x1f8] sm:$0xff]
                %2371 = vst [vmem:[%s2243 + $0x798] sm:$0xff] %v2370
              $region72: #{generator_forward.4} parent=66 // loop_footer
                %s2241 = sadd.s32 1, %s2237
              $region73: #{generator_forward.4} parent=66 // loop_footer_branch
                %2236 = sbr.rel target = $region69
              $region74: #{generator_forward.4} parent=66 // loop_exit
                _
            $region67: #{generator_forward.4} parent=62 // pred_fallthru
              _
            // Predicated region
            $region75: #{generator_forward.4} parent=62 // pred_check
              _
            $region76: #{generator_forward.4} parent=62 // pred_check_branch
              %2373 = sbr.rel target = $region78
            $region77: #{generator_forward.4} parent=62 // pred_region
              _
            $region78: #{generator_forward.4} parent=62 // pred_fallthru
              _
          $region63: #{generator_forward.4} parent=58 // pred_fallthru
            _
          %2374 = vnop
        $region59: #{generator_forward.4} parent=50 // pred_fallthru
          _
      $region51: #{generator_forward.4} parent=5 // pred_fallthru
        _
      %p2375 = scmp.le.s32.totalorder 2, %s9
      // Predicated region
      $region79: #{generator_forward.4} parent=5 // pred_check
        %p2376 = pneg %p2375
      $region80: #{generator_forward.4} parent=5 // pred_check_branch
        %2378 = sbr.rel (%p2376) target = $region82
      $region81: #{generator_forward.4} parent=5 // pred_region
        %s2379 = ssub.s32 %s9, 2
        // Predicated region
        $region83: #{generator_forward.4} parent=81 // pred_check
          %p2380 = pneg %p143
        $region84: #{generator_forward.4} parent=81 // pred_check_branch
          %2382 = sbr.rel (%p2380) target = $region86
        $region85: #{generator_forward.4} parent=81 // pred_region
          %s2383 = sand.u32 %s128, 1
          %s2384 = sand.u32 %s128, 1
          %s2385 = smul.addr %s2384, 512
          %s2386 = scalar_lea.vmem [#allocation3], %s2385
        $region86: #{generator_forward.4} parent=81 // pred_fallthru
          _
      $region82: #{generator_forward.4} parent=5 // pred_fallthru
        _
    $region6: #{generator_forward.4} parent=1 // loop_footer
      %s13 = sadd.s32 1, %s9
    $region7: #{generator_forward.4} parent=1 // loop_footer_branch
      %8 = sbr.rel target = $region3
    $region8: #{generator_forward.4} parent=1 // loop_exit
      _

// kernel: generator_forward.5
$region0: #{generator_forward.5}
  #allocation0 [shape = 'u32[]', space=smem, size = 0x4, offset = 0x4, fixed_abs, tag = 'smem constant byte address 0x4 - core index']
  #allocation1 [shape = 'u32[144,128]{1,0:T(1,128)}', space=vmem, size = 0x12000, scoped, tag = 'internal scratch']
  %s0 = inlined_call_operand.vmem [shape: bf16[4,128,1024], index: 0, kind: input, shape index: {}]
  %s1 = inlined_call_operand.vmem [shape: bf16[4,1024,128], index: 1, kind: input, shape index: {}]
  %s2 = inlined_call_operand.vmem [shape: f32[2,128], index: 2, kind: input, shape index: {}]
  %s3 = inlined_call_operand.vmem [shape: bf16[4,128,128], index: 3, kind: output, shape index: {}]
  %s4 = sld [smem:[#allocation0]]
  $region45: #{generator_forward.5} parent=0
    _
  %s6 = ssub.s32 1, %s4
  %s7 = scalar_select 0, %s6, %s4
  loop: start=0, step=1, limit=6
  $region2: #{generator_forward.5} parent=0 // loop_pre_header
    _
  $region3: #{generator_forward.5} parent=0 // loop_header
    %s9 = sphi 0, %s13
    %p10 = scmp.ge.s32.totalorder %s9, 6
    %s16 = sphi 0, %s35
    %s17 = sphi 0, %s31
    %s18 = sphi 0, %s27
    %s19 = sphi 0, %s16
    %s20 = sphi 0, %s17
    %s21 = sphi 0, %s18
    %s22 = sphi 0, %s19
    %s23 = sphi 0, %s20
    %s24 = sphi 0, %s21
    %s40 = sphi 0, %s42
    %s43 = sphi 0, %s40
    %s44 = sphi 0, %s43
    %s60 = sphi 0, %s44
    %s68 = sphi 0, %s70
    %s71 = sphi 0, %s68
    %s72 = sphi 0, %s71
    %s88 = sphi 0, %s72
    %s94 = sphi 0, %s96
    %s97 = sphi 0, %s94
    %s98 = sphi 0, %s97
    %s114 = sphi 0, %s98
    %s124 = sphi 0, %s126
    %s127 = sphi 0, %s124
    %s128 = sphi 0, %s127
    %s144 = sphi 0, %s128
  $region4: #{generator_forward.5} parent=0 // loop_header_branch
    %12 = sbr.rel (%p10) target = $region8
  $region5: #{generator_forward.5} parent=0 // loop_body
    %s14 = ssub.s32 %s9, 1
    %s15 = ssub.s32 %s9, 2
    %s25 = sadd.s32 1, %s18
    %p26 = scmp.ge.s32.totalorder %s25, 1
    %s27 = scalar_select %p26, 0, %s25
    %s28 = sadd.s32 1, %s17
    %s29 = scalar_select %p26, %s28, %s17
    %p30 = scmp.ge.s32.totalorder %s29, 1
    %s31 = scalar_select %p30, 0, %s29
    %s32 = sadd.s32 1, %s16
    %s33 = scalar_select %p30, %s32, %s16
    %p34 = scmp.ge.s32.totalorder %s33, 4
    %s35 = scalar_select %p34, 0, %s33
    %s36 = ssub.s32 %s16, %s35
    %s37 = ssub.s32 %s17, %s31
    %s38 = sor.u32 %s36, %s37
    %p39 = scmp.eq.s32.totalorder %s38, 0
    %s41 = sadd.s32 %s40, 1
    %s42 = scalar_select %p39, %s40, %s41
    %p45 = pneg %p39
    %p46 = scmp.eq.s32.totalorder %s9, 3
    %p47 = por %p45, %p46
    %p48 = scmp.ne.s32.totalorder %s40, %s43
    %p49 = scmp.eq.s32.totalorder %s9, 0
    %p50 = por %p48, %p49
    %p51 = scmp.ne.s32.totalorder %s40, %s43
    %p52 = scmp.eq.s32.totalorder %s14, 3
    %p53 = por %p51, %p52
    %p54 = scmp.ne.s32.totalorder %s43, %s44
    %p55 = scmp.eq.s32.totalorder %s14, 0
    %p56 = por %p54, %p55
    %p57 = scmp.ne.s32.totalorder %s43, %s44
    %p58 = scmp.eq.s32.totalorder %s15, 3
    %p59 = por %p57, %p58
    %p61 = scmp.ne.s32.totalorder %s44, %s60
    %p62 = scmp.eq.s32.totalorder %s15, 0
    %p63 = por %p61, %p62
    %s64 = ssub.s32 %s16, %s35
    %s65 = ssub.s32 %s18, %s27
    %s66 = sor.u32 %s64, %s65
    %p67 = scmp.eq.s32.totalorder %s66, 0
    %s69 = sadd.s32 %s68, 1
    %s70 = scalar_select %p67, %s68, %s69
    %p73 = pneg %p67
    %p74 = scmp.eq.s32.totalorder %s9, 3
    %p75 = por %p73, %p74
    %p76 = scmp.ne.s32.totalorder %s68, %s71
    %p77 = scmp.eq.s32.totalorder %s9, 0
    %p78 = por %p76, %p77
    %p79 = scmp.ne.s32.totalorder %s68, %s71
    %p80 = scmp.eq.s32.totalorder %s14, 3
    %p81 = por %p79, %p80
    %p82 = scmp.ne.s32.totalorder %s71, %s72
    %p83 = scmp.eq.s32.totalorder %s14, 0
    %p84 = por %p82, %p83
    %p85 = scmp.ne.s32.totalorder %s71, %s72
    %p86 = scmp.eq.s32.totalorder %s15, 3
    %p87 = por %p85, %p86
    %p89 = scmp.ne.s32.totalorder %s72, %s88
    %p90 = scmp.eq.s32.totalorder %s15, 0
    %p91 = por %p89, %p90
    %s92 = ssub.s32 %s18, %s27
    %p93 = scmp.eq.s32.totalorder %s92, 0
    %s95 = sadd.s32 %s94, 1
    %s96 = scalar_select %p93, %s94, %s95
    %p99 = pneg %p93
    %p100 = scmp.eq.s32.totalorder %s9, 3
    %p101 = por %p99, %p100
    %p102 = scmp.ne.s32.totalorder %s94, %s97
    %p103 = scmp.eq.s32.totalorder %s9, 0
    %p104 = por %p102, %p103
    %p105 = scmp.ne.s32.totalorder %s94, %s97
    %p106 = scmp.eq.s32.totalorder %s14, 3
    %p107 = por %p105, %p106
    %p108 = scmp.ne.s32.totalorder %s97, %s98
    %p109 = scmp.eq.s32.totalorder %s14, 0
    %p110 = por %p108, %p109
    %p111 = scmp.ne.s32.totalorder %s97, %s98
    %p112 = scmp.eq.s32.totalorder %s15, 3
    %p113 = por %p111, %p112
    %p115 = scmp.ne.s32.totalorder %s98, %s114
    %p116 = scmp.eq.s32.totalorder %s15, 0
    %p117 = por %p115, %p116
    %s118 = ssub.s32 %s16, %s35
    %s119 = ssub.s32 %s17, %s31
    %s120 = sor.u32 %s118, %s119
    %s121 = ssub.s32 %s18, %s27
    %s122 = sor.u32 %s120, %s121
    %p123 = scmp.eq.s32.totalorder %s122, 0
    %s125 = sadd.s32 %s124, 1
    %s126 = scalar_select %p123, %s124, %s125
    %p129 = pneg %p123
    %p130 = scmp.eq.s32.totalorder %s9, 3
    %p131 = por %p129, %p130
    %p132 = scmp.ne.s32.totalorder %s124, %s127
    %p133 = scmp.eq.s32.totalorder %s9, 0
    %p134 = por %p132, %p133
    %p135 = scmp.ne.s32.totalorder %s124, %s127
    %p136 = scmp.eq.s32.totalorder %s14, 3
    %p137 = por %p135, %p136
    %p138 = scmp.ne.s32.totalorder %s127, %s128
    %p139 = scmp.eq.s32.totalorder %s14, 0
    %p140 = por %p138, %p139
    %p141 = scmp.ne.s32.totalorder %s127, %s128
    %p142 = scmp.eq.s32.totalorder %s15, 3
    %p143 = por %p141, %p142
    %p145 = scmp.ne.s32.totalorder %s128, %s144
    %p146 = scmp.eq.s32.totalorder %s15, 0
    %p147 = por %p145, %p146
    %p148 = scmp.le.s32.totalorder 1, %s9
    %p149 = scmp.lt.s32.totalorder %s9, 5
    %p150 = pnand %p148, %p149
    %p151 = pneg %p150
    // Predicated region
    $region9: #{generator_forward.5} parent=5 // pred_check
      _
    $region10: #{generator_forward.5} parent=5 // pred_check_branch
      %153 = sbr.rel (%p150) target = $region12
    $region11: #{generator_forward.5} parent=5 // pred_region
      %s154 = ssub.s32 %s9, 1
      // Predicated region
      $region13: #{generator_forward.5} parent=11 // pred_check
        %p155 = pneg %p110
      $region14: #{generator_forward.5} parent=11 // pred_check_branch
        %157 = sbr.rel (%p155) target = $region16
      $region15: #{generator_forward.5} parent=11 // pred_region
        %p158 = scmp.lt.s32.totalorder %s21, 0
        %s159 = scalar_select %p158, %s21, 0
        %s160 = smul.addr %s159, 2
        %s161 = scalar_lea.vmem %s2, %s160
      $region16: #{generator_forward.5} parent=11 // pred_fallthru
        _
    $region12: #{generator_forward.5} parent=5 // pred_fallthru
      _
    %p162 = scmp.lt.s32.totalorder %s9, 4
    // Predicated region
    $region17: #{generator_forward.5} parent=5 // pred_check
      %p163 = pneg %p162
    $region18: #{generator_forward.5} parent=5 // pred_check_branch
      %165 = sbr.rel (%p163) target = $region20
    $region19: #{generator_forward.5} parent=5 // pred_region
      // Predicated region
      $region21: #{generator_forward.5} parent=19 // pred_check
        %p166 = pneg %p50
      $region22: #{generator_forward.5} parent=19 // pred_check_branch
        %168 = sbr.rel (%p166) target = $region24
      $region23: #{generator_forward.5} parent=19 // pred_region
        %s169 = smul.u32 16, %s17
        %p170 = scmp.lt.s32.totalorder %s16, 3
        %s171 = scalar_select %p170, %s16, 3
        %p172 = scmp.lt.s32.totalorder %s169, 15
        %s173 = scalar_select %p172, %s169, 15
        %s174 = smul.addr %s173, 8
        %s175 = smul.addr %s171, 128
        %s176 = sadd.s32 %s174, %s175
        %s177 = smul.addr %s176, 4
        %s178 = scalar_lea.vmem %s0, %s177
        %s179 = smul.u32 16, %s17
      $region24: #{generator_forward.5} parent=19 // pred_fallthru
        _
      // Predicated region
      $region25: #{generator_forward.5} parent=19 // pred_check
        %p180 = pneg %p78
      $region26: #{generator_forward.5} parent=19 // pred_check_branch
        %182 = sbr.rel (%p180) target = $region28
      $region27: #{generator_forward.5} parent=19 // pred_region
        %p183 = scmp.lt.s32.totalorder %s16, 3
        %s184 = scalar_select %p183, %s16, 3
        %p185 = scmp.lt.s32.totalorder %s18, 0
        %s186 = scalar_select %p185, %s18, 0
        %s187 = smul.addr %s184, 128
        %s188 = sadd.s32 %s186, %s187
        %s189 = smul.addr %s188, 4
        %s190 = scalar_lea.vmem %s1, %s189
      $region28: #{generator_forward.5} parent=19 // pred_fallthru
        _
    $region20: #{generator_forward.5} parent=5 // pred_fallthru
      _
    %p191 = scmp.le.s32.totalorder 1, %s9
    %p192 = scmp.lt.s32.totalorder %s9, 5
    %p193 = pnand %p191, %p192
    %p194 = pneg %p193
    // Predicated region
    $region29: #{generator_forward.5} parent=5 // pred_check
      _
    $region30: #{generator_forward.5} parent=5 // pred_check_branch
      %196 = sbr.rel (%p193) target = $region32
    $region31: #{generator_forward.5} parent=5 // pred_region
      %s197 = ssub.s32 %s9, 1
      %s198 = smul.u32 16, %s20
      %p199 = scmp.lt.s32.totalorder %s19, 3
      %s200 = scalar_select %p199, %s19, 3
      %p201 = scmp.lt.s32.totalorder %s198, 15
      %s202 = scalar_select %p201, %s198, 15
      %s203 = smul.addr %s202, 8
      %s204 = smul.addr %s200, 128
      %s205 = sadd.s32 %s203, %s204
      %s206 = smul.addr %s205, 4
      %s207 = scalar_lea.vmem %s0, %s206
      %p208 = pneg %p56
      %p209 = pneg %p53
      %p210 = scmp.lt.s32.totalorder %s19, 3
      %s211 = scalar_select %p210, %s19, 3
      %p212 = scmp.lt.s32.totalorder %s21, 0
      %s213 = scalar_select %p212, %s21, 0
      %s214 = smul.addr %s211, 128
      %s215 = sadd.s32 %s213, %s214
      %s216 = smul.addr %s215, 4
      %s217 = scalar_lea.vmem %s1, %s216
      %p218 = pneg %p84
      %p219 = pneg %p81
      %p220 = scmp.lt.s32.totalorder %s21, 0
      %s221 = scalar_select %p220, %s21, 0
      %s222 = smul.addr %s221, 2
      %s223 = scalar_lea.vmem %s2, %s222
      %p224 = pneg %p110
      %p225 = pneg %p107
      %p226 = pneg %p140
      %p227 = pneg %p137
      %s228 = smul.u32 16, %s20
      %p229 = scmp.lt.s32.totalorder %s19, 3
      %s230 = scalar_select %p229, %s19, 3
      %p231 = scmp.lt.s32.totalorder %s228, 15
      %s232 = scalar_select %p231, %s228, 15
      %p233 = scmp.lt.s32.totalorder %s21, 0
      %s234 = scalar_select %p233, %s21, 0
      %s235 = sadd.s32 %s234, %s232
      %s236 = smul.addr %s230, 16
      %s237 = sadd.s32 %s235, %s236
      %s238 = smul.addr %s237, 4
      %s239 = scalar_lea.vmem %s3, %s238
      %s240 = smul.u32 16, %s20
      %p241 = scmp.lt.s32.totalorder %s19, 3
      %s242 = scalar_select %p241, %s19, 3
      %p243 = scmp.lt.s32.totalorder %s240, 15
      %s244 = scalar_select %p243, %s240, 15
      %s245 = smul.addr %s244, 8
      %s246 = smul.addr %s242, 128
      %s247 = sadd.s32 %s245, %s246
      %s248 = smul.addr %s247, 4
      %s249 = scalar_lea.vmem %s0, %s248
      %s250 = smul.u32 16, %s20
      %p251 = scmp.lt.s32.totalorder %s19, 3
      %s252 = scalar_select %p251, %s19, 3
      %p253 = scmp.lt.s32.totalorder %s21, 0
      %s254 = scalar_select %p253, %s21, 0
      %s255 = smul.addr %s252, 128
      %s256 = sadd.s32 %s254, %s255
      %s257 = smul.addr %s256, 4
      %s258 = scalar_lea.vmem %s1, %s257
      %p259 = scmp.lt.s32.totalorder %s21, 0
      %s260 = scalar_select %p259, %s21, 0
      %s261 = smul.addr %s260, 2
      %s262 = scalar_lea.vmem %s2, %s261
      %s263 = smul.u32 16, %s20
      %p264 = scmp.lt.s32.totalorder %s19, 3
      %s265 = scalar_select %p264, %s19, 3
      %p266 = scmp.lt.s32.totalorder %s263, 15
      %s267 = scalar_select %p266, %s263, 15
      %p268 = scmp.lt.s32.totalorder %s21, 0
      %s269 = scalar_select %p268, %s21, 0
      %s270 = sadd.s32 %s269, %s267
      %s271 = smul.addr %s265, 16
      %s272 = sadd.s32 %s270, %s271
      %s273 = smul.addr %s272, 4
      %s274 = scalar_lea.vmem %s3, %s273
      %s275 = smul.u32 16, %s20
      %v277 = vld [vmem:[%s249] sm:$0xff]
      %v278 = vld [vmem:[%s249 + $0x8] sm:$0xff]
      %v279 = vld [vmem:[%s249 + $0x10] sm:$0xff]
      %v280 = vld [vmem:[%s249 + $0x18] sm:$0xff]
      %v281 = vld [vmem:[%s249 + $0x20] sm:$0xff]
      %v282 = vld [vmem:[%s249 + $0x28] sm:$0xff]
      %v283 = vld [vmem:[%s249 + $0x30] sm:$0xff]
      %v284 = vld [vmem:[%s249 + $0x38] sm:$0xff]
      %v285 = vld [vmem:[%s249 + $0x40] sm:$0xff]
      %v286 = vld [vmem:[%s249 + $0x48] sm:$0xff]
      %v287 = vld [vmem:[%s249 + $0x50] sm:$0xff]
      %v288 = vld [vmem:[%s249 + $0x58] sm:$0xff]
      %v289 = vld [vmem:[%s249 + $0x60] sm:$0xff]
      %v290 = vld [vmem:[%s249 + $0x68] sm:$0xff]
      %v291 = vld [vmem:[%s249 + $0x70] sm:$0xff]
      %v292 = vld [vmem:[%s249 + $0x78] sm:$0xff]
      %v293 = vld [vmem:[%s249 + $0x80] sm:$0xff]
      %v294 = vld [vmem:[%s249 + $0x88] sm:$0xff]
      %v295 = vld [vmem:[%s249 + $0x90] sm:$0xff]
      %v296 = vld [vmem:[%s249 + $0x98] sm:$0xff]
      %v297 = vld [vmem:[%s249 + $0xa0] sm:$0xff]
      %v298 = vld [vmem:[%s249 + $0xa8] sm:$0xff]
      %v299 = vld [vmem:[%s249 + $0xb0] sm:$0xff]
      %v300 = vld [vmem:[%s249 + $0xb8] sm:$0xff]
      %v301 = vld [vmem:[%s249 + $0xc0] sm:$0xff]
      %v302 = vld [vmem:[%s249 + $0xc8] sm:$0xff]
      %v303 = vld [vmem:[%s249 + $0xd0] sm:$0xff]
      %v304 = vld [vmem:[%s249 + $0xd8] sm:$0xff]
      %v305 = vld [vmem:[%s249 + $0xe0] sm:$0xff]
      %v306 = vld [vmem:[%s249 + $0xe8] sm:$0xff]
      %v307 = vld [vmem:[%s249 + $0xf0] sm:$0xff]
      %v308 = vld [vmem:[%s249 + $0xf8] sm:$0xff]
      %v309 = vld [vmem:[%s249 + $0x100] sm:$0xff]
      %v310 = vld [vmem:[%s249 + $0x108] sm:$0xff]
      %v311 = vld [vmem:[%s249 + $0x110] sm:$0xff]
      %v312 = vld [vmem:[%s249 + $0x118] sm:$0xff]
      %v313 = vld [vmem:[%s249 + $0x120] sm:$0xff]
      %v314 = vld [vmem:[%s249 + $0x128] sm:$0xff]
      %v315 = vld [vmem:[%s249 + $0x130] sm:$0xff]
      %v316 = vld [vmem:[%s249 + $0x138] sm:$0xff]
      %v317 = vld [vmem:[%s249 + $0x140] sm:$0xff]
      %v318 = vld [vmem:[%s249 + $0x148] sm:$0xff]
      %v319 = vld [vmem:[%s249 + $0x150] sm:$0xff]
      %v320 = vld [vmem:[%s249 + $0x158] sm:$0xff]
      %v321 = vld [vmem:[%s249 + $0x160] sm:$0xff]
      %v322 = vld [vmem:[%s249 + $0x168] sm:$0xff]
      %v323 = vld [vmem:[%s249 + $0x170] sm:$0xff]
      %v324 = vld [vmem:[%s249 + $0x178] sm:$0xff]
      %v325 = vld [vmem:[%s249 + $0x180] sm:$0xff]
      %v326 = vld [vmem:[%s249 + $0x188] sm:$0xff]
      %v327 = vld [vmem:[%s249 + $0x190] sm:$0xff]
      %v328 = vld [vmem:[%s249 + $0x198] sm:$0xff]
      %v329 = vld [vmem:[%s249 + $0x1a0] sm:$0xff]
      %v330 = vld [vmem:[%s249 + $0x1a8] sm:$0xff]
      %v331 = vld [vmem:[%s249 + $0x1b0] sm:$0xff]
      %v332 = vld [vmem:[%s249 + $0x1b8] sm:$0xff]
      %v333 = vld [vmem:[%s249 + $0x1c0] sm:$0xff]
      %v334 = vld [vmem:[%s249 + $0x1c8] sm:$0xff]
      %v335 = vld [vmem:[%s249 + $0x1d0] sm:$0xff]
      %v336 = vld [vmem:[%s249 + $0x1d8] sm:$0xff]
      %v337 = vld [vmem:[%s249 + $0x1e0] sm:$0xff]
      %v338 = vld [vmem:[%s249 + $0x1e8] sm:$0xff]
      %v339 = vld [vmem:[%s249 + $0x1f0] sm:$0xff]
      %v340 = vld [vmem:[%s249 + $0x1f8] sm:$0xff]
      %v341 = vld [vmem:[%s258] sm:$0xf]
      %v342 = vld [vmem:[%s258 + $0x4] sm:$0xf]
      %v343 = vld [vmem:[%s258 + $0x8] sm:$0xf]
      %v344 = vld [vmem:[%s258 + $0xc] sm:$0xf]
      %v345 = vld [vmem:[%s258 + $0x10] sm:$0xf]
      %v346 = vld [vmem:[%s258 + $0x14] sm:$0xf]
      %v347 = vld [vmem:[%s258 + $0x18] sm:$0xf]
      %v348 = vld [vmem:[%s258 + $0x1c] sm:$0xf]
      %v349 = vld [vmem:[%s258 + $0x20] sm:$0xf]
      %v350 = vld [vmem:[%s258 + $0x24] sm:$0xf]
      %v351 = vld [vmem:[%s258 + $0x28] sm:$0xf]
      %v352 = vld [vmem:[%s258 + $0x2c] sm:$0xf]
      %v353 = vld [vmem:[%s258 + $0x30] sm:$0xf]
      %v354 = vld [vmem:[%s258 + $0x34] sm:$0xf]
      %v355 = vld [vmem:[%s258 + $0x38] sm:$0xf]
      %v356 = vld [vmem:[%s258 + $0x3c] sm:$0xf]
      %v357 = vld [vmem:[%s258 + $0x40] sm:$0xf]
      %v358 = vld [vmem:[%s258 + $0x44] sm:$0xf]
      %v359 = vld [vmem:[%s258 + $0x48] sm:$0xf]
      %v360 = vld [vmem:[%s258 + $0x4c] sm:$0xf]
      %v361 = vld [vmem:[%s258 + $0x50] sm:$0xf]
      %v362 = vld [vmem:[%s258 + $0x54] sm:$0xf]
      %v363 = vld [vmem:[%s258 + $0x58] sm:$0xf]
      %v364 = vld [vmem:[%s258 + $0x5c] sm:$0xf]
      %v365 = vld [vmem:[%s258 + $0x60] sm:$0xf]
      %v366 = vld [vmem:[%s258 + $0x64] sm:$0xf]
      %v367 = vld [vmem:[%s258 + $0x68] sm:$0xf]
      %v368 = vld [vmem:[%s258 + $0x6c] sm:$0xf]
      %v369 = vld [vmem:[%s258 + $0x70] sm:$0xf]
      %v370 = vld [vmem:[%s258 + $0x74] sm:$0xf]
      %v371 = vld [vmem:[%s258 + $0x78] sm:$0xf]
      %v372 = vld [vmem:[%s258 + $0x7c] sm:$0xf]
      %v373 = vld [vmem:[%s258 + $0x80] sm:$0xf]
      %v374 = vld [vmem:[%s258 + $0x84] sm:$0xf]
      %v375 = vld [vmem:[%s258 + $0x88] sm:$0xf]
      %v376 = vld [vmem:[%s258 + $0x8c] sm:$0xf]
      %v377 = vld [vmem:[%s258 + $0x90] sm:$0xf]
      %v378 = vld [vmem:[%s258 + $0x94] sm:$0xf]
      %v379 = vld [vmem:[%s258 + $0x98] sm:$0xf]
      %v380 = vld [vmem:[%s258 + $0x9c] sm:$0xf]
      %v381 = vld [vmem:[%s258 + $0xa0] sm:$0xf]
      %v382 = vld [vmem:[%s258 + $0xa4] sm:$0xf]
      %v383 = vld [vmem:[%s258 + $0xa8] sm:$0xf]
      %v384 = vld [vmem:[%s258 + $0xac] sm:$0xf]
      %v385 = vld [vmem:[%s258 + $0xb0] sm:$0xf]
      %v386 = vld [vmem:[%s258 + $0xb4] sm:$0xf]
      %v387 = vld [vmem:[%s258 + $0xb8] sm:$0xf]
      %v388 = vld [vmem:[%s258 + $0xbc] sm:$0xf]
      %v389 = vld [vmem:[%s258 + $0xc0] sm:$0xf]
      %v390 = vld [vmem:[%s258 + $0xc4] sm:$0xf]
      %v391 = vld [vmem:[%s258 + $0xc8] sm:$0xf]
      %v392 = vld [vmem:[%s258 + $0xcc] sm:$0xf]
      %v393 = vld [vmem:[%s258 + $0xd0] sm:$0xf]
      %v394 = vld [vmem:[%s258 + $0xd4] sm:$0xf]
      %v395 = vld [vmem:[%s258 + $0xd8] sm:$0xf]
      %v396 = vld [vmem:[%s258 + $0xdc] sm:$0xf]
      %v397 = vld [vmem:[%s258 + $0xe0] sm:$0xf]
      %v398 = vld [vmem:[%s258 + $0xe4] sm:$0xf]
      %v399 = vld [vmem:[%s258 + $0xe8] sm:$0xf]
      %v400 = vld [vmem:[%s258 + $0xec] sm:$0xf]
      %v401 = vld [vmem:[%s258 + $0xf0] sm:$0xf]
      %v402 = vld [vmem:[%s258 + $0xf4] sm:$0xf]
      %v403 = vld [vmem:[%s258 + $0xf8] sm:$0xf]
      %v404 = vld [vmem:[%s258 + $0xfc] sm:$0xf]
      %v405 = vld [vmem:[%s258 + $0x100] sm:$0xf]
      %v406 = vld [vmem:[%s258 + $0x104] sm:$0xf]
      %v407 = vld [vmem:[%s258 + $0x108] sm:$0xf]
      %v408 = vld [vmem:[%s258 + $0x10c] sm:$0xf]
      %v409 = vld [vmem:[%s258 + $0x110] sm:$0xf]
      %v410 = vld [vmem:[%s258 + $0x114] sm:$0xf]
      %v411 = vld [vmem:[%s258 + $0x118] sm:$0xf]
      %v412 = vld [vmem:[%s258 + $0x11c] sm:$0xf]
      %v413 = vld [vmem:[%s258 + $0x120] sm:$0xf]
      %v414 = vld [vmem:[%s258 + $0x124] sm:$0xf]
      %v415 = vld [vmem:[%s258 + $0x128] sm:$0xf]
      %v416 = vld [vmem:[%s258 + $0x12c] sm:$0xf]
      %v417 = vld [vmem:[%s258 + $0x130] sm:$0xf]
      %v418 = vld [vmem:[%s258 + $0x134] sm:$0xf]
      %v419 = vld [vmem:[%s258 + $0x138] sm:$0xf]
      %v420 = vld [vmem:[%s258 + $0x13c] sm:$0xf]
      %v421 = vld [vmem:[%s258 + $0x140] sm:$0xf]
      %v422 = vld [vmem:[%s258 + $0x144] sm:$0xf]
      %v423 = vld [vmem:[%s258 + $0x148] sm:$0xf]
      %v424 = vld [vmem:[%s258 + $0x14c] sm:$0xf]
      %v425 = vld [vmem:[%s258 + $0x150] sm:$0xf]
      %v426 = vld [vmem:[%s258 + $0x154] sm:$0xf]
      %v427 = vld [vmem:[%s258 + $0x158] sm:$0xf]
      %v428 = vld [vmem:[%s258 + $0x15c] sm:$0xf]
      %v429 = vld [vmem:[%s258 + $0x160] sm:$0xf]
      %v430 = vld [vmem:[%s258 + $0x164] sm:$0xf]
      %v431 = vld [vmem:[%s258 + $0x168] sm:$0xf]
      %v432 = vld [vmem:[%s258 + $0x16c] sm:$0xf]
      %v433 = vld [vmem:[%s258 + $0x170] sm:$0xf]
      %v434 = vld [vmem:[%s258 + $0x174] sm:$0xf]
      %v435 = vld [vmem:[%s258 + $0x178] sm:$0xf]
      %v436 = vld [vmem:[%s258 + $0x17c] sm:$0xf]
      %v437 = vld [vmem:[%s258 + $0x180] sm:$0xf]
      %v438 = vld [vmem:[%s258 + $0x184] sm:$0xf]
      %v439 = vld [vmem:[%s258 + $0x188] sm:$0xf]
      %v440 = vld [vmem:[%s258 + $0x18c] sm:$0xf]
      %v441 = vld [vmem:[%s258 + $0x190] sm:$0xf]
      %v442 = vld [vmem:[%s258 + $0x194] sm:$0xf]
      %v443 = vld [vmem:[%s258 + $0x198] sm:$0xf]
      %v444 = vld [vmem:[%s258 + $0x19c] sm:$0xf]
      %v445 = vld [vmem:[%s258 + $0x1a0] sm:$0xf]
      %v446 = vld [vmem:[%s258 + $0x1a4] sm:$0xf]
      %v447 = vld [vmem:[%s258 + $0x1a8] sm:$0xf]
      %v448 = vld [vmem:[%s258 + $0x1ac] sm:$0xf]
      %v449 = vld [vmem:[%s258 + $0x1b0] sm:$0xf]
      %v450 = vld [vmem:[%s258 + $0x1b4] sm:$0xf]
      %v451 = vld [vmem:[%s258 + $0x1b8] sm:$0xf]
      %v452 = vld [vmem:[%s258 + $0x1bc] sm:$0xf]
      %v453 = vld [vmem:[%s258 + $0x1c0] sm:$0xf]
      %v454 = vld [vmem:[%s258 + $0x1c4] sm:$0xf]
      %v455 = vld [vmem:[%s258 + $0x1c8] sm:$0xf]
      %v456 = vld [vmem:[%s258 + $0x1cc] sm:$0xf]
      %v457 = vld [vmem:[%s258 + $0x1d0] sm:$0xf]
      %v458 = vld [vmem:[%s258 + $0x1d4] sm:$0xf]
      %v459 = vld [vmem:[%s258 + $0x1d8] sm:$0xf]
      %v460 = vld [vmem:[%s258 + $0x1dc] sm:$0xf]
      %v461 = vld [vmem:[%s258 + $0x1e0] sm:$0xf]
      %v462 = vld [vmem:[%s258 + $0x1e4] sm:$0xf]
      %v463 = vld [vmem:[%s258 + $0x1e8] sm:$0xf]
      %v464 = vld [vmem:[%s258 + $0x1ec] sm:$0xf]
      %v465 = vld [vmem:[%s258 + $0x1f0] sm:$0xf]
      %v466 = vld [vmem:[%s258 + $0x1f4] sm:$0xf]
      %v467 = vld [vmem:[%s258 + $0x1f8] sm:$0xf]
      %v468 = vld [vmem:[%s258 + $0x1fc] sm:$0xf]
      %v533 = vunpack.c.l.b16 %v277
      %v534 = vunpack.c.h.b16 %v277
      %v535 = vunpack.c.l.b16 %v278
      %v536 = vunpack.c.h.b16 %v278
      %v537 = vunpack.c.l.b16 %v279
      %v538 = vunpack.c.h.b16 %v279
      %v539 = vunpack.c.l.b16 %v280
      %v540 = vunpack.c.h.b16 %v280
      %v541 = vunpack.c.l.b16 %v281
      %v542 = vunpack.c.h.b16 %v281
      %v543 = vunpack.c.l.b16 %v282
      %v544 = vunpack.c.h.b16 %v282
      %v545 = vunpack.c.l.b16 %v283
      %v546 = vunpack.c.h.b16 %v283
      %v547 = vunpack.c.l.b16 %v284
      %v548 = vunpack.c.h.b16 %v284
      %v549 = vunpack.c.l.b16 %v285
      %v550 = vunpack.c.h.b16 %v285
      %v551 = vunpack.c.l.b16 %v286
      %v552 = vunpack.c.h.b16 %v286
      %v553 = vunpack.c.l.b16 %v287
      %v554 = vunpack.c.h.b16 %v287
      %v555 = vunpack.c.l.b16 %v288
      %v556 = vunpack.c.h.b16 %v288
      %v557 = vunpack.c.l.b16 %v289
      %v558 = vunpack.c.h.b16 %v289
      %v559 = vunpack.c.l.b16 %v290
      %v560 = vunpack.c.h.b16 %v290
      %v561 = vunpack.c.l.b16 %v291
      %v562 = vunpack.c.h.b16 %v291
      %v563 = vunpack.c.l.b16 %v292
      %v564 = vunpack.c.h.b16 %v292
      %v565 = vunpack.c.l.b16 %v293
      %v566 = vunpack.c.h.b16 %v293
      %v567 = vunpack.c.l.b16 %v294
      %v568 = vunpack.c.h.b16 %v294
      %v569 = vunpack.c.l.b16 %v295
      %v570 = vunpack.c.h.b16 %v295
      %v571 = vunpack.c.l.b16 %v296
      %v572 = vunpack.c.h.b16 %v296
      %v573 = vunpack.c.l.b16 %v297
      %v574 = vunpack.c.h.b16 %v297
      %v575 = vunpack.c.l.b16 %v298
      %v576 = vunpack.c.h.b16 %v298
      %v577 = vunpack.c.l.b16 %v299
      %v578 = vunpack.c.h.b16 %v299
      %v579 = vunpack.c.l.b16 %v300
      %v580 = vunpack.c.h.b16 %v300
      %v581 = vunpack.c.l.b16 %v301
      %v582 = vunpack.c.h.b16 %v301
      %v583 = vunpack.c.l.b16 %v302
      %v584 = vunpack.c.h.b16 %v302
      %v585 = vunpack.c.l.b16 %v303
      %v586 = vunpack.c.h.b16 %v303
      %v587 = vunpack.c.l.b16 %v304
      %v588 = vunpack.c.h.b16 %v304
      %v589 = vunpack.c.l.b16 %v305
      %v590 = vunpack.c.h.b16 %v305
      %v591 = vunpack.c.l.b16 %v306
      %v592 = vunpack.c.h.b16 %v306
      %v593 = vunpack.c.l.b16 %v307
      %v594 = vunpack.c.h.b16 %v307
      %v595 = vunpack.c.l.b16 %v308
      %v596 = vunpack.c.h.b16 %v308
      %v597 = vunpack.c.l.b16 %v309
      %v598 = vunpack.c.h.b16 %v309
      %v599 = vunpack.c.l.b16 %v310
      %v600 = vunpack.c.h.b16 %v310
      %v601 = vunpack.c.l.b16 %v311
      %v602 = vunpack.c.h.b16 %v311
      %v603 = vunpack.c.l.b16 %v312
      %v604 = vunpack.c.h.b16 %v312
      %v605 = vunpack.c.l.b16 %v313
      %v606 = vunpack.c.h.b16 %v313
      %v607 = vunpack.c.l.b16 %v314
      %v608 = vunpack.c.h.b16 %v314
      %v609 = vunpack.c.l.b16 %v315
      %v610 = vunpack.c.h.b16 %v315
      %v611 = vunpack.c.l.b16 %v316
      %v612 = vunpack.c.h.b16 %v316
      %v613 = vunpack.c.l.b16 %v317
      %v614 = vunpack.c.h.b16 %v317
      %v615 = vunpack.c.l.b16 %v318
      %v616 = vunpack.c.h.b16 %v318
      %v617 = vunpack.c.l.b16 %v319
      %v618 = vunpack.c.h.b16 %v319
      %v619 = vunpack.c.l.b16 %v320
      %v620 = vunpack.c.h.b16 %v320
      %v621 = vunpack.c.l.b16 %v321
      %v622 = vunpack.c.h.b16 %v321
      %v623 = vunpack.c.l.b16 %v322
      %v624 = vunpack.c.h.b16 %v322
      %v625 = vunpack.c.l.b16 %v323
      %v626 = vunpack.c.h.b16 %v323
      %v627 = vunpack.c.l.b16 %v324
      %v628 = vunpack.c.h.b16 %v324
      %v629 = vunpack.c.l.b16 %v325
      %v630 = vunpack.c.h.b16 %v325
      %v631 = vunpack.c.l.b16 %v326
      %v632 = vunpack.c.h.b16 %v326
      %v633 = vunpack.c.l.b16 %v327
      %v634 = vunpack.c.h.b16 %v327
      %v635 = vunpack.c.l.b16 %v328
      %v636 = vunpack.c.h.b16 %v328
      %v637 = vunpack.c.l.b16 %v329
      %v638 = vunpack.c.h.b16 %v329
      %v639 = vunpack.c.l.b16 %v330
      %v640 = vunpack.c.h.b16 %v330
      %v641 = vunpack.c.l.b16 %v331
      %v642 = vunpack.c.h.b16 %v331
      %v643 = vunpack.c.l.b16 %v332
      %v644 = vunpack.c.h.b16 %v332
      %v645 = vunpack.c.l.b16 %v333
      %v646 = vunpack.c.h.b16 %v333
      %v647 = vunpack.c.l.b16 %v334
      %v648 = vunpack.c.h.b16 %v334
      %v649 = vunpack.c.l.b16 %v335
      %v650 = vunpack.c.h.b16 %v335
      %v651 = vunpack.c.l.b16 %v336
      %v652 = vunpack.c.h.b16 %v336
      %v653 = vunpack.c.l.b16 %v337
      %v654 = vunpack.c.h.b16 %v337
      %v655 = vunpack.c.l.b16 %v338
      %v656 = vunpack.c.h.b16 %v338
      %v657 = vunpack.c.l.b16 %v339
      %v658 = vunpack.c.h.b16 %v339
      %v659 = vunpack.c.l.b16 %v340
      %v660 = vunpack.c.h.b16 %v340
      %v661 = vpack.c.b16 %v541, %v533
      %v662 = vpack.c.b16 %v542, %v534
      %v663 = vpack.c.b16 %v543, %v535
      %v664 = vpack.c.b16 %v544, %v536
      %v665 = vpack.c.b16 %v545, %v537
      %v666 = vpack.c.b16 %v546, %v538
      %v667 = vpack.c.b16 %v547, %v539
      %v668 = vpack.c.b16 %v548, %v540
      %v669 = vpack.c.b16 %v557, %v549
      %v670 = vpack.c.b16 %v558, %v550
      %v671 = vpack.c.b16 %v559, %v551
      %v672 = vpack.c.b16 %v560, %v552
      %v673 = vpack.c.b16 %v561, %v553
      %v674 = vpack.c.b16 %v562, %v554
      %v675 = vpack.c.b16 %v563, %v555
      %v676 = vpack.c.b16 %v564, %v556
      %v677 = vpack.c.b16 %v573, %v565
      %v678 = vpack.c.b16 %v574, %v566
      %v679 = vpack.c.b16 %v575, %v567
      %v680 = vpack.c.b16 %v576, %v568
      %v681 = vpack.c.b16 %v577, %v569
      %v682 = vpack.c.b16 %v578, %v570
      %v683 = vpack.c.b16 %v579, %v571
      %v684 = vpack.c.b16 %v580, %v572
      %v685 = vpack.c.b16 %v589, %v581
      %v686 = vpack.c.b16 %v590, %v582
      %v687 = vpack.c.b16 %v591, %v583
      %v688 = vpack.c.b16 %v592, %v584
      %v689 = vpack.c.b16 %v593, %v585
      %v690 = vpack.c.b16 %v594, %v586
      %v691 = vpack.c.b16 %v595, %v587
      %v692 = vpack.c.b16 %v596, %v588
      %v693 = vpack.c.b16 %v605, %v597
      %v694 = vpack.c.b16 %v606, %v598
      %v695 = vpack.c.b16 %v607, %v599
      %v696 = vpack.c.b16 %v608, %v600
      %v697 = vpack.c.b16 %v609, %v601
      %v698 = vpack.c.b16 %v610, %v602
      %v699 = vpack.c.b16 %v611, %v603
      %v700 = vpack.c.b16 %v612, %v604
      %v701 = vpack.c.b16 %v621, %v613
      %v702 = vpack.c.b16 %v622, %v614
      %v703 = vpack.c.b16 %v623, %v615
      %v704 = vpack.c.b16 %v624, %v616
      %v705 = vpack.c.b16 %v625, %v617
      %v706 = vpack.c.b16 %v626, %v618
      %v707 = vpack.c.b16 %v627, %v619
      %v708 = vpack.c.b16 %v628, %v620
      %v709 = vpack.c.b16 %v637, %v629
      %v710 = vpack.c.b16 %v638, %v630
      %v711 = vpack.c.b16 %v639, %v631
      %v712 = vpack.c.b16 %v640, %v632
      %v713 = vpack.c.b16 %v641, %v633
      %v714 = vpack.c.b16 %v642, %v634
      %v715 = vpack.c.b16 %v643, %v635
      %v716 = vpack.c.b16 %v644, %v636
      %v717 = vpack.c.b16 %v653, %v645
      %v718 = vpack.c.b16 %v654, %v646
      %v719 = vpack.c.b16 %v655, %v647
      %v720 = vpack.c.b16 %v656, %v648
      %v721 = vpack.c.b16 %v657, %v649
      %v722 = vpack.c.b16 %v658, %v650
      %v723 = vpack.c.b16 %v659, %v651
      %v724 = vpack.c.b16 %v660, %v652
      %v917 = vunpack.c.l.b16 %v341
      %v918 = vunpack.c.l.b16 %v342
      %v919 = vunpack.c.l.b16 %v343
      %v920 = vunpack.c.l.b16 %v344
      %v921 = vunpack.c.l.b16 %v345
      %v922 = vunpack.c.l.b16 %v346
      %v923 = vunpack.c.l.b16 %v347
      %v924 = vunpack.c.l.b16 %v348
      %v925 = vunpack.c.l.b16 %v349
      %v926 = vunpack.c.l.b16 %v350
      %v927 = vunpack.c.l.b16 %v351
      %v928 = vunpack.c.l.b16 %v352
      %v929 = vunpack.c.l.b16 %v353
      %v930 = vunpack.c.l.b16 %v354
      %v931 = vunpack.c.l.b16 %v355
      %v932 = vunpack.c.l.b16 %v356
      %v933 = vunpack.c.l.b16 %v357
      %v934 = vunpack.c.l.b16 %v358
      %v935 = vunpack.c.l.b16 %v359
      %v936 = vunpack.c.l.b16 %v360
      %v937 = vunpack.c.l.b16 %v361
      %v938 = vunpack.c.l.b16 %v362
      %v939 = vunpack.c.l.b16 %v363
      %v940 = vunpack.c.l.b16 %v364
      %v941 = vunpack.c.l.b16 %v365
      %v942 = vunpack.c.l.b16 %v366
      %v943 = vunpack.c.l.b16 %v367
      %v944 = vunpack.c.l.b16 %v368
      %v945 = vunpack.c.l.b16 %v369
      %v946 = vunpack.c.l.b16 %v370
      %v947 = vunpack.c.l.b16 %v371
      %v948 = vunpack.c.l.b16 %v372
      %v949 = vunpack.c.l.b16 %v373
      %v950 = vunpack.c.l.b16 %v374
      %v951 = vunpack.c.l.b16 %v375
      %v952 = vunpack.c.l.b16 %v376
      %v953 = vunpack.c.l.b16 %v377
      %v954 = vunpack.c.l.b16 %v378
      %v955 = vunpack.c.l.b16 %v379
      %v956 = vunpack.c.l.b16 %v380
      %v957 = vunpack.c.l.b16 %v381
      %v958 = vunpack.c.l.b16 %v382
      %v959 = vunpack.c.l.b16 %v383
      %v960 = vunpack.c.l.b16 %v384
      %v961 = vunpack.c.l.b16 %v385
      %v962 = vunpack.c.l.b16 %v386
      %v963 = vunpack.c.l.b16 %v387
      %v964 = vunpack.c.l.b16 %v388
      %v965 = vunpack.c.l.b16 %v389
      %v966 = vunpack.c.l.b16 %v390
      %v967 = vunpack.c.l.b16 %v391
      %v968 = vunpack.c.l.b16 %v392
      %v969 = vunpack.c.l.b16 %v393
      %v970 = vunpack.c.l.b16 %v394
      %v971 = vunpack.c.l.b16 %v395
      %v972 = vunpack.c.l.b16 %v396
      %v973 = vunpack.c.l.b16 %v397
      %v974 = vunpack.c.l.b16 %v398
      %v975 = vunpack.c.l.b16 %v399
      %v976 = vunpack.c.l.b16 %v400
      %v977 = vunpack.c.l.b16 %v401
      %v978 = vunpack.c.l.b16 %v402
      %v979 = vunpack.c.l.b16 %v403
      %v980 = vunpack.c.l.b16 %v404
      %v981 = vunpack.c.l.b16 %v405
      %v982 = vunpack.c.l.b16 %v406
      %v983 = vunpack.c.l.b16 %v407
      %v984 = vunpack.c.l.b16 %v408
      %v985 = vunpack.c.l.b16 %v409
      %v986 = vunpack.c.l.b16 %v410
      %v987 = vunpack.c.l.b16 %v411
      %v988 = vunpack.c.l.b16 %v412
      %v989 = vunpack.c.l.b16 %v413
      %v990 = vunpack.c.l.b16 %v414
      %v991 = vunpack.c.l.b16 %v415
      %v992 = vunpack.c.l.b16 %v416
      %v993 = vunpack.c.l.b16 %v417
      %v994 = vunpack.c.l.b16 %v418
      %v995 = vunpack.c.l.b16 %v419
      %v996 = vunpack.c.l.b16 %v420
      %v997 = vunpack.c.l.b16 %v421
      %v998 = vunpack.c.l.b16 %v422
      %v999 = vunpack.c.l.b16 %v423
      %v1000 = vunpack.c.l.b16 %v424
      %v1001 = vunpack.c.l.b16 %v425
      %v1002 = vunpack.c.l.b16 %v426
      %v1003 = vunpack.c.l.b16 %v427
      %v1004 = vunpack.c.l.b16 %v428
      %v1005 = vunpack.c.l.b16 %v429
      %v1006 = vunpack.c.l.b16 %v430
      %v1007 = vunpack.c.l.b16 %v431
      %v1008 = vunpack.c.l.b16 %v432
      %v1009 = vunpack.c.l.b16 %v433
      %v1010 = vunpack.c.l.b16 %v434
      %v1011 = vunpack.c.l.b16 %v435
      %v1012 = vunpack.c.l.b16 %v436
      %v1013 = vunpack.c.l.b16 %v437
      %v1014 = vunpack.c.l.b16 %v438
      %v1015 = vunpack.c.l.b16 %v439
      %v1016 = vunpack.c.l.b16 %v440
      %v1017 = vunpack.c.l.b16 %v441
      %v1018 = vunpack.c.l.b16 %v442
      %v1019 = vunpack.c.l.b16 %v443
      %v1020 = vunpack.c.l.b16 %v444
      %v1021 = vunpack.c.l.b16 %v445
      %v1022 = vunpack.c.l.b16 %v446
      %v1023 = vunpack.c.l.b16 %v447
      %v1024 = vunpack.c.l.b16 %v448
      %v1025 = vunpack.c.l.b16 %v449
      %v1026 = vunpack.c.l.b16 %v450
      %v1027 = vunpack.c.l.b16 %v451
      %v1028 = vunpack.c.l.b16 %v452
      %v1029 = vunpack.c.l.b16 %v453
      %v1030 = vunpack.c.l.b16 %v454
      %v1031 = vunpack.c.l.b16 %v455
      %v1032 = vunpack.c.l.b16 %v456
      %v1033 = vunpack.c.l.b16 %v457
      %v1034 = vunpack.c.l.b16 %v458
      %v1035 = vunpack.c.l.b16 %v459
      %v1036 = vunpack.c.l.b16 %v460
      %v1037 = vunpack.c.l.b16 %v461
      %v1038 = vunpack.c.l.b16 %v462
      %v1039 = vunpack.c.l.b16 %v463
      %v1040 = vunpack.c.l.b16 %v464
      %v1041 = vunpack.c.l.b16 %v465
      %v1042 = vunpack.c.l.b16 %v466
      %v1043 = vunpack.c.l.b16 %v467
      %v1044 = vunpack.c.l.b16 %v468
      %v1045 = vpack.c.b16 %v918, %v917
      %v1046 = vpack.c.b16 %v920, %v919
      %v1047 = vpack.c.b16 %v922, %v921
      %v1048 = vpack.c.b16 %v924, %v923
      %v1049 = vpack.c.b16 %v926, %v925
      %v1050 = vpack.c.b16 %v928, %v927
      %v1051 = vpack.c.b16 %v930, %v929
      %v1052 = vpack.c.b16 %v932, %v931
      %v1053 = vpack.c.b16 %v934, %v933
      %v1054 = vpack.c.b16 %v936, %v935
      %v1055 = vpack.c.b16 %v938, %v937
      %v1056 = vpack.c.b16 %v940, %v939
      %v1057 = vpack.c.b16 %v942, %v941
      %v1058 = vpack.c.b16 %v944, %v943
      %v1059 = vpack.c.b16 %v946, %v945
      %v1060 = vpack.c.b16 %v948, %v947
      %v1061 = vpack.c.b16 %v950, %v949
      %v1062 = vpack.c.b16 %v952, %v951
      %v1063 = vpack.c.b16 %v954, %v953
      %v1064 = vpack.c.b16 %v956, %v955
      %v1065 = vpack.c.b16 %v958, %v957
      %v1066 = vpack.c.b16 %v960, %v959
      %v1067 = vpack.c.b16 %v962, %v961
      %v1068 = vpack.c.b16 %v964, %v963
      %v1069 = vpack.c.b16 %v966, %v965
      %v1070 = vpack.c.b16 %v968, %v967
      %v1071 = vpack.c.b16 %v970, %v969
      %v1072 = vpack.c.b16 %v972, %v971
      %v1073 = vpack.c.b16 %v974, %v973
      %v1074 = vpack.c.b16 %v976, %v975
      %v1075 = vpack.c.b16 %v978, %v977
      %v1076 = vpack.c.b16 %v980, %v979
      %v1077 = vpack.c.b16 %v982, %v981
      %v1078 = vpack.c.b16 %v984, %v983
      %v1079 = vpack.c.b16 %v986, %v985
      %v1080 = vpack.c.b16 %v988, %v987
      %v1081 = vpack.c.b16 %v990, %v989
      %v1082 = vpack.c.b16 %v992, %v991
      %v1083 = vpack.c.b16 %v994, %v993
      %v1084 = vpack.c.b16 %v996, %v995
      %v1085 = vpack.c.b16 %v998, %v997
      %v1086 = vpack.c.b16 %v1000, %v999
      %v1087 = vpack.c.b16 %v1002, %v1001
      %v1088 = vpack.c.b16 %v1004, %v1003
      %v1089 = vpack.c.b16 %v1006, %v1005
      %v1090 = vpack.c.b16 %v1008, %v1007
      %v1091 = vpack.c.b16 %v1010, %v1009
      %v1092 = vpack.c.b16 %v1012, %v1011
      %v1093 = vpack.c.b16 %v1014, %v1013
      %v1094 = vpack.c.b16 %v1016, %v1015
      %v1095 = vpack.c.b16 %v1018, %v1017
      %v1096 = vpack.c.b16 %v1020, %v1019
      %v1097 = vpack.c.b16 %v1022, %v1021
      %v1098 = vpack.c.b16 %v1024, %v1023
      %v1099 = vpack.c.b16 %v1026, %v1025
      %v1100 = vpack.c.b16 %v1028, %v1027
      %v1101 = vpack.c.b16 %v1030, %v1029
      %v1102 = vpack.c.b16 %v1032, %v1031
      %v1103 = vpack.c.b16 %v1034, %v1033
      %v1104 = vpack.c.b16 %v1036, %v1035
      %v1105 = vpack.c.b16 %v1038, %v1037
      %v1106 = vpack.c.b16 %v1040, %v1039
      %v1107 = vpack.c.b16 %v1042, %v1041
      %v1108 = vpack.c.b16 %v1044, %v1043
      %1173 = vmatprep.subr.bf16.mxu0 0
      %1174 = vmatpush1.bf16.msra.mxu0 %v1052
      %1175 = vmatprep.subr.bf16.mxu0 0
      %1176 = vmatpush1.bf16.msra.mxu0 %v1051
      %1177 = vmatprep.subr.bf16.mxu0 0
      %1178 = vmatpush1.bf16.msra.mxu0 %v1050
      %1179 = vmatprep.subr.bf16.mxu0 0
      %1180 = vmatpush1.bf16.msra.mxu0 %v1049
      %1181 = vmatprep.subr.bf16.mxu0 0
      %1182 = vmatpush1.bf16.msra.mxu0 %v1048
      %1183 = vmatprep.subr.bf16.mxu0 0
      %1184 = vmatpush1.bf16.msra.mxu0 %v1047
      %1185 = vmatprep.subr.bf16.mxu0 0
      %1186 = vmatpush1.bf16.msra.mxu0 %v1046
      %1187 = vmatprep.subr.bf16.mxu0 0
      %1188 = vmatpush1.bf16.msra.mxu0 %v1045
      %1189 = vmatprep.subr.bf16.mxu0 0
      %1190 = vmatpush2.bf16.msra.mxu0 %v1060
      %1191 = vmatprep.subr.bf16.mxu0 0
      %1192 = vmatpush2.bf16.msra.mxu0 %v1059
      %1193 = vmatprep.subr.bf16.mxu0 0
      %1194 = vmatpush2.bf16.msra.mxu0 %v1058
      %1195 = vmatprep.subr.bf16.mxu0 0
      %1196 = vmatpush2.bf16.msra.mxu0 %v1057
      %1197 = vmatprep.subr.bf16.mxu0 0
      %1198 = vmatpush2.bf16.msra.mxu0 %v1056
      %1199 = vmatprep.subr.bf16.mxu0 0
      %1200 = vmatpush2.bf16.msra.mxu0 %v1055
      %1201 = vmatprep.subr.bf16.mxu0 0
      %1202 = vmatpush2.bf16.msra.mxu0 %v1054
      %1203 = vmatprep.subr.bf16.mxu0 0
      %1204 = vmatpush2.bf16.msra.mxu0 %v1053
      %1205 = vmatprep.mubr.bf16.mxu0 %v662
      %1206 = vmatmul.mubr.bf16.gmra.mxu0 %v661
      %v1207 = vpop.f32.mrf.mxu0
      %v1208 = vadd.f32 0.0, %v1207
      %v1209 = vpop.f32.mrf.mxu0
      %v1210 = vpop.f32.mrf.mxu0
      %v1211 = vadd.f32 0.0, %v1210
      %v1212 = vpop.f32.mrf.mxu0
      %1213 = vmatprep.mubr.bf16.mxu0 %v670
      %1214 = vmatmul.mubr.bf16.gmra.mxu0 %v669
      %v1215 = vpop.f32.mrf.mxu0
      %v1216 = vadd.f32 0.0, %v1215
      %v1217 = vpop.f32.mrf.mxu0
      %v1218 = vpop.f32.mrf.mxu0
      %v1219 = vadd.f32 0.0, %v1218
      %v1220 = vpop.f32.mrf.mxu0
      %1221 = vmatprep.mubr.bf16.mxu0 %v678
      %1222 = vmatmul.mubr.bf16.gmra.mxu0 %v677
      %v1223 = vpop.f32.mrf.mxu0
      %v1224 = vadd.f32 0.0, %v1223
      %v1225 = vpop.f32.mrf.mxu0
      %v1226 = vpop.f32.mrf.mxu0
      %v1227 = vadd.f32 0.0, %v1226
      %v1228 = vpop.f32.mrf.mxu0
      %1229 = vmatprep.mubr.bf16.mxu0 %v686
      %1230 = vmatmul.mubr.bf16.gmra.mxu0 %v685
      %v1231 = vpop.f32.mrf.mxu0
      %v1232 = vadd.f32 0.0, %v1231
      %v1233 = vpop.f32.mrf.mxu0
      %v1234 = vpop.f32.mrf.mxu0
      %v1235 = vadd.f32 0.0, %v1234
      %v1236 = vpop.f32.mrf.mxu0
      %1237 = vmatprep.mubr.bf16.mxu0 %v694
      %1238 = vmatmul.mubr.bf16.gmra.mxu0 %v693
      %v1239 = vpop.f32.mrf.mxu0
      %v1240 = vadd.f32 0.0, %v1239
      %v1241 = vpop.f32.mrf.mxu0
      %v1242 = vpop.f32.mrf.mxu0
      %v1243 = vadd.f32 0.0, %v1242
      %v1244 = vpop.f32.mrf.mxu0
      %1245 = vmatprep.mubr.bf16.mxu0 %v702
      %1246 = vmatmul.mubr.bf16.gmra.mxu0 %v701
      %v1247 = vpop.f32.mrf.mxu0
      %v1248 = vadd.f32 0.0, %v1247
      %v1249 = vpop.f32.mrf.mxu0
      %v1250 = vpop.f32.mrf.mxu0
      %v1251 = vadd.f32 0.0, %v1250
      %v1252 = vpop.f32.mrf.mxu0
      %1253 = vmatprep.mubr.bf16.mxu0 %v710
      %1254 = vmatmul.mubr.bf16.gmra.mxu0 %v709
      %v1255 = vpop.f32.mrf.mxu0
      %v1256 = vadd.f32 0.0, %v1255
      %v1257 = vpop.f32.mrf.mxu0
      %v1258 = vpop.f32.mrf.mxu0
      %v1259 = vadd.f32 0.0, %v1258
      %v1260 = vpop.f32.mrf.mxu0
      %1261 = vmatprep.mubr.bf16.mxu0 %v718
      %1262 = vmatmul.mubr.bf16.gmra.mxu0 %v717
      %v1263 = vpop.f32.mrf.mxu0
      %v1264 = vadd.f32 0.0, %v1263
      %v1265 = vpop.f32.mrf.mxu0
      %v1266 = vpop.f32.mrf.mxu0
      %v1267 = vadd.f32 0.0, %v1266
      %v1268 = vpop.f32.mrf.mxu0
      %1269 = vdwg.mxu0
      %1270 = vmatprep.subr.bf16.mxu0 0
      %1271 = vmatpush1.bf16.msra.mxu0 %v1068
      %1272 = vmatprep.subr.bf16.mxu0 0
      %1273 = vmatpush1.bf16.msra.mxu0 %v1067
      %1274 = vmatprep.subr.bf16.mxu0 0
      %1275 = vmatpush1.bf16.msra.mxu0 %v1066
      %1276 = vmatprep.subr.bf16.mxu0 0
      %1277 = vmatpush1.bf16.msra.mxu0 %v1065
      %1278 = vmatprep.subr.bf16.mxu0 0
      %1279 = vmatpush1.bf16.msra.mxu0 %v1064
      %1280 = vmatprep.subr.bf16.mxu0 0
      %1281 = vmatpush1.bf16.msra.mxu0 %v1063
      %1282 = vmatprep.subr.bf16.mxu0 0
      %1283 = vmatpush1.bf16.msra.mxu0 %v1062
      %1284 = vmatprep.subr.bf16.mxu0 0
      %1285 = vmatpush1.bf16.msra.mxu0 %v1061
      %1286 = vmatprep.subr.bf16.mxu0 0
      %1287 = vmatpush2.bf16.msra.mxu0 %v1076
      %1288 = vmatprep.subr.bf16.mxu0 0
      %1289 = vmatpush2.bf16.msra.mxu0 %v1075
      %1290 = vmatprep.subr.bf16.mxu0 0
      %1291 = vmatpush2.bf16.msra.mxu0 %v1074
      %1292 = vmatprep.subr.bf16.mxu0 0
      %1293 = vmatpush2.bf16.msra.mxu0 %v1073
      %1294 = vmatprep.subr.bf16.mxu0 0
      %1295 = vmatpush2.bf16.msra.mxu0 %v1072
      %1296 = vmatprep.subr.bf16.mxu0 0
      %1297 = vmatpush2.bf16.msra.mxu0 %v1071
      %1298 = vmatprep.subr.bf16.mxu0 0
      %1299 = vmatpush2.bf16.msra.mxu0 %v1070
      %1300 = vmatprep.subr.bf16.mxu0 0
      %1301 = vmatpush2.bf16.msra.mxu0 %v1069
      %1302 = vmatprep.mubr.bf16.mxu0 %v664
      %1303 = vmatmul.mubr.bf16.gmra.mxu0 %v663
      %v1304 = vpop.f32.mrf.mxu0
      %v1305 = vadd.f32 %v1208, %v1304
      %v1306 = vpop.f32.mrf.mxu0
      %v1307 = vpop.f32.mrf.mxu0
      %v1308 = vadd.f32 %v1211, %v1307
      %v1309 = vpop.f32.mrf.mxu0
      %1310 = vmatprep.mubr.bf16.mxu0 %v672
      %1311 = vmatmul.mubr.bf16.gmra.mxu0 %v671
      %v1312 = vpop.f32.mrf.mxu0
      %v1313 = vadd.f32 %v1216, %v1312
      %v1314 = vpop.f32.mrf.mxu0
      %v1315 = vpop.f32.mrf.mxu0
      %v1316 = vadd.f32 %v1219, %v1315
      %v1317 = vpop.f32.mrf.mxu0
      %1318 = vmatprep.mubr.bf16.mxu0 %v680
      %1319 = vmatmul.mubr.bf16.gmra.mxu0 %v679
      %v1320 = vpop.f32.mrf.mxu0
      %v1321 = vadd.f32 %v1224, %v1320
      %v1322 = vpop.f32.mrf.mxu0
      %v1323 = vpop.f32.mrf.mxu0
      %v1324 = vadd.f32 %v1227, %v1323
      %v1325 = vpop.f32.mrf.mxu0
      %1326 = vmatprep.mubr.bf16.mxu0 %v688
      %1327 = vmatmul.mubr.bf16.gmra.mxu0 %v687
      %v1328 = vpop.f32.mrf.mxu0
      %v1329 = vadd.f32 %v1232, %v1328
      %v1330 = vpop.f32.mrf.mxu0
      %v1331 = vpop.f32.mrf.mxu0
      %v1332 = vadd.f32 %v1235, %v1331
      %v1333 = vpop.f32.mrf.mxu0
      %1334 = vmatprep.mubr.bf16.mxu0 %v696
      %1335 = vmatmul.mubr.bf16.gmra.mxu0 %v695
      %v1336 = vpop.f32.mrf.mxu0
      %v1337 = vadd.f32 %v1240, %v1336
      %v1338 = vpop.f32.mrf.mxu0
      %v1339 = vpop.f32.mrf.mxu0
      %v1340 = vadd.f32 %v1243, %v1339
      %v1341 = vpop.f32.mrf.mxu0
      %1342 = vmatprep.mubr.bf16.mxu0 %v704
      %1343 = vmatmul.mubr.bf16.gmra.mxu0 %v703
      %v1344 = vpop.f32.mrf.mxu0
      %v1345 = vadd.f32 %v1248, %v1344
      %v1346 = vpop.f32.mrf.mxu0
      %v1347 = vpop.f32.mrf.mxu0
      %v1348 = vadd.f32 %v1251, %v1347
      %v1349 = vpop.f32.mrf.mxu0
      %1350 = vmatprep.mubr.bf16.mxu0 %v712
      %1351 = vmatmul.mubr.bf16.gmra.mxu0 %v711
      %v1352 = vpop.f32.mrf.mxu0
      %v1353 = vadd.f32 %v1256, %v1352
      %v1354 = vpop.f32.mrf.mxu0
      %v1355 = vpop.f32.mrf.mxu0
      %v1356 = vadd.f32 %v1259, %v1355
      %v1357 = vpop.f32.mrf.mxu0
      %1358 = vmatprep.mubr.bf16.mxu0 %v720
      %1359 = vmatmul.mubr.bf16.gmra.mxu0 %v719
      %v1360 = vpop.f32.mrf.mxu0
      %v1361 = vadd.f32 %v1264, %v1360
      %v1362 = vpop.f32.mrf.mxu0
      %v1363 = vpop.f32.mrf.mxu0
      %v1364 = vadd.f32 %v1267, %v1363
      %v1365 = vpop.f32.mrf.mxu0
      %1366 = vdwg.mxu0
      %1367 = vmatprep.subr.bf16.mxu0 0
      %1368 = vmatpush1.bf16.msra.mxu0 %v1084
      %1369 = vmatprep.subr.bf16.mxu0 0
      %1370 = vmatpush1.bf16.msra.mxu0 %v1083
      %1371 = vmatprep.subr.bf16.mxu0 0
      %1372 = vmatpush1.bf16.msra.mxu0 %v1082
      %1373 = vmatprep.subr.bf16.mxu0 0
      %1374 = vmatpush1.bf16.msra.mxu0 %v1081
      %1375 = vmatprep.subr.bf16.mxu0 0
      %1376 = vmatpush1.bf16.msra.mxu0 %v1080
      %1377 = vmatprep.subr.bf16.mxu0 0
      %1378 = vmatpush1.bf16.msra.mxu0 %v1079
      %1379 = vmatprep.subr.bf16.mxu0 0
      %1380 = vmatpush1.bf16.msra.mxu0 %v1078
      %1381 = vmatprep.subr.bf16.mxu0 0
      %1382 = vmatpush1.bf16.msra.mxu0 %v1077
      %1383 = vmatprep.subr.bf16.mxu0 0
      %1384 = vmatpush2.bf16.msra.mxu0 %v1092
      %1385 = vmatprep.subr.bf16.mxu0 0
      %1386 = vmatpush2.bf16.msra.mxu0 %v1091
      %1387 = vmatprep.subr.bf16.mxu0 0
      %1388 = vmatpush2.bf16.msra.mxu0 %v1090
      %1389 = vmatprep.subr.bf16.mxu0 0
      %1390 = vmatpush2.bf16.msra.mxu0 %v1089
      %1391 = vmatprep.subr.bf16.mxu0 0
      %1392 = vmatpush2.bf16.msra.mxu0 %v1088
      %1393 = vmatprep.subr.bf16.mxu0 0
      %1394 = vmatpush2.bf16.msra.mxu0 %v1087
      %1395 = vmatprep.subr.bf16.mxu0 0
      %1396 = vmatpush2.bf16.msra.mxu0 %v1086
      %1397 = vmatprep.subr.bf16.mxu0 0
      %1398 = vmatpush2.bf16.msra.mxu0 %v1085
      %1399 = vmatprep.mubr.bf16.mxu0 %v666
      %1400 = vmatmul.mubr.bf16.gmra.mxu0 %v665
      %v1401 = vpop.f32.mrf.mxu0
      %v1402 = vadd.f32 %v1305, %v1401
      %v1403 = vpop.f32.mrf.mxu0
      %v1404 = vpop.f32.mrf.mxu0
      %v1405 = vadd.f32 %v1308, %v1404
      %v1406 = vpop.f32.mrf.mxu0
      %1407 = vmatprep.mubr.bf16.mxu0 %v674
      %1408 = vmatmul.mubr.bf16.gmra.mxu0 %v673
      %v1409 = vpop.f32.mrf.mxu0
      %v1410 = vadd.f32 %v1313, %v1409
      %v1411 = vpop.f32.mrf.mxu0
      %v1412 = vpop.f32.mrf.mxu0
      %v1413 = vadd.f32 %v1316, %v1412
      %v1414 = vpop.f32.mrf.mxu0
      %1415 = vmatprep.mubr.bf16.mxu0 %v682
      %1416 = vmatmul.mubr.bf16.gmra.mxu0 %v681
      %v1417 = vpop.f32.mrf.mxu0
      %v1418 = vadd.f32 %v1321, %v1417
      %v1419 = vpop.f32.mrf.mxu0
      %v1420 = vpop.f32.mrf.mxu0
      %v1421 = vadd.f32 %v1324, %v1420
      %v1422 = vpop.f32.mrf.mxu0
      %1423 = vmatprep.mubr.bf16.mxu0 %v690
      %1424 = vmatmul.mubr.bf16.gmra.mxu0 %v689
      %v1425 = vpop.f32.mrf.mxu0
      %v1426 = vadd.f32 %v1329, %v1425
      %v1427 = vpop.f32.mrf.mxu0
      %v1428 = vpop.f32.mrf.mxu0
      %v1429 = vadd.f32 %v1332, %v1428
      %v1430 = vpop.f32.mrf.mxu0
      %1431 = vmatprep.mubr.bf16.mxu0 %v698
      %1432 = vmatmul.mubr.bf16.gmra.mxu0 %v697
      %v1433 = vpop.f32.mrf.mxu0
      %v1434 = vadd.f32 %v1337, %v1433
      %v1435 = vpop.f32.mrf.mxu0
      %v1436 = vpop.f32.mrf.mxu0
      %v1437 = vadd.f32 %v1340, %v1436
      %v1438 = vpop.f32.mrf.mxu0
      %1439 = vmatprep.mubr.bf16.mxu0 %v706
      %1440 = vmatmul.mubr.bf16.gmra.mxu0 %v705
      %v1441 = vpop.f32.mrf.mxu0
      %v1442 = vadd.f32 %v1345, %v1441
      %v1443 = vpop.f32.mrf.mxu0
      %v1444 = vpop.f32.mrf.mxu0
      %v1445 = vadd.f32 %v1348, %v1444
      %v1446 = vpop.f32.mrf.mxu0
      %1447 = vmatprep.mubr.bf16.mxu0 %v714
      %1448 = vmatmul.mubr.bf16.gmra.mxu0 %v713
      %v1449 = vpop.f32.mrf.mxu0
      %v1450 = vadd.f32 %v1353, %v1449
      %v1451 = vpop.f32.mrf.mxu0
      %v1452 = vpop.f32.mrf.mxu0
      %v1453 = vadd.f32 %v1356, %v1452
      %v1454 = vpop.f32.mrf.mxu0
      %1455 = vmatprep.mubr.bf16.mxu0 %v722
      %1456 = vmatmul.mubr.bf16.gmra.mxu0 %v721
      %v1457 = vpop.f32.mrf.mxu0
      %v1458 = vadd.f32 %v1361, %v1457
      %v1459 = vpop.f32.mrf.mxu0
      %v1460 = vpop.f32.mrf.mxu0
      %v1461 = vadd.f32 %v1364, %v1460
      %v1462 = vpop.f32.mrf.mxu0
      %1463 = vdwg.mxu0
      %1464 = vmatprep.subr.bf16.mxu0 0
      %1465 = vmatpush1.bf16.msra.mxu0 %v1100
      %1466 = vmatprep.subr.bf16.mxu0 0
      %1467 = vmatpush1.bf16.msra.mxu0 %v1099
      %1468 = vmatprep.subr.bf16.mxu0 0
      %1469 = vmatpush1.bf16.msra.mxu0 %v1098
      %1470 = vmatprep.subr.bf16.mxu0 0
      %1471 = vmatpush1.bf16.msra.mxu0 %v1097
      %1472 = vmatprep.subr.bf16.mxu0 0
      %1473 = vmatpush1.bf16.msra.mxu0 %v1096
      %1474 = vmatprep.subr.bf16.mxu0 0
      %1475 = vmatpush1.bf16.msra.mxu0 %v1095
      %1476 = vmatprep.subr.bf16.mxu0 0
      %1477 = vmatpush1.bf16.msra.mxu0 %v1094
      %1478 = vmatprep.subr.bf16.mxu0 0
      %1479 = vmatpush1.bf16.msra.mxu0 %v1093
      %1480 = vmatprep.subr.bf16.mxu0 0
      %1481 = vmatpush2.bf16.msra.mxu0 %v1108
      %1482 = vmatprep.subr.bf16.mxu0 0
      %1483 = vmatpush2.bf16.msra.mxu0 %v1107
      %1484 = vmatprep.subr.bf16.mxu0 0
      %1485 = vmatpush2.bf16.msra.mxu0 %v1106
      %1486 = vmatprep.subr.bf16.mxu0 0
      %1487 = vmatpush2.bf16.msra.mxu0 %v1105
      %1488 = vmatprep.subr.bf16.mxu0 0
      %1489 = vmatpush2.bf16.msra.mxu0 %v1104
      %1490 = vmatprep.subr.bf16.mxu0 0
      %1491 = vmatpush2.bf16.msra.mxu0 %v1103
      %1492 = vmatprep.subr.bf16.mxu0 0
      %1493 = vmatpush2.bf16.msra.mxu0 %v1102
      %1494 = vmatprep.subr.bf16.mxu0 0
      %1495 = vmatpush2.bf16.msra.mxu0 %v1101
      %1496 = vmatprep.mubr.bf16.mxu0 %v668
      %1497 = vmatmul.mubr.bf16.gmra.mxu0 %v667
      %v1498 = vpop.f32.mrf.mxu0
      %v1499 = vadd.f32 %v1402, %v1498
      %v1500 = vpop.f32.mrf.mxu0
      %v1501 = vpop.f32.mrf.mxu0
      %v1502 = vadd.f32 %v1405, %v1501
      %v1503 = vpop.f32.mrf.mxu0
      %1504 = vmatprep.mubr.bf16.mxu0 %v676
      %1505 = vmatmul.mubr.bf16.gmra.mxu0 %v675
      %v1506 = vpop.f32.mrf.mxu0
      %v1507 = vadd.f32 %v1410, %v1506
      %v1508 = vpop.f32.mrf.mxu0
      %v1509 = vpop.f32.mrf.mxu0
      %v1510 = vadd.f32 %v1413, %v1509
      %v1511 = vpop.f32.mrf.mxu0
      %1512 = vmatprep.mubr.bf16.mxu0 %v684
      %1513 = vmatmul.mubr.bf16.gmra.mxu0 %v683
      %v1514 = vpop.f32.mrf.mxu0
      %v1515 = vadd.f32 %v1418, %v1514
      %v1516 = vpop.f32.mrf.mxu0
      %v1517 = vpop.f32.mrf.mxu0
      %v1518 = vadd.f32 %v1421, %v1517
      %v1519 = vpop.f32.mrf.mxu0
      %1520 = vmatprep.mubr.bf16.mxu0 %v692
      %1521 = vmatmul.mubr.bf16.gmra.mxu0 %v691
      %v1522 = vpop.f32.mrf.mxu0
      %v1523 = vadd.f32 %v1426, %v1522
      %v1524 = vpop.f32.mrf.mxu0
      %v1525 = vpop.f32.mrf.mxu0
      %v1526 = vadd.f32 %v1429, %v1525
      %v1527 = vpop.f32.mrf.mxu0
      %1528 = vmatprep.mubr.bf16.mxu0 %v700
      %1529 = vmatmul.mubr.bf16.gmra.mxu0 %v699
      %v1530 = vpop.f32.mrf.mxu0
      %v1531 = vadd.f32 %v1434, %v1530
      %v1532 = vpop.f32.mrf.mxu0
      %v1533 = vpop.f32.mrf.mxu0
      %v1534 = vadd.f32 %v1437, %v1533
      %v1535 = vpop.f32.mrf.mxu0
      %1536 = vmatprep.mubr.bf16.mxu0 %v708
      %1537 = vmatmul.mubr.bf16.gmra.mxu0 %v707
      %v1538 = vpop.f32.mrf.mxu0
      %v1539 = vadd.f32 %v1442, %v1538
      %v1540 = vpop.f32.mrf.mxu0
      %v1541 = vpop.f32.mrf.mxu0
      %v1542 = vadd.f32 %v1445, %v1541
      %v1543 = vpop.f32.mrf.mxu0
      %1544 = vmatprep.mubr.bf16.mxu0 %v716
      %1545 = vmatmul.mubr.bf16.gmra.mxu0 %v715
      %v1546 = vpop.f32.mrf.mxu0
      %v1547 = vadd.f32 %v1450, %v1546
      %v1548 = vpop.f32.mrf.mxu0
      %v1549 = vpop.f32.mrf.mxu0
      %v1550 = vadd.f32 %v1453, %v1549
      %v1551 = vpop.f32.mrf.mxu0
      %1552 = vmatprep.mubr.bf16.mxu0 %v724
      %1553 = vmatmul.mubr.bf16.gmra.mxu0 %v723
      %v1554 = vpop.f32.mrf.mxu0
      %v1555 = vadd.f32 %v1458, %v1554
      %v1556 = vpop.f32.mrf.mxu0
      %v1557 = vpop.f32.mrf.mxu0
      %v1558 = vadd.f32 %v1461, %v1557
      %v1559 = vpop.f32.mrf.mxu0
      %1560 = vdwg.mxu0
      %v1561 = vld [vmem:[%s262] sm:$0x1]
      %v1562 = vlaneseq
      %v1563 = vshrl.u32 %v1562, 7
      %v1564 = vsub.s32 0, %v1563
      %v1565 = vrot.slane %v1561, %v1564
      %v1566 = vmul.f32 %v1499, %v1565
      %v1567 = vmul.f32 %v1502, %v1565
      %v1568 = vmul.f32 %v1507, %v1565
      %v1569 = vmul.f32 %v1510, %v1565
      %v1570 = vmul.f32 %v1515, %v1565
      %v1571 = vmul.f32 %v1518, %v1565
      %v1572 = vmul.f32 %v1523, %v1565
      %v1573 = vmul.f32 %v1526, %v1565
      %v1574 = vmul.f32 %v1531, %v1565
      %v1575 = vmul.f32 %v1534, %v1565
      %v1576 = vmul.f32 %v1539, %v1565
      %v1577 = vmul.f32 %v1542, %v1565
      %v1578 = vmul.f32 %v1547, %v1565
      %v1579 = vmul.f32 %v1550, %v1565
      %v1580 = vmul.f32 %v1555, %v1565
      %v1581 = vmul.f32 %v1558, %v1565
      %v1582 = vld [vmem:[%s262 + $0x1] sm:$0x1]
      %v1583 = vlaneseq
      %v1584 = vshrl.u32 %v1583, 7
      %v1585 = vsub.s32 0, %v1584
      %v1586 = vrot.slane %v1582, %v1585
      %v1587 = vadd.f32 %v1566, %v1586
      %v1588 = vadd.f32 %v1567, %v1586
      %v1589 = vadd.f32 %v1568, %v1586
      %v1590 = vadd.f32 %v1569, %v1586
      %v1591 = vadd.f32 %v1570, %v1586
      %v1592 = vadd.f32 %v1571, %v1586
      %v1593 = vadd.f32 %v1572, %v1586
      %v1594 = vadd.f32 %v1573, %v1586
      %v1595 = vadd.f32 %v1574, %v1586
      %v1596 = vadd.f32 %v1575, %v1586
      %v1597 = vadd.f32 %v1576, %v1586
      %v1598 = vadd.f32 %v1577, %v1586
      %v1599 = vadd.f32 %v1578, %v1586
      %v1600 = vadd.f32 %v1579, %v1586
      %v1601 = vadd.f32 %v1580, %v1586
      %v1602 = vadd.f32 %v1581, %v1586
      %v1603 = vmax.f32 %v1587, 0.0
      %v1604 = vmax.f32 %v1588, 0.0
      %v1605 = vmax.f32 %v1589, 0.0
      %v1606 = vmax.f32 %v1590, 0.0
      %v1607 = vmax.f32 %v1591, 0.0
      %v1608 = vmax.f32 %v1592, 0.0
      %v1609 = vmax.f32 %v1593, 0.0
      %v1610 = vmax.f32 %v1594, 0.0
      %v1611 = vmax.f32 %v1595, 0.0
      %v1612 = vmax.f32 %v1596, 0.0
      %v1613 = vmax.f32 %v1597, 0.0
      %v1614 = vmax.f32 %v1598, 0.0
      %v1615 = vmax.f32 %v1599, 0.0
      %v1616 = vmax.f32 %v1600, 0.0
      %v1617 = vmax.f32 %v1601, 0.0
      %v1618 = vmax.f32 %v1602, 0.0
      %v1619 = vpack.c.bf16 %v1604, %v1603
      %v1620 = vpack.c.bf16 %v1606, %v1605
      %v1621 = vpack.c.bf16 %v1608, %v1607
      %v1622 = vpack.c.bf16 %v1610, %v1609
      %v1623 = vpack.c.bf16 %v1612, %v1611
      %v1624 = vpack.c.bf16 %v1614, %v1613
      %v1625 = vpack.c.bf16 %v1616, %v1615
      %v1626 = vpack.c.bf16 %v1618, %v1617
      %v1635 = vunpack.c.l.b16 %v1619
      %v1636 = vunpack.c.h.b16 %v1619
      %v1637 = vunpack.c.l.b16 %v1620
      %v1638 = vunpack.c.h.b16 %v1620
      %v1639 = vunpack.c.l.b16 %v1621
      %v1640 = vunpack.c.h.b16 %v1621
      %v1641 = vunpack.c.l.b16 %v1622
      %v1642 = vunpack.c.h.b16 %v1622
      %v1643 = vunpack.c.l.b16 %v1623
      %v1644 = vunpack.c.h.b16 %v1623
      %v1645 = vunpack.c.l.b16 %v1624
      %v1646 = vunpack.c.h.b16 %v1624
      %v1647 = vunpack.c.l.b16 %v1625
      %v1648 = vunpack.c.h.b16 %v1625
      %v1649 = vunpack.c.l.b16 %v1626
      %v1650 = vunpack.c.h.b16 %v1626
      %v1651 = vpack.c.b16 %v1635, %v1635
      %v1652 = vpack.c.b16 %v1636, %v1636
      %v1653 = vpack.c.b16 %v1637, %v1637
      %v1654 = vpack.c.b16 %v1638, %v1638
      %v1655 = vpack.c.b16 %v1639, %v1639
      %v1656 = vpack.c.b16 %v1640, %v1640
      %v1657 = vpack.c.b16 %v1641, %v1641
      %v1658 = vpack.c.b16 %v1642, %v1642
      %v1659 = vpack.c.b16 %v1643, %v1643
      %v1660 = vpack.c.b16 %v1644, %v1644
      %v1661 = vpack.c.b16 %v1645, %v1645
      %v1662 = vpack.c.b16 %v1646, %v1646
      %v1663 = vpack.c.b16 %v1647, %v1647
      %v1664 = vpack.c.b16 %v1648, %v1648
      %v1665 = vpack.c.b16 %v1649, %v1649
      %v1666 = vpack.c.b16 %v1650, %v1650
      %1683 = vst [vmem:[%s274] sm:$0xf] %v1651
      %1684 = vst [vmem:[%s274 + $0x4] sm:$0xf] %v1652
      %1685 = vst [vmem:[%s274 + $0x8] sm:$0xf] %v1653
      %1686 = vst [vmem:[%s274 + $0xc] sm:$0xf] %v1654
      %1687 = vst [vmem:[%s274 + $0x10] sm:$0xf] %v1655
      %1688 = vst [vmem:[%s274 + $0x14] sm:$0xf] %v1656
      %1689 = vst [vmem:[%s274 + $0x18] sm:$0xf] %v1657
      %1690 = vst [vmem:[%s274 + $0x1c] sm:$0xf] %v1658
      %1691 = vst [vmem:[%s274 + $0x20] sm:$0xf] %v1659
      %1692 = vst [vmem:[%s274 + $0x24] sm:$0xf] %v1660
      %1693 = vst [vmem:[%s274 + $0x28] sm:$0xf] %v1661
      %1694 = vst [vmem:[%s274 + $0x2c] sm:$0xf] %v1662
      %1695 = vst [vmem:[%s274 + $0x30] sm:$0xf] %v1663
      %1696 = vst [vmem:[%s274 + $0x34] sm:$0xf] %v1664
      %1697 = vst [vmem:[%s274 + $0x38] sm:$0xf] %v1665
      %1698 = vst [vmem:[%s274 + $0x3c] sm:$0xf] %v1666
      %s1699 = smul.u32 16, %s20
      %p1700 = scmp.lt.s32.totalorder %s19, 3
      %s1701 = scalar_select %p1700, %s19, 3
      %p1702 = scmp.lt.s32.totalorder %s1699, 15
      %s1703 = scalar_select %p1702, %s1699, 15
      %p1704 = scmp.lt.s32.totalorder %s21, 0
      %s1705 = scalar_select %p1704, %s21, 0
      %s1706 = sadd.s32 %s1705, %s1703
      %s1707 = smul.addr %s1701, 16
      %s1708 = sadd.s32 %s1706, %s1707
      %s1709 = smul.addr %s1708, 4
      %s1710 = scalar_lea.vmem %s3, %s1709
      // Predicated region
      $region33: #{generator_forward.5} parent=31 // pred_check
        %p1711 = pneg %p137
      $region34: #{generator_forward.5} parent=31 // pred_check_branch
        %1713 = sbr.rel (%p1711) target = $region36
      $region35: #{generator_forward.5} parent=31 // pred_region
        %s1714 = smul.u32 16, %s20
      $region36: #{generator_forward.5} parent=31 // pred_fallthru
        _
    $region32: #{generator_forward.5} parent=5 // pred_fallthru
      _
    %p1715 = scmp.le.s32.totalorder 2, %s9
    // Predicated region
    $region37: #{generator_forward.5} parent=5 // pred_check
      %p1716 = pneg %p1715
    $region38: #{generator_forward.5} parent=5 // pred_check_branch
      %1718 = sbr.rel (%p1716) target = $region40
    $region39: #{generator_forward.5} parent=5 // pred_region
      %s1719 = ssub.s32 %s9, 2
      // Predicated region
      $region41: #{generator_forward.5} parent=39 // pred_check
        %p1720 = pneg %p143
      $region42: #{generator_forward.5} parent=39 // pred_check_branch
        %1722 = sbr.rel (%p1720) target = $region44
      $region43: #{generator_forward.5} parent=39 // pred_region
        %s1723 = smul.u32 16, %s23
        %p1724 = scmp.lt.s32.totalorder %s22, 3
        %s1725 = scalar_select %p1724, %s22, 3
        %p1726 = scmp.lt.s32.totalorder %s1723, 15
        %s1727 = scalar_select %p1726, %s1723, 15
        %p1728 = scmp.lt.s32.totalorder %s24, 0
        %s1729 = scalar_select %p1728, %s24, 0
        %s1730 = sadd.s32 %s1729, %s1727
        %s1731 = smul.addr %s1725, 16
        %s1732 = sadd.s32 %s1730, %s1731
        %s1733 = smul.addr %s1732, 4
        %s1734 = scalar_lea.vmem %s3, %s1733
      $region44: #{generator_forward.5} parent=39 // pred_fallthru
        _
    $region40: #{generator_forward.5} parent=5 // pred_fallthru
      _
  $region6: #{generator_forward.5} parent=0 // loop_footer
    %s13 = sadd.s32 1, %s9
  $region7: #{generator_forward.5} parent=0 // loop_footer_branch
    %8 = sbr.rel target = $region3
  $region8: #{generator_forward.5} parent=0 // loop_exit
    _

// kernel: generator_forward.6
$region0: #{generator_forward.6}
  #allocation0 [shape = 'u32[]', space=smem, size = 0x4, offset = 0x4, fixed_abs, tag = 'smem constant byte address 0x4 - core index']
  #allocation1 [shape = 'u32[144,128]{1,0:T(1,128)}', space=vmem, size = 0x12000, scoped, tag = 'internal scratch']
  %s0 = inlined_call_operand.vmem [shape: bf16[4,384,512], index: 0, kind: input, shape index: {}]
  %s1 = inlined_call_operand.vmem [shape: bf16[4,512,128], index: 1, kind: input, shape index: {}]
  %s2 = inlined_call_operand.vmem [shape: f32[2,128], index: 2, kind: input, shape index: {}]
  %s3 = inlined_call_operand.vmem [shape: bf16[4,384,128], index: 3, kind: output, shape index: {}]
  %s4 = sld [smem:[#allocation0]]
  $region45: #{generator_forward.6} parent=0
    _
  %s6 = ssub.s32 1, %s4
  %s7 = scalar_select 0, %s6, %s4
  loop: start=0, step=1, limit=6
  $region2: #{generator_forward.6} parent=0 // loop_pre_header
    _
  $region3: #{generator_forward.6} parent=0 // loop_header
    %s9 = sphi 0, %s13
    %p10 = scmp.ge.s32.totalorder %s9, 6
    %s16 = sphi 0, %s35
    %s17 = sphi 0, %s31
    %s18 = sphi 0, %s27
    %s19 = sphi 0, %s16
    %s20 = sphi 0, %s17
    %s21 = sphi 0, %s18
    %s22 = sphi 0, %s19
    %s23 = sphi 0, %s20
    %s24 = sphi 0, %s21
    %s40 = sphi 0, %s42
    %s43 = sphi 0, %s40
    %s44 = sphi 0, %s43
    %s60 = sphi 0, %s44
    %s68 = sphi 0, %s70
    %s71 = sphi 0, %s68
    %s72 = sphi 0, %s71
    %s88 = sphi 0, %s72
    %s94 = sphi 0, %s96
    %s97 = sphi 0, %s94
    %s98 = sphi 0, %s97
    %s114 = sphi 0, %s98
    %s124 = sphi 0, %s126
    %s127 = sphi 0, %s124
    %s128 = sphi 0, %s127
    %s144 = sphi 0, %s128
  $region4: #{generator_forward.6} parent=0 // loop_header_branch
    %12 = sbr.rel (%p10) target = $region8
  $region5: #{generator_forward.6} parent=0 // loop_body
    %s14 = ssub.s32 %s9, 1
    %s15 = ssub.s32 %s9, 2
    %s25 = sadd.s32 1, %s18
    %p26 = scmp.ge.s32.totalorder %s25, 1
    %s27 = scalar_select %p26, 0, %s25
    %s28 = sadd.s32 1, %s17
    %s29 = scalar_select %p26, %s28, %s17
    %p30 = scmp.ge.s32.totalorder %s29, 1
    %s31 = scalar_select %p30, 0, %s29
    %s32 = sadd.s32 1, %s16
    %s33 = scalar_select %p30, %s32, %s16
    %p34 = scmp.ge.s32.totalorder %s33, 4
    %s35 = scalar_select %p34, 0, %s33
    %s36 = ssub.s32 %s16, %s35
    %s37 = ssub.s32 %s17, %s31
    %s38 = sor.u32 %s36, %s37
    %p39 = scmp.eq.s32.totalorder %s38, 0
    %s41 = sadd.s32 %s40, 1
    %s42 = scalar_select %p39, %s40, %s41
    %p45 = pneg %p39
    %p46 = scmp.eq.s32.totalorder %s9, 3
    %p47 = por %p45, %p46
    %p48 = scmp.ne.s32.totalorder %s40, %s43
    %p49 = scmp.eq.s32.totalorder %s9, 0
    %p50 = por %p48, %p49
    %p51 = scmp.ne.s32.totalorder %s40, %s43
    %p52 = scmp.eq.s32.totalorder %s14, 3
    %p53 = por %p51, %p52
    %p54 = scmp.ne.s32.totalorder %s43, %s44
    %p55 = scmp.eq.s32.totalorder %s14, 0
    %p56 = por %p54, %p55
    %p57 = scmp.ne.s32.totalorder %s43, %s44
    %p58 = scmp.eq.s32.totalorder %s15, 3
    %p59 = por %p57, %p58
    %p61 = scmp.ne.s32.totalorder %s44, %s60
    %p62 = scmp.eq.s32.totalorder %s15, 0
    %p63 = por %p61, %p62
    %s64 = ssub.s32 %s16, %s35
    %s65 = ssub.s32 %s18, %s27
    %s66 = sor.u32 %s64, %s65
    %p67 = scmp.eq.s32.totalorder %s66, 0
    %s69 = sadd.s32 %s68, 1
    %s70 = scalar_select %p67, %s68, %s69
    %p73 = pneg %p67
    %p74 = scmp.eq.s32.totalorder %s9, 3
    %p75 = por %p73, %p74
    %p76 = scmp.ne.s32.totalorder %s68, %s71
    %p77 = scmp.eq.s32.totalorder %s9, 0
    %p78 = por %p76, %p77
    %p79 = scmp.ne.s32.totalorder %s68, %s71
    %p80 = scmp.eq.s32.totalorder %s14, 3
    %p81 = por %p79, %p80
    %p82 = scmp.ne.s32.totalorder %s71, %s72
    %p83 = scmp.eq.s32.totalorder %s14, 0
    %p84 = por %p82, %p83
    %p85 = scmp.ne.s32.totalorder %s71, %s72
    %p86 = scmp.eq.s32.totalorder %s15, 3
    %p87 = por %p85, %p86
    %p89 = scmp.ne.s32.totalorder %s72, %s88
    %p90 = scmp.eq.s32.totalorder %s15, 0
    %p91 = por %p89, %p90
    %s92 = ssub.s32 %s18, %s27
    %p93 = scmp.eq.s32.totalorder %s92, 0
    %s95 = sadd.s32 %s94, 1
    %s96 = scalar_select %p93, %s94, %s95
    %p99 = pneg %p93
    %p100 = scmp.eq.s32.totalorder %s9, 3
    %p101 = por %p99, %p100
    %p102 = scmp.ne.s32.totalorder %s94, %s97
    %p103 = scmp.eq.s32.totalorder %s9, 0
    %p104 = por %p102, %p103
    %p105 = scmp.ne.s32.totalorder %s94, %s97
    %p106 = scmp.eq.s32.totalorder %s14, 3
    %p107 = por %p105, %p106
    %p108 = scmp.ne.s32.totalorder %s97, %s98
    %p109 = scmp.eq.s32.totalorder %s14, 0
    %p110 = por %p108, %p109
    %p111 = scmp.ne.s32.totalorder %s97, %s98
    %p112 = scmp.eq.s32.totalorder %s15, 3
    %p113 = por %p111, %p112
    %p115 = scmp.ne.s32.totalorder %s98, %s114
    %p116 = scmp.eq.s32.totalorder %s15, 0
    %p117 = por %p115, %p116
    %s118 = ssub.s32 %s16, %s35
    %s119 = ssub.s32 %s17, %s31
    %s120 = sor.u32 %s118, %s119
    %s121 = ssub.s32 %s18, %s27
    %s122 = sor.u32 %s120, %s121
    %p123 = scmp.eq.s32.totalorder %s122, 0
    %s125 = sadd.s32 %s124, 1
    %s126 = scalar_select %p123, %s124, %s125
    %p129 = pneg %p123
    %p130 = scmp.eq.s32.totalorder %s9, 3
    %p131 = por %p129, %p130
    %p132 = scmp.ne.s32.totalorder %s124, %s127
    %p133 = scmp.eq.s32.totalorder %s9, 0
    %p134 = por %p132, %p133
    %p135 = scmp.ne.s32.totalorder %s124, %s127
    %p136 = scmp.eq.s32.totalorder %s14, 3
    %p137 = por %p135, %p136
    %p138 = scmp.ne.s32.totalorder %s127, %s128
    %p139 = scmp.eq.s32.totalorder %s14, 0
    %p140 = por %p138, %p139
    %p141 = scmp.ne.s32.totalorder %s127, %s128
    %p142 = scmp.eq.s32.totalorder %s15, 3
    %p143 = por %p141, %p142
    %p145 = scmp.ne.s32.totalorder %s128, %s144
    %p146 = scmp.eq.s32.totalorder %s15, 0
    %p147 = por %p145, %p146
    %p148 = scmp.le.s32.totalorder 1, %s9
    %p149 = scmp.lt.s32.totalorder %s9, 5
    %p150 = pnand %p148, %p149
    %p151 = pneg %p150
    // Predicated region
    $region9: #{generator_forward.6} parent=5 // pred_check
      _
    $region10: #{generator_forward.6} parent=5 // pred_check_branch
      %153 = sbr.rel (%p150) target = $region12
    $region11: #{generator_forward.6} parent=5 // pred_region
      %s154 = ssub.s32 %s9, 1
      // Predicated region
      $region13: #{generator_forward.6} parent=11 // pred_check
        %p155 = pneg %p110
      $region14: #{generator_forward.6} parent=11 // pred_check_branch
        %157 = sbr.rel (%p155) target = $region16
      $region15: #{generator_forward.6} parent=11 // pred_region
        %p158 = scmp.lt.s32.totalorder %s21, 0
        %s159 = scalar_select %p158, %s21, 0
        %s160 = smul.addr %s159, 2
        %s161 = scalar_lea.vmem %s2, %s160
      $region16: #{generator_forward.6} parent=11 // pred_fallthru
        _
    $region12: #{generator_forward.6} parent=5 // pred_fallthru
      _
    %p162 = scmp.lt.s32.totalorder %s9, 4
    // Predicated region
    $region17: #{generator_forward.6} parent=5 // pred_check
      %p163 = pneg %p162
    $region18: #{generator_forward.6} parent=5 // pred_check_branch
      %165 = sbr.rel (%p163) target = $region20
    $region19: #{generator_forward.6} parent=5 // pred_region
      // Predicated region
      $region21: #{generator_forward.6} parent=19 // pred_check
        %p166 = pneg %p50
      $region22: #{generator_forward.6} parent=19 // pred_check_branch
        %168 = sbr.rel (%p166) target = $region24
      $region23: #{generator_forward.6} parent=19 // pred_region
        %s169 = smul.u32 48, %s17
        %p170 = scmp.lt.s32.totalorder %s16, 3
        %s171 = scalar_select %p170, %s16, 3
        %p172 = scmp.lt.s32.totalorder %s169, 47
        %s173 = scalar_select %p172, %s169, 47
        %s174 = smul.addr %s173, 4
        %s175 = smul.addr %s171, 192
        %s176 = sadd.s32 %s174, %s175
        %s177 = smul.addr %s176, 4
        %s178 = scalar_lea.vmem %s0, %s177
        %s179 = smul.u32 48, %s17
      $region24: #{generator_forward.6} parent=19 // pred_fallthru
        _
      // Predicated region
      $region25: #{generator_forward.6} parent=19 // pred_check
        %p180 = pneg %p78
      $region26: #{generator_forward.6} parent=19 // pred_check_branch
        %182 = sbr.rel (%p180) target = $region28
      $region27: #{generator_forward.6} parent=19 // pred_region
        %p183 = scmp.lt.s32.totalorder %s16, 3
        %s184 = scalar_select %p183, %s16, 3
        %p185 = scmp.lt.s32.totalorder %s18, 0
        %s186 = scalar_select %p185, %s18, 0
        %s187 = smul.addr %s184, 64
        %s188 = sadd.s32 %s186, %s187
        %s189 = smul.addr %s188, 4
        %s190 = scalar_lea.vmem %s1, %s189
      $region28: #{generator_forward.6} parent=19 // pred_fallthru
        _
    $region20: #{generator_forward.6} parent=5 // pred_fallthru
      _
    %p191 = scmp.le.s32.totalorder 1, %s9
    %p192 = scmp.lt.s32.totalorder %s9, 5
    %p193 = pnand %p191, %p192
    %p194 = pneg %p193
    // Predicated region
    $region29: #{generator_forward.6} parent=5 // pred_check
      _
    $region30: #{generator_forward.6} parent=5 // pred_check_branch
      %196 = sbr.rel (%p193) target = $region32
    $region31: #{generator_forward.6} parent=5 // pred_region
      %s197 = ssub.s32 %s9, 1
      %s198 = smul.u32 48, %s20
      %p199 = scmp.lt.s32.totalorder %s19, 3
      %s200 = scalar_select %p199, %s19, 3
      %p201 = scmp.lt.s32.totalorder %s198, 47
      %s202 = scalar_select %p201, %s198, 47
      %s203 = smul.addr %s202, 4
      %s204 = smul.addr %s200, 192
      %s205 = sadd.s32 %s203, %s204
      %s206 = smul.addr %s205, 4
      %s207 = scalar_lea.vmem %s0, %s206
      %p208 = pneg %p56
      %p209 = pneg %p53
      %p210 = scmp.lt.s32.totalorder %s19, 3
      %s211 = scalar_select %p210, %s19, 3
      %p212 = scmp.lt.s32.totalorder %s21, 0
      %s213 = scalar_select %p212, %s21, 0
      %s214 = smul.addr %s211, 64
      %s215 = sadd.s32 %s213, %s214
      %s216 = smul.addr %s215, 4
      %s217 = scalar_lea.vmem %s1, %s216
      %p218 = pneg %p84
      %p219 = pneg %p81
      %p220 = scmp.lt.s32.totalorder %s21, 0
      %s221 = scalar_select %p220, %s21, 0
      %s222 = smul.addr %s221, 2
      %s223 = scalar_lea.vmem %s2, %s222
      %p224 = pneg %p110
      %p225 = pneg %p107
      %p226 = pneg %p140
      %p227 = pneg %p137
      %s228 = smul.u32 48, %s20
      %p229 = scmp.lt.s32.totalorder %s19, 3
      %s230 = scalar_select %p229, %s19, 3
      %p231 = scmp.lt.s32.totalorder %s228, 47
      %s232 = scalar_select %p231, %s228, 47
      %p233 = scmp.lt.s32.totalorder %s21, 0
      %s234 = scalar_select %p233, %s21, 0
      %s235 = sadd.s32 %s234, %s232
      %s236 = smul.addr %s230, 48
      %s237 = sadd.s32 %s235, %s236
      %s238 = smul.addr %s237, 4
      %s239 = scalar_lea.vmem %s3, %s238
      %s240 = smul.u32 48, %s20
      %p241 = scmp.lt.s32.totalorder %s19, 3
      %s242 = scalar_select %p241, %s19, 3
      %p243 = scmp.lt.s32.totalorder %s240, 47
      %s244 = scalar_select %p243, %s240, 47
      %s245 = smul.addr %s244, 4
      %s246 = smul.addr %s242, 192
      %s247 = sadd.s32 %s245, %s246
      %s248 = smul.addr %s247, 4
      %s249 = scalar_lea.vmem %s0, %s248
      %s250 = smul.u32 48, %s20
      %p251 = scmp.lt.s32.totalorder %s19, 3
      %s252 = scalar_select %p251, %s19, 3
      %p253 = scmp.lt.s32.totalorder %s21, 0
      %s254 = scalar_select %p253, %s21, 0
      %s255 = smul.addr %s252, 64
      %s256 = sadd.s32 %s254, %s255
      %s257 = smul.addr %s256, 4
      %s258 = scalar_lea.vmem %s1, %s257
      %p259 = scmp.lt.s32.totalorder %s21, 0
      %s260 = scalar_select %p259, %s21, 0
      %s261 = smul.addr %s260, 2
      %s262 = scalar_lea.vmem %s2, %s261
      %s263 = smul.u32 48, %s20
      %p264 = scmp.lt.s32.totalorder %s19, 3
      %s265 = scalar_select %p264, %s19, 3
      %p266 = scmp.lt.s32.totalorder %s263, 47
      %s267 = scalar_select %p266, %s263, 47
      %p268 = scmp.lt.s32.totalorder %s21, 0
      %s269 = scalar_select %p268, %s21, 0
      %s270 = sadd.s32 %s269, %s267
      %s271 = smul.addr %s265, 48
      %s272 = sadd.s32 %s270, %s271
      %s273 = smul.addr %s272, 4
      %s274 = scalar_lea.vmem %s3, %s273
      %s275 = smul.u32 48, %s20
      %v277 = vld [vmem:[%s249] sm:$0xff]
      %v278 = vld [vmem:[%s249 + $0x8] sm:$0xff]
      %v279 = vld [vmem:[%s249 + $0x10] sm:$0xff]
      %v280 = vld [vmem:[%s249 + $0x18] sm:$0xff]
      %v281 = vld [vmem:[%s249 + $0x20] sm:$0xff]
      %v282 = vld [vmem:[%s249 + $0x28] sm:$0xff]
      %v283 = vld [vmem:[%s249 + $0x30] sm:$0xff]
      %v284 = vld [vmem:[%s249 + $0x38] sm:$0xff]
      %v285 = vld [vmem:[%s249 + $0x40] sm:$0xff]
      %v286 = vld [vmem:[%s249 + $0x48] sm:$0xff]
      %v287 = vld [vmem:[%s249 + $0x50] sm:$0xff]
      %v288 = vld [vmem:[%s249 + $0x58] sm:$0xff]
      %v289 = vld [vmem:[%s249 + $0x60] sm:$0xff]
      %v290 = vld [vmem:[%s249 + $0x68] sm:$0xff]
      %v291 = vld [vmem:[%s249 + $0x70] sm:$0xff]
      %v292 = vld [vmem:[%s249 + $0x78] sm:$0xff]
      %v293 = vld [vmem:[%s249 + $0x80] sm:$0xff]
      %v294 = vld [vmem:[%s249 + $0x88] sm:$0xff]
      %v295 = vld [vmem:[%s249 + $0x90] sm:$0xff]
      %v296 = vld [vmem:[%s249 + $0x98] sm:$0xff]
      %v297 = vld [vmem:[%s249 + $0xa0] sm:$0xff]
      %v298 = vld [vmem:[%s249 + $0xa8] sm:$0xff]
      %v299 = vld [vmem:[%s249 + $0xb0] sm:$0xff]
      %v300 = vld [vmem:[%s249 + $0xb8] sm:$0xff]
      %v301 = vld [vmem:[%s249 + $0xc0] sm:$0xff]
      %v302 = vld [vmem:[%s249 + $0xc8] sm:$0xff]
      %v303 = vld [vmem:[%s249 + $0xd0] sm:$0xff]
      %v304 = vld [vmem:[%s249 + $0xd8] sm:$0xff]
      %v305 = vld [vmem:[%s249 + $0xe0] sm:$0xff]
      %v306 = vld [vmem:[%s249 + $0xe8] sm:$0xff]
      %v307 = vld [vmem:[%s249 + $0xf0] sm:$0xff]
      %v308 = vld [vmem:[%s249 + $0xf8] sm:$0xff]
      %v309 = vld [vmem:[%s249 + $0x100] sm:$0xff]
      %v310 = vld [vmem:[%s249 + $0x108] sm:$0xff]
      %v311 = vld [vmem:[%s249 + $0x110] sm:$0xff]
      %v312 = vld [vmem:[%s249 + $0x118] sm:$0xff]
      %v313 = vld [vmem:[%s249 + $0x120] sm:$0xff]
      %v314 = vld [vmem:[%s249 + $0x128] sm:$0xff]
      %v315 = vld [vmem:[%s249 + $0x130] sm:$0xff]
      %v316 = vld [vmem:[%s249 + $0x138] sm:$0xff]
      %v317 = vld [vmem:[%s249 + $0x140] sm:$0xff]
      %v318 = vld [vmem:[%s249 + $0x148] sm:$0xff]
      %v319 = vld [vmem:[%s249 + $0x150] sm:$0xff]
      %v320 = vld [vmem:[%s249 + $0x158] sm:$0xff]
      %v321 = vld [vmem:[%s249 + $0x160] sm:$0xff]
      %v322 = vld [vmem:[%s249 + $0x168] sm:$0xff]
      %v323 = vld [vmem:[%s249 + $0x170] sm:$0xff]
      %v324 = vld [vmem:[%s249 + $0x178] sm:$0xff]
      %v325 = vld [vmem:[%s249 + $0x180] sm:$0xff]
      %v326 = vld [vmem:[%s249 + $0x188] sm:$0xff]
      %v327 = vld [vmem:[%s249 + $0x190] sm:$0xff]
      %v328 = vld [vmem:[%s249 + $0x198] sm:$0xff]
      %v329 = vld [vmem:[%s249 + $0x1a0] sm:$0xff]
      %v330 = vld [vmem:[%s249 + $0x1a8] sm:$0xff]
      %v331 = vld [vmem:[%s249 + $0x1b0] sm:$0xff]
      %v332 = vld [vmem:[%s249 + $0x1b8] sm:$0xff]
      %v333 = vld [vmem:[%s249 + $0x1c0] sm:$0xff]
      %v334 = vld [vmem:[%s249 + $0x1c8] sm:$0xff]
      %v335 = vld [vmem:[%s249 + $0x1d0] sm:$0xff]
      %v336 = vld [vmem:[%s249 + $0x1d8] sm:$0xff]
      %v337 = vld [vmem:[%s249 + $0x1e0] sm:$0xff]
      %v338 = vld [vmem:[%s249 + $0x1e8] sm:$0xff]
      %v339 = vld [vmem:[%s249 + $0x1f0] sm:$0xff]
      %v340 = vld [vmem:[%s249 + $0x1f8] sm:$0xff]
      %v341 = vld [vmem:[%s249 + $0x200] sm:$0xff]
      %v342 = vld [vmem:[%s249 + $0x208] sm:$0xff]
      %v343 = vld [vmem:[%s249 + $0x210] sm:$0xff]
      %v344 = vld [vmem:[%s249 + $0x218] sm:$0xff]
      %v345 = vld [vmem:[%s249 + $0x220] sm:$0xff]
      %v346 = vld [vmem:[%s249 + $0x228] sm:$0xff]
      %v347 = vld [vmem:[%s249 + $0x230] sm:$0xff]
      %v348 = vld [vmem:[%s249 + $0x238] sm:$0xff]
      %v349 = vld [vmem:[%s249 + $0x240] sm:$0xff]
      %v350 = vld [vmem:[%s249 + $0x248] sm:$0xff]
      %v351 = vld [vmem:[%s249 + $0x250] sm:$0xff]
      %v352 = vld [vmem:[%s249 + $0x258] sm:$0xff]
      %v353 = vld [vmem:[%s249 + $0x260] sm:$0xff]
      %v354 = vld [vmem:[%s249 + $0x268] sm:$0xff]
      %v355 = vld [vmem:[%s249 + $0x270] sm:$0xff]
      %v356 = vld [vmem:[%s249 + $0x278] sm:$0xff]
      %v357 = vld [vmem:[%s249 + $0x280] sm:$0xff]
      %v358 = vld [vmem:[%s249 + $0x288] sm:$0xff]
      %v359 = vld [vmem:[%s249 + $0x290] sm:$0xff]
      %v360 = vld [vmem:[%s249 + $0x298] sm:$0xff]
      %v361 = vld [vmem:[%s249 + $0x2a0] sm:$0xff]
      %v362 = vld [vmem:[%s249 + $0x2a8] sm:$0xff]
      %v363 = vld [vmem:[%s249 + $0x2b0] sm:$0xff]
      %v364 = vld [vmem:[%s249 + $0x2b8] sm:$0xff]
      %v365 = vld [vmem:[%s249 + $0x2c0] sm:$0xff]
      %v366 = vld [vmem:[%s249 + $0x2c8] sm:$0xff]
      %v367 = vld [vmem:[%s249 + $0x2d0] sm:$0xff]
      %v368 = vld [vmem:[%s249 + $0x2d8] sm:$0xff]
      %v369 = vld [vmem:[%s249 + $0x2e0] sm:$0xff]
      %v370 = vld [vmem:[%s249 + $0x2e8] sm:$0xff]
      %v371 = vld [vmem:[%s249 + $0x2f0] sm:$0xff]
      %v372 = vld [vmem:[%s249 + $0x2f8] sm:$0xff]
      %v373 = vld [vmem:[%s258] sm:$0xf]
      %v374 = vld [vmem:[%s258 + $0x4] sm:$0xf]
      %v375 = vld [vmem:[%s258 + $0x8] sm:$0xf]
      %v376 = vld [vmem:[%s258 + $0xc] sm:$0xf]
      %v377 = vld [vmem:[%s258 + $0x10] sm:$0xf]
      %v378 = vld [vmem:[%s258 + $0x14] sm:$0xf]
      %v379 = vld [vmem:[%s258 + $0x18] sm:$0xf]
      %v380 = vld [vmem:[%s258 + $0x1c] sm:$0xf]
      %v381 = vld [vmem:[%s258 + $0x20] sm:$0xf]
      %v382 = vld [vmem:[%s258 + $0x24] sm:$0xf]
      %v383 = vld [vmem:[%s258 + $0x28] sm:$0xf]
      %v384 = vld [vmem:[%s258 + $0x2c] sm:$0xf]
      %v385 = vld [vmem:[%s258 + $0x30] sm:$0xf]
      %v386 = vld [vmem:[%s258 + $0x34] sm:$0xf]
      %v387 = vld [vmem:[%s258 + $0x38] sm:$0xf]
      %v388 = vld [vmem:[%s258 + $0x3c] sm:$0xf]
      %v389 = vld [vmem:[%s258 + $0x40] sm:$0xf]
      %v390 = vld [vmem:[%s258 + $0x44] sm:$0xf]
      %v391 = vld [vmem:[%s258 + $0x48] sm:$0xf]
      %v392 = vld [vmem:[%s258 + $0x4c] sm:$0xf]
      %v393 = vld [vmem:[%s258 + $0x50] sm:$0xf]
      %v394 = vld [vmem:[%s258 + $0x54] sm:$0xf]
      %v395 = vld [vmem:[%s258 + $0x58] sm:$0xf]
      %v396 = vld [vmem:[%s258 + $0x5c] sm:$0xf]
      %v397 = vld [vmem:[%s258 + $0x60] sm:$0xf]
      %v398 = vld [vmem:[%s258 + $0x64] sm:$0xf]
      %v399 = vld [vmem:[%s258 + $0x68] sm:$0xf]
      %v400 = vld [vmem:[%s258 + $0x6c] sm:$0xf]
      %v401 = vld [vmem:[%s258 + $0x70] sm:$0xf]
      %v402 = vld [vmem:[%s258 + $0x74] sm:$0xf]
      %v403 = vld [vmem:[%s258 + $0x78] sm:$0xf]
      %v404 = vld [vmem:[%s258 + $0x7c] sm:$0xf]
      %v405 = vld [vmem:[%s258 + $0x80] sm:$0xf]
      %v406 = vld [vmem:[%s258 + $0x84] sm:$0xf]
      %v407 = vld [vmem:[%s258 + $0x88] sm:$0xf]
      %v408 = vld [vmem:[%s258 + $0x8c] sm:$0xf]
      %v409 = vld [vmem:[%s258 + $0x90] sm:$0xf]
      %v410 = vld [vmem:[%s258 + $0x94] sm:$0xf]
      %v411 = vld [vmem:[%s258 + $0x98] sm:$0xf]
      %v412 = vld [vmem:[%s258 + $0x9c] sm:$0xf]
      %v413 = vld [vmem:[%s258 + $0xa0] sm:$0xf]
      %v414 = vld [vmem:[%s258 + $0xa4] sm:$0xf]
      %v415 = vld [vmem:[%s258 + $0xa8] sm:$0xf]
      %v416 = vld [vmem:[%s258 + $0xac] sm:$0xf]
      %v417 = vld [vmem:[%s258 + $0xb0] sm:$0xf]
      %v418 = vld [vmem:[%s258 + $0xb4] sm:$0xf]
      %v419 = vld [vmem:[%s258 + $0xb8] sm:$0xf]
      %v420 = vld [vmem:[%s258 + $0xbc] sm:$0xf]
      %v421 = vld [vmem:[%s258 + $0xc0] sm:$0xf]
      %v422 = vld [vmem:[%s258 + $0xc4] sm:$0xf]
      %v423 = vld [vmem:[%s258 + $0xc8] sm:$0xf]
      %v424 = vld [vmem:[%s258 + $0xcc] sm:$0xf]
      %v425 = vld [vmem:[%s258 + $0xd0] sm:$0xf]
      %v426 = vld [vmem:[%s258 + $0xd4] sm:$0xf]
      %v427 = vld [vmem:[%s258 + $0xd8] sm:$0xf]
      %v428 = vld [vmem:[%s258 + $0xdc] sm:$0xf]
      %v429 = vld [vmem:[%s258 + $0xe0] sm:$0xf]
      %v430 = vld [vmem:[%s258 + $0xe4] sm:$0xf]
      %v431 = vld [vmem:[%s258 + $0xe8] sm:$0xf]
      %v432 = vld [vmem:[%s258 + $0xec] sm:$0xf]
      %v433 = vld [vmem:[%s258 + $0xf0] sm:$0xf]
      %v434 = vld [vmem:[%s258 + $0xf4] sm:$0xf]
      %v435 = vld [vmem:[%s258 + $0xf8] sm:$0xf]
      %v436 = vld [vmem:[%s258 + $0xfc] sm:$0xf]
      %v533 = vunpack.c.l.b16 %v277
      %v534 = vunpack.c.h.b16 %v277
      %v535 = vunpack.c.l.b16 %v278
      %v536 = vunpack.c.h.b16 %v278
      %v537 = vunpack.c.l.b16 %v279
      %v538 = vunpack.c.h.b16 %v279
      %v539 = vunpack.c.l.b16 %v280
      %v540 = vunpack.c.h.b16 %v280
      %v541 = vunpack.c.l.b16 %v281
      %v542 = vunpack.c.h.b16 %v281
      %v543 = vunpack.c.l.b16 %v282
      %v544 = vunpack.c.h.b16 %v282
      %v545 = vunpack.c.l.b16 %v283
      %v546 = vunpack.c.h.b16 %v283
      %v547 = vunpack.c.l.b16 %v284
      %v548 = vunpack.c.h.b16 %v284
      %v549 = vunpack.c.l.b16 %v285
      %v550 = vunpack.c.h.b16 %v285
      %v551 = vunpack.c.l.b16 %v286
      %v552 = vunpack.c.h.b16 %v286
      %v553 = vunpack.c.l.b16 %v287
      %v554 = vunpack.c.h.b16 %v287
      %v555 = vunpack.c.l.b16 %v288
      %v556 = vunpack.c.h.b16 %v288
      %v557 = vunpack.c.l.b16 %v289
      %v558 = vunpack.c.h.b16 %v289
      %v559 = vunpack.c.l.b16 %v290
      %v560 = vunpack.c.h.b16 %v290
      %v561 = vunpack.c.l.b16 %v291
      %v562 = vunpack.c.h.b16 %v291
      %v563 = vunpack.c.l.b16 %v292
      %v564 = vunpack.c.h.b16 %v292
      %v565 = vunpack.c.l.b16 %v293
      %v566 = vunpack.c.h.b16 %v293
      %v567 = vunpack.c.l.b16 %v294
      %v568 = vunpack.c.h.b16 %v294
      %v569 = vunpack.c.l.b16 %v295
      %v570 = vunpack.c.h.b16 %v295
      %v571 = vunpack.c.l.b16 %v296
      %v572 = vunpack.c.h.b16 %v296
      %v573 = vunpack.c.l.b16 %v297
      %v574 = vunpack.c.h.b16 %v297
      %v575 = vunpack.c.l.b16 %v298
      %v576 = vunpack.c.h.b16 %v298
      %v577 = vunpack.c.l.b16 %v299
      %v578 = vunpack.c.h.b16 %v299
      %v579 = vunpack.c.l.b16 %v300
      %v580 = vunpack.c.h.b16 %v300
      %v581 = vunpack.c.l.b16 %v301
      %v582 = vunpack.c.h.b16 %v301
      %v583 = vunpack.c.l.b16 %v302
      %v584 = vunpack.c.h.b16 %v302
      %v585 = vunpack.c.l.b16 %v303
      %v586 = vunpack.c.h.b16 %v303
      %v587 = vunpack.c.l.b16 %v304
      %v588 = vunpack.c.h.b16 %v304
      %v589 = vunpack.c.l.b16 %v305
      %v590 = vunpack.c.h.b16 %v305
      %v591 = vunpack.c.l.b16 %v306
      %v592 = vunpack.c.h.b16 %v306
      %v593 = vunpack.c.l.b16 %v307
      %v594 = vunpack.c.h.b16 %v307
      %v595 = vunpack.c.l.b16 %v308
      %v596 = vunpack.c.h.b16 %v308
      %v597 = vunpack.c.l.b16 %v309
      %v598 = vunpack.c.h.b16 %v309
      %v599 = vunpack.c.l.b16 %v310
      %v600 = vunpack.c.h.b16 %v310
      %v601 = vunpack.c.l.b16 %v311
      %v602 = vunpack.c.h.b16 %v311
      %v603 = vunpack.c.l.b16 %v312
      %v604 = vunpack.c.h.b16 %v312
      %v605 = vunpack.c.l.b16 %v313
      %v606 = vunpack.c.h.b16 %v313
      %v607 = vunpack.c.l.b16 %v314
      %v608 = vunpack.c.h.b16 %v314
      %v609 = vunpack.c.l.b16 %v315
      %v610 = vunpack.c.h.b16 %v315
      %v611 = vunpack.c.l.b16 %v316
      %v612 = vunpack.c.h.b16 %v316
      %v613 = vunpack.c.l.b16 %v317
      %v614 = vunpack.c.h.b16 %v317
      %v615 = vunpack.c.l.b16 %v318
      %v616 = vunpack.c.h.b16 %v318
      %v617 = vunpack.c.l.b16 %v319
      %v618 = vunpack.c.h.b16 %v319
      %v619 = vunpack.c.l.b16 %v320
      %v620 = vunpack.c.h.b16 %v320
      %v621 = vunpack.c.l.b16 %v321
      %v622 = vunpack.c.h.b16 %v321
      %v623 = vunpack.c.l.b16 %v322
      %v624 = vunpack.c.h.b16 %v322
      %v625 = vunpack.c.l.b16 %v323
      %v626 = vunpack.c.h.b16 %v323
      %v627 = vunpack.c.l.b16 %v324
      %v628 = vunpack.c.h.b16 %v324
      %v629 = vunpack.c.l.b16 %v325
      %v630 = vunpack.c.h.b16 %v325
      %v631 = vunpack.c.l.b16 %v326
      %v632 = vunpack.c.h.b16 %v326
      %v633 = vunpack.c.l.b16 %v327
      %v634 = vunpack.c.h.b16 %v327
      %v635 = vunpack.c.l.b16 %v328
      %v636 = vunpack.c.h.b16 %v328
      %v637 = vunpack.c.l.b16 %v329
      %v638 = vunpack.c.h.b16 %v329
      %v639 = vunpack.c.l.b16 %v330
      %v640 = vunpack.c.h.b16 %v330
      %v641 = vunpack.c.l.b16 %v331
      %v642 = vunpack.c.h.b16 %v331
      %v643 = vunpack.c.l.b16 %v332
      %v644 = vunpack.c.h.b16 %v332
      %v645 = vunpack.c.l.b16 %v333
      %v646 = vunpack.c.h.b16 %v333
      %v647 = vunpack.c.l.b16 %v334
      %v648 = vunpack.c.h.b16 %v334
      %v649 = vunpack.c.l.b16 %v335
      %v650 = vunpack.c.h.b16 %v335
      %v651 = vunpack.c.l.b16 %v336
      %v652 = vunpack.c.h.b16 %v336
      %v653 = vunpack.c.l.b16 %v337
      %v654 = vunpack.c.h.b16 %v337
      %v655 = vunpack.c.l.b16 %v338
      %v656 = vunpack.c.h.b16 %v338
      %v657 = vunpack.c.l.b16 %v339
      %v658 = vunpack.c.h.b16 %v339
      %v659 = vunpack.c.l.b16 %v340
      %v660 = vunpack.c.h.b16 %v340
      %v661 = vunpack.c.l.b16 %v341
      %v662 = vunpack.c.h.b16 %v341
      %v663 = vunpack.c.l.b16 %v342
      %v664 = vunpack.c.h.b16 %v342
      %v665 = vunpack.c.l.b16 %v343
      %v666 = vunpack.c.h.b16 %v343
      %v667 = vunpack.c.l.b16 %v344
      %v668 = vunpack.c.h.b16 %v344
      %v669 = vunpack.c.l.b16 %v345
      %v670 = vunpack.c.h.b16 %v345
      %v671 = vunpack.c.l.b16 %v346
      %v672 = vunpack.c.h.b16 %v346
      %v673 = vunpack.c.l.b16 %v347
      %v674 = vunpack.c.h.b16 %v347
      %v675 = vunpack.c.l.b16 %v348
      %v676 = vunpack.c.h.b16 %v348
      %v677 = vunpack.c.l.b16 %v349
      %v678 = vunpack.c.h.b16 %v349
      %v679 = vunpack.c.l.b16 %v350
      %v680 = vunpack.c.h.b16 %v350
      %v681 = vunpack.c.l.b16 %v351
      %v682 = vunpack.c.h.b16 %v351
      %v683 = vunpack.c.l.b16 %v352
      %v684 = vunpack.c.h.b16 %v352
      %v685 = vunpack.c.l.b16 %v353
      %v686 = vunpack.c.h.b16 %v353
      %v687 = vunpack.c.l.b16 %v354
      %v688 = vunpack.c.h.b16 %v354
      %v689 = vunpack.c.l.b16 %v355
      %v690 = vunpack.c.h.b16 %v355
      %v691 = vunpack.c.l.b16 %v356
      %v692 = vunpack.c.h.b16 %v356
      %v693 = vunpack.c.l.b16 %v357
      %v694 = vunpack.c.h.b16 %v357
      %v695 = vunpack.c.l.b16 %v358
      %v696 = vunpack.c.h.b16 %v358
      %v697 = vunpack.c.l.b16 %v359
      %v698 = vunpack.c.h.b16 %v359
      %v699 = vunpack.c.l.b16 %v360
      %v700 = vunpack.c.h.b16 %v360
      %v701 = vunpack.c.l.b16 %v361
      %v702 = vunpack.c.h.b16 %v361
      %v703 = vunpack.c.l.b16 %v362
      %v704 = vunpack.c.h.b16 %v362
      %v705 = vunpack.c.l.b16 %v363
      %v706 = vunpack.c.h.b16 %v363
      %v707 = vunpack.c.l.b16 %v364
      %v708 = vunpack.c.h.b16 %v364
      %v709 = vunpack.c.l.b16 %v365
      %v710 = vunpack.c.h.b16 %v365
      %v711 = vunpack.c.l.b16 %v366
      %v712 = vunpack.c.h.b16 %v366
      %v713 = vunpack.c.l.b16 %v367
      %v714 = vunpack.c.h.b16 %v367
      %v715 = vunpack.c.l.b16 %v368
      %v716 = vunpack.c.h.b16 %v368
      %v717 = vunpack.c.l.b16 %v369
      %v718 = vunpack.c.h.b16 %v369
      %v719 = vunpack.c.l.b16 %v370
      %v720 = vunpack.c.h.b16 %v370
      %v721 = vunpack.c.l.b16 %v371
      %v722 = vunpack.c.h.b16 %v371
      %v723 = vunpack.c.l.b16 %v372
      %v724 = vunpack.c.h.b16 %v372
      %v725 = vpack.c.b16 %v537, %v533
      %v726 = vpack.c.b16 %v538, %v534
      %v727 = vpack.c.b16 %v539, %v535
      %v728 = vpack.c.b16 %v540, %v536
      %v729 = vpack.c.b16 %v545, %v541
      %v730 = vpack.c.b16 %v546, %v542
      %v731 = vpack.c.b16 %v547, %v543
      %v732 = vpack.c.b16 %v548, %v544
      %v733 = vpack.c.b16 %v553, %v549
      %v734 = vpack.c.b16 %v554, %v550
      %v735 = vpack.c.b16 %v555, %v551
      %v736 = vpack.c.b16 %v556, %v552
      %v737 = vpack.c.b16 %v561, %v557
      %v738 = vpack.c.b16 %v562, %v558
      %v739 = vpack.c.b16 %v563, %v559
      %v740 = vpack.c.b16 %v564, %v560
      %v741 = vpack.c.b16 %v569, %v565
      %v742 = vpack.c.b16 %v570, %v566
      %v743 = vpack.c.b16 %v571, %v567
      %v744 = vpack.c.b16 %v572, %v568
      %v745 = vpack.c.b16 %v577, %v573
      %v746 = vpack.c.b16 %v578, %v574
      %v747 = vpack.c.b16 %v579, %v575
      %v748 = vpack.c.b16 %v580, %v576
      %v749 = vpack.c.b16 %v585, %v581
      %v750 = vpack.c.b16 %v586, %v582
      %v751 = vpack.c.b16 %v587, %v583
      %v752 = vpack.c.b16 %v588, %v584
      %v753 = vpack.c.b16 %v593, %v589
      %v754 = vpack.c.b16 %v594, %v590
      %v755 = vpack.c.b16 %v595, %v591
      %v756 = vpack.c.b16 %v596, %v592
      %v757 = vpack.c.b16 %v601, %v597
      %v758 = vpack.c.b16 %v602, %v598
      %v759 = vpack.c.b16 %v603, %v599
      %v760 = vpack.c.b16 %v604, %v600
      %v761 = vpack.c.b16 %v609, %v605
      %v762 = vpack.c.b16 %v610, %v606
      %v763 = vpack.c.b16 %v611, %v607
      %v764 = vpack.c.b16 %v612, %v608
      %v765 = vpack.c.b16 %v617, %v613
      %v766 = vpack.c.b16 %v618, %v614
      %v767 = vpack.c.b16 %v619, %v615
      %v768 = vpack.c.b16 %v620, %v616
      %v769 = vpack.c.b16 %v625, %v621
      %v770 = vpack.c.b16 %v626, %v622
      %v771 = vpack.c.b16 %v627, %v623
      %v772 = vpack.c.b16 %v628, %v624
      %v773 = vpack.c.b16 %v633, %v629
      %v774 = vpack.c.b16 %v634, %v630
      %v775 = vpack.c.b16 %v635, %v631
      %v776 = vpack.c.b16 %v636, %v632
      %v777 = vpack.c.b16 %v641, %v637
      %v778 = vpack.c.b16 %v642, %v638
      %v779 = vpack.c.b16 %v643, %v639
      %v780 = vpack.c.b16 %v644, %v640
      %v781 = vpack.c.b16 %v649, %v645
      %v782 = vpack.c.b16 %v650, %v646
      %v783 = vpack.c.b16 %v651, %v647
      %v784 = vpack.c.b16 %v652, %v648
      %v785 = vpack.c.b16 %v657, %v653
      %v786 = vpack.c.b16 %v658, %v654
      %v787 = vpack.c.b16 %v659, %v655
      %v788 = vpack.c.b16 %v660, %v656
      %v789 = vpack.c.b16 %v665, %v661
      %v790 = vpack.c.b16 %v666, %v662
      %v791 = vpack.c.b16 %v667, %v663
      %v792 = vpack.c.b16 %v668, %v664
      %v793 = vpack.c.b16 %v673, %v669
      %v794 = vpack.c.b16 %v674, %v670
      %v795 = vpack.c.b16 %v675, %v671
      %v796 = vpack.c.b16 %v676, %v672
      %v797 = vpack.c.b16 %v681, %v677
      %v798 = vpack.c.b16 %v682, %v678
      %v799 = vpack.c.b16 %v683, %v679
      %v800 = vpack.c.b16 %v684, %v680
      %v801 = vpack.c.b16 %v689, %v685
      %v802 = vpack.c.b16 %v690, %v686
      %v803 = vpack.c.b16 %v691, %v687
      %v804 = vpack.c.b16 %v692, %v688
      %v805 = vpack.c.b16 %v697, %v693
      %v806 = vpack.c.b16 %v698, %v694
      %v807 = vpack.c.b16 %v699, %v695
      %v808 = vpack.c.b16 %v700, %v696
      %v809 = vpack.c.b16 %v705, %v701
      %v810 = vpack.c.b16 %v706, %v702
      %v811 = vpack.c.b16 %v707, %v703
      %v812 = vpack.c.b16 %v708, %v704
      %v813 = vpack.c.b16 %v713, %v709
      %v814 = vpack.c.b16 %v714, %v710
      %v815 = vpack.c.b16 %v715, %v711
      %v816 = vpack.c.b16 %v716, %v712
      %v817 = vpack.c.b16 %v721, %v717
      %v818 = vpack.c.b16 %v722, %v718
      %v819 = vpack.c.b16 %v723, %v719
      %v820 = vpack.c.b16 %v724, %v720
      %v981 = vunpack.c.l.b16 %v373
      %v982 = vunpack.c.l.b16 %v374
      %v983 = vunpack.c.l.b16 %v375
      %v984 = vunpack.c.l.b16 %v376
      %v985 = vunpack.c.l.b16 %v377
      %v986 = vunpack.c.l.b16 %v378
      %v987 = vunpack.c.l.b16 %v379
      %v988 = vunpack.c.l.b16 %v380
      %v989 = vunpack.c.l.b16 %v381
      %v990 = vunpack.c.l.b16 %v382
      %v991 = vunpack.c.l.b16 %v383
      %v992 = vunpack.c.l.b16 %v384
      %v993 = vunpack.c.l.b16 %v385
      %v994 = vunpack.c.l.b16 %v386
      %v995 = vunpack.c.l.b16 %v387
      %v996 = vunpack.c.l.b16 %v388
      %v997 = vunpack.c.l.b16 %v389
      %v998 = vunpack.c.l.b16 %v390
      %v999 = vunpack.c.l.b16 %v391
      %v1000 = vunpack.c.l.b16 %v392
      %v1001 = vunpack.c.l.b16 %v393
      %v1002 = vunpack.c.l.b16 %v394
      %v1003 = vunpack.c.l.b16 %v395
      %v1004 = vunpack.c.l.b16 %v396
      %v1005 = vunpack.c.l.b16 %v397
      %v1006 = vunpack.c.l.b16 %v398
      %v1007 = vunpack.c.l.b16 %v399
      %v1008 = vunpack.c.l.b16 %v400
      %v1009 = vunpack.c.l.b16 %v401
      %v1010 = vunpack.c.l.b16 %v402
      %v1011 = vunpack.c.l.b16 %v403
      %v1012 = vunpack.c.l.b16 %v404
      %v1013 = vunpack.c.l.b16 %v405
      %v1014 = vunpack.c.l.b16 %v406
      %v1015 = vunpack.c.l.b16 %v407
      %v1016 = vunpack.c.l.b16 %v408
      %v1017 = vunpack.c.l.b16 %v409
      %v1018 = vunpack.c.l.b16 %v410
      %v1019 = vunpack.c.l.b16 %v411
      %v1020 = vunpack.c.l.b16 %v412
      %v1021 = vunpack.c.l.b16 %v413
      %v1022 = vunpack.c.l.b16 %v414
      %v1023 = vunpack.c.l.b16 %v415
      %v1024 = vunpack.c.l.b16 %v416
      %v1025 = vunpack.c.l.b16 %v417
      %v1026 = vunpack.c.l.b16 %v418
      %v1027 = vunpack.c.l.b16 %v419
      %v1028 = vunpack.c.l.b16 %v420
      %v1029 = vunpack.c.l.b16 %v421
      %v1030 = vunpack.c.l.b16 %v422
      %v1031 = vunpack.c.l.b16 %v423
      %v1032 = vunpack.c.l.b16 %v424
      %v1033 = vunpack.c.l.b16 %v425
      %v1034 = vunpack.c.l.b16 %v426
      %v1035 = vunpack.c.l.b16 %v427
      %v1036 = vunpack.c.l.b16 %v428
      %v1037 = vunpack.c.l.b16 %v429
      %v1038 = vunpack.c.l.b16 %v430
      %v1039 = vunpack.c.l.b16 %v431
      %v1040 = vunpack.c.l.b16 %v432
      %v1041 = vunpack.c.l.b16 %v433
      %v1042 = vunpack.c.l.b16 %v434
      %v1043 = vunpack.c.l.b16 %v435
      %v1044 = vunpack.c.l.b16 %v436
      %v1045 = vpack.c.b16 %v982, %v981
      %v1046 = vpack.c.b16 %v984, %v983
      %v1047 = vpack.c.b16 %v986, %v985
      %v1048 = vpack.c.b16 %v988, %v987
      %v1049 = vpack.c.b16 %v990, %v989
      %v1050 = vpack.c.b16 %v992, %v991
      %v1051 = vpack.c.b16 %v994, %v993
      %v1052 = vpack.c.b16 %v996, %v995
      %v1053 = vpack.c.b16 %v998, %v997
      %v1054 = vpack.c.b16 %v1000, %v999
      %v1055 = vpack.c.b16 %v1002, %v1001
      %v1056 = vpack.c.b16 %v1004, %v1003
      %v1057 = vpack.c.b16 %v1006, %v1005
      %v1058 = vpack.c.b16 %v1008, %v1007
      %v1059 = vpack.c.b16 %v1010, %v1009
      %v1060 = vpack.c.b16 %v1012, %v1011
      %v1061 = vpack.c.b16 %v1014, %v1013
      %v1062 = vpack.c.b16 %v1016, %v1015
      %v1063 = vpack.c.b16 %v1018, %v1017
      %v1064 = vpack.c.b16 %v1020, %v1019
      %v1065 = vpack.c.b16 %v1022, %v1021
      %v1066 = vpack.c.b16 %v1024, %v1023
      %v1067 = vpack.c.b16 %v1026, %v1025
      %v1068 = vpack.c.b16 %v1028, %v1027
      %v1069 = vpack.c.b16 %v1030, %v1029
      %v1070 = vpack.c.b16 %v1032, %v1031
      %v1071 = vpack.c.b16 %v1034, %v1033
      %v1072 = vpack.c.b16 %v1036, %v1035
      %v1073 = vpack.c.b16 %v1038, %v1037
      %v1074 = vpack.c.b16 %v1040, %v1039
      %v1075 = vpack.c.b16 %v1042, %v1041
      %v1076 = vpack.c.b16 %v1044, %v1043
      %1109 = vmatprep.subr.bf16.mxu0 0
      %1110 = vmatpush1.bf16.msra.mxu0 %v1052
      %1111 = vmatprep.subr.bf16.mxu0 0
      %1112 = vmatpush1.bf16.msra.mxu0 %v1051
      %1113 = vmatprep.subr.bf16.mxu0 0
      %1114 = vmatpush1.bf16.msra.mxu0 %v1050
      %1115 = vmatprep.subr.bf16.mxu0 0
      %1116 = vmatpush1.bf16.msra.mxu0 %v1049
      %1117 = vmatprep.subr.bf16.mxu0 0
      %1118 = vmatpush1.bf16.msra.mxu0 %v1048
      %1119 = vmatprep.subr.bf16.mxu0 0
      %1120 = vmatpush1.bf16.msra.mxu0 %v1047
      %1121 = vmatprep.subr.bf16.mxu0 0
      %1122 = vmatpush1.bf16.msra.mxu0 %v1046
      %1123 = vmatprep.subr.bf16.mxu0 0
      %1124 = vmatpush1.bf16.msra.mxu0 %v1045
      %1125 = vmatprep.subr.bf16.mxu0 0
      %1126 = vmatpush2.bf16.msra.mxu0 %v1060
      %1127 = vmatprep.subr.bf16.mxu0 0
      %1128 = vmatpush2.bf16.msra.mxu0 %v1059
      %1129 = vmatprep.subr.bf16.mxu0 0
      %1130 = vmatpush2.bf16.msra.mxu0 %v1058
      %1131 = vmatprep.subr.bf16.mxu0 0
      %1132 = vmatpush2.bf16.msra.mxu0 %v1057
      %1133 = vmatprep.subr.bf16.mxu0 0
      %1134 = vmatpush2.bf16.msra.mxu0 %v1056
      %1135 = vmatprep.subr.bf16.mxu0 0
      %1136 = vmatpush2.bf16.msra.mxu0 %v1055
      %1137 = vmatprep.subr.bf16.mxu0 0
      %1138 = vmatpush2.bf16.msra.mxu0 %v1054
      %1139 = vmatprep.subr.bf16.mxu0 0
      %1140 = vmatpush2.bf16.msra.mxu0 %v1053
      %1141 = vmatprep.mubr.bf16.mxu0 %v726
      %1142 = vmatmul.mubr.bf16.gmra.mxu0 %v725
      %v1143 = vpop.f32.mrf.mxu0
      %v1144 = vadd.f32 0.0, %v1143
      %v1145 = vpop.f32.mrf.mxu0
      %v1146 = vpop.f32.mrf.mxu0
      %v1147 = vadd.f32 0.0, %v1146
      %v1148 = vpop.f32.mrf.mxu0
      %1149 = vmatprep.mubr.bf16.mxu0 %v730
      %1150 = vmatmul.mubr.bf16.gmra.mxu0 %v729
      %v1151 = vpop.f32.mrf.mxu0
      %v1152 = vadd.f32 0.0, %v1151
      %v1153 = vpop.f32.mrf.mxu0
      %v1154 = vpop.f32.mrf.mxu0
      %v1155 = vadd.f32 0.0, %v1154
      %v1156 = vpop.f32.mrf.mxu0
      %1157 = vmatprep.mubr.bf16.mxu0 %v734
      %1158 = vmatmul.mubr.bf16.gmra.mxu0 %v733
      %v1159 = vpop.f32.mrf.mxu0
      %v1160 = vadd.f32 0.0, %v1159
      %v1161 = vpop.f32.mrf.mxu0
      %v1162 = vpop.f32.mrf.mxu0
      %v1163 = vadd.f32 0.0, %v1162
      %v1164 = vpop.f32.mrf.mxu0
      %1165 = vmatprep.mubr.bf16.mxu0 %v738
      %1166 = vmatmul.mubr.bf16.gmra.mxu0 %v737
      %v1167 = vpop.f32.mrf.mxu0
      %v1168 = vadd.f32 0.0, %v1167
      %v1169 = vpop.f32.mrf.mxu0
      %v1170 = vpop.f32.mrf.mxu0
      %v1171 = vadd.f32 0.0, %v1170
      %v1172 = vpop.f32.mrf.mxu0
      %1173 = vmatprep.mubr.bf16.mxu0 %v742
      %1174 = vmatmul.mubr.bf16.gmra.mxu0 %v741
      %v1175 = vpop.f32.mrf.mxu0
      %v1176 = vadd.f32 0.0, %v1175
      %v1177 = vpop.f32.mrf.mxu0
      %v1178 = vpop.f32.mrf.mxu0
      %v1179 = vadd.f32 0.0, %v1178
      %v1180 = vpop.f32.mrf.mxu0
      %1181 = vmatprep.mubr.bf16.mxu0 %v746
      %1182 = vmatmul.mubr.bf16.gmra.mxu0 %v745
      %v1183 = vpop.f32.mrf.mxu0
      %v1184 = vadd.f32 0.0, %v1183
      %v1185 = vpop.f32.mrf.mxu0
      %v1186 = vpop.f32.mrf.mxu0
      %v1187 = vadd.f32 0.0, %v1186
      %v1188 = vpop.f32.mrf.mxu0
      %1189 = vmatprep.mubr.bf16.mxu0 %v750
      %1190 = vmatmul.mubr.bf16.gmra.mxu0 %v749
      %v1191 = vpop.f32.mrf.mxu0
      %v1192 = vadd.f32 0.0, %v1191
      %v1193 = vpop.f32.mrf.mxu0
      %v1194 = vpop.f32.mrf.mxu0
      %v1195 = vadd.f32 0.0, %v1194
      %v1196 = vpop.f32.mrf.mxu0
      %1197 = vmatprep.mubr.bf16.mxu0 %v754
      %1198 = vmatmul.mubr.bf16.gmra.mxu0 %v753
      %v1199 = vpop.f32.mrf.mxu0
      %v1200 = vadd.f32 0.0, %v1199
      %v1201 = vpop.f32.mrf.mxu0
      %v1202 = vpop.f32.mrf.mxu0
      %v1203 = vadd.f32 0.0, %v1202
      %v1204 = vpop.f32.mrf.mxu0
      %1205 = vmatprep.mubr.bf16.mxu0 %v758
      %1206 = vmatmul.mubr.bf16.gmra.mxu0 %v757
      %v1207 = vpop.f32.mrf.mxu0
      %v1208 = vadd.f32 0.0, %v1207
      %v1209 = vpop.f32.mrf.mxu0
      %v1210 = vpop.f32.mrf.mxu0
      %v1211 = vadd.f32 0.0, %v1210
      %v1212 = vpop.f32.mrf.mxu0
      %1213 = vmatprep.mubr.bf16.mxu0 %v762
      %1214 = vmatmul.mubr.bf16.gmra.mxu0 %v761
      %v1215 = vpop.f32.mrf.mxu0
      %v1216 = vadd.f32 0.0, %v1215
      %v1217 = vpop.f32.mrf.mxu0
      %v1218 = vpop.f32.mrf.mxu0
      %v1219 = vadd.f32 0.0, %v1218
      %v1220 = vpop.f32.mrf.mxu0
      %1221 = vmatprep.mubr.bf16.mxu0 %v766
      %1222 = vmatmul.mubr.bf16.gmra.mxu0 %v765
      %v1223 = vpop.f32.mrf.mxu0
      %v1224 = vadd.f32 0.0, %v1223
      %v1225 = vpop.f32.mrf.mxu0
      %v1226 = vpop.f32.mrf.mxu0
      %v1227 = vadd.f32 0.0, %v1226
      %v1228 = vpop.f32.mrf.mxu0
      %1229 = vmatprep.mubr.bf16.mxu0 %v770
      %1230 = vmatmul.mubr.bf16.gmra.mxu0 %v769
      %v1231 = vpop.f32.mrf.mxu0
      %v1232 = vadd.f32 0.0, %v1231
      %v1233 = vpop.f32.mrf.mxu0
      %v1234 = vpop.f32.mrf.mxu0
      %v1235 = vadd.f32 0.0, %v1234
      %v1236 = vpop.f32.mrf.mxu0
      %1237 = vmatprep.mubr.bf16.mxu0 %v774
      %1238 = vmatmul.mubr.bf16.gmra.mxu0 %v773
      %v1239 = vpop.f32.mrf.mxu0
      %v1240 = vadd.f32 0.0, %v1239
      %v1241 = vpop.f32.mrf.mxu0
      %v1242 = vpop.f32.mrf.mxu0
      %v1243 = vadd.f32 0.0, %v1242
      %v1244 = vpop.f32.mrf.mxu0
      %1245 = vmatprep.mubr.bf16.mxu0 %v778
      %1246 = vmatmul.mubr.bf16.gmra.mxu0 %v777
      %v1247 = vpop.f32.mrf.mxu0
      %v1248 = vadd.f32 0.0, %v1247
      %v1249 = vpop.f32.mrf.mxu0
      %v1250 = vpop.f32.mrf.mxu0
      %v1251 = vadd.f32 0.0, %v1250
      %v1252 = vpop.f32.mrf.mxu0
      %1253 = vmatprep.mubr.bf16.mxu0 %v782
      %1254 = vmatmul.mubr.bf16.gmra.mxu0 %v781
      %v1255 = vpop.f32.mrf.mxu0
      %v1256 = vadd.f32 0.0, %v1255
      %v1257 = vpop.f32.mrf.mxu0
      %v1258 = vpop.f32.mrf.mxu0
      %v1259 = vadd.f32 0.0, %v1258
      %v1260 = vpop.f32.mrf.mxu0
      %1261 = vmatprep.mubr.bf16.mxu0 %v786
      %1262 = vmatmul.mubr.bf16.gmra.mxu0 %v785
      %v1263 = vpop.f32.mrf.mxu0
      %v1264 = vadd.f32 0.0, %v1263
      %v1265 = vpop.f32.mrf.mxu0
      %v1266 = vpop.f32.mrf.mxu0
      %v1267 = vadd.f32 0.0, %v1266
      %v1268 = vpop.f32.mrf.mxu0
      %1269 = vmatprep.mubr.bf16.mxu0 %v790
      %1270 = vmatmul.mubr.bf16.gmra.mxu0 %v789
      %v1271 = vpop.f32.mrf.mxu0
      %v1272 = vadd.f32 0.0, %v1271
      %v1273 = vpop.f32.mrf.mxu0
      %v1274 = vpop.f32.mrf.mxu0
      %v1275 = vadd.f32 0.0, %v1274
      %v1276 = vpop.f32.mrf.mxu0
      %1277 = vmatprep.mubr.bf16.mxu0 %v794
      %1278 = vmatmul.mubr.bf16.gmra.mxu0 %v793
      %v1279 = vpop.f32.mrf.mxu0
      %v1280 = vadd.f32 0.0, %v1279
      %v1281 = vpop.f32.mrf.mxu0
      %v1282 = vpop.f32.mrf.mxu0
      %v1283 = vadd.f32 0.0, %v1282
      %v1284 = vpop.f32.mrf.mxu0
      %1285 = vmatprep.mubr.bf16.mxu0 %v798
      %1286 = vmatmul.mubr.bf16.gmra.mxu0 %v797
      %v1287 = vpop.f32.mrf.mxu0
      %v1288 = vadd.f32 0.0, %v1287
      %v1289 = vpop.f32.mrf.mxu0
      %v1290 = vpop.f32.mrf.mxu0
      %v1291 = vadd.f32 0.0, %v1290
      %v1292 = vpop.f32.mrf.mxu0
      %1293 = vmatprep.mubr.bf16.mxu0 %v802
      %1294 = vmatmul.mubr.bf16.gmra.mxu0 %v801
      %v1295 = vpop.f32.mrf.mxu0
      %v1296 = vadd.f32 0.0, %v1295
      %v1297 = vpop.f32.mrf.mxu0
      %v1298 = vpop.f32.mrf.mxu0
      %v1299 = vadd.f32 0.0, %v1298
      %v1300 = vpop.f32.mrf.mxu0
      %1301 = vmatprep.mubr.bf16.mxu0 %v806
      %1302 = vmatmul.mubr.bf16.gmra.mxu0 %v805
      %v1303 = vpop.f32.mrf.mxu0
      %v1304 = vadd.f32 0.0, %v1303
      %v1305 = vpop.f32.mrf.mxu0
      %v1306 = vpop.f32.mrf.mxu0
      %v1307 = vadd.f32 0.0, %v1306
      %v1308 = vpop.f32.mrf.mxu0
      %1309 = vmatprep.mubr.bf16.mxu0 %v810
      %1310 = vmatmul.mubr.bf16.gmra.mxu0 %v809
      %v1311 = vpop.f32.mrf.mxu0
      %v1312 = vadd.f32 0.0, %v1311
      %v1313 = vpop.f32.mrf.mxu0
      %v1314 = vpop.f32.mrf.mxu0
      %v1315 = vadd.f32 0.0, %v1314
      %v1316 = vpop.f32.mrf.mxu0
      %1317 = vmatprep.mubr.bf16.mxu0 %v814
      %1318 = vmatmul.mubr.bf16.gmra.mxu0 %v813
      %v1319 = vpop.f32.mrf.mxu0
      %v1320 = vadd.f32 0.0, %v1319
      %v1321 = vpop.f32.mrf.mxu0
      %v1322 = vpop.f32.mrf.mxu0
      %v1323 = vadd.f32 0.0, %v1322
      %v1324 = vpop.f32.mrf.mxu0
      %1325 = vmatprep.mubr.bf16.mxu0 %v818
      %1326 = vmatmul.mubr.bf16.gmra.mxu0 %v817
      %v1327 = vpop.f32.mrf.mxu0
      %v1328 = vadd.f32 0.0, %v1327
      %v1329 = vpop.f32.mrf.mxu0
      %v1330 = vpop.f32.mrf.mxu0
      %v1331 = vadd.f32 0.0, %v1330
      %v1332 = vpop.f32.mrf.mxu0
      %1333 = vdwg.mxu0
      %1334 = vmatprep.subr.bf16.mxu0 0
      %1335 = vmatpush1.bf16.msra.mxu0 %v1068
      %1336 = vmatprep.subr.bf16.mxu0 0
      %1337 = vmatpush1.bf16.msra.mxu0 %v1067
      %1338 = vmatprep.subr.bf16.mxu0 0
      %1339 = vmatpush1.bf16.msra.mxu0 %v1066
      %1340 = vmatprep.subr.bf16.mxu0 0
      %1341 = vmatpush1.bf16.msra.mxu0 %v1065
      %1342 = vmatprep.subr.bf16.mxu0 0
      %1343 = vmatpush1.bf16.msra.mxu0 %v1064
      %1344 = vmatprep.subr.bf16.mxu0 0
      %1345 = vmatpush1.bf16.msra.mxu0 %v1063
      %1346 = vmatprep.subr.bf16.mxu0 0
      %1347 = vmatpush1.bf16.msra.mxu0 %v1062
      %1348 = vmatprep.subr.bf16.mxu0 0
      %1349 = vmatpush1.bf16.msra.mxu0 %v1061
      %1350 = vmatprep.subr.bf16.mxu0 0
      %1351 = vmatpush2.bf16.msra.mxu0 %v1076
      %1352 = vmatprep.subr.bf16.mxu0 0
      %1353 = vmatpush2.bf16.msra.mxu0 %v1075
      %1354 = vmatprep.subr.bf16.mxu0 0
      %1355 = vmatpush2.bf16.msra.mxu0 %v1074
      %1356 = vmatprep.subr.bf16.mxu0 0
      %1357 = vmatpush2.bf16.msra.mxu0 %v1073
      %1358 = vmatprep.subr.bf16.mxu0 0
      %1359 = vmatpush2.bf16.msra.mxu0 %v1072
      %1360 = vmatprep.subr.bf16.mxu0 0
      %1361 = vmatpush2.bf16.msra.mxu0 %v1071
      %1362 = vmatprep.subr.bf16.mxu0 0
      %1363 = vmatpush2.bf16.msra.mxu0 %v1070
      %1364 = vmatprep.subr.bf16.mxu0 0
      %1365 = vmatpush2.bf16.msra.mxu0 %v1069
      %1366 = vmatprep.mubr.bf16.mxu0 %v728
      %1367 = vmatmul.mubr.bf16.gmra.mxu0 %v727
      %v1368 = vpop.f32.mrf.mxu0
      %v1369 = vadd.f32 %v1144, %v1368
      %v1370 = vpop.f32.mrf.mxu0
      %v1371 = vpop.f32.mrf.mxu0
      %v1372 = vadd.f32 %v1147, %v1371
      %v1373 = vpop.f32.mrf.mxu0
      %1374 = vmatprep.mubr.bf16.mxu0 %v732
      %1375 = vmatmul.mubr.bf16.gmra.mxu0 %v731
      %v1376 = vpop.f32.mrf.mxu0
      %v1377 = vadd.f32 %v1152, %v1376
      %v1378 = vpop.f32.mrf.mxu0
      %v1379 = vpop.f32.mrf.mxu0
      %v1380 = vadd.f32 %v1155, %v1379
      %v1381 = vpop.f32.mrf.mxu0
      %1382 = vmatprep.mubr.bf16.mxu0 %v736
      %1383 = vmatmul.mubr.bf16.gmra.mxu0 %v735
      %v1384 = vpop.f32.mrf.mxu0
      %v1385 = vadd.f32 %v1160, %v1384
      %v1386 = vpop.f32.mrf.mxu0
      %v1387 = vpop.f32.mrf.mxu0
      %v1388 = vadd.f32 %v1163, %v1387
      %v1389 = vpop.f32.mrf.mxu0
      %1390 = vmatprep.mubr.bf16.mxu0 %v740
      %1391 = vmatmul.mubr.bf16.gmra.mxu0 %v739
      %v1392 = vpop.f32.mrf.mxu0
      %v1393 = vadd.f32 %v1168, %v1392
      %v1394 = vpop.f32.mrf.mxu0
      %v1395 = vpop.f32.mrf.mxu0
      %v1396 = vadd.f32 %v1171, %v1395
      %v1397 = vpop.f32.mrf.mxu0
      %1398 = vmatprep.mubr.bf16.mxu0 %v744
      %1399 = vmatmul.mubr.bf16.gmra.mxu0 %v743
      %v1400 = vpop.f32.mrf.mxu0
      %v1401 = vadd.f32 %v1176, %v1400
      %v1402 = vpop.f32.mrf.mxu0
      %v1403 = vpop.f32.mrf.mxu0
      %v1404 = vadd.f32 %v1179, %v1403
      %v1405 = vpop.f32.mrf.mxu0
      %1406 = vmatprep.mubr.bf16.mxu0 %v748
      %1407 = vmatmul.mubr.bf16.gmra.mxu0 %v747
      %v1408 = vpop.f32.mrf.mxu0
      %v1409 = vadd.f32 %v1184, %v1408
      %v1410 = vpop.f32.mrf.mxu0
      %v1411 = vpop.f32.mrf.mxu0
      %v1412 = vadd.f32 %v1187, %v1411
      %v1413 = vpop.f32.mrf.mxu0
      %1414 = vmatprep.mubr.bf16.mxu0 %v752
      %1415 = vmatmul.mubr.bf16.gmra.mxu0 %v751
      %v1416 = vpop.f32.mrf.mxu0
      %v1417 = vadd.f32 %v1192, %v1416
      %v1418 = vpop.f32.mrf.mxu0
      %v1419 = vpop.f32.mrf.mxu0
      %v1420 = vadd.f32 %v1195, %v1419
      %v1421 = vpop.f32.mrf.mxu0
      %1422 = vmatprep.mubr.bf16.mxu0 %v756
      %1423 = vmatmul.mubr.bf16.gmra.mxu0 %v755
      %v1424 = vpop.f32.mrf.mxu0
      %v1425 = vadd.f32 %v1200, %v1424
      %v1426 = vpop.f32.mrf.mxu0
      %v1427 = vpop.f32.mrf.mxu0
      %v1428 = vadd.f32 %v1203, %v1427
      %v1429 = vpop.f32.mrf.mxu0
      %1430 = vmatprep.mubr.bf16.mxu0 %v760
      %1431 = vmatmul.mubr.bf16.gmra.mxu0 %v759
      %v1432 = vpop.f32.mrf.mxu0
      %v1433 = vadd.f32 %v1208, %v1432
      %v1434 = vpop.f32.mrf.mxu0
      %v1435 = vpop.f32.mrf.mxu0
      %v1436 = vadd.f32 %v1211, %v1435
      %v1437 = vpop.f32.mrf.mxu0
      %1438 = vmatprep.mubr.bf16.mxu0 %v764
      %1439 = vmatmul.mubr.bf16.gmra.mxu0 %v763
      %v1440 = vpop.f32.mrf.mxu0
      %v1441 = vadd.f32 %v1216, %v1440
      %v1442 = vpop.f32.mrf.mxu0
      %v1443 = vpop.f32.mrf.mxu0
      %v1444 = vadd.f32 %v1219, %v1443
      %v1445 = vpop.f32.mrf.mxu0
      %1446 = vmatprep.mubr.bf16.mxu0 %v768
      %1447 = vmatmul.mubr.bf16.gmra.mxu0 %v767
      %v1448 = vpop.f32.mrf.mxu0
      %v1449 = vadd.f32 %v1224, %v1448
      %v1450 = vpop.f32.mrf.mxu0
      %v1451 = vpop.f32.mrf.mxu0
      %v1452 = vadd.f32 %v1227, %v1451
      %v1453 = vpop.f32.mrf.mxu0
      %1454 = vmatprep.mubr.bf16.mxu0 %v772
      %1455 = vmatmul.mubr.bf16.gmra.mxu0 %v771
      %v1456 = vpop.f32.mrf.mxu0
      %v1457 = vadd.f32 %v1232, %v1456
      %v1458 = vpop.f32.mrf.mxu0
      %v1459 = vpop.f32.mrf.mxu0
      %v1460 = vadd.f32 %v1235, %v1459
      %v1461 = vpop.f32.mrf.mxu0
      %1462 = vmatprep.mubr.bf16.mxu0 %v776
      %1463 = vmatmul.mubr.bf16.gmra.mxu0 %v775
      %v1464 = vpop.f32.mrf.mxu0
      %v1465 = vadd.f32 %v1240, %v1464
      %v1466 = vpop.f32.mrf.mxu0
      %v1467 = vpop.f32.mrf.mxu0
      %v1468 = vadd.f32 %v1243, %v1467
      %v1469 = vpop.f32.mrf.mxu0
      %1470 = vmatprep.mubr.bf16.mxu0 %v780
      %1471 = vmatmul.mubr.bf16.gmra.mxu0 %v779
      %v1472 = vpop.f32.mrf.mxu0
      %v1473 = vadd.f32 %v1248, %v1472
      %v1474 = vpop.f32.mrf.mxu0
      %v1475 = vpop.f32.mrf.mxu0
      %v1476 = vadd.f32 %v1251, %v1475
      %v1477 = vpop.f32.mrf.mxu0
      %1478 = vmatprep.mubr.bf16.mxu0 %v784
      %1479 = vmatmul.mubr.bf16.gmra.mxu0 %v783
      %v1480 = vpop.f32.mrf.mxu0
      %v1481 = vadd.f32 %v1256, %v1480
      %v1482 = vpop.f32.mrf.mxu0
      %v1483 = vpop.f32.mrf.mxu0
      %v1484 = vadd.f32 %v1259, %v1483
      %v1485 = vpop.f32.mrf.mxu0
      %1486 = vmatprep.mubr.bf16.mxu0 %v788
      %1487 = vmatmul.mubr.bf16.gmra.mxu0 %v787
      %v1488 = vpop.f32.mrf.mxu0
      %v1489 = vadd.f32 %v1264, %v1488
      %v1490 = vpop.f32.mrf.mxu0
      %v1491 = vpop.f32.mrf.mxu0
      %v1492 = vadd.f32 %v1267, %v1491
      %v1493 = vpop.f32.mrf.mxu0
      %1494 = vmatprep.mubr.bf16.mxu0 %v792
      %1495 = vmatmul.mubr.bf16.gmra.mxu0 %v791
      %v1496 = vpop.f32.mrf.mxu0
      %v1497 = vadd.f32 %v1272, %v1496
      %v1498 = vpop.f32.mrf.mxu0
      %v1499 = vpop.f32.mrf.mxu0
      %v1500 = vadd.f32 %v1275, %v1499
      %v1501 = vpop.f32.mrf.mxu0
      %1502 = vmatprep.mubr.bf16.mxu0 %v796
      %1503 = vmatmul.mubr.bf16.gmra.mxu0 %v795
      %v1504 = vpop.f32.mrf.mxu0
      %v1505 = vadd.f32 %v1280, %v1504
      %v1506 = vpop.f32.mrf.mxu0
      %v1507 = vpop.f32.mrf.mxu0
      %v1508 = vadd.f32 %v1283, %v1507
      %v1509 = vpop.f32.mrf.mxu0
      %1510 = vmatprep.mubr.bf16.mxu0 %v800
      %1511 = vmatmul.mubr.bf16.gmra.mxu0 %v799
      %v1512 = vpop.f32.mrf.mxu0
      %v1513 = vadd.f32 %v1288, %v1512
      %v1514 = vpop.f32.mrf.mxu0
      %v1515 = vpop.f32.mrf.mxu0
      %v1516 = vadd.f32 %v1291, %v1515
      %v1517 = vpop.f32.mrf.mxu0
      %1518 = vmatprep.mubr.bf16.mxu0 %v804
      %1519 = vmatmul.mubr.bf16.gmra.mxu0 %v803
      %v1520 = vpop.f32.mrf.mxu0
      %v1521 = vadd.f32 %v1296, %v1520
      %v1522 = vpop.f32.mrf.mxu0
      %v1523 = vpop.f32.mrf.mxu0
      %v1524 = vadd.f32 %v1299, %v1523
      %v1525 = vpop.f32.mrf.mxu0
      %1526 = vmatprep.mubr.bf16.mxu0 %v808
      %1527 = vmatmul.mubr.bf16.gmra.mxu0 %v807
      %v1528 = vpop.f32.mrf.mxu0
      %v1529 = vadd.f32 %v1304, %v1528
      %v1530 = vpop.f32.mrf.mxu0
      %v1531 = vpop.f32.mrf.mxu0
      %v1532 = vadd.f32 %v1307, %v1531
      %v1533 = vpop.f32.mrf.mxu0
      %1534 = vmatprep.mubr.bf16.mxu0 %v812
      %1535 = vmatmul.mubr.bf16.gmra.mxu0 %v811
      %v1536 = vpop.f32.mrf.mxu0
      %v1537 = vadd.f32 %v1312, %v1536
      %v1538 = vpop.f32.mrf.mxu0
      %v1539 = vpop.f32.mrf.mxu0
      %v1540 = vadd.f32 %v1315, %v1539
      %v1541 = vpop.f32.mrf.mxu0
      %1542 = vmatprep.mubr.bf16.mxu0 %v816
      %1543 = vmatmul.mubr.bf16.gmra.mxu0 %v815
      %v1544 = vpop.f32.mrf.mxu0
      %v1545 = vadd.f32 %v1320, %v1544
      %v1546 = vpop.f32.mrf.mxu0
      %v1547 = vpop.f32.mrf.mxu0
      %v1548 = vadd.f32 %v1323, %v1547
      %v1549 = vpop.f32.mrf.mxu0
      %1550 = vmatprep.mubr.bf16.mxu0 %v820
      %1551 = vmatmul.mubr.bf16.gmra.mxu0 %v819
      %v1552 = vpop.f32.mrf.mxu0
      %v1553 = vadd.f32 %v1328, %v1552
      %v1554 = vpop.f32.mrf.mxu0
      %v1555 = vpop.f32.mrf.mxu0
      %v1556 = vadd.f32 %v1331, %v1555
      %v1557 = vpop.f32.mrf.mxu0
      %1558 = vdwg.mxu0
      %v1559 = vld [vmem:[%s262] sm:$0x1]
      %v1560 = vlaneseq
      %v1561 = vshrl.u32 %v1560, 7
      %v1562 = vsub.s32 0, %v1561
      %v1563 = vrot.slane %v1559, %v1562
      %v1564 = vmul.f32 %v1369, %v1563
      %v1565 = vmul.f32 %v1372, %v1563
      %v1566 = vmul.f32 %v1377, %v1563
      %v1567 = vmul.f32 %v1380, %v1563
      %v1568 = vmul.f32 %v1385, %v1563
      %v1569 = vmul.f32 %v1388, %v1563
      %v1570 = vmul.f32 %v1393, %v1563
      %v1571 = vmul.f32 %v1396, %v1563
      %v1572 = vmul.f32 %v1401, %v1563
      %v1573 = vmul.f32 %v1404, %v1563
      %v1574 = vmul.f32 %v1409, %v1563
      %v1575 = vmul.f32 %v1412, %v1563
      %v1576 = vmul.f32 %v1417, %v1563
      %v1577 = vmul.f32 %v1420, %v1563
      %v1578 = vmul.f32 %v1425, %v1563
      %v1579 = vmul.f32 %v1428, %v1563
      %v1580 = vmul.f32 %v1433, %v1563
      %v1581 = vmul.f32 %v1436, %v1563
      %v1582 = vmul.f32 %v1441, %v1563
      %v1583 = vmul.f32 %v1444, %v1563
      %v1584 = vmul.f32 %v1449, %v1563
      %v1585 = vmul.f32 %v1452, %v1563
      %v1586 = vmul.f32 %v1457, %v1563
      %v1587 = vmul.f32 %v1460, %v1563
      %v1588 = vmul.f32 %v1465, %v1563
      %v1589 = vmul.f32 %v1468, %v1563
      %v1590 = vmul.f32 %v1473, %v1563
      %v1591 = vmul.f32 %v1476, %v1563
      %v1592 = vmul.f32 %v1481, %v1563
      %v1593 = vmul.f32 %v1484, %v1563
      %v1594 = vmul.f32 %v1489, %v1563
      %v1595 = vmul.f32 %v1492, %v1563
      %v1596 = vmul.f32 %v1497, %v1563
      %v1597 = vmul.f32 %v1500, %v1563
      %v1598 = vmul.f32 %v1505, %v1563
      %v1599 = vmul.f32 %v1508, %v1563
      %v1600 = vmul.f32 %v1513, %v1563
      %v1601 = vmul.f32 %v1516, %v1563
      %v1602 = vmul.f32 %v1521, %v1563
      %v1603 = vmul.f32 %v1524, %v1563
      %v1604 = vmul.f32 %v1529, %v1563
      %v1605 = vmul.f32 %v1532, %v1563
      %v1606 = vmul.f32 %v1537, %v1563
      %v1607 = vmul.f32 %v1540, %v1563
      %v1608 = vmul.f32 %v1545, %v1563
      %v1609 = vmul.f32 %v1548, %v1563
      %v1610 = vmul.f32 %v1553, %v1563
      %v1611 = vmul.f32 %v1556, %v1563
      %v1612 = vld [vmem:[%s262 + $0x1] sm:$0x1]
      %v1613 = vlaneseq
      %v1614 = vshrl.u32 %v1613, 7
      %v1615 = vsub.s32 0, %v1614
      %v1616 = vrot.slane %v1612, %v1615
      %v1617 = vadd.f32 %v1564, %v1616
      %v1618 = vadd.f32 %v1565, %v1616
      %v1619 = vadd.f32 %v1566, %v1616
      %v1620 = vadd.f32 %v1567, %v1616
      %v1621 = vadd.f32 %v1568, %v1616
      %v1622 = vadd.f32 %v1569, %v1616
      %v1623 = vadd.f32 %v1570, %v1616
      %v1624 = vadd.f32 %v1571, %v1616
      %v1625 = vadd.f32 %v1572, %v1616
      %v1626 = vadd.f32 %v1573, %v1616
      %v1627 = vadd.f32 %v1574, %v1616
      %v1628 = vadd.f32 %v1575, %v1616
      %v1629 = vadd.f32 %v1576, %v1616
      %v1630 = vadd.f32 %v1577, %v1616
      %v1631 = vadd.f32 %v1578, %v1616
      %v1632 = vadd.f32 %v1579, %v1616
      %v1633 = vadd.f32 %v1580, %v1616
      %v1634 = vadd.f32 %v1581, %v1616
      %v1635 = vadd.f32 %v1582, %v1616
      %v1636 = vadd.f32 %v1583, %v1616
      %v1637 = vadd.f32 %v1584, %v1616
      %v1638 = vadd.f32 %v1585, %v1616
      %v1639 = vadd.f32 %v1586, %v1616
      %v1640 = vadd.f32 %v1587, %v1616
      %v1641 = vadd.f32 %v1588, %v1616
      %v1642 = vadd.f32 %v1589, %v1616
      %v1643 = vadd.f32 %v1590, %v1616
      %v1644 = vadd.f32 %v1591, %v1616
      %v1645 = vadd.f32 %v1592, %v1616
      %v1646 = vadd.f32 %v1593, %v1616
      %v1647 = vadd.f32 %v1594, %v1616
      %v1648 = vadd.f32 %v1595, %v1616
      %v1649 = vadd.f32 %v1596, %v1616
      %v1650 = vadd.f32 %v1597, %v1616
      %v1651 = vadd.f32 %v1598, %v1616
      %v1652 = vadd.f32 %v1599, %v1616
      %v1653 = vadd.f32 %v1600, %v1616
      %v1654 = vadd.f32 %v1601, %v1616
      %v1655 = vadd.f32 %v1602, %v1616
      %v1656 = vadd.f32 %v1603, %v1616
      %v1657 = vadd.f32 %v1604, %v1616
      %v1658 = vadd.f32 %v1605, %v1616
      %v1659 = vadd.f32 %v1606, %v1616
      %v1660 = vadd.f32 %v1607, %v1616
      %v1661 = vadd.f32 %v1608, %v1616
      %v1662 = vadd.f32 %v1609, %v1616
      %v1663 = vadd.f32 %v1610, %v1616
      %v1664 = vadd.f32 %v1611, %v1616
      %v1665 = vmax.f32 %v1617, 0.0
      %v1666 = vmax.f32 %v1618, 0.0
      %v1667 = vmax.f32 %v1619, 0.0
      %v1668 = vmax.f32 %v1620, 0.0
      %v1669 = vmax.f32 %v1621, 0.0
      %v1670 = vmax.f32 %v1622, 0.0
      %v1671 = vmax.f32 %v1623, 0.0
      %v1672 = vmax.f32 %v1624, 0.0
      %v1673 = vmax.f32 %v1625, 0.0
      %v1674 = vmax.f32 %v1626, 0.0
      %v1675 = vmax.f32 %v1627, 0.0
      %v1676 = vmax.f32 %v1628, 0.0
      %v1677 = vmax.f32 %v1629, 0.0
      %v1678 = vmax.f32 %v1630, 0.0
      %v1679 = vmax.f32 %v1631, 0.0
      %v1680 = vmax.f32 %v1632, 0.0
      %v1681 = vmax.f32 %v1633, 0.0
      %v1682 = vmax.f32 %v1634, 0.0
      %v1683 = vmax.f32 %v1635, 0.0
      %v1684 = vmax.f32 %v1636, 0.0
      %v1685 = vmax.f32 %v1637, 0.0
      %v1686 = vmax.f32 %v1638, 0.0
      %v1687 = vmax.f32 %v1639, 0.0
      %v1688 = vmax.f32 %v1640, 0.0
      %v1689 = vmax.f32 %v1641, 0.0
      %v1690 = vmax.f32 %v1642, 0.0
      %v1691 = vmax.f32 %v1643, 0.0
      %v1692 = vmax.f32 %v1644, 0.0
      %v1693 = vmax.f32 %v1645, 0.0
      %v1694 = vmax.f32 %v1646, 0.0
      %v1695 = vmax.f32 %v1647, 0.0
      %v1696 = vmax.f32 %v1648, 0.0
      %v1697 = vmax.f32 %v1649, 0.0
      %v1698 = vmax.f32 %v1650, 0.0
      %v1699 = vmax.f32 %v1651, 0.0
      %v1700 = vmax.f32 %v1652, 0.0
      %v1701 = vmax.f32 %v1653, 0.0
      %v1702 = vmax.f32 %v1654, 0.0
      %v1703 = vmax.f32 %v1655, 0.0
      %v1704 = vmax.f32 %v1656, 0.0
      %v1705 = vmax.f32 %v1657, 0.0
      %v1706 = vmax.f32 %v1658, 0.0
      %v1707 = vmax.f32 %v1659, 0.0
      %v1708 = vmax.f32 %v1660, 0.0
      %v1709 = vmax.f32 %v1661, 0.0
      %v1710 = vmax.f32 %v1662, 0.0
      %v1711 = vmax.f32 %v1663, 0.0
      %v1712 = vmax.f32 %v1664, 0.0
      %v1713 = vpack.c.bf16 %v1666, %v1665
      %v1714 = vpack.c.bf16 %v1668, %v1667
      %v1715 = vpack.c.bf16 %v1670, %v1669
      %v1716 = vpack.c.bf16 %v1672, %v1671
      %v1717 = vpack.c.bf16 %v1674, %v1673
      %v1718 = vpack.c.bf16 %v1676, %v1675
      %v1719 = vpack.c.bf16 %v1678, %v1677
      %v1720 = vpack.c.bf16 %v1680, %v1679
      %v1721 = vpack.c.bf16 %v1682, %v1681
      %v1722 = vpack.c.bf16 %v1684, %v1683
      %v1723 = vpack.c.bf16 %v1686, %v1685
      %v1724 = vpack.c.bf16 %v1688, %v1687
      %v1725 = vpack.c.bf16 %v1690, %v1689
      %v1726 = vpack.c.bf16 %v1692, %v1691
      %v1727 = vpack.c.bf16 %v1694, %v1693
      %v1728 = vpack.c.bf16 %v1696, %v1695
      %v1729 = vpack.c.bf16 %v1698, %v1697
      %v1730 = vpack.c.bf16 %v1700, %v1699
      %v1731 = vpack.c.bf16 %v1702, %v1701
      %v1732 = vpack.c.bf16 %v1704, %v1703
      %v1733 = vpack.c.bf16 %v1706, %v1705
      %v1734 = vpack.c.bf16 %v1708, %v1707
      %v1735 = vpack.c.bf16 %v1710, %v1709
      %v1736 = vpack.c.bf16 %v1712, %v1711
      %v1761 = vunpack.c.l.b16 %v1713
      %v1762 = vunpack.c.h.b16 %v1713
      %v1763 = vunpack.c.l.b16 %v1714
      %v1764 = vunpack.c.h.b16 %v1714
      %v1765 = vunpack.c.l.b16 %v1715
      %v1766 = vunpack.c.h.b16 %v1715
      %v1767 = vunpack.c.l.b16 %v1716
      %v1768 = vunpack.c.h.b16 %v1716
      %v1769 = vunpack.c.l.b16 %v1717
      %v1770 = vunpack.c.h.b16 %v1717
      %v1771 = vunpack.c.l.b16 %v1718
      %v1772 = vunpack.c.h.b16 %v1718
      %v1773 = vunpack.c.l.b16 %v1719
      %v1774 = vunpack.c.h.b16 %v1719
      %v1775 = vunpack.c.l.b16 %v1720
      %v1776 = vunpack.c.h.b16 %v1720
      %v1777 = vunpack.c.l.b16 %v1721
      %v1778 = vunpack.c.h.b16 %v1721
      %v1779 = vunpack.c.l.b16 %v1722
      %v1780 = vunpack.c.h.b16 %v1722
      %v1781 = vunpack.c.l.b16 %v1723
      %v1782 = vunpack.c.h.b16 %v1723
      %v1783 = vunpack.c.l.b16 %v1724
      %v1784 = vunpack.c.h.b16 %v1724
      %v1785 = vunpack.c.l.b16 %v1725
      %v1786 = vunpack.c.h.b16 %v1725
      %v1787 = vunpack.c.l.b16 %v1726
      %v1788 = vunpack.c.h.b16 %v1726
      %v1789 = vunpack.c.l.b16 %v1727
      %v1790 = vunpack.c.h.b16 %v1727
      %v1791 = vunpack.c.l.b16 %v1728
      %v1792 = vunpack.c.h.b16 %v1728
      %v1793 = vunpack.c.l.b16 %v1729
      %v1794 = vunpack.c.h.b16 %v1729
      %v1795 = vunpack.c.l.b16 %v1730
      %v1796 = vunpack.c.h.b16 %v1730
      %v1797 = vunpack.c.l.b16 %v1731
      %v1798 = vunpack.c.h.b16 %v1731
      %v1799 = vunpack.c.l.b16 %v1732
      %v1800 = vunpack.c.h.b16 %v1732
      %v1801 = vunpack.c.l.b16 %v1733
      %v1802 = vunpack.c.h.b16 %v1733
      %v1803 = vunpack.c.l.b16 %v1734
      %v1804 = vunpack.c.h.b16 %v1734
      %v1805 = vunpack.c.l.b16 %v1735
      %v1806 = vunpack.c.h.b16 %v1735
      %v1807 = vunpack.c.l.b16 %v1736
      %v1808 = vunpack.c.h.b16 %v1736
      %v1809 = vpack.c.b16 %v1761, %v1761
      %v1810 = vpack.c.b16 %v1762, %v1762
      %v1811 = vpack.c.b16 %v1763, %v1763
      %v1812 = vpack.c.b16 %v1764, %v1764
      %v1813 = vpack.c.b16 %v1765, %v1765
      %v1814 = vpack.c.b16 %v1766, %v1766
      %v1815 = vpack.c.b16 %v1767, %v1767
      %v1816 = vpack.c.b16 %v1768, %v1768
      %v1817 = vpack.c.b16 %v1769, %v1769
      %v1818 = vpack.c.b16 %v1770, %v1770
      %v1819 = vpack.c.b16 %v1771, %v1771
      %v1820 = vpack.c.b16 %v1772, %v1772
      %v1821 = vpack.c.b16 %v1773, %v1773
      %v1822 = vpack.c.b16 %v1774, %v1774
      %v1823 = vpack.c.b16 %v1775, %v1775
      %v1824 = vpack.c.b16 %v1776, %v1776
      %v1825 = vpack.c.b16 %v1777, %v1777
      %v1826 = vpack.c.b16 %v1778, %v1778
      %v1827 = vpack.c.b16 %v1779, %v1779
      %v1828 = vpack.c.b16 %v1780, %v1780
      %v1829 = vpack.c.b16 %v1781, %v1781
      %v1830 = vpack.c.b16 %v1782, %v1782
      %v1831 = vpack.c.b16 %v1783, %v1783
      %v1832 = vpack.c.b16 %v1784, %v1784
      %v1833 = vpack.c.b16 %v1785, %v1785
      %v1834 = vpack.c.b16 %v1786, %v1786
      %v1835 = vpack.c.b16 %v1787, %v1787
      %v1836 = vpack.c.b16 %v1788, %v1788
      %v1837 = vpack.c.b16 %v1789, %v1789
      %v1838 = vpack.c.b16 %v1790, %v1790
      %v1839 = vpack.c.b16 %v1791, %v1791
      %v1840 = vpack.c.b16 %v1792, %v1792
      %v1841 = vpack.c.b16 %v1793, %v1793
      %v1842 = vpack.c.b16 %v1794, %v1794
      %v1843 = vpack.c.b16 %v1795, %v1795
      %v1844 = vpack.c.b16 %v1796, %v1796
      %v1845 = vpack.c.b16 %v1797, %v1797
      %v1846 = vpack.c.b16 %v1798, %v1798
      %v1847 = vpack.c.b16 %v1799, %v1799
      %v1848 = vpack.c.b16 %v1800, %v1800
      %v1849 = vpack.c.b16 %v1801, %v1801
      %v1850 = vpack.c.b16 %v1802, %v1802
      %v1851 = vpack.c.b16 %v1803, %v1803
      %v1852 = vpack.c.b16 %v1804, %v1804
      %v1853 = vpack.c.b16 %v1805, %v1805
      %v1854 = vpack.c.b16 %v1806, %v1806
      %v1855 = vpack.c.b16 %v1807, %v1807
      %v1856 = vpack.c.b16 %v1808, %v1808
      %1905 = vst [vmem:[%s274] sm:$0xf] %v1809
      %1906 = vst [vmem:[%s274 + $0x4] sm:$0xf] %v1810
      %1907 = vst [vmem:[%s274 + $0x8] sm:$0xf] %v1811
      %1908 = vst [vmem:[%s274 + $0xc] sm:$0xf] %v1812
      %1909 = vst [vmem:[%s274 + $0x10] sm:$0xf] %v1813
      %1910 = vst [vmem:[%s274 + $0x14] sm:$0xf] %v1814
      %1911 = vst [vmem:[%s274 + $0x18] sm:$0xf] %v1815
      %1912 = vst [vmem:[%s274 + $0x1c] sm:$0xf] %v1816
      %1913 = vst [vmem:[%s274 + $0x20] sm:$0xf] %v1817
      %1914 = vst [vmem:[%s274 + $0x24] sm:$0xf] %v1818
      %1915 = vst [vmem:[%s274 + $0x28] sm:$0xf] %v1819
      %1916 = vst [vmem:[%s274 + $0x2c] sm:$0xf] %v1820
      %1917 = vst [vmem:[%s274 + $0x30] sm:$0xf] %v1821
      %1918 = vst [vmem:[%s274 + $0x34] sm:$0xf] %v1822
      %1919 = vst [vmem:[%s274 + $0x38] sm:$0xf] %v1823
      %1920 = vst [vmem:[%s274 + $0x3c] sm:$0xf] %v1824
      %1921 = vst [vmem:[%s274 + $0x40] sm:$0xf] %v1825
      %1922 = vst [vmem:[%s274 + $0x44] sm:$0xf] %v1826
      %1923 = vst [vmem:[%s274 + $0x48] sm:$0xf] %v1827
      %1924 = vst [vmem:[%s274 + $0x4c] sm:$0xf] %v1828
      %1925 = vst [vmem:[%s274 + $0x50] sm:$0xf] %v1829
      %1926 = vst [vmem:[%s274 + $0x54] sm:$0xf] %v1830
      %1927 = vst [vmem:[%s274 + $0x58] sm:$0xf] %v1831
      %1928 = vst [vmem:[%s274 + $0x5c] sm:$0xf] %v1832
      %1929 = vst [vmem:[%s274 + $0x60] sm:$0xf] %v1833
      %1930 = vst [vmem:[%s274 + $0x64] sm:$0xf] %v1834
      %1931 = vst [vmem:[%s274 + $0x68] sm:$0xf] %v1835
      %1932 = vst [vmem:[%s274 + $0x6c] sm:$0xf] %v1836
      %1933 = vst [vmem:[%s274 + $0x70] sm:$0xf] %v1837
      %1934 = vst [vmem:[%s274 + $0x74] sm:$0xf] %v1838
      %1935 = vst [vmem:[%s274 + $0x78] sm:$0xf] %v1839
      %1936 = vst [vmem:[%s274 + $0x7c] sm:$0xf] %v1840
      %1937 = vst [vmem:[%s274 + $0x80] sm:$0xf] %v1841
      %1938 = vst [vmem:[%s274 + $0x84] sm:$0xf] %v1842
      %1939 = vst [vmem:[%s274 + $0x88] sm:$0xf] %v1843
      %1940 = vst [vmem:[%s274 + $0x8c] sm:$0xf] %v1844
      %1941 = vst [vmem:[%s274 + $0x90] sm:$0xf] %v1845
      %1942 = vst [vmem:[%s274 + $0x94] sm:$0xf] %v1846
      %1943 = vst [vmem:[%s274 + $0x98] sm:$0xf] %v1847
      %1944 = vst [vmem:[%s274 + $0x9c] sm:$0xf] %v1848
      %1945 = vst [vmem:[%s274 + $0xa0] sm:$0xf] %v1849
      %1946 = vst [vmem:[%s274 + $0xa4] sm:$0xf] %v1850
      %1947 = vst [vmem:[%s274 + $0xa8] sm:$0xf] %v1851
      %1948 = vst [vmem:[%s274 + $0xac] sm:$0xf] %v1852
      %1949 = vst [vmem:[%s274 + $0xb0] sm:$0xf] %v1853
      %1950 = vst [vmem:[%s274 + $0xb4] sm:$0xf] %v1854
      %1951 = vst [vmem:[%s274 + $0xb8] sm:$0xf] %v1855
      %1952 = vst [vmem:[%s274 + $0xbc] sm:$0xf] %v1856
      %s1953 = smul.u32 48, %s20
      %p1954 = scmp.lt.s32.totalorder %s19, 3
      %s1955 = scalar_select %p1954, %s19, 3
      %p1956 = scmp.lt.s32.totalorder %s1953, 47
      %s1957 = scalar_select %p1956, %s1953, 47
      %p1958 = scmp.lt.s32.totalorder %s21, 0
      %s1959 = scalar_select %p1958, %s21, 0
      %s1960 = sadd.s32 %s1959, %s1957
      %s1961 = smul.addr %s1955, 48
      %s1962 = sadd.s32 %s1960, %s1961
      %s1963 = smul.addr %s1962, 4
      %s1964 = scalar_lea.vmem %s3, %s1963
      // Predicated region
      $region33: #{generator_forward.6} parent=31 // pred_check
        %p1965 = pneg %p137
      $region34: #{generator_forward.6} parent=31 // pred_check_branch
        %1967 = sbr.rel (%p1965) target = $region36
      $region35: #{generator_forward.6} parent=31 // pred_region
        %s1968 = smul.u32 48, %s20
      $region36: #{generator_forward.6} parent=31 // pred_fallthru
        _
    $region32: #{generator_forward.6} parent=5 // pred_fallthru
      _
    %p1969 = scmp.le.s32.totalorder 2, %s9
    // Predicated region
    $region37: #{generator_forward.6} parent=5 // pred_check
      %p1970 = pneg %p1969
    $region38: #{generator_forward.6} parent=5 // pred_check_branch
      %1972 = sbr.rel (%p1970) target = $region40
    $region39: #{generator_forward.6} parent=5 // pred_region
      %s1973 = ssub.s32 %s9, 2
      // Predicated region
      $region41: #{generator_forward.6} parent=39 // pred_check
        %p1974 = pneg %p143
      $region42: #{generator_forward.6} parent=39 // pred_check_branch
        %1976 = sbr.rel (%p1974) target = $region44
      $region43: #{generator_forward.6} parent=39 // pred_region
        %s1977 = smul.u32 48, %s23
        %p1978 = scmp.lt.s32.totalorder %s22, 3
        %s1979 = scalar_select %p1978, %s22, 3
        %p1980 = scmp.lt.s32.totalorder %s1977, 47
        %s1981 = scalar_select %p1980, %s1977, 47
        %p1982 = scmp.lt.s32.totalorder %s24, 0
        %s1983 = scalar_select %p1982, %s24, 0
        %s1984 = sadd.s32 %s1983, %s1981
        %s1985 = smul.addr %s1979, 48
        %s1986 = sadd.s32 %s1984, %s1985
        %s1987 = smul.addr %s1986, 4
        %s1988 = scalar_lea.vmem %s3, %s1987
      $region44: #{generator_forward.6} parent=39 // pred_fallthru
        _
    $region40: #{generator_forward.6} parent=5 // pred_fallthru
      _
  $region6: #{generator_forward.6} parent=0 // loop_footer
    %s13 = sadd.s32 1, %s9
  $region7: #{generator_forward.6} parent=0 // loop_footer_branch
    %8 = sbr.rel target = $region3
  $region8: #{generator_forward.6} parent=0 // loop_exit
    _

// kernel: generator_forward.7
$region0: #{generator_forward.7}
  #allocation0 [shape = 'u32[]', space=smem, size = 0x4, offset = 0x4, fixed_abs, tag = 'smem constant byte address 0x4 - core index']
  #allocation1 [shape = 'u32[144,128]{1,0:T(1,128)}', space=vmem, size = 0x12000, scoped, tag = 'internal scratch']
  %s0 = inlined_call_operand.vmem [shape: bf16[1,1536,128], index: 0, kind: input, shape index: {}]
  %s1 = inlined_call_operand.vmem [shape: bf16[1,128,16], index: 1, kind: input, shape index: {}]
  %s2 = inlined_call_operand.vmem [shape: f32[1,1536,16], index: 2, kind: output, shape index: {}]
  %s3 = sld [smem:[#allocation0]]
  $region41: #{generator_forward.7} parent=0
    _
  %s5 = ssub.s32 1, %s3
  %s6 = scalar_select 0, %s5, %s3
  loop: start=0, step=1, limit=5
  $region2: #{generator_forward.7} parent=0 // loop_pre_header
    _
  $region3: #{generator_forward.7} parent=0 // loop_header
    %s8 = sphi 0, %s12
    %p9 = scmp.ge.s32.totalorder %s8, 5
    %s15 = sphi 0, %s34
    %s16 = sphi 0, %s30
    %s17 = sphi 0, %s26
    %s18 = sphi 0, %s15
    %s19 = sphi 0, %s16
    %s20 = sphi 0, %s17
    %s21 = sphi 0, %s18
    %s22 = sphi 0, %s19
    %s23 = sphi 0, %s20
    %s39 = sphi 0, %s41
    %s42 = sphi 0, %s39
    %s43 = sphi 0, %s42
    %s59 = sphi 0, %s43
    %s67 = sphi 0, %s69
    %s70 = sphi 0, %s67
    %s71 = sphi 0, %s70
    %s87 = sphi 0, %s71
    %s97 = sphi 0, %s99
    %s100 = sphi 0, %s97
    %s101 = sphi 0, %s100
    %s117 = sphi 0, %s101
  $region4: #{generator_forward.7} parent=0 // loop_header_branch
    %11 = sbr.rel (%p9) target = $region8
  $region5: #{generator_forward.7} parent=0 // loop_body
    %s13 = ssub.s32 %s8, 1
    %s14 = ssub.s32 %s8, 2
    %s24 = sadd.s32 1, %s17
    %p25 = scmp.ge.s32.totalorder %s24, 1
    %s26 = scalar_select %p25, 0, %s24
    %s27 = sadd.s32 1, %s16
    %s28 = scalar_select %p25, %s27, %s16
    %p29 = scmp.ge.s32.totalorder %s28, 3
    %s30 = scalar_select %p29, 0, %s28
    %s31 = sadd.s32 1, %s15
    %s32 = scalar_select %p29, %s31, %s15
    %p33 = scmp.ge.s32.totalorder %s32, 1
    %s34 = scalar_select %p33, 0, %s32
    %s35 = ssub.s32 %s15, %s34
    %s36 = ssub.s32 %s16, %s30
    %s37 = sor.u32 %s35, %s36
    %p38 = scmp.eq.s32.totalorder %s37, 0
    %s40 = sadd.s32 %s39, 1
    %s41 = scalar_select %p38, %s39, %s40
    %p44 = pneg %p38
    %p45 = scmp.eq.s32.totalorder %s8, 2
    %p46 = por %p44, %p45
    %p47 = scmp.ne.s32.totalorder %s39, %s42
    %p48 = scmp.eq.s32.totalorder %s8, 0
    %p49 = por %p47, %p48
    %p50 = scmp.ne.s32.totalorder %s39, %s42
    %p51 = scmp.eq.s32.totalorder %s13, 2
    %p52 = por %p50, %p51
    %p53 = scmp.ne.s32.totalorder %s42, %s43
    %p54 = scmp.eq.s32.totalorder %s13, 0
    %p55 = por %p53, %p54
    %p56 = scmp.ne.s32.totalorder %s42, %s43
    %p57 = scmp.eq.s32.totalorder %s14, 2
    %p58 = por %p56, %p57
    %p60 = scmp.ne.s32.totalorder %s43, %s59
    %p61 = scmp.eq.s32.totalorder %s14, 0
    %p62 = por %p60, %p61
    %s63 = ssub.s32 %s15, %s34
    %s64 = ssub.s32 %s17, %s26
    %s65 = sor.u32 %s63, %s64
    %p66 = scmp.eq.s32.totalorder %s65, 0
    %s68 = sadd.s32 %s67, 1
    %s69 = scalar_select %p66, %s67, %s68
    %p72 = pneg %p66
    %p73 = scmp.eq.s32.totalorder %s8, 2
    %p74 = por %p72, %p73
    %p75 = scmp.ne.s32.totalorder %s67, %s70
    %p76 = scmp.eq.s32.totalorder %s8, 0
    %p77 = por %p75, %p76
    %p78 = scmp.ne.s32.totalorder %s67, %s70
    %p79 = scmp.eq.s32.totalorder %s13, 2
    %p80 = por %p78, %p79
    %p81 = scmp.ne.s32.totalorder %s70, %s71
    %p82 = scmp.eq.s32.totalorder %s13, 0
    %p83 = por %p81, %p82
    %p84 = scmp.ne.s32.totalorder %s70, %s71
    %p85 = scmp.eq.s32.totalorder %s14, 2
    %p86 = por %p84, %p85
    %p88 = scmp.ne.s32.totalorder %s71, %s87
    %p89 = scmp.eq.s32.totalorder %s14, 0
    %p90 = por %p88, %p89
    %s91 = ssub.s32 %s15, %s34
    %s92 = ssub.s32 %s16, %s30
    %s93 = sor.u32 %s91, %s92
    %s94 = ssub.s32 %s17, %s26
    %s95 = sor.u32 %s93, %s94
    %p96 = scmp.eq.s32.totalorder %s95, 0
    %s98 = sadd.s32 %s97, 1
    %s99 = scalar_select %p96, %s97, %s98
    %p102 = pneg %p96
    %p103 = scmp.eq.s32.totalorder %s8, 2
    %p104 = por %p102, %p103
    %p105 = scmp.ne.s32.totalorder %s97, %s100
    %p106 = scmp.eq.s32.totalorder %s8, 0
    %p107 = por %p105, %p106
    %p108 = scmp.ne.s32.totalorder %s97, %s100
    %p109 = scmp.eq.s32.totalorder %s13, 2
    %p110 = por %p108, %p109
    %p111 = scmp.ne.s32.totalorder %s100, %s101
    %p112 = scmp.eq.s32.totalorder %s13, 0
    %p113 = por %p111, %p112
    %p114 = scmp.ne.s32.totalorder %s100, %s101
    %p115 = scmp.eq.s32.totalorder %s14, 2
    %p116 = por %p114, %p115
    %p118 = scmp.ne.s32.totalorder %s101, %s117
    %p119 = scmp.eq.s32.totalorder %s14, 0
    %p120 = por %p118, %p119
    %p121 = scmp.le.s32.totalorder 1, %s8
    %p122 = scmp.lt.s32.totalorder %s8, 4
    %p123 = pnand %p121, %p122
    %p124 = pneg %p123
    // Predicated region
    $region9: #{generator_forward.7} parent=5 // pred_check
      _
    $region10: #{generator_forward.7} parent=5 // pred_check_branch
      %126 = sbr.rel (%p123) target = $region12
    $region11: #{generator_forward.7} parent=5 // pred_region
      %s127 = ssub.s32 %s8, 1
      // Predicated region
      $region13: #{generator_forward.7} parent=11 // pred_check
        %p128 = pneg %p83
      $region14: #{generator_forward.7} parent=11 // pred_check_branch
        %130 = sbr.rel (%p128) target = $region16
      $region15: #{generator_forward.7} parent=11 // pred_region
        %p131 = scmp.lt.s32.totalorder %s18, 0
        %s132 = scalar_select %p131, %s18, 0
        %p133 = scmp.lt.s32.totalorder %s20, 0
        %s134 = scalar_select %p133, %s20, 0
        %s135 = smul.addr %s132, 16
        %s136 = sadd.s32 %s134, %s135
        %s137 = smul.addr %s136, 4
        %s138 = scalar_lea.vmem %s1, %s137
      $region16: #{generator_forward.7} parent=11 // pred_fallthru
        _
    $region12: #{generator_forward.7} parent=5 // pred_fallthru
      _
    %p139 = scmp.lt.s32.totalorder %s8, 3
    // Predicated region
    $region17: #{generator_forward.7} parent=5 // pred_check
      %p140 = pneg %p139
    $region18: #{generator_forward.7} parent=5 // pred_check_branch
      %142 = sbr.rel (%p140) target = $region20
    $region19: #{generator_forward.7} parent=5 // pred_region
      // Predicated region
      $region21: #{generator_forward.7} parent=19 // pred_check
        %p143 = pneg %p49
      $region22: #{generator_forward.7} parent=19 // pred_check_branch
        %145 = sbr.rel (%p143) target = $region24
      $region23: #{generator_forward.7} parent=19 // pred_region
        %s146 = smul.u32 64, %s16
        %p147 = scmp.lt.s32.totalorder %s15, 0
        %s148 = scalar_select %p147, %s15, 0
        %p149 = scmp.lt.s32.totalorder %s146, 191
        %s150 = scalar_select %p149, %s146, 191
        %s151 = smul.addr %s148, 192
        %s152 = sadd.s32 %s150, %s151
        %s153 = smul.addr %s152, 4
        %s154 = scalar_lea.vmem %s0, %s153
        %s155 = smul.u32 64, %s16
      $region24: #{generator_forward.7} parent=19 // pred_fallthru
        _
    $region20: #{generator_forward.7} parent=5 // pred_fallthru
      _
    %p156 = scmp.le.s32.totalorder 1, %s8
    %p157 = scmp.lt.s32.totalorder %s8, 4
    %p158 = pnand %p156, %p157
    %p159 = pneg %p158
    // Predicated region
    $region25: #{generator_forward.7} parent=5 // pred_check
      _
    $region26: #{generator_forward.7} parent=5 // pred_check_branch
      %161 = sbr.rel (%p158) target = $region28
    $region27: #{generator_forward.7} parent=5 // pred_region
      %s162 = ssub.s32 %s8, 1
      %s163 = smul.u32 64, %s19
      %p164 = scmp.lt.s32.totalorder %s18, 0
      %s165 = scalar_select %p164, %s18, 0
      %p166 = scmp.lt.s32.totalorder %s163, 191
      %s167 = scalar_select %p166, %s163, 191
      %s168 = smul.addr %s165, 192
      %s169 = sadd.s32 %s167, %s168
      %s170 = smul.addr %s169, 4
      %s171 = scalar_lea.vmem %s0, %s170
      %p172 = pneg %p55
      %p173 = pneg %p52
      %p174 = scmp.lt.s32.totalorder %s18, 0
      %s175 = scalar_select %p174, %s18, 0
      %p176 = scmp.lt.s32.totalorder %s20, 0
      %s177 = scalar_select %p176, %s20, 0
      %s178 = smul.addr %s175, 16
      %s179 = sadd.s32 %s177, %s178
      %s180 = smul.addr %s179, 4
      %s181 = scalar_lea.vmem %s1, %s180
      %p182 = pneg %p83
      %p183 = pneg %p80
      %p184 = pneg %p113
      %p185 = pneg %p110
      %s186 = smul.u32 64, %s19
      %p187 = scmp.lt.s32.totalorder %s18, 0
      %s188 = scalar_select %p187, %s18, 0
      %p189 = scmp.lt.s32.totalorder %s186, 191
      %s190 = scalar_select %p189, %s186, 191
      %p191 = scmp.lt.s32.totalorder %s20, 0
      %s192 = scalar_select %p191, %s20, 0
      %s193 = sadd.s32 %s192, %s190
      %s194 = smul.addr %s188, 192
      %s195 = sadd.s32 %s193, %s194
      %s196 = smul.addr %s195, 8
      %s197 = scalar_lea.vmem %s2, %s196
      %s198 = smul.u32 64, %s19
      %p199 = scmp.lt.s32.totalorder %s18, 0
      %s200 = scalar_select %p199, %s18, 0
      %p201 = scmp.lt.s32.totalorder %s198, 191
      %s202 = scalar_select %p201, %s198, 191
      %s203 = smul.addr %s200, 192
      %s204 = sadd.s32 %s202, %s203
      %s205 = smul.addr %s204, 4
      %s206 = scalar_lea.vmem %s0, %s205
      %s207 = smul.u32 64, %s19
      %p208 = scmp.lt.s32.totalorder %s18, 0
      %s209 = scalar_select %p208, %s18, 0
      %p210 = scmp.lt.s32.totalorder %s20, 0
      %s211 = scalar_select %p210, %s20, 0
      %s212 = smul.addr %s209, 16
      %s213 = sadd.s32 %s211, %s212
      %s214 = smul.addr %s213, 4
      %s215 = scalar_lea.vmem %s1, %s214
      %s216 = smul.u32 64, %s19
      %p217 = scmp.lt.s32.totalorder %s18, 0
      %s218 = scalar_select %p217, %s18, 0
      %p219 = scmp.lt.s32.totalorder %s216, 191
      %s220 = scalar_select %p219, %s216, 191
      %p221 = scmp.lt.s32.totalorder %s20, 0
      %s222 = scalar_select %p221, %s20, 0
      %s223 = sadd.s32 %s222, %s220
      %s224 = smul.addr %s218, 192
      %s225 = sadd.s32 %s223, %s224
      %s226 = smul.addr %s225, 8
      %s227 = scalar_lea.vmem %s2, %s226
      %s228 = smul.u32 64, %s19
      %v230 = vld [vmem:[%s206] sm:$0xf]
      %v231 = vld [vmem:[%s206 + $0x4] sm:$0xf]
      %v232 = vld [vmem:[%s206 + $0x8] sm:$0xf]
      %v233 = vld [vmem:[%s206 + $0xc] sm:$0xf]
      %v234 = vld [vmem:[%s206 + $0x10] sm:$0xf]
      %v235 = vld [vmem:[%s206 + $0x14] sm:$0xf]
      %v236 = vld [vmem:[%s206 + $0x18] sm:$0xf]
      %v237 = vld [vmem:[%s206 + $0x1c] sm:$0xf]
      %v238 = vld [vmem:[%s206 + $0x20] sm:$0xf]
      %v239 = vld [vmem:[%s206 + $0x24] sm:$0xf]
      %v240 = vld [vmem:[%s206 + $0x28] sm:$0xf]
      %v241 = vld [vmem:[%s206 + $0x2c] sm:$0xf]
      %v242 = vld [vmem:[%s206 + $0x30] sm:$0xf]
      %v243 = vld [vmem:[%s206 + $0x34] sm:$0xf]
      %v244 = vld [vmem:[%s206 + $0x38] sm:$0xf]
      %v245 = vld [vmem:[%s206 + $0x3c] sm:$0xf]
      %v246 = vld [vmem:[%s206 + $0x40] sm:$0xf]
      %v247 = vld [vmem:[%s206 + $0x44] sm:$0xf]
      %v248 = vld [vmem:[%s206 + $0x48] sm:$0xf]
      %v249 = vld [vmem:[%s206 + $0x4c] sm:$0xf]
      %v250 = vld [vmem:[%s206 + $0x50] sm:$0xf]
      %v251 = vld [vmem:[%s206 + $0x54] sm:$0xf]
      %v252 = vld [vmem:[%s206 + $0x58] sm:$0xf]
      %v253 = vld [vmem:[%s206 + $0x5c] sm:$0xf]
      %v254 = vld [vmem:[%s206 + $0x60] sm:$0xf]
      %v255 = vld [vmem:[%s206 + $0x64] sm:$0xf]
      %v256 = vld [vmem:[%s206 + $0x68] sm:$0xf]
      %v257 = vld [vmem:[%s206 + $0x6c] sm:$0xf]
      %v258 = vld [vmem:[%s206 + $0x70] sm:$0xf]
      %v259 = vld [vmem:[%s206 + $0x74] sm:$0xf]
      %v260 = vld [vmem:[%s206 + $0x78] sm:$0xf]
      %v261 = vld [vmem:[%s206 + $0x7c] sm:$0xf]
      %v262 = vld [vmem:[%s206 + $0x80] sm:$0xf]
      %v263 = vld [vmem:[%s206 + $0x84] sm:$0xf]
      %v264 = vld [vmem:[%s206 + $0x88] sm:$0xf]
      %v265 = vld [vmem:[%s206 + $0x8c] sm:$0xf]
      %v266 = vld [vmem:[%s206 + $0x90] sm:$0xf]
      %v267 = vld [vmem:[%s206 + $0x94] sm:$0xf]
      %v268 = vld [vmem:[%s206 + $0x98] sm:$0xf]
      %v269 = vld [vmem:[%s206 + $0x9c] sm:$0xf]
      %v270 = vld [vmem:[%s206 + $0xa0] sm:$0xf]
      %v271 = vld [vmem:[%s206 + $0xa4] sm:$0xf]
      %v272 = vld [vmem:[%s206 + $0xa8] sm:$0xf]
      %v273 = vld [vmem:[%s206 + $0xac] sm:$0xf]
      %v274 = vld [vmem:[%s206 + $0xb0] sm:$0xf]
      %v275 = vld [vmem:[%s206 + $0xb4] sm:$0xf]
      %v276 = vld [vmem:[%s206 + $0xb8] sm:$0xf]
      %v277 = vld [vmem:[%s206 + $0xbc] sm:$0xf]
      %v278 = vld [vmem:[%s206 + $0xc0] sm:$0xf]
      %v279 = vld [vmem:[%s206 + $0xc4] sm:$0xf]
      %v280 = vld [vmem:[%s206 + $0xc8] sm:$0xf]
      %v281 = vld [vmem:[%s206 + $0xcc] sm:$0xf]
      %v282 = vld [vmem:[%s206 + $0xd0] sm:$0xf]
      %v283 = vld [vmem:[%s206 + $0xd4] sm:$0xf]
      %v284 = vld [vmem:[%s206 + $0xd8] sm:$0xf]
      %v285 = vld [vmem:[%s206 + $0xdc] sm:$0xf]
      %v286 = vld [vmem:[%s206 + $0xe0] sm:$0xf]
      %v287 = vld [vmem:[%s206 + $0xe4] sm:$0xf]
      %v288 = vld [vmem:[%s206 + $0xe8] sm:$0xf]
      %v289 = vld [vmem:[%s206 + $0xec] sm:$0xf]
      %v290 = vld [vmem:[%s206 + $0xf0] sm:$0xf]
      %v291 = vld [vmem:[%s206 + $0xf4] sm:$0xf]
      %v292 = vld [vmem:[%s206 + $0xf8] sm:$0xf]
      %v293 = vld [vmem:[%s206 + $0xfc] sm:$0xf]
      %v294 = vld [vmem:[%s215] sm:$0xf]
      %v295 = vld [vmem:[%s215 + $0x4] sm:$0xf]
      %v296 = vld [vmem:[%s215 + $0x8] sm:$0xf]
      %v297 = vld [vmem:[%s215 + $0xc] sm:$0xf]
      %v298 = vld [vmem:[%s215 + $0x10] sm:$0xf]
      %v299 = vld [vmem:[%s215 + $0x14] sm:$0xf]
      %v300 = vld [vmem:[%s215 + $0x18] sm:$0xf]
      %v301 = vld [vmem:[%s215 + $0x1c] sm:$0xf]
      %v302 = vld [vmem:[%s215 + $0x20] sm:$0xf]
      %v303 = vld [vmem:[%s215 + $0x24] sm:$0xf]
      %v304 = vld [vmem:[%s215 + $0x28] sm:$0xf]
      %v305 = vld [vmem:[%s215 + $0x2c] sm:$0xf]
      %v306 = vld [vmem:[%s215 + $0x30] sm:$0xf]
      %v307 = vld [vmem:[%s215 + $0x34] sm:$0xf]
      %v308 = vld [vmem:[%s215 + $0x38] sm:$0xf]
      %v309 = vld [vmem:[%s215 + $0x3c] sm:$0xf]
      %v374 = vunpack.c.l.b16 %v230
      %v375 = vunpack.c.l.b16 %v231
      %v376 = vunpack.c.l.b16 %v232
      %v377 = vunpack.c.l.b16 %v233
      %v378 = vunpack.c.l.b16 %v234
      %v379 = vunpack.c.l.b16 %v235
      %v380 = vunpack.c.l.b16 %v236
      %v381 = vunpack.c.l.b16 %v237
      %v382 = vunpack.c.l.b16 %v238
      %v383 = vunpack.c.l.b16 %v239
      %v384 = vunpack.c.l.b16 %v240
      %v385 = vunpack.c.l.b16 %v241
      %v386 = vunpack.c.l.b16 %v242
      %v387 = vunpack.c.l.b16 %v243
      %v388 = vunpack.c.l.b16 %v244
      %v389 = vunpack.c.l.b16 %v245
      %v390 = vunpack.c.l.b16 %v246
      %v391 = vunpack.c.l.b16 %v247
      %v392 = vunpack.c.l.b16 %v248
      %v393 = vunpack.c.l.b16 %v249
      %v394 = vunpack.c.l.b16 %v250
      %v395 = vunpack.c.l.b16 %v251
      %v396 = vunpack.c.l.b16 %v252
      %v397 = vunpack.c.l.b16 %v253
      %v398 = vunpack.c.l.b16 %v254
      %v399 = vunpack.c.l.b16 %v255
      %v400 = vunpack.c.l.b16 %v256
      %v401 = vunpack.c.l.b16 %v257
      %v402 = vunpack.c.l.b16 %v258
      %v403 = vunpack.c.l.b16 %v259
      %v404 = vunpack.c.l.b16 %v260
      %v405 = vunpack.c.l.b16 %v261
      %v406 = vunpack.c.l.b16 %v262
      %v407 = vunpack.c.l.b16 %v263
      %v408 = vunpack.c.l.b16 %v264
      %v409 = vunpack.c.l.b16 %v265
      %v410 = vunpack.c.l.b16 %v266
      %v411 = vunpack.c.l.b16 %v267
      %v412 = vunpack.c.l.b16 %v268
      %v413 = vunpack.c.l.b16 %v269
      %v414 = vunpack.c.l.b16 %v270
      %v415 = vunpack.c.l.b16 %v271
      %v416 = vunpack.c.l.b16 %v272
      %v417 = vunpack.c.l.b16 %v273
      %v418 = vunpack.c.l.b16 %v274
      %v419 = vunpack.c.l.b16 %v275
      %v420 = vunpack.c.l.b16 %v276
      %v421 = vunpack.c.l.b16 %v277
      %v422 = vunpack.c.l.b16 %v278
      %v423 = vunpack.c.l.b16 %v279
      %v424 = vunpack.c.l.b16 %v280
      %v425 = vunpack.c.l.b16 %v281
      %v426 = vunpack.c.l.b16 %v282
      %v427 = vunpack.c.l.b16 %v283
      %v428 = vunpack.c.l.b16 %v284
      %v429 = vunpack.c.l.b16 %v285
      %v430 = vunpack.c.l.b16 %v286
      %v431 = vunpack.c.l.b16 %v287
      %v432 = vunpack.c.l.b16 %v288
      %v433 = vunpack.c.l.b16 %v289
      %v434 = vunpack.c.l.b16 %v290
      %v435 = vunpack.c.l.b16 %v291
      %v436 = vunpack.c.l.b16 %v292
      %v437 = vunpack.c.l.b16 %v293
      %v438 = vpack.c.b16 %v375, %v374
      %v439 = vpack.c.b16 %v377, %v376
      %v440 = vpack.c.b16 %v379, %v378
      %v441 = vpack.c.b16 %v381, %v380
      %v442 = vpack.c.b16 %v383, %v382
      %v443 = vpack.c.b16 %v385, %v384
      %v444 = vpack.c.b16 %v387, %v386
      %v445 = vpack.c.b16 %v389, %v388
      %v446 = vpack.c.b16 %v391, %v390
      %v447 = vpack.c.b16 %v393, %v392
      %v448 = vpack.c.b16 %v395, %v394
      %v449 = vpack.c.b16 %v397, %v396
      %v450 = vpack.c.b16 %v399, %v398
      %v451 = vpack.c.b16 %v401, %v400
      %v452 = vpack.c.b16 %v403, %v402
      %v453 = vpack.c.b16 %v405, %v404
      %v454 = vpack.c.b16 %v407, %v406
      %v455 = vpack.c.b16 %v409, %v408
      %v456 = vpack.c.b16 %v411, %v410
      %v457 = vpack.c.b16 %v413, %v412
      %v458 = vpack.c.b16 %v415, %v414
      %v459 = vpack.c.b16 %v417, %v416
      %v460 = vpack.c.b16 %v419, %v418
      %v461 = vpack.c.b16 %v421, %v420
      %v462 = vpack.c.b16 %v423, %v422
      %v463 = vpack.c.b16 %v425, %v424
      %v464 = vpack.c.b16 %v427, %v426
      %v465 = vpack.c.b16 %v429, %v428
      %v466 = vpack.c.b16 %v431, %v430
      %v467 = vpack.c.b16 %v433, %v432
      %v468 = vpack.c.b16 %v435, %v434
      %v469 = vpack.c.b16 %v437, %v436
      %v518 = vunpack.c.l.b16 %v294
      %v519 = vunpack.c.l.b16 %v295
      %v520 = vunpack.c.l.b16 %v296
      %v521 = vunpack.c.l.b16 %v297
      %v522 = vunpack.c.l.b16 %v298
      %v523 = vunpack.c.l.b16 %v299
      %v524 = vunpack.c.l.b16 %v300
      %v525 = vunpack.c.l.b16 %v301
      %v526 = vunpack.c.l.b16 %v302
      %v527 = vunpack.c.l.b16 %v303
      %v528 = vunpack.c.l.b16 %v304
      %v529 = vunpack.c.l.b16 %v305
      %v530 = vunpack.c.l.b16 %v306
      %v531 = vunpack.c.l.b16 %v307
      %v532 = vunpack.c.l.b16 %v308
      %v533 = vunpack.c.l.b16 %v309
      %v534 = vpack.c.b16 %v519, %v518
      %v535 = vpack.c.b16 %v521, %v520
      %v536 = vpack.c.b16 %v523, %v522
      %v537 = vpack.c.b16 %v525, %v524
      %v538 = vpack.c.b16 %v527, %v526
      %v539 = vpack.c.b16 %v529, %v528
      %v540 = vpack.c.b16 %v531, %v530
      %v541 = vpack.c.b16 %v533, %v532
      %550 = vmatprep.subr.bf16.mxu0 0
      %551 = vmatpush1.bf16.msra.mxu0 %v541
      %552 = vmatprep.subr.bf16.mxu0 0
      %553 = vmatpush1.bf16.msra.mxu0 %v540
      %554 = vmatprep.subr.bf16.mxu0 0
      %555 = vmatpush1.bf16.msra.mxu0 %v539
      %556 = vmatprep.subr.bf16.mxu0 0
      %557 = vmatpush1.bf16.msra.mxu0 %v538
      %558 = vmatprep.subr.bf16.mxu0 0
      %559 = vmatpush1.bf16.msra.mxu0 %v537
      %560 = vmatprep.subr.bf16.mxu0 0
      %561 = vmatpush1.bf16.msra.mxu0 %v536
      %562 = vmatprep.subr.bf16.mxu0 0
      %563 = vmatpush1.bf16.msra.mxu0 %v535
      %564 = vmatprep.subr.bf16.mxu0 0
      %565 = vmatpush1.bf16.msra.mxu0 %v534
      %566 = vmatprep.subr.bf16.mxu0 0
      %567 = vmatpush2.bf16.msra.mxu0 0
      %568 = vmatprep.subr.bf16.mxu0 0
      %569 = vmatpush2.bf16.msra.mxu0 0
      %570 = vmatprep.subr.bf16.mxu0 0
      %571 = vmatpush2.bf16.msra.mxu0 0
      %572 = vmatprep.subr.bf16.mxu0 0
      %573 = vmatpush2.bf16.msra.mxu0 0
      %574 = vmatprep.subr.bf16.mxu0 0
      %575 = vmatpush2.bf16.msra.mxu0 0
      %576 = vmatprep.subr.bf16.mxu0 0
      %577 = vmatpush2.bf16.msra.mxu0 0
      %578 = vmatprep.subr.bf16.mxu0 0
      %579 = vmatpush2.bf16.msra.mxu0 0
      %580 = vmatprep.subr.bf16.mxu0 0
      %581 = vmatpush2.bf16.msra.mxu0 0
      %582 = vmatprep.mubr.bf16.mxu0 0
      %583 = vmatmul.mubr.bf16.gmra.mxu0 %v438
      %v584 = vpop.f32.mrf.mxu0
      %v585 = vadd.f32 0.0, %v584
      %v586 = vpop.f32.mrf.mxu0
      %v587 = vpop.f32.mrf.mxu0
      %v588 = vadd.f32 0.0, %v587
      %v589 = vpop.f32.mrf.mxu0
      %590 = vmatprep.mubr.bf16.mxu0 0
      %591 = vmatmul.mubr.bf16.gmra.mxu0 %v439
      %v592 = vpop.f32.mrf.mxu0
      %v593 = vadd.f32 0.0, %v592
      %v594 = vpop.f32.mrf.mxu0
      %v595 = vpop.f32.mrf.mxu0
      %v596 = vadd.f32 0.0, %v595
      %v597 = vpop.f32.mrf.mxu0
      %598 = vmatprep.mubr.bf16.mxu0 0
      %599 = vmatmul.mubr.bf16.gmra.mxu0 %v440
      %v600 = vpop.f32.mrf.mxu0
      %v601 = vadd.f32 0.0, %v600
      %v602 = vpop.f32.mrf.mxu0
      %v603 = vpop.f32.mrf.mxu0
      %v604 = vadd.f32 0.0, %v603
      %v605 = vpop.f32.mrf.mxu0
      %606 = vmatprep.mubr.bf16.mxu0 0
      %607 = vmatmul.mubr.bf16.gmra.mxu0 %v441
      %v608 = vpop.f32.mrf.mxu0
      %v609 = vadd.f32 0.0, %v608
      %v610 = vpop.f32.mrf.mxu0
      %v611 = vpop.f32.mrf.mxu0
      %v612 = vadd.f32 0.0, %v611
      %v613 = vpop.f32.mrf.mxu0
      %614 = vmatprep.mubr.bf16.mxu0 0
      %615 = vmatmul.mubr.bf16.gmra.mxu0 %v442
      %v616 = vpop.f32.mrf.mxu0
      %v617 = vadd.f32 0.0, %v616
      %v618 = vpop.f32.mrf.mxu0
      %v619 = vpop.f32.mrf.mxu0
      %v620 = vadd.f32 0.0, %v619
      %v621 = vpop.f32.mrf.mxu0
      %622 = vmatprep.mubr.bf16.mxu0 0
      %623 = vmatmul.mubr.bf16.gmra.mxu0 %v443
      %v624 = vpop.f32.mrf.mxu0
      %v625 = vadd.f32 0.0, %v624
      %v626 = vpop.f32.mrf.mxu0
      %v627 = vpop.f32.mrf.mxu0
      %v628 = vadd.f32 0.0, %v627
      %v629 = vpop.f32.mrf.mxu0
      %630 = vmatprep.mubr.bf16.mxu0 0
      %631 = vmatmul.mubr.bf16.gmra.mxu0 %v444
      %v632 = vpop.f32.mrf.mxu0
      %v633 = vadd.f32 0.0, %v632
      %v634 = vpop.f32.mrf.mxu0
      %v635 = vpop.f32.mrf.mxu0
      %v636 = vadd.f32 0.0, %v635
      %v637 = vpop.f32.mrf.mxu0
      %638 = vmatprep.mubr.bf16.mxu0 0
      %639 = vmatmul.mubr.bf16.gmra.mxu0 %v445
      %v640 = vpop.f32.mrf.mxu0
      %v641 = vadd.f32 0.0, %v640
      %v642 = vpop.f32.mrf.mxu0
      %v643 = vpop.f32.mrf.mxu0
      %v644 = vadd.f32 0.0, %v643
      %v645 = vpop.f32.mrf.mxu0
      %646 = vmatprep.mubr.bf16.mxu0 0
      %647 = vmatmul.mubr.bf16.gmra.mxu0 %v446
      %v648 = vpop.f32.mrf.mxu0
      %v649 = vadd.f32 0.0, %v648
      %v650 = vpop.f32.mrf.mxu0
      %v651 = vpop.f32.mrf.mxu0
      %v652 = vadd.f32 0.0, %v651
      %v653 = vpop.f32.mrf.mxu0
      %654 = vmatprep.mubr.bf16.mxu0 0
      %655 = vmatmul.mubr.bf16.gmra.mxu0 %v447
      %v656 = vpop.f32.mrf.mxu0
      %v657 = vadd.f32 0.0, %v656
      %v658 = vpop.f32.mrf.mxu0
      %v659 = vpop.f32.mrf.mxu0
      %v660 = vadd.f32 0.0, %v659
      %v661 = vpop.f32.mrf.mxu0
      %662 = vmatprep.mubr.bf16.mxu0 0
      %663 = vmatmul.mubr.bf16.gmra.mxu0 %v448
      %v664 = vpop.f32.mrf.mxu0
      %v665 = vadd.f32 0.0, %v664
      %v666 = vpop.f32.mrf.mxu0
      %v667 = vpop.f32.mrf.mxu0
      %v668 = vadd.f32 0.0, %v667
      %v669 = vpop.f32.mrf.mxu0
      %670 = vmatprep.mubr.bf16.mxu0 0
      %671 = vmatmul.mubr.bf16.gmra.mxu0 %v449
      %v672 = vpop.f32.mrf.mxu0
      %v673 = vadd.f32 0.0, %v672
      %v674 = vpop.f32.mrf.mxu0
      %v675 = vpop.f32.mrf.mxu0
      %v676 = vadd.f32 0.0, %v675
      %v677 = vpop.f32.mrf.mxu0
      %678 = vmatprep.mubr.bf16.mxu0 0
      %679 = vmatmul.mubr.bf16.gmra.mxu0 %v450
      %v680 = vpop.f32.mrf.mxu0
      %v681 = vadd.f32 0.0, %v680
      %v682 = vpop.f32.mrf.mxu0
      %v683 = vpop.f32.mrf.mxu0
      %v684 = vadd.f32 0.0, %v683
      %v685 = vpop.f32.mrf.mxu0
      %686 = vmatprep.mubr.bf16.mxu0 0
      %687 = vmatmul.mubr.bf16.gmra.mxu0 %v451
      %v688 = vpop.f32.mrf.mxu0
      %v689 = vadd.f32 0.0, %v688
      %v690 = vpop.f32.mrf.mxu0
      %v691 = vpop.f32.mrf.mxu0
      %v692 = vadd.f32 0.0, %v691
      %v693 = vpop.f32.mrf.mxu0
      %694 = vmatprep.mubr.bf16.mxu0 0
      %695 = vmatmul.mubr.bf16.gmra.mxu0 %v452
      %v696 = vpop.f32.mrf.mxu0
      %v697 = vadd.f32 0.0, %v696
      %v698 = vpop.f32.mrf.mxu0
      %v699 = vpop.f32.mrf.mxu0
      %v700 = vadd.f32 0.0, %v699
      %v701 = vpop.f32.mrf.mxu0
      %702 = vmatprep.mubr.bf16.mxu0 0
      %703 = vmatmul.mubr.bf16.gmra.mxu0 %v453
      %v704 = vpop.f32.mrf.mxu0
      %v705 = vadd.f32 0.0, %v704
      %v706 = vpop.f32.mrf.mxu0
      %v707 = vpop.f32.mrf.mxu0
      %v708 = vadd.f32 0.0, %v707
      %v709 = vpop.f32.mrf.mxu0
      %710 = vmatprep.mubr.bf16.mxu0 0
      %711 = vmatmul.mubr.bf16.gmra.mxu0 %v454
      %v712 = vpop.f32.mrf.mxu0
      %v713 = vadd.f32 0.0, %v712
      %v714 = vpop.f32.mrf.mxu0
      %v715 = vpop.f32.mrf.mxu0
      %v716 = vadd.f32 0.0, %v715
      %v717 = vpop.f32.mrf.mxu0
      %718 = vmatprep.mubr.bf16.mxu0 0
      %719 = vmatmul.mubr.bf16.gmra.mxu0 %v455
      %v720 = vpop.f32.mrf.mxu0
      %v721 = vadd.f32 0.0, %v720
      %v722 = vpop.f32.mrf.mxu0
      %v723 = vpop.f32.mrf.mxu0
      %v724 = vadd.f32 0.0, %v723
      %v725 = vpop.f32.mrf.mxu0
      %726 = vmatprep.mubr.bf16.mxu0 0
      %727 = vmatmul.mubr.bf16.gmra.mxu0 %v456
      %v728 = vpop.f32.mrf.mxu0
      %v729 = vadd.f32 0.0, %v728
      %v730 = vpop.f32.mrf.mxu0
      %v731 = vpop.f32.mrf.mxu0
      %v732 = vadd.f32 0.0, %v731
      %v733 = vpop.f32.mrf.mxu0
      %734 = vmatprep.mubr.bf16.mxu0 0
      %735 = vmatmul.mubr.bf16.gmra.mxu0 %v457
      %v736 = vpop.f32.mrf.mxu0
      %v737 = vadd.f32 0.0, %v736
      %v738 = vpop.f32.mrf.mxu0
      %v739 = vpop.f32.mrf.mxu0
      %v740 = vadd.f32 0.0, %v739
      %v741 = vpop.f32.mrf.mxu0
      %742 = vmatprep.mubr.bf16.mxu0 0
      %743 = vmatmul.mubr.bf16.gmra.mxu0 %v458
      %v744 = vpop.f32.mrf.mxu0
      %v745 = vadd.f32 0.0, %v744
      %v746 = vpop.f32.mrf.mxu0
      %v747 = vpop.f32.mrf.mxu0
      %v748 = vadd.f32 0.0, %v747
      %v749 = vpop.f32.mrf.mxu0
      %750 = vmatprep.mubr.bf16.mxu0 0
      %751 = vmatmul.mubr.bf16.gmra.mxu0 %v459
      %v752 = vpop.f32.mrf.mxu0
      %v753 = vadd.f32 0.0, %v752
      %v754 = vpop.f32.mrf.mxu0
      %v755 = vpop.f32.mrf.mxu0
      %v756 = vadd.f32 0.0, %v755
      %v757 = vpop.f32.mrf.mxu0
      %758 = vmatprep.mubr.bf16.mxu0 0
      %759 = vmatmul.mubr.bf16.gmra.mxu0 %v460
      %v760 = vpop.f32.mrf.mxu0
      %v761 = vadd.f32 0.0, %v760
      %v762 = vpop.f32.mrf.mxu0
      %v763 = vpop.f32.mrf.mxu0
      %v764 = vadd.f32 0.0, %v763
      %v765 = vpop.f32.mrf.mxu0
      %766 = vmatprep.mubr.bf16.mxu0 0
      %767 = vmatmul.mubr.bf16.gmra.mxu0 %v461
      %v768 = vpop.f32.mrf.mxu0
      %v769 = vadd.f32 0.0, %v768
      %v770 = vpop.f32.mrf.mxu0
      %v771 = vpop.f32.mrf.mxu0
      %v772 = vadd.f32 0.0, %v771
      %v773 = vpop.f32.mrf.mxu0
      %774 = vmatprep.mubr.bf16.mxu0 0
      %775 = vmatmul.mubr.bf16.gmra.mxu0 %v462
      %v776 = vpop.f32.mrf.mxu0
      %v777 = vadd.f32 0.0, %v776
      %v778 = vpop.f32.mrf.mxu0
      %v779 = vpop.f32.mrf.mxu0
      %v780 = vadd.f32 0.0, %v779
      %v781 = vpop.f32.mrf.mxu0
      %782 = vmatprep.mubr.bf16.mxu0 0
      %783 = vmatmul.mubr.bf16.gmra.mxu0 %v463
      %v784 = vpop.f32.mrf.mxu0
      %v785 = vadd.f32 0.0, %v784
      %v786 = vpop.f32.mrf.mxu0
      %v787 = vpop.f32.mrf.mxu0
      %v788 = vadd.f32 0.0, %v787
      %v789 = vpop.f32.mrf.mxu0
      %790 = vmatprep.mubr.bf16.mxu0 0
      %791 = vmatmul.mubr.bf16.gmra.mxu0 %v464
      %v792 = vpop.f32.mrf.mxu0
      %v793 = vadd.f32 0.0, %v792
      %v794 = vpop.f32.mrf.mxu0
      %v795 = vpop.f32.mrf.mxu0
      %v796 = vadd.f32 0.0, %v795
      %v797 = vpop.f32.mrf.mxu0
      %798 = vmatprep.mubr.bf16.mxu0 0
      %799 = vmatmul.mubr.bf16.gmra.mxu0 %v465
      %v800 = vpop.f32.mrf.mxu0
      %v801 = vadd.f32 0.0, %v800
      %v802 = vpop.f32.mrf.mxu0
      %v803 = vpop.f32.mrf.mxu0
      %v804 = vadd.f32 0.0, %v803
      %v805 = vpop.f32.mrf.mxu0
      %806 = vmatprep.mubr.bf16.mxu0 0
      %807 = vmatmul.mubr.bf16.gmra.mxu0 %v466
      %v808 = vpop.f32.mrf.mxu0
      %v809 = vadd.f32 0.0, %v808
      %v810 = vpop.f32.mrf.mxu0
      %v811 = vpop.f32.mrf.mxu0
      %v812 = vadd.f32 0.0, %v811
      %v813 = vpop.f32.mrf.mxu0
      %814 = vmatprep.mubr.bf16.mxu0 0
      %815 = vmatmul.mubr.bf16.gmra.mxu0 %v467
      %v816 = vpop.f32.mrf.mxu0
      %v817 = vadd.f32 0.0, %v816
      %v818 = vpop.f32.mrf.mxu0
      %v819 = vpop.f32.mrf.mxu0
      %v820 = vadd.f32 0.0, %v819
      %v821 = vpop.f32.mrf.mxu0
      %822 = vmatprep.mubr.bf16.mxu0 0
      %823 = vmatmul.mubr.bf16.gmra.mxu0 %v468
      %v824 = vpop.f32.mrf.mxu0
      %v825 = vadd.f32 0.0, %v824
      %v826 = vpop.f32.mrf.mxu0
      %v827 = vpop.f32.mrf.mxu0
      %v828 = vadd.f32 0.0, %v827
      %v829 = vpop.f32.mrf.mxu0
      %830 = vmatprep.mubr.bf16.mxu0 0
      %831 = vmatmul.mubr.bf16.gmra.mxu0 %v469
      %v832 = vpop.f32.mrf.mxu0
      %v833 = vadd.f32 0.0, %v832
      %v834 = vpop.f32.mrf.mxu0
      %v835 = vpop.f32.mrf.mxu0
      %v836 = vadd.f32 0.0, %v835
      %v837 = vpop.f32.mrf.mxu0
      %838 = vdwg.mxu0
      %vm839 = vcmask 130048
      %840 = vst.msk [vmem:[%s227] sm:$0xff] %vm839, %v585
      %841 = vst.msk [vmem:[%s227 + $0x8] sm:$0xff] %vm839, %v588
      %842 = vst.msk [vmem:[%s227 + $0x10] sm:$0xff] %vm839, %v593
      %843 = vst.msk [vmem:[%s227 + $0x18] sm:$0xff] %vm839, %v596
      %844 = vst.msk [vmem:[%s227 + $0x20] sm:$0xff] %vm839, %v601
      %845 = vst.msk [vmem:[%s227 + $0x28] sm:$0xff] %vm839, %v604
      %846 = vst.msk [vmem:[%s227 + $0x30] sm:$0xff] %vm839, %v609
      %847 = vst.msk [vmem:[%s227 + $0x38] sm:$0xff] %vm839, %v612
      %848 = vst.msk [vmem:[%s227 + $0x40] sm:$0xff] %vm839, %v617
      %849 = vst.msk [vmem:[%s227 + $0x48] sm:$0xff] %vm839, %v620
      %850 = vst.msk [vmem:[%s227 + $0x50] sm:$0xff] %vm839, %v625
      %851 = vst.msk [vmem:[%s227 + $0x58] sm:$0xff] %vm839, %v628
      %852 = vst.msk [vmem:[%s227 + $0x60] sm:$0xff] %vm839, %v633
      %853 = vst.msk [vmem:[%s227 + $0x68] sm:$0xff] %vm839, %v636
      %854 = vst.msk [vmem:[%s227 + $0x70] sm:$0xff] %vm839, %v641
      %855 = vst.msk [vmem:[%s227 + $0x78] sm:$0xff] %vm839, %v644
      %856 = vst.msk [vmem:[%s227 + $0x80] sm:$0xff] %vm839, %v649
      %857 = vst.msk [vmem:[%s227 + $0x88] sm:$0xff] %vm839, %v652
      %858 = vst.msk [vmem:[%s227 + $0x90] sm:$0xff] %vm839, %v657
      %859 = vst.msk [vmem:[%s227 + $0x98] sm:$0xff] %vm839, %v660
      %860 = vst.msk [vmem:[%s227 + $0xa0] sm:$0xff] %vm839, %v665
      %861 = vst.msk [vmem:[%s227 + $0xa8] sm:$0xff] %vm839, %v668
      %862 = vst.msk [vmem:[%s227 + $0xb0] sm:$0xff] %vm839, %v673
      %863 = vst.msk [vmem:[%s227 + $0xb8] sm:$0xff] %vm839, %v676
      %864 = vst.msk [vmem:[%s227 + $0xc0] sm:$0xff] %vm839, %v681
      %865 = vst.msk [vmem:[%s227 + $0xc8] sm:$0xff] %vm839, %v684
      %866 = vst.msk [vmem:[%s227 + $0xd0] sm:$0xff] %vm839, %v689
      %867 = vst.msk [vmem:[%s227 + $0xd8] sm:$0xff] %vm839, %v692
      %868 = vst.msk [vmem:[%s227 + $0xe0] sm:$0xff] %vm839, %v697
      %869 = vst.msk [vmem:[%s227 + $0xe8] sm:$0xff] %vm839, %v700
      %870 = vst.msk [vmem:[%s227 + $0xf0] sm:$0xff] %vm839, %v705
      %871 = vst.msk [vmem:[%s227 + $0xf8] sm:$0xff] %vm839, %v708
      %872 = vst.msk [vmem:[%s227 + $0x100] sm:$0xff] %vm839, %v713
      %873 = vst.msk [vmem:[%s227 + $0x108] sm:$0xff] %vm839, %v716
      %874 = vst.msk [vmem:[%s227 + $0x110] sm:$0xff] %vm839, %v721
      %875 = vst.msk [vmem:[%s227 + $0x118] sm:$0xff] %vm839, %v724
      %876 = vst.msk [vmem:[%s227 + $0x120] sm:$0xff] %vm839, %v729
      %877 = vst.msk [vmem:[%s227 + $0x128] sm:$0xff] %vm839, %v732
      %878 = vst.msk [vmem:[%s227 + $0x130] sm:$0xff] %vm839, %v737
      %879 = vst.msk [vmem:[%s227 + $0x138] sm:$0xff] %vm839, %v740
      %880 = vst.msk [vmem:[%s227 + $0x140] sm:$0xff] %vm839, %v745
      %881 = vst.msk [vmem:[%s227 + $0x148] sm:$0xff] %vm839, %v748
      %882 = vst.msk [vmem:[%s227 + $0x150] sm:$0xff] %vm839, %v753
      %883 = vst.msk [vmem:[%s227 + $0x158] sm:$0xff] %vm839, %v756
      %884 = vst.msk [vmem:[%s227 + $0x160] sm:$0xff] %vm839, %v761
      %885 = vst.msk [vmem:[%s227 + $0x168] sm:$0xff] %vm839, %v764
      %886 = vst.msk [vmem:[%s227 + $0x170] sm:$0xff] %vm839, %v769
      %887 = vst.msk [vmem:[%s227 + $0x178] sm:$0xff] %vm839, %v772
      %888 = vst.msk [vmem:[%s227 + $0x180] sm:$0xff] %vm839, %v777
      %889 = vst.msk [vmem:[%s227 + $0x188] sm:$0xff] %vm839, %v780
      %890 = vst.msk [vmem:[%s227 + $0x190] sm:$0xff] %vm839, %v785
      %891 = vst.msk [vmem:[%s227 + $0x198] sm:$0xff] %vm839, %v788
      %892 = vst.msk [vmem:[%s227 + $0x1a0] sm:$0xff] %vm839, %v793
      %893 = vst.msk [vmem:[%s227 + $0x1a8] sm:$0xff] %vm839, %v796
      %894 = vst.msk [vmem:[%s227 + $0x1b0] sm:$0xff] %vm839, %v801
      %895 = vst.msk [vmem:[%s227 + $0x1b8] sm:$0xff] %vm839, %v804
      %896 = vst.msk [vmem:[%s227 + $0x1c0] sm:$0xff] %vm839, %v809
      %897 = vst.msk [vmem:[%s227 + $0x1c8] sm:$0xff] %vm839, %v812
      %898 = vst.msk [vmem:[%s227 + $0x1d0] sm:$0xff] %vm839, %v817
      %899 = vst.msk [vmem:[%s227 + $0x1d8] sm:$0xff] %vm839, %v820
      %900 = vst.msk [vmem:[%s227 + $0x1e0] sm:$0xff] %vm839, %v825
      %901 = vst.msk [vmem:[%s227 + $0x1e8] sm:$0xff] %vm839, %v828
      %902 = vst.msk [vmem:[%s227 + $0x1f0] sm:$0xff] %vm839, %v833
      %903 = vst.msk [vmem:[%s227 + $0x1f8] sm:$0xff] %vm839, %v836
      %s904 = smul.u32 64, %s19
      %p905 = scmp.lt.s32.totalorder %s18, 0
      %s906 = scalar_select %p905, %s18, 0
      %p907 = scmp.lt.s32.totalorder %s904, 191
      %s908 = scalar_select %p907, %s904, 191
      %p909 = scmp.lt.s32.totalorder %s20, 0
      %s910 = scalar_select %p909, %s20, 0
      %s911 = sadd.s32 %s910, %s908
      %s912 = smul.addr %s906, 192
      %s913 = sadd.s32 %s911, %s912
      %s914 = smul.addr %s913, 8
      %s915 = scalar_lea.vmem %s2, %s914
      // Predicated region
      $region29: #{generator_forward.7} parent=27 // pred_check
        %p916 = pneg %p110
      $region30: #{generator_forward.7} parent=27 // pred_check_branch
        %918 = sbr.rel (%p916) target = $region32
      $region31: #{generator_forward.7} parent=27 // pred_region
        %s919 = smul.u32 64, %s19
      $region32: #{generator_forward.7} parent=27 // pred_fallthru
        _
    $region28: #{generator_forward.7} parent=5 // pred_fallthru
      _
    %p920 = scmp.le.s32.totalorder 2, %s8
    // Predicated region
    $region33: #{generator_forward.7} parent=5 // pred_check
      %p921 = pneg %p920
    $region34: #{generator_forward.7} parent=5 // pred_check_branch
      %923 = sbr.rel (%p921) target = $region36
    $region35: #{generator_forward.7} parent=5 // pred_region
      %s924 = ssub.s32 %s8, 2
      // Predicated region
      $region37: #{generator_forward.7} parent=35 // pred_check
        %p925 = pneg %p116
      $region38: #{generator_forward.7} parent=35 // pred_check_branch
        %927 = sbr.rel (%p925) target = $region40
      $region39: #{generator_forward.7} parent=35 // pred_region
        %s928 = smul.u32 64, %s22
        %p929 = scmp.lt.s32.totalorder %s21, 0
        %s930 = scalar_select %p929, %s21, 0
        %p931 = scmp.lt.s32.totalorder %s928, 191
        %s932 = scalar_select %p931, %s928, 191
        %p933 = scmp.lt.s32.totalorder %s23, 0
        %s934 = scalar_select %p933, %s23, 0
        %s935 = sadd.s32 %s934, %s932
        %s936 = smul.addr %s930, 192
        %s937 = sadd.s32 %s935, %s936
        %s938 = smul.addr %s937, 8
        %s939 = scalar_lea.vmem %s2, %s938
      $region40: #{generator_forward.7} parent=35 // pred_fallthru
        _
    $region36: #{generator_forward.7} parent=5 // pred_fallthru
      _
  $region6: #{generator_forward.7} parent=0 // loop_footer
    %s12 = sadd.s32 1, %s8
  $region7: #{generator_forward.7} parent=0 // loop_footer_branch
    %7 = sbr.rel target = $region3
  $region8: #{generator_forward.7} parent=0 // loop_exit
    _

</llo_original>
